<compile_context>
chip_gen: v6e
topology: v6e:2x2x1
jax: 0.10.0
libtpu: 0.0.40
codegen_flags: <defaults>
</compile_context>

<pallas_src>
import jax
import jax.numpy as jnp
from jax.experimental import pallas as pl
from jax.experimental.pallas import tpu as pltpu

CP = 8  # conv3 output channels padded to one sublane tile (3 -> 8)


# ---------------------------------------------------------------------------
# Fused conv1 -> conv2 -> BN(batch stats) -> ReLU -> conv3 kernel.
# ---------------------------------------------------------------------------
def cnn_pallas_fused(xcol, w1, b1, w2, b2, gamma, beta, w3t, b3, *, N, H, W):
    M, K1 = xcol.shape          # M = N*H*W, K1 = 9*Cin
    CH = w1.shape[1]            # hidden channels (64)
    eps = 1e-5

    b1r = b1.reshape(1, CH).astype(jnp.float32)
    b2r = b2.reshape(1, CH).astype(jnp.float32)
    gr = gamma.reshape(1, CH).astype(jnp.float32)
    btr = beta.reshape(1, CH).astype(jnp.float32)

    def kernel(xcol_ref, w1_ref, b1_ref, w2_ref, b2_ref, g_ref, bt_ref,
               w3_ref, b3_ref, o_ref, pad_ref, cols_ref):
        # ---- conv1: one (M, 9*Cin) @ (9*Cin, CH) bf16 matmul, f32 accum ----
        y1 = jnp.dot(xcol_ref[...], w1_ref[...],
                     preferred_element_type=jnp.float32) + b1_ref[...]

        # ---- halo scratch: zero ONCE; border stays zero for both convs -----
        pad_ref[...] = jnp.zeros_like(pad_ref)
        pad_ref[:, 1:H + 1, 1:W + 1, :] = y1.reshape(N, H, W, CH)

        # in-kernel im2col: write each shifted window directly into its lane
        # offset of the (M, 9*CH) bf16 buffer (no per-tap temporaries).
        def build_cols():
            for t in range(9):
                kh, kw = divmod(t, 3)
                win = pad_ref[:, kh:kh + H, kw:kw + W, :].reshape(M, CH)
                cols_ref[:, t * CH:(t + 1) * CH] = win.astype(cols_ref.dtype)

        build_cols()

        # ---- conv2: single (M, 576) @ (576, CH) bf16 matmul, f32 accum -----
        y2 = jnp.dot(cols_ref[...], w2_ref[...],
                     preferred_element_type=jnp.float32) + b2_ref[...]

        # ---- BatchNorm2d (train-mode batch stats, biased var) + ReLU (f32) -
        mean = jnp.sum(y2, axis=0, keepdims=True) * (1.0 / M)
        d = y2 - mean
        var = jnp.sum(d * d, axis=0, keepdims=True) * (1.0 / M)   # biased
        scale = g_ref[...] * jax.lax.rsqrt(var + eps)             # EUP rsqrt
        yr = jnp.maximum(d * scale + bt_ref[...], 0.0)

        # ---- conv3, computed transposed: (CP,576) @ (M,576)^T -> (CP, M) ---
        pad_ref[:, 1:H + 1, 1:W + 1, :] = yr.reshape(N, H, W, CH)
        build_cols()
        out_t = jax.lax.dot_general(
            w3_ref[...], cols_ref[...],
            dimension_numbers=(((1,), (1,)), ((), ())),           # A @ B^T
            preferred_element_type=jnp.float32)
        o_ref[...] = (out_t + b3_ref[...]).astype(o_ref.dtype)    # lane-dense

    return pl.pallas_call(
        kernel,
        out_shape=jax.ShapeDtypeStruct((CP, M), jnp.float32),
        grid=(1,),
        in_specs=[
            pl.BlockSpec((M, K1), lambda i: (0, 0)),          # im2col input (bf16)
            pl.BlockSpec((K1, CH), lambda i: (0, 0)),         # w1 (27, 64) bf16
            pl.BlockSpec((1, CH), lambda i: (0, 0)),          # b1
            pl.BlockSpec((9 * CH, CH), lambda i: (0, 0)),     # w2 (576, 64) bf16
            pl.BlockSpec((1, CH), lambda i: (0, 0)),          # b2
            pl.BlockSpec((1, CH), lambda i: (0, 0)),          # gamma
            pl.BlockSpec((1, CH), lambda i: (0, 0)),          # beta
            pl.BlockSpec((CP, 9 * CH), lambda i: (0, 0)),     # w3^T (8, 576) bf16
            pl.BlockSpec((CP, 1), lambda i: (0, 0)),          # b3 column (8, 1)
        ],
        out_specs=pl.BlockSpec((CP, M), lambda i: (0, 0)),
        scratch_shapes=[
            pltpu.VMEM((N, H + 2, W + 2, CH), jnp.float32),   # halo buffer
            pltpu.VMEM((M, 9 * CH), jnp.bfloat16),            # im2col buffer
        ],
        compiler_params=pltpu.CompilerParams(
            dimension_semantics=("arbitrary",)),
    )(xcol, w1, b1r, w2, b2r, gr, btr, w3t, b3)


# ---------------------------------------------------------------------------
# Wrapper: NCHW <-> NHWC plumbing, conv1 im2col, weight flattening / padding.
# ---------------------------------------------------------------------------
def cnn_forward(x_nchw, params):
    N, Cin, H, W = x_nchw.shape
    CH = params["w1"].shape[-1]
    cout = params["w3"].shape[-1]

    x = jnp.transpose(x_nchw, (0, 2, 3, 1)).astype(jnp.float32)   # NCHW -> NHWC

    # conv1 im2col (tiny: (N*H*W, 9*Cin)) so the first conv is one K=27 matmul.
    xp = jnp.pad(x, ((0, 0), (1, 1), (1, 1), (0, 0)))
    cols = [xp[:, kh:kh + H, kw:kw + W, :] for kh in range(3) for kw in range(3)]
    xcol = jnp.concatenate(cols, axis=-1).reshape(N * H * W, 9 * Cin)

    # bf16 MXU operands (accumulation stays f32 inside the kernel).
    xcol = xcol.astype(jnp.bfloat16)
    w1 = params["w1"].reshape(9 * Cin, CH).astype(jnp.bfloat16)
    w2 = params["w2"].reshape(9 * CH, CH).astype(jnp.bfloat16)

    # conv3 weights transposed to (cout, 9*CH), output channels padded 3 -> 8.
    w3_full = jnp.transpose(params["w3"].reshape(9 * CH, cout))        # (3, 576)
    w3t = jnp.zeros((CP, 9 * CH), jnp.bfloat16).at[:cout].set(
        w3_full.astype(jnp.bfloat16))
    b3 = jnp.zeros((CP, 1), jnp.float32).at[:cout, 0].set(params["b3"])

    y = cnn_pallas_fused(xcol, w1, params["b1"], w2, params["b2"],
                         params["gamma"], params["beta"], w3t, b3,
                         N=N, H=H, W=W)                                # (CP, M)
    out = y[:cout].reshape(cout, N, H, W)                              # (3,N,H,W)
    return jnp.transpose(out, (1, 0, 2, 3))                           # NCHW


# ---------------------------------------------------------------------------
# Parameter init (PyTorch-style uniform bounds; BN gamma=1, beta=0 defaults).
# ---------------------------------------------------------------------------
def init_params(key, cin=3, hidden=64, cout=3):
    def conv_init(k, ci, co):
        k_w, k_b = jax.random.split(k)
        bound = 1.0 / jnp.sqrt(ci * 9.0)
        w = jax.random.uniform(k_w, (3, 3, ci, co), jnp.float32, -bound, bound)
        b = jax.random.uniform(k_b, (co,), jnp.float32, -bound, bound)
        return w, b

    k1, k2, k3 = jax.random.split(key, 3)
    w1, b1 = conv_init(k1, cin, hidden)
    w2, b2 = conv_init(k2, hidden, hidden)
    w3, b3 = conv_init(k3, hidden, cout)
    return dict(w1=w1, b1=b1, w2=w2, b2=b2,
                gamma=jnp.ones((hidden,), jnp.float32),
                beta=jnp.zeros((hidden,), jnp.float32),
                w3=w3, b3=b3)


# ---------------------------------------------------------------------------
# Pure-JAX f32 reference (same math) for a correctness check.
# ---------------------------------------------------------------------------
def cnn_reference(x_nchw, params, eps=1e-5):
    x = jnp.transpose(x_nchw, (0, 2, 3, 1))

    def conv(a, w, b):
        return jax.lax.conv_general_dilated(
            a, w, window_strides=(1, 1), padding="SAME",
            dimension_numbers=("NHWC", "HWIO", "NHWC")) + b

    y = conv(x, params["w1"], params["b1"])
    y = conv(y, params["w2"], params["b2"])
    mean = jnp.mean(y, axis=(0, 1, 2), keepdims=True)
    var = jnp.mean((y - mean) ** 2, axis=(0, 1, 2), keepdims=True)   # biased
    y = (y - mean) * jax.lax.rsqrt(var + eps) * params["gamma"] + params["beta"]
    y = jnp.maximum(y, 0.0)
    y = conv(y, params["w3"], params["b3"])
    return jnp.transpose(y, (0, 3, 1, 2))


if __name__ == "__main__":
    key = jax.random.PRNGKey(0)
    k_param, k_x = jax.random.split(key)
    params = init_params(k_param, cin=3, hidden=64, cout=3)

    x = jax.random.normal(k_x, (2, 3, 16, 16), jnp.float32)   # NCHW like PyTorch

    fwd = jax.jit(cnn_forward)
    out = jax.block_until_ready(fwd(x, params))

    assert out.shape == (2, 3, 16, 16), out.shape
    assert out.dtype == jnp.float32
    assert bool(jnp.all(jnp.isfinite(out)))

    ref = cnn_reference(x, params)
    max_err = float(jnp.max(jnp.abs(out - ref)))
    # bf16 MXU operands with f32 accumulation: tolerance relaxed per review.
    assert max_err < 3e-2, f"max abs err vs f32 reference: {max_err}"

    print("KERNEL_OK")
</pallas_src>

<mosaic_0001>
module attributes {stable_mosaic.version = 11 : i64} {
  func.func @kernel(%arg0: i32, %arg1: memref<512x27xbf16, #tpu.memory_space<vmem>>, %arg2: memref<27x64xbf16, #tpu.memory_space<vmem>>, %arg3: memref<1x64xf32, #tpu.memory_space<vmem>>, %arg4: memref<576x64xbf16, #tpu.memory_space<vmem>>, %arg5: memref<1x64xf32, #tpu.memory_space<vmem>>, %arg6: memref<1x64xf32, #tpu.memory_space<vmem>>, %arg7: memref<1x64xf32, #tpu.memory_space<vmem>>, %arg8: memref<8x576xbf16, #tpu.memory_space<vmem>>, %arg9: memref<8x1xf32, #tpu.memory_space<vmem>>, %arg10: memref<8x512xf32, #tpu.memory_space<vmem>>, %arg11: memref<2x18x18x64xf32, #tpu.memory_space<vmem>>, %arg12: memref<512x576xbf16, #tpu.memory_space<vmem>>) attributes {dimension_semantics = [#tpu.dimension_semantics<arbitrary>], iteration_bounds = array<i64: 1>, scalar_prefetch = 0 : i64, scratch_operands = 2 : i64, tpu.core_type = #tpu.core_type<tc>, window_params = [{pipeline_mode = #tpu.pipeline_mode<synchronous>, transform_indices = @transform_0, window_bounds = array<i64: 512, 27>}, {pipeline_mode = #tpu.pipeline_mode<synchronous>, transform_indices = @transform_1, window_bounds = array<i64: 27, 64>}, {pipeline_mode = #tpu.pipeline_mode<synchronous>, transform_indices = @transform_2, window_bounds = array<i64: 1, 64>}, {pipeline_mode = #tpu.pipeline_mode<synchronous>, transform_indices = @transform_3, window_bounds = array<i64: 576, 64>}, {pipeline_mode = #tpu.pipeline_mode<synchronous>, transform_indices = @transform_4, window_bounds = array<i64: 1, 64>}, {pipeline_mode = #tpu.pipeline_mode<synchronous>, transform_indices = @transform_5, window_bounds = array<i64: 1, 64>}, {pipeline_mode = #tpu.pipeline_mode<synchronous>, transform_indices = @transform_6, window_bounds = array<i64: 1, 64>}, {pipeline_mode = #tpu.pipeline_mode<synchronous>, transform_indices = @transform_7, window_bounds = array<i64: 8, 576>}, {pipeline_mode = #tpu.pipeline_mode<synchronous>, transform_indices = @transform_8, window_bounds = array<i64: 8, 1>}, {pipeline_mode = #tpu.pipeline_mode<synchronous>, transform_indices = @transform_9, window_bounds = array<i64: 8, 512>}]} {
    %c0 = arith.constant 0 : index
    %c0_0 = arith.constant 0 : index
    %0 = vector.load %arg1[%c0, %c0_0] : memref<512x27xbf16, #tpu.memory_space<vmem>>, vector<512x27xbf16>
    %c0_1 = arith.constant 0 : index
    %c0_2 = arith.constant 0 : index
    %1 = vector.load %arg2[%c0_1, %c0_2] : memref<27x64xbf16, #tpu.memory_space<vmem>>, vector<27x64xbf16>
    %cst = arith.constant dense<0.000000e+00> : vector<512x64xf32>
    %2 = tpu.matmul %0, %1, %cst {dimension_numbers = #tpu.dot_dimension_numbers<[1], [0], [0], [1], [0, 0, 1, 1], [], []>} : vector<512x27xbf16>, vector<27x64xbf16>, vector<512x64xf32> -> vector<512x64xf32>
    %c0_3 = arith.constant 0 : index
    %c0_4 = arith.constant 0 : index
    %3 = vector.load %arg3[%c0_3, %c0_4] : memref<1x64xf32, #tpu.memory_space<vmem>>, vector<1x64xf32>
    %4 = vector.broadcast %3 : vector<1x64xf32> to vector<512x64xf32>
    %5 = arith.addf %2, %4 : vector<512x64xf32>
    %cst_5 = arith.constant 0.000000e+00 : f32
    %6 = vector.broadcast %cst_5 : f32 to vector<2x18x18x64xf32>
    %c0_6 = arith.constant 0 : index
    %c0_7 = arith.constant 0 : index
    %c0_8 = arith.constant 0 : index
    %c0_9 = arith.constant 0 : index
    %7 = vector.load %arg11[%c0_6, %c0_7, %c0_8, %c0_9] : memref<2x18x18x64xf32, #tpu.memory_space<vmem>>, vector<2x18x18x64xf32>
    tpu.vector_store %arg11[%c0_6, %c0_7, %c0_8, %c0_9], %6 {strides = array<i32>} : memref<2x18x18x64xf32, #tpu.memory_space<vmem>>, vector<2x18x18x64xf32>,
    %8 = vector.shape_cast %5 : vector<512x64xf32> to vector<2x16x16x64xf32>
    %c0_10 = arith.constant 0 : index
    %c1 = arith.constant 1 : index
    %c1_11 = arith.constant 1 : index
    %c0_12 = arith.constant 0 : index
    %9 = vector.load %arg11[%c0_10, %c1, %c1_11, %c0_12] : memref<2x18x18x64xf32, #tpu.memory_space<vmem>>, vector<2x16x16x64xf32>
    tpu.vector_store %arg11[%c0_10, %c1, %c1_11, %c0_12], %8 {strides = array<i32>} : memref<2x18x18x64xf32, #tpu.memory_space<vmem>>, vector<2x16x16x64xf32>,
    %c0_13 = arith.constant 0 : index
    %c0_14 = arith.constant 0 : index
    %c0_15 = arith.constant 0 : index
    %c0_16 = arith.constant 0 : index
    %10 = vector.load %arg11[%c0_13, %c0_14, %c0_15, %c0_16] : memref<2x18x18x64xf32, #tpu.memory_space<vmem>>, vector<2x16x16x64xf32>
    %11 = vector.shape_cast %10 : vector<2x16x16x64xf32> to vector<512x64xf32>
    %12 = arith.truncf %11 : vector<512x64xf32> to vector<512x64xbf16>
    %c0_17 = arith.constant 0 : index
    %c0_18 = arith.constant 0 : index
    %13 = vector.load %arg12[%c0_17, %c0_18] : memref<512x576xbf16, #tpu.memory_space<vmem>>, vector<512x64xbf16>
    tpu.vector_store %arg12[%c0_17, %c0_18], %12 {strides = array<i32>} : memref<512x576xbf16, #tpu.memory_space<vmem>>, vector<512x64xbf16>,
    %c0_19 = arith.constant 0 : index
    %c0_20 = arith.constant 0 : index
    %c1_21 = arith.constant 1 : index
    %c0_22 = arith.constant 0 : index
    %14 = vector.load %arg11[%c0_19, %c0_20, %c1_21, %c0_22] : memref<2x18x18x64xf32, #tpu.memory_space<vmem>>, vector<2x16x16x64xf32>
    %15 = vector.shape_cast %14 : vector<2x16x16x64xf32> to vector<512x64xf32>
    %16 = arith.truncf %15 : vector<512x64xf32> to vector<512x64xbf16>
    %c0_23 = arith.constant 0 : index
    %c64 = arith.constant 64 : index
    %17 = vector.load %arg12[%c0_23, %c64] : memref<512x576xbf16, #tpu.memory_space<vmem>>, vector<512x64xbf16>
    tpu.vector_store %arg12[%c0_23, %c64], %16 {strides = array<i32>} : memref<512x576xbf16, #tpu.memory_space<vmem>>, vector<512x64xbf16>,
    %c0_24 = arith.constant 0 : index
    %c0_25 = arith.constant 0 : index
    %c2 = arith.constant 2 : index
    %c0_26 = arith.constant 0 : index
    %18 = vector.load %arg11[%c0_24, %c0_25, %c2, %c0_26] : memref<2x18x18x64xf32, #tpu.memory_space<vmem>>, vector<2x16x16x64xf32>
    %19 = vector.shape_cast %18 : vector<2x16x16x64xf32> to vector<512x64xf32>
    %20 = arith.truncf %19 : vector<512x64xf32> to vector<512x64xbf16>
    %c0_27 = arith.constant 0 : index
    %c128 = arith.constant 128 : index
    %21 = vector.load %arg12[%c0_27, %c128] : memref<512x576xbf16, #tpu.memory_space<vmem>>, vector<512x64xbf16>
    tpu.vector_store %arg12[%c0_27, %c128], %20 {strides = array<i32>} : memref<512x576xbf16, #tpu.memory_space<vmem>>, vector<512x64xbf16>,
    %c0_28 = arith.constant 0 : index
    %c1_29 = arith.constant 1 : index
    %c0_30 = arith.constant 0 : index
    %c0_31 = arith.constant 0 : index
    %22 = vector.load %arg11[%c0_28, %c1_29, %c0_30, %c0_31] : memref<2x18x18x64xf32, #tpu.memory_space<vmem>>, vector<2x16x16x64xf32>
    %23 = vector.shape_cast %22 : vector<2x16x16x64xf32> to vector<512x64xf32>
    %24 = arith.truncf %23 : vector<512x64xf32> to vector<512x64xbf16>
    %c0_32 = arith.constant 0 : index
    %c192 = arith.constant 192 : index
    %25 = vector.load %arg12[%c0_32, %c192] : memref<512x576xbf16, #tpu.memory_space<vmem>>, vector<512x64xbf16>
    tpu.vector_store %arg12[%c0_32, %c192], %24 {strides = array<i32>} : memref<512x576xbf16, #tpu.memory_space<vmem>>, vector<512x64xbf16>,
    %c0_33 = arith.constant 0 : index
    %c1_34 = arith.constant 1 : index
    %c1_35 = arith.constant 1 : index
    %c0_36 = arith.constant 0 : index
    %26 = vector.load %arg11[%c0_33, %c1_34, %c1_35, %c0_36] : memref<2x18x18x64xf32, #tpu.memory_space<vmem>>, vector<2x16x16x64xf32>
    %27 = vector.shape_cast %26 : vector<2x16x16x64xf32> to vector<512x64xf32>
    %28 = arith.truncf %27 : vector<512x64xf32> to vector<512x64xbf16>
    %c0_37 = arith.constant 0 : index
    %c256 = arith.constant 256 : index
    %29 = vector.load %arg12[%c0_37, %c256] : memref<512x576xbf16, #tpu.memory_space<vmem>>, vector<512x64xbf16>
    tpu.vector_store %arg12[%c0_37, %c256], %28 {strides = array<i32>} : memref<512x576xbf16, #tpu.memory_space<vmem>>, vector<512x64xbf16>,
    %c0_38 = arith.constant 0 : index
    %c1_39 = arith.constant 1 : index
    %c2_40 = arith.constant 2 : index
    %c0_41 = arith.constant 0 : index
    %30 = vector.load %arg11[%c0_38, %c1_39, %c2_40, %c0_41] : memref<2x18x18x64xf32, #tpu.memory_space<vmem>>, vector<2x16x16x64xf32>
    %31 = vector.shape_cast %30 : vector<2x16x16x64xf32> to vector<512x64xf32>
    %32 = arith.truncf %31 : vector<512x64xf32> to vector<512x64xbf16>
    %c0_42 = arith.constant 0 : index
    %c320 = arith.constant 320 : index
    %33 = vector.load %arg12[%c0_42, %c320] : memref<512x576xbf16, #tpu.memory_space<vmem>>, vector<512x64xbf16>
    tpu.vector_store %arg12[%c0_42, %c320], %32 {strides = array<i32>} : memref<512x576xbf16, #tpu.memory_space<vmem>>, vector<512x64xbf16>,
    %c0_43 = arith.constant 0 : index
    %c2_44 = arith.constant 2 : index
    %c0_45 = arith.constant 0 : index
    %c0_46 = arith.constant 0 : index
    %34 = vector.load %arg11[%c0_43, %c2_44, %c0_45, %c0_46] : memref<2x18x18x64xf32, #tpu.memory_space<vmem>>, vector<2x16x16x64xf32>
    %35 = vector.shape_cast %34 : vector<2x16x16x64xf32> to vector<512x64xf32>
    %36 = arith.truncf %35 : vector<512x64xf32> to vector<512x64xbf16>
    %c0_47 = arith.constant 0 : index
    %c384 = arith.constant 384 : index
    %37 = vector.load %arg12[%c0_47, %c384] : memref<512x576xbf16, #tpu.memory_space<vmem>>, vector<512x64xbf16>
    tpu.vector_store %arg12[%c0_47, %c384], %36 {strides = array<i32>} : memref<512x576xbf16, #tpu.memory_space<vmem>>, vector<512x64xbf16>,
    %c0_48 = arith.constant 0 : index
    %c2_49 = arith.constant 2 : index
    %c1_50 = arith.constant 1 : index
    %c0_51 = arith.constant 0 : index
    %38 = vector.load %arg11[%c0_48, %c2_49, %c1_50, %c0_51] : memref<2x18x18x64xf32, #tpu.memory_space<vmem>>, vector<2x16x16x64xf32>
    %39 = vector.shape_cast %38 : vector<2x16x16x64xf32> to vector<512x64xf32>
    %40 = arith.truncf %39 : vector<512x64xf32> to vector<512x64xbf16>
    %c0_52 = arith.constant 0 : index
    %c448 = arith.constant 448 : index
    %41 = vector.load %arg12[%c0_52, %c448] : memref<512x576xbf16, #tpu.memory_space<vmem>>, vector<512x64xbf16>
    tpu.vector_store %arg12[%c0_52, %c448], %40 {strides = array<i32>} : memref<512x576xbf16, #tpu.memory_space<vmem>>, vector<512x64xbf16>,
    %c0_53 = arith.constant 0 : index
    %c2_54 = arith.constant 2 : index
    %c2_55 = arith.constant 2 : index
    %c0_56 = arith.constant 0 : index
    %42 = vector.load %arg11[%c0_53, %c2_54, %c2_55, %c0_56] : memref<2x18x18x64xf32, #tpu.memory_space<vmem>>, vector<2x16x16x64xf32>
    %43 = vector.shape_cast %42 : vector<2x16x16x64xf32> to vector<512x64xf32>
    %44 = arith.truncf %43 : vector<512x64xf32> to vector<512x64xbf16>
    %c0_57 = arith.constant 0 : index
    %c512 = arith.constant 512 : index
    %45 = vector.load %arg12[%c0_57, %c512] : memref<512x576xbf16, #tpu.memory_space<vmem>>, vector<512x64xbf16>
    tpu.vector_store %arg12[%c0_57, %c512], %44 {strides = array<i32>} : memref<512x576xbf16, #tpu.memory_space<vmem>>, vector<512x64xbf16>,
    %c0_58 = arith.constant 0 : index
    %c0_59 = arith.constant 0 : index
    %46 = vector.load %arg12[%c0_58, %c0_59] : memref<512x576xbf16, #tpu.memory_space<vmem>>, vector<512x576xbf16>
    %c0_60 = arith.constant 0 : index
    %c0_61 = arith.constant 0 : index
    %47 = vector.load %arg4[%c0_60, %c0_61] : memref<576x64xbf16, #tpu.memory_space<vmem>>, vector<576x64xbf16>
    %cst_62 = arith.constant dense<0.000000e+00> : vector<512x64xf32>
    %48 = tpu.matmul %46, %47, %cst_62 {dimension_numbers = #tpu.dot_dimension_numbers<[1], [0], [0], [1], [0, 0, 1, 1], [], []>} : vector<512x576xbf16>, vector<576x64xbf16>, vector<512x64xf32> -> vector<512x64xf32>
    %c0_63 = arith.constant 0 : index
    %c0_64 = arith.constant 0 : index
    %49 = vector.load %arg5[%c0_63, %c0_64] : memref<1x64xf32, #tpu.memory_space<vmem>>, vector<1x64xf32>
    %50 = vector.broadcast %49 : vector<1x64xf32> to vector<512x64xf32>
    %51 = arith.addf %48, %50 : vector<512x64xf32>
    %cst_65 = arith.constant dense<0.000000e+00> : vector<64xf32>
    %52 = vector.multi_reduction <add>, %51, %cst_65 [0] : vector<512x64xf32> to vector<64xf32>
    %53 = vector.shape_cast %52 : vector<64xf32> to vector<1x64xf32>
    %cst_66 = arith.constant 0.001953125 : f32
    %54 = vector.broadcast %cst_66 : f32 to vector<1x64xf32>
    %55 = arith.mulf %53, %54 : vector<1x64xf32>
    %56 = vector.broadcast %55 : vector<1x64xf32> to vector<512x64xf32>
    %57 = arith.subf %51, %56 : vector<512x64xf32>
    %58 = arith.mulf %57, %57 : vector<512x64xf32>
    %cst_67 = arith.constant dense<0.000000e+00> : vector<64xf32>
    %59 = vector.multi_reduction <add>, %58, %cst_67 [0] : vector<512x64xf32> to vector<64xf32>
    %60 = vector.shape_cast %59 : vector<64xf32> to vector<1x64xf32>
    %cst_68 = arith.constant 0.001953125 : f32
    %61 = vector.broadcast %cst_68 : f32 to vector<1x64xf32>
    %62 = arith.mulf %60, %61 : vector<1x64xf32>
    %c0_69 = arith.constant 0 : index
    %c0_70 = arith.constant 0 : index
    %63 = vector.load %arg6[%c0_69, %c0_70] : memref<1x64xf32, #tpu.memory_space<vmem>>, vector<1x64xf32>
    %cst_71 = arith.constant 9.99999974E-6 : f32
    %64 = vector.broadcast %cst_71 : f32 to vector<1x64xf32>
    %65 = arith.addf %62, %64 : vector<1x64xf32>
    %66 = math.rsqrt %65 : vector<1x64xf32>
    %67 = arith.mulf %63, %66 : vector<1x64xf32>
    %68 = vector.broadcast %67 : vector<1x64xf32> to vector<512x64xf32>
    %69 = arith.mulf %57, %68 : vector<512x64xf32>
    %c0_72 = arith.constant 0 : index
    %c0_73 = arith.constant 0 : index
    %70 = vector.load %arg7[%c0_72, %c0_73] : memref<1x64xf32, #tpu.memory_space<vmem>>, vector<1x64xf32>
    %71 = vector.broadcast %70 : vector<1x64xf32> to vector<512x64xf32>
    %72 = arith.addf %69, %71 : vector<512x64xf32>
    %cst_74 = arith.constant 0.000000e+00 : f32
    %73 = vector.broadcast %cst_74 : f32 to vector<512x64xf32>
    %74 = arith.maximumf %72, %73 : vector<512x64xf32>
    %75 = vector.shape_cast %74 : vector<512x64xf32> to vector<2x16x16x64xf32>
    %c0_75 = arith.constant 0 : index
    %c1_76 = arith.constant 1 : index
    %c1_77 = arith.constant 1 : index
    %c0_78 = arith.constant 0 : index
    %76 = vector.load %arg11[%c0_75, %c1_76, %c1_77, %c0_78] : memref<2x18x18x64xf32, #tpu.memory_space<vmem>>, vector<2x16x16x64xf32>
    tpu.vector_store %arg11[%c0_75, %c1_76, %c1_77, %c0_78], %75 {strides = array<i32>} : memref<2x18x18x64xf32, #tpu.memory_space<vmem>>, vector<2x16x16x64xf32>,
    %c0_79 = arith.constant 0 : index
    %c0_80 = arith.constant 0 : index
    %c0_81 = arith.constant 0 : index
    %c0_82 = arith.constant 0 : index
    %77 = vector.load %arg11[%c0_79, %c0_80, %c0_81, %c0_82] : memref<2x18x18x64xf32, #tpu.memory_space<vmem>>, vector<2x16x16x64xf32>
    %78 = vector.shape_cast %77 : vector<2x16x16x64xf32> to vector<512x64xf32>
    %79 = arith.truncf %78 : vector<512x64xf32> to vector<512x64xbf16>
    %c0_83 = arith.constant 0 : index
    %c0_84 = arith.constant 0 : index
    %80 = vector.load %arg12[%c0_83, %c0_84] : memref<512x576xbf16, #tpu.memory_space<vmem>>, vector<512x64xbf16>
    tpu.vector_store %arg12[%c0_83, %c0_84], %79 {strides = array<i32>} : memref<512x576xbf16, #tpu.memory_space<vmem>>, vector<512x64xbf16>,
    %c0_85 = arith.constant 0 : index
    %c0_86 = arith.constant 0 : index
    %c1_87 = arith.constant 1 : index
    %c0_88 = arith.constant 0 : index
    %81 = vector.load %arg11[%c0_85, %c0_86, %c1_87, %c0_88] : memref<2x18x18x64xf32, #tpu.memory_space<vmem>>, vector<2x16x16x64xf32>
    %82 = vector.shape_cast %81 : vector<2x16x16x64xf32> to vector<512x64xf32>
    %83 = arith.truncf %82 : vector<512x64xf32> to vector<512x64xbf16>
    %c0_89 = arith.constant 0 : index
    %c64_90 = arith.constant 64 : index
    %84 = vector.load %arg12[%c0_89, %c64_90] : memref<512x576xbf16, #tpu.memory_space<vmem>>, vector<512x64xbf16>
    tpu.vector_store %arg12[%c0_89, %c64_90], %83 {strides = array<i32>} : memref<512x576xbf16, #tpu.memory_space<vmem>>, vector<512x64xbf16>,
    %c0_91 = arith.constant 0 : index
    %c0_92 = arith.constant 0 : index
    %c2_93 = arith.constant 2 : index
    %c0_94 = arith.constant 0 : index
    %85 = vector.load %arg11[%c0_91, %c0_92, %c2_93, %c0_94] : memref<2x18x18x64xf32, #tpu.memory_space<vmem>>, vector<2x16x16x64xf32>
    %86 = vector.shape_cast %85 : vector<2x16x16x64xf32> to vector<512x64xf32>
    %87 = arith.truncf %86 : vector<512x64xf32> to vector<512x64xbf16>
    %c0_95 = arith.constant 0 : index
    %c128_96 = arith.constant 128 : index
    %88 = vector.load %arg12[%c0_95, %c128_96] : memref<512x576xbf16, #tpu.memory_space<vmem>>, vector<512x64xbf16>
    tpu.vector_store %arg12[%c0_95, %c128_96], %87 {strides = array<i32>} : memref<512x576xbf16, #tpu.memory_space<vmem>>, vector<512x64xbf16>,
    %c0_97 = arith.constant 0 : index
    %c1_98 = arith.constant 1 : index
    %c0_99 = arith.constant 0 : index
    %c0_100 = arith.constant 0 : index
    %89 = vector.load %arg11[%c0_97, %c1_98, %c0_99, %c0_100] : memref<2x18x18x64xf32, #tpu.memory_space<vmem>>, vector<2x16x16x64xf32>
    %90 = vector.shape_cast %89 : vector<2x16x16x64xf32> to vector<512x64xf32>
    %91 = arith.truncf %90 : vector<512x64xf32> to vector<512x64xbf16>
    %c0_101 = arith.constant 0 : index
    %c192_102 = arith.constant 192 : index
    %92 = vector.load %arg12[%c0_101, %c192_102] : memref<512x576xbf16, #tpu.memory_space<vmem>>, vector<512x64xbf16>
    tpu.vector_store %arg12[%c0_101, %c192_102], %91 {strides = array<i32>} : memref<512x576xbf16, #tpu.memory_space<vmem>>, vector<512x64xbf16>,
    %c0_103 = arith.constant 0 : index
    %c1_104 = arith.constant 1 : index
    %c1_105 = arith.constant 1 : index
    %c0_106 = arith.constant 0 : index
    %93 = vector.load %arg11[%c0_103, %c1_104, %c1_105, %c0_106] : memref<2x18x18x64xf32, #tpu.memory_space<vmem>>, vector<2x16x16x64xf32>
    %94 = vector.shape_cast %93 : vector<2x16x16x64xf32> to vector<512x64xf32>
    %95 = arith.truncf %94 : vector<512x64xf32> to vector<512x64xbf16>
    %c0_107 = arith.constant 0 : index
    %c256_108 = arith.constant 256 : index
    %96 = vector.load %arg12[%c0_107, %c256_108] : memref<512x576xbf16, #tpu.memory_space<vmem>>, vector<512x64xbf16>
    tpu.vector_store %arg12[%c0_107, %c256_108], %95 {strides = array<i32>} : memref<512x576xbf16, #tpu.memory_space<vmem>>, vector<512x64xbf16>,
    %c0_109 = arith.constant 0 : index
    %c1_110 = arith.constant 1 : index
    %c2_111 = arith.constant 2 : index
    %c0_112 = arith.constant 0 : index
    %97 = vector.load %arg11[%c0_109, %c1_110, %c2_111, %c0_112] : memref<2x18x18x64xf32, #tpu.memory_space<vmem>>, vector<2x16x16x64xf32>
    %98 = vector.shape_cast %97 : vector<2x16x16x64xf32> to vector<512x64xf32>
    %99 = arith.truncf %98 : vector<512x64xf32> to vector<512x64xbf16>
    %c0_113 = arith.constant 0 : index
    %c320_114 = arith.constant 320 : index
    %100 = vector.load %arg12[%c0_113, %c320_114] : memref<512x576xbf16, #tpu.memory_space<vmem>>, vector<512x64xbf16>
    tpu.vector_store %arg12[%c0_113, %c320_114], %99 {strides = array<i32>} : memref<512x576xbf16, #tpu.memory_space<vmem>>, vector<512x64xbf16>,
    %c0_115 = arith.constant 0 : index
    %c2_116 = arith.constant 2 : index
    %c0_117 = arith.constant 0 : index
    %c0_118 = arith.constant 0 : index
    %101 = vector.load %arg11[%c0_115, %c2_116, %c0_117, %c0_118] : memref<2x18x18x64xf32, #tpu.memory_space<vmem>>, vector<2x16x16x64xf32>
    %102 = vector.shape_cast %101 : vector<2x16x16x64xf32> to vector<512x64xf32>
    %103 = arith.truncf %102 : vector<512x64xf32> to vector<512x64xbf16>
    %c0_119 = arith.constant 0 : index
    %c384_120 = arith.constant 384 : index
    %104 = vector.load %arg12[%c0_119, %c384_120] : memref<512x576xbf16, #tpu.memory_space<vmem>>, vector<512x64xbf16>
    tpu.vector_store %arg12[%c0_119, %c384_120], %103 {strides = array<i32>} : memref<512x576xbf16, #tpu.memory_space<vmem>>, vector<512x64xbf16>,
    %c0_121 = arith.constant 0 : index
    %c2_122 = arith.constant 2 : index
    %c1_123 = arith.constant 1 : index
    %c0_124 = arith.constant 0 : index
    %105 = vector.load %arg11[%c0_121, %c2_122, %c1_123, %c0_124] : memref<2x18x18x64xf32, #tpu.memory_space<vmem>>, vector<2x16x16x64xf32>
    %106 = vector.shape_cast %105 : vector<2x16x16x64xf32> to vector<512x64xf32>
    %107 = arith.truncf %106 : vector<512x64xf32> to vector<512x64xbf16>
    %c0_125 = arith.constant 0 : index
    %c448_126 = arith.constant 448 : index
    %108 = vector.load %arg12[%c0_125, %c448_126] : memref<512x576xbf16, #tpu.memory_space<vmem>>, vector<512x64xbf16>
    tpu.vector_store %arg12[%c0_125, %c448_126], %107 {strides = array<i32>} : memref<512x576xbf16, #tpu.memory_space<vmem>>, vector<512x64xbf16>,
    %c0_127 = arith.constant 0 : index
    %c2_128 = arith.constant 2 : index
    %c2_129 = arith.constant 2 : index
    %c0_130 = arith.constant 0 : index
    %109 = vector.load %arg11[%c0_127, %c2_128, %c2_129, %c0_130] : memref<2x18x18x64xf32, #tpu.memory_space<vmem>>, vector<2x16x16x64xf32>
    %110 = vector.shape_cast %109 : vector<2x16x16x64xf32> to vector<512x64xf32>
    %111 = arith.truncf %110 : vector<512x64xf32> to vector<512x64xbf16>
    %c0_131 = arith.constant 0 : index
    %c512_132 = arith.constant 512 : index
    %112 = vector.load %arg12[%c0_131, %c512_132] : memref<512x576xbf16, #tpu.memory_space<vmem>>, vector<512x64xbf16>
    tpu.vector_store %arg12[%c0_131, %c512_132], %111 {strides = array<i32>} : memref<512x576xbf16, #tpu.memory_space<vmem>>, vector<512x64xbf16>,
    %c0_133 = arith.constant 0 : index
    %c0_134 = arith.constant 0 : index
    %113 = vector.load %arg8[%c0_133, %c0_134] : memref<8x576xbf16, #tpu.memory_space<vmem>>, vector<8x576xbf16>
    %c0_135 = arith.constant 0 : index
    %c0_136 = arith.constant 0 : index
    %114 = vector.load %arg12[%c0_135, %c0_136] : memref<512x576xbf16, #tpu.memory_space<vmem>>, vector<512x576xbf16>
    %cst_137 = arith.constant dense<0.000000e+00> : vector<8x512xf32>
    %115 = tpu.matmul %113, %114, %cst_137 {dimension_numbers = #tpu.dot_dimension_numbers<[1], [1], [0], [0], [0, 0, 1, 0], [], []>} : vector<8x576xbf16>, vector<512x576xbf16>, vector<8x512xf32> -> vector<8x512xf32>
    %c0_138 = arith.constant 0 : index
    %c0_139 = arith.constant 0 : index
    %116 = vector.load %arg9[%c0_138, %c0_139] : memref<8x1xf32, #tpu.memory_space<vmem>>, vector<8x1xf32>
    %117 = vector.broadcast %116 : vector<8x1xf32> to vector<8x512xf32>
    %118 = arith.addf %115, %117 : vector<8x512xf32>
    %c0_140 = arith.constant 0 : index
    %c0_141 = arith.constant 0 : index
    %119 = vector.load %arg10[%c0_140, %c0_141] : memref<8x512xf32, #tpu.memory_space<vmem>>, vector<8x512xf32>
    tpu.vector_store %arg10[%c0_140, %c0_141], %118 {strides = array<i32>} : memref<8x512xf32, #tpu.memory_space<vmem>>, vector<8x512xf32>,
    return
  }
  func.func @transform_0(%arg0: i32) -> (i32, i32) {
    %c0_i32 = arith.constant 0 : i32
    %c0_i32_0 = arith.constant 0 : i32
    %c0_i32_1 = arith.constant 0 : i32
    return %c0_i32, %c0_i32_0 : i32, i32
  }
  func.func @transform_1(%arg0: i32) -> (i32, i32) {
    %c0_i32 = arith.constant 0 : i32
    %c0_i32_0 = arith.constant 0 : i32
    %c0_i32_1 = arith.constant 0 : i32
    return %c0_i32, %c0_i32_0 : i32, i32
  }
  func.func @transform_2(%arg0: i32) -> (i32, i32) {
    %c0_i32 = arith.constant 0 : i32
    %c0_i32_0 = arith.constant 0 : i32
    %c0_i32_1 = arith.constant 0 : i32
    return %c0_i32, %c0_i32_0 : i32, i32
  }
  func.func @transform_3(%arg0: i32) -> (i32, i32) {
    %c0_i32 = arith.constant 0 : i32
    %c0_i32_0 = arith.constant 0 : i32
    %c0_i32_1 = arith.constant 0 : i32
    return %c0_i32, %c0_i32_0 : i32, i32
  }
  func.func @transform_4(%arg0: i32) -> (i32, i32) {
    %c0_i32 = arith.constant 0 : i32
    %c0_i32_0 = arith.constant 0 : i32
    %c0_i32_1 = arith.constant 0 : i32
    return %c0_i32, %c0_i32_0 : i32, i32
  }
  func.func @transform_5(%arg0: i32) -> (i32, i32) {
    %c0_i32 = arith.constant 0 : i32
    %c0_i32_0 = arith.constant 0 : i32
    %c0_i32_1 = arith.constant 0 : i32
    return %c0_i32, %c0_i32_0 : i32, i32
  }
  func.func @transform_6(%arg0: i32) -> (i32, i32) {
    %c0_i32 = arith.constant 0 : i32
    %c0_i32_0 = arith.constant 0 : i32
    %c0_i32_1 = arith.constant 0 : i32
    return %c0_i32, %c0_i32_0 : i32, i32
  }
  func.func @transform_7(%arg0: i32) -> (i32, i32) {
    %c0_i32 = arith.constant 0 : i32
    %c0_i32_0 = arith.constant 0 : i32
    %c0_i32_1 = arith.constant 0 : i32
    return %c0_i32, %c0_i32_0 : i32, i32
  }
  func.func @transform_8(%arg0: i32) -> (i32, i32) {
    %c0_i32 = arith.constant 0 : i32
    %c0_i32_0 = arith.constant 0 : i32
    %c0_i32_1 = arith.constant 0 : i32
    return %c0_i32, %c0_i32_0 : i32, i32
  }
  func.func @transform_9(%arg0: i32) -> (i32, i32) {
    %c0_i32 = arith.constant 0 : i32
    %c0_i32_0 = arith.constant 0 : i32
    %c0_i32_1 = arith.constant 0 : i32
    return %c0_i32, %c0_i32_0 : i32, i32
  }
}

</mosaic_0001>

<llo_original>
// kernel: cnn_forward.1
$region0: #{cnn_forward.1}
  #allocation0 [shape = 'u32[]', space=smem, size = 0x4, offset = 0x4, fixed_abs, tag = 'smem constant byte address 0x4 - core index']
  #allocation1 [shape = 'u32[144,128]{1,0:T(1,128)}', space=vmem, size = 0x12000, scoped, tag = 'internal scratch']
  #allocation2 [shape = 'f32[2,18,18,64]{3,2,1,0:T(8,128)}', space=vmem, size = 0x6c000, scoped, tag = 'scratch operand']
  #allocation3 [shape = 'bf16[512,576]{1,0:T(8,128)(2,1)}', space=vmem, size = 0xa0000, scoped, tag = 'scratch operand']
  %s0 = inlined_call_operand.vmem [shape: bf16[512,27], index: 0, kind: input, shape index: {}]
  %s1 = inlined_call_operand.vmem [shape: bf16[27,64], index: 1, kind: input, shape index: {}]
  %s2 = inlined_call_operand.vmem [shape: f32[1,64], index: 2, kind: input, shape index: {}]
  %s3 = inlined_call_operand.vmem [shape: bf16[576,64], index: 3, kind: input, shape index: {}]
  %s4 = inlined_call_operand.vmem [shape: f32[1,64], index: 4, kind: input, shape index: {}]
  %s5 = inlined_call_operand.vmem [shape: f32[1,64], index: 5, kind: input, shape index: {}]
  %s6 = inlined_call_operand.vmem [shape: f32[1,64], index: 6, kind: input, shape index: {}]
  %s7 = inlined_call_operand.vmem [shape: bf16[8,576], index: 7, kind: input, shape index: {}]
  %s8 = inlined_call_operand.vmem [shape: f32[8,1], index: 8, kind: input, shape index: {}]
  %s9 = inlined_call_operand.vmem [shape: f32[8,512], index: 9, kind: output, shape index: {}]
  %s10 = sld [smem:[#allocation0]]
  $region46: #{cnn_forward.1} parent=0
    _
  %s12 = ssub.s32 1, %s10
  %s13 = scalar_select 0, %s12, %s10
  // Predicated region
  $region2: #{cnn_forward.1} parent=0 // pred_check
    _
  $region3: #{cnn_forward.1} parent=0 // pred_check_branch
    %15 = sbr.rel (0) target = $region5
  $region4: #{cnn_forward.1} parent=0 // pred_region
    _
  $region5: #{cnn_forward.1} parent=0 // pred_fallthru
    _
  // Predicated region
  $region6: #{cnn_forward.1} parent=0 // pred_check
    _
  $region7: #{cnn_forward.1} parent=0 // pred_check_branch
    %17 = sbr.rel (0) target = $region9
  $region8: #{cnn_forward.1} parent=0 // pred_region
    _
  $region9: #{cnn_forward.1} parent=0 // pred_fallthru
    _
  // Predicated region
  $region10: #{cnn_forward.1} parent=0 // pred_check
    _
  $region11: #{cnn_forward.1} parent=0 // pred_check_branch
    %19 = sbr.rel (0) target = $region13
  $region12: #{cnn_forward.1} parent=0 // pred_region
    _
  $region13: #{cnn_forward.1} parent=0 // pred_fallthru
    _
  // Predicated region
  $region14: #{cnn_forward.1} parent=0 // pred_check
    _
  $region15: #{cnn_forward.1} parent=0 // pred_check_branch
    %21 = sbr.rel (0) target = $region17
  $region16: #{cnn_forward.1} parent=0 // pred_region
    _
  $region17: #{cnn_forward.1} parent=0 // pred_fallthru
    _
  // Predicated region
  $region18: #{cnn_forward.1} parent=0 // pred_check
    _
  $region19: #{cnn_forward.1} parent=0 // pred_check_branch
    %23 = sbr.rel (0) target = $region21
  $region20: #{cnn_forward.1} parent=0 // pred_region
    _
  $region21: #{cnn_forward.1} parent=0 // pred_fallthru
    _
  // Predicated region
  $region22: #{cnn_forward.1} parent=0 // pred_check
    _
  $region23: #{cnn_forward.1} parent=0 // pred_check_branch
    %25 = sbr.rel (0) target = $region25
  $region24: #{cnn_forward.1} parent=0 // pred_region
    _
  $region25: #{cnn_forward.1} parent=0 // pred_fallthru
    _
  // Predicated region
  $region26: #{cnn_forward.1} parent=0 // pred_check
    _
  $region27: #{cnn_forward.1} parent=0 // pred_check_branch
    %27 = sbr.rel (0) target = $region29
  $region28: #{cnn_forward.1} parent=0 // pred_region
    _
  $region29: #{cnn_forward.1} parent=0 // pred_fallthru
    _
  // Predicated region
  $region30: #{cnn_forward.1} parent=0 // pred_check
    _
  $region31: #{cnn_forward.1} parent=0 // pred_check_branch
    %29 = sbr.rel (0) target = $region33
  $region32: #{cnn_forward.1} parent=0 // pred_region
    _
  $region33: #{cnn_forward.1} parent=0 // pred_fallthru
    _
  // Predicated region
  $region34: #{cnn_forward.1} parent=0 // pred_check
    _
  $region35: #{cnn_forward.1} parent=0 // pred_check_branch
    %31 = sbr.rel (0) target = $region37
  $region36: #{cnn_forward.1} parent=0 // pred_region
    _
  $region37: #{cnn_forward.1} parent=0 // pred_fallthru
    _
  %v33 = vld [vmem:[%s0] sm:$0xf]
  %v34 = vld [vmem:[%s0 + $0x4] sm:$0xf]
  %v35 = vld [vmem:[%s0 + $0x8] sm:$0xf]
  %v36 = vld [vmem:[%s0 + $0xc] sm:$0xf]
  %v37 = vld [vmem:[%s0 + $0x10] sm:$0xf]
  %v38 = vld [vmem:[%s0 + $0x14] sm:$0xf]
  %v39 = vld [vmem:[%s0 + $0x18] sm:$0xf]
  %v40 = vld [vmem:[%s0 + $0x1c] sm:$0xf]
  %v41 = vld [vmem:[%s0 + $0x20] sm:$0xf]
  %v42 = vld [vmem:[%s0 + $0x24] sm:$0xf]
  %v43 = vld [vmem:[%s0 + $0x28] sm:$0xf]
  %v44 = vld [vmem:[%s0 + $0x2c] sm:$0xf]
  %v45 = vld [vmem:[%s0 + $0x30] sm:$0xf]
  %v46 = vld [vmem:[%s0 + $0x34] sm:$0xf]
  %v47 = vld [vmem:[%s0 + $0x38] sm:$0xf]
  %v48 = vld [vmem:[%s0 + $0x3c] sm:$0xf]
  %v49 = vld [vmem:[%s0 + $0x40] sm:$0xf]
  %v50 = vld [vmem:[%s0 + $0x44] sm:$0xf]
  %v51 = vld [vmem:[%s0 + $0x48] sm:$0xf]
  %v52 = vld [vmem:[%s0 + $0x4c] sm:$0xf]
  %v53 = vld [vmem:[%s0 + $0x50] sm:$0xf]
  %v54 = vld [vmem:[%s0 + $0x54] sm:$0xf]
  %v55 = vld [vmem:[%s0 + $0x58] sm:$0xf]
  %v56 = vld [vmem:[%s0 + $0x5c] sm:$0xf]
  %v57 = vld [vmem:[%s0 + $0x60] sm:$0xf]
  %v58 = vld [vmem:[%s0 + $0x64] sm:$0xf]
  %v59 = vld [vmem:[%s0 + $0x68] sm:$0xf]
  %v60 = vld [vmem:[%s0 + $0x6c] sm:$0xf]
  %v61 = vld [vmem:[%s0 + $0x70] sm:$0xf]
  %v62 = vld [vmem:[%s0 + $0x74] sm:$0xf]
  %v63 = vld [vmem:[%s0 + $0x78] sm:$0xf]
  %v64 = vld [vmem:[%s0 + $0x7c] sm:$0xf]
  %v65 = vld [vmem:[%s0 + $0x80] sm:$0xf]
  %v66 = vld [vmem:[%s0 + $0x84] sm:$0xf]
  %v67 = vld [vmem:[%s0 + $0x88] sm:$0xf]
  %v68 = vld [vmem:[%s0 + $0x8c] sm:$0xf]
  %v69 = vld [vmem:[%s0 + $0x90] sm:$0xf]
  %v70 = vld [vmem:[%s0 + $0x94] sm:$0xf]
  %v71 = vld [vmem:[%s0 + $0x98] sm:$0xf]
  %v72 = vld [vmem:[%s0 + $0x9c] sm:$0xf]
  %v73 = vld [vmem:[%s0 + $0xa0] sm:$0xf]
  %v74 = vld [vmem:[%s0 + $0xa4] sm:$0xf]
  %v75 = vld [vmem:[%s0 + $0xa8] sm:$0xf]
  %v76 = vld [vmem:[%s0 + $0xac] sm:$0xf]
  %v77 = vld [vmem:[%s0 + $0xb0] sm:$0xf]
  %v78 = vld [vmem:[%s0 + $0xb4] sm:$0xf]
  %v79 = vld [vmem:[%s0 + $0xb8] sm:$0xf]
  %v80 = vld [vmem:[%s0 + $0xbc] sm:$0xf]
  %v81 = vld [vmem:[%s0 + $0xc0] sm:$0xf]
  %v82 = vld [vmem:[%s0 + $0xc4] sm:$0xf]
  %v83 = vld [vmem:[%s0 + $0xc8] sm:$0xf]
  %v84 = vld [vmem:[%s0 + $0xcc] sm:$0xf]
  %v85 = vld [vmem:[%s0 + $0xd0] sm:$0xf]
  %v86 = vld [vmem:[%s0 + $0xd4] sm:$0xf]
  %v87 = vld [vmem:[%s0 + $0xd8] sm:$0xf]
  %v88 = vld [vmem:[%s0 + $0xdc] sm:$0xf]
  %v89 = vld [vmem:[%s0 + $0xe0] sm:$0xf]
  %v90 = vld [vmem:[%s0 + $0xe4] sm:$0xf]
  %v91 = vld [vmem:[%s0 + $0xe8] sm:$0xf]
  %v92 = vld [vmem:[%s0 + $0xec] sm:$0xf]
  %v93 = vld [vmem:[%s0 + $0xf0] sm:$0xf]
  %v94 = vld [vmem:[%s0 + $0xf4] sm:$0xf]
  %v95 = vld [vmem:[%s0 + $0xf8] sm:$0xf]
  %v96 = vld [vmem:[%s0 + $0xfc] sm:$0xf]
  %v97 = vld [vmem:[%s1] sm:$0xf]
  %v98 = vld [vmem:[%s1 + $0x4] sm:$0xf]
  %v99 = vld [vmem:[%s1 + $0x8] sm:$0xf]
  %v100 = vld [vmem:[%s1 + $0xc] sm:$0x3]
  %v101 = vld [vmem:[%s2] sm:$0x1]
  %v103 = vlaneseq
  %v104 = vshrl.u32 %v103, 7
  %v105 = vsub.s32 0, %v104
  %v106 = vrot.slane %v101, %v105
  %v172 = vunpack.c.l.b16 %v33
  %v173 = vunpack.c.l.b16 %v34
  %v174 = vunpack.c.l.b16 %v35
  %v175 = vunpack.c.l.b16 %v36
  %v176 = vunpack.c.l.b16 %v37
  %v177 = vunpack.c.l.b16 %v38
  %v178 = vunpack.c.l.b16 %v39
  %v179 = vunpack.c.l.b16 %v40
  %v180 = vunpack.c.l.b16 %v41
  %v181 = vunpack.c.l.b16 %v42
  %v182 = vunpack.c.l.b16 %v43
  %v183 = vunpack.c.l.b16 %v44
  %v184 = vunpack.c.l.b16 %v45
  %v185 = vunpack.c.l.b16 %v46
  %v186 = vunpack.c.l.b16 %v47
  %v187 = vunpack.c.l.b16 %v48
  %v188 = vunpack.c.l.b16 %v49
  %v189 = vunpack.c.l.b16 %v50
  %v190 = vunpack.c.l.b16 %v51
  %v191 = vunpack.c.l.b16 %v52
  %v192 = vunpack.c.l.b16 %v53
  %v193 = vunpack.c.l.b16 %v54
  %v194 = vunpack.c.l.b16 %v55
  %v195 = vunpack.c.l.b16 %v56
  %v196 = vunpack.c.l.b16 %v57
  %v197 = vunpack.c.l.b16 %v58
  %v198 = vunpack.c.l.b16 %v59
  %v199 = vunpack.c.l.b16 %v60
  %v200 = vunpack.c.l.b16 %v61
  %v201 = vunpack.c.l.b16 %v62
  %v202 = vunpack.c.l.b16 %v63
  %v203 = vunpack.c.l.b16 %v64
  %v204 = vunpack.c.l.b16 %v65
  %v205 = vunpack.c.l.b16 %v66
  %v206 = vunpack.c.l.b16 %v67
  %v207 = vunpack.c.l.b16 %v68
  %v208 = vunpack.c.l.b16 %v69
  %v209 = vunpack.c.l.b16 %v70
  %v210 = vunpack.c.l.b16 %v71
  %v211 = vunpack.c.l.b16 %v72
  %v212 = vunpack.c.l.b16 %v73
  %v213 = vunpack.c.l.b16 %v74
  %v214 = vunpack.c.l.b16 %v75
  %v215 = vunpack.c.l.b16 %v76
  %v216 = vunpack.c.l.b16 %v77
  %v217 = vunpack.c.l.b16 %v78
  %v218 = vunpack.c.l.b16 %v79
  %v219 = vunpack.c.l.b16 %v80
  %v220 = vunpack.c.l.b16 %v81
  %v221 = vunpack.c.l.b16 %v82
  %v222 = vunpack.c.l.b16 %v83
  %v223 = vunpack.c.l.b16 %v84
  %v224 = vunpack.c.l.b16 %v85
  %v225 = vunpack.c.l.b16 %v86
  %v226 = vunpack.c.l.b16 %v87
  %v227 = vunpack.c.l.b16 %v88
  %v228 = vunpack.c.l.b16 %v89
  %v229 = vunpack.c.l.b16 %v90
  %v230 = vunpack.c.l.b16 %v91
  %v231 = vunpack.c.l.b16 %v92
  %v232 = vunpack.c.l.b16 %v93
  %v233 = vunpack.c.l.b16 %v94
  %v234 = vunpack.c.l.b16 %v95
  %v235 = vunpack.c.l.b16 %v96
  %v236 = vpack.c.b16 %v173, %v172
  %v237 = vpack.c.b16 %v175, %v174
  %v238 = vpack.c.b16 %v177, %v176
  %v239 = vpack.c.b16 %v179, %v178
  %v240 = vpack.c.b16 %v181, %v180
  %v241 = vpack.c.b16 %v183, %v182
  %v242 = vpack.c.b16 %v185, %v184
  %v243 = vpack.c.b16 %v187, %v186
  %v244 = vpack.c.b16 %v189, %v188
  %v245 = vpack.c.b16 %v191, %v190
  %v246 = vpack.c.b16 %v193, %v192
  %v247 = vpack.c.b16 %v195, %v194
  %v248 = vpack.c.b16 %v197, %v196
  %v249 = vpack.c.b16 %v199, %v198
  %v250 = vpack.c.b16 %v201, %v200
  %v251 = vpack.c.b16 %v203, %v202
  %v252 = vpack.c.b16 %v205, %v204
  %v253 = vpack.c.b16 %v207, %v206
  %v254 = vpack.c.b16 %v209, %v208
  %v255 = vpack.c.b16 %v211, %v210
  %v256 = vpack.c.b16 %v213, %v212
  %v257 = vpack.c.b16 %v215, %v214
  %v258 = vpack.c.b16 %v217, %v216
  %v259 = vpack.c.b16 %v219, %v218
  %v260 = vpack.c.b16 %v221, %v220
  %v261 = vpack.c.b16 %v223, %v222
  %v262 = vpack.c.b16 %v225, %v224
  %v263 = vpack.c.b16 %v227, %v226
  %v264 = vpack.c.b16 %v229, %v228
  %v265 = vpack.c.b16 %v231, %v230
  %v266 = vpack.c.b16 %v233, %v232
  %v267 = vpack.c.b16 %v235, %v234
  %v272 = vunpack.c.l.b16 %v97
  %v273 = vunpack.c.l.b16 %v98
  %v274 = vunpack.c.l.b16 %v99
  %v275 = vunpack.c.l.b16 %v100
  %v276 = vpack.c.b16 %v273, %v272
  %v277 = vpack.c.b16 %v275, %v274
  %vm279 = vcmask 220160
  %v281 = vsel %vm279, %v236, 0
  %v284 = vsel %vm279, %v237, 0
  %v287 = vsel %vm279, %v238, 0
  %v290 = vsel %vm279, %v239, 0
  %v293 = vsel %vm279, %v240, 0
  %v296 = vsel %vm279, %v241, 0
  %v299 = vsel %vm279, %v242, 0
  %v302 = vsel %vm279, %v243, 0
  %v305 = vsel %vm279, %v244, 0
  %v308 = vsel %vm279, %v245, 0
  %v311 = vsel %vm279, %v246, 0
  %v314 = vsel %vm279, %v247, 0
  %v317 = vsel %vm279, %v248, 0
  %v320 = vsel %vm279, %v249, 0
  %v323 = vsel %vm279, %v250, 0
  %v326 = vsel %vm279, %v251, 0
  %v329 = vsel %vm279, %v252, 0
  %v332 = vsel %vm279, %v253, 0
  %v335 = vsel %vm279, %v254, 0
  %v338 = vsel %vm279, %v255, 0
  %v341 = vsel %vm279, %v256, 0
  %v344 = vsel %vm279, %v257, 0
  %v347 = vsel %vm279, %v258, 0
  %v350 = vsel %vm279, %v259, 0
  %v353 = vsel %vm279, %v260, 0
  %v356 = vsel %vm279, %v261, 0
  %v359 = vsel %vm279, %v262, 0
  %v362 = vsel %vm279, %v263, 0
  %v365 = vsel %vm279, %v264, 0
  %v368 = vsel %vm279, %v265, 0
  %v371 = vsel %vm279, %v266, 0
  %v374 = vsel %vm279, %v267, 0
  %vm376 = vcmask 1044480
  %vm377 = vcmask 1045504
  %v378 = vsel %vm376, 4294967295, 65535
  %v379 = vsel %vm377, %v378, 0
  %v381 = vand.u32 %v277, %v379
  %383 = vmatprep.subr.bf16.mxu0 0
  %384 = vmatpush1.bf16.msra.mxu0 0
  %385 = vmatprep.subr.bf16.mxu0 0
  %386 = vmatpush1.bf16.msra.mxu0 0
  %387 = vmatprep.subr.bf16.mxu0 0
  %388 = vmatpush1.bf16.msra.mxu0 0
  %389 = vmatprep.subr.bf16.mxu0 0
  %390 = vmatpush1.bf16.msra.mxu0 0
  %391 = vmatprep.subr.bf16.mxu0 0
  %392 = vmatpush1.bf16.msra.mxu0 0
  %393 = vmatprep.subr.bf16.mxu0 0
  %394 = vmatpush1.bf16.msra.mxu0 0
  %395 = vmatprep.subr.bf16.mxu0 0
  %396 = vmatpush1.bf16.msra.mxu0 %v381
  %397 = vmatprep.subr.bf16.mxu0 0
  %398 = vmatpush1.bf16.msra.mxu0 %v276
  %399 = vmatprep.subr.bf16.mxu0 0
  %400 = vmatpush2.bf16.msra.mxu0 0
  %401 = vmatprep.subr.bf16.mxu0 0
  %402 = vmatpush2.bf16.msra.mxu0 0
  %403 = vmatprep.subr.bf16.mxu0 0
  %404 = vmatpush2.bf16.msra.mxu0 0
  %405 = vmatprep.subr.bf16.mxu0 0
  %406 = vmatpush2.bf16.msra.mxu0 0
  %407 = vmatprep.subr.bf16.mxu0 0
  %408 = vmatpush2.bf16.msra.mxu0 0
  %409 = vmatprep.subr.bf16.mxu0 0
  %410 = vmatpush2.bf16.msra.mxu0 0
  %411 = vmatprep.subr.bf16.mxu0 0
  %412 = vmatpush2.bf16.msra.mxu0 0
  %413 = vmatprep.subr.bf16.mxu0 0
  %414 = vmatpush2.bf16.msra.mxu0 0
  %415 = vmatprep.mubr.bf16.mxu0 0
  %416 = vmatmul.mubr.bf16.gmra.mxu0 %v281
  %v417 = vpop.f32.mrf.mxu0
  %v418 = vadd.f32 %v106, %v417
  %v419 = vpop.f32.mrf.mxu0
  %v420 = vpop.f32.mrf.mxu0
  %v421 = vadd.f32 %v106, %v420
  %v422 = vpop.f32.mrf.mxu0
  %423 = vmatprep.mubr.bf16.mxu0 0
  %424 = vmatmul.mubr.bf16.gmra.mxu0 %v284
  %v425 = vpop.f32.mrf.mxu0
  %v426 = vadd.f32 %v106, %v425
  %v427 = vpop.f32.mrf.mxu0
  %v428 = vpop.f32.mrf.mxu0
  %v429 = vadd.f32 %v106, %v428
  %v430 = vpop.f32.mrf.mxu0
  %431 = vmatprep.mubr.bf16.mxu0 0
  %432 = vmatmul.mubr.bf16.gmra.mxu0 %v287
  %v433 = vpop.f32.mrf.mxu0
  %v434 = vadd.f32 %v106, %v433
  %v435 = vpop.f32.mrf.mxu0
  %v436 = vpop.f32.mrf.mxu0
  %v437 = vadd.f32 %v106, %v436
  %v438 = vpop.f32.mrf.mxu0
  %439 = vmatprep.mubr.bf16.mxu0 0
  %440 = vmatmul.mubr.bf16.gmra.mxu0 %v290
  %v441 = vpop.f32.mrf.mxu0
  %v442 = vadd.f32 %v106, %v441
  %v443 = vpop.f32.mrf.mxu0
  %v444 = vpop.f32.mrf.mxu0
  %v445 = vadd.f32 %v106, %v444
  %v446 = vpop.f32.mrf.mxu0
  %447 = vmatprep.mubr.bf16.mxu0 0
  %448 = vmatmul.mubr.bf16.gmra.mxu0 %v293
  %v449 = vpop.f32.mrf.mxu0
  %v450 = vadd.f32 %v106, %v449
  %v451 = vpop.f32.mrf.mxu0
  %v452 = vpop.f32.mrf.mxu0
  %v453 = vadd.f32 %v106, %v452
  %v454 = vpop.f32.mrf.mxu0
  %455 = vmatprep.mubr.bf16.mxu0 0
  %456 = vmatmul.mubr.bf16.gmra.mxu0 %v296
  %v457 = vpop.f32.mrf.mxu0
  %v458 = vadd.f32 %v106, %v457
  %v459 = vpop.f32.mrf.mxu0
  %v460 = vpop.f32.mrf.mxu0
  %v461 = vadd.f32 %v106, %v460
  %v462 = vpop.f32.mrf.mxu0
  %463 = vmatprep.mubr.bf16.mxu0 0
  %464 = vmatmul.mubr.bf16.gmra.mxu0 %v299
  %v465 = vpop.f32.mrf.mxu0
  %v466 = vadd.f32 %v106, %v465
  %v467 = vpop.f32.mrf.mxu0
  %v468 = vpop.f32.mrf.mxu0
  %v469 = vadd.f32 %v106, %v468
  %v470 = vpop.f32.mrf.mxu0
  %471 = vmatprep.mubr.bf16.mxu0 0
  %472 = vmatmul.mubr.bf16.gmra.mxu0 %v302
  %v473 = vpop.f32.mrf.mxu0
  %v474 = vadd.f32 %v106, %v473
  %v475 = vpop.f32.mrf.mxu0
  %v476 = vpop.f32.mrf.mxu0
  %v477 = vadd.f32 %v106, %v476
  %v478 = vpop.f32.mrf.mxu0
  %479 = vmatprep.mubr.bf16.mxu0 0
  %480 = vmatmul.mubr.bf16.gmra.mxu0 %v305
  %v481 = vpop.f32.mrf.mxu0
  %v482 = vadd.f32 %v106, %v481
  %v483 = vpop.f32.mrf.mxu0
  %v484 = vpop.f32.mrf.mxu0
  %v485 = vadd.f32 %v106, %v484
  %v486 = vpop.f32.mrf.mxu0
  %487 = vmatprep.mubr.bf16.mxu0 0
  %488 = vmatmul.mubr.bf16.gmra.mxu0 %v308
  %v489 = vpop.f32.mrf.mxu0
  %v490 = vadd.f32 %v106, %v489
  %v491 = vpop.f32.mrf.mxu0
  %v492 = vpop.f32.mrf.mxu0
  %v493 = vadd.f32 %v106, %v492
  %v494 = vpop.f32.mrf.mxu0
  %495 = vmatprep.mubr.bf16.mxu0 0
  %496 = vmatmul.mubr.bf16.gmra.mxu0 %v311
  %v497 = vpop.f32.mrf.mxu0
  %v498 = vadd.f32 %v106, %v497
  %v499 = vpop.f32.mrf.mxu0
  %v500 = vpop.f32.mrf.mxu0
  %v501 = vadd.f32 %v106, %v500
  %v502 = vpop.f32.mrf.mxu0
  %503 = vmatprep.mubr.bf16.mxu0 0
  %504 = vmatmul.mubr.bf16.gmra.mxu0 %v314
  %v505 = vpop.f32.mrf.mxu0
  %v506 = vadd.f32 %v106, %v505
  %v507 = vpop.f32.mrf.mxu0
  %v508 = vpop.f32.mrf.mxu0
  %v509 = vadd.f32 %v106, %v508
  %v510 = vpop.f32.mrf.mxu0
  %511 = vmatprep.mubr.bf16.mxu0 0
  %512 = vmatmul.mubr.bf16.gmra.mxu0 %v317
  %v513 = vpop.f32.mrf.mxu0
  %v514 = vadd.f32 %v106, %v513
  %v515 = vpop.f32.mrf.mxu0
  %v516 = vpop.f32.mrf.mxu0
  %v517 = vadd.f32 %v106, %v516
  %v518 = vpop.f32.mrf.mxu0
  %519 = vmatprep.mubr.bf16.mxu0 0
  %520 = vmatmul.mubr.bf16.gmra.mxu0 %v320
  %v521 = vpop.f32.mrf.mxu0
  %v522 = vadd.f32 %v106, %v521
  %v523 = vpop.f32.mrf.mxu0
  %v524 = vpop.f32.mrf.mxu0
  %v525 = vadd.f32 %v106, %v524
  %v526 = vpop.f32.mrf.mxu0
  %527 = vmatprep.mubr.bf16.mxu0 0
  %528 = vmatmul.mubr.bf16.gmra.mxu0 %v323
  %v529 = vpop.f32.mrf.mxu0
  %v530 = vadd.f32 %v106, %v529
  %v531 = vpop.f32.mrf.mxu0
  %v532 = vpop.f32.mrf.mxu0
  %v533 = vadd.f32 %v106, %v532
  %v534 = vpop.f32.mrf.mxu0
  %535 = vmatprep.mubr.bf16.mxu0 0
  %536 = vmatmul.mubr.bf16.gmra.mxu0 %v326
  %v537 = vpop.f32.mrf.mxu0
  %v538 = vadd.f32 %v106, %v537
  %v539 = vpop.f32.mrf.mxu0
  %v540 = vpop.f32.mrf.mxu0
  %v541 = vadd.f32 %v106, %v540
  %v542 = vpop.f32.mrf.mxu0
  %543 = vmatprep.mubr.bf16.mxu0 0
  %544 = vmatmul.mubr.bf16.gmra.mxu0 %v329
  %v545 = vpop.f32.mrf.mxu0
  %v546 = vadd.f32 %v106, %v545
  %v547 = vpop.f32.mrf.mxu0
  %v548 = vpop.f32.mrf.mxu0
  %v549 = vadd.f32 %v106, %v548
  %v550 = vpop.f32.mrf.mxu0
  %551 = vmatprep.mubr.bf16.mxu0 0
  %552 = vmatmul.mubr.bf16.gmra.mxu0 %v332
  %v553 = vpop.f32.mrf.mxu0
  %v554 = vadd.f32 %v106, %v553
  %v555 = vpop.f32.mrf.mxu0
  %v556 = vpop.f32.mrf.mxu0
  %v557 = vadd.f32 %v106, %v556
  %v558 = vpop.f32.mrf.mxu0
  %559 = vmatprep.mubr.bf16.mxu0 0
  %560 = vmatmul.mubr.bf16.gmra.mxu0 %v335
  %v561 = vpop.f32.mrf.mxu0
  %v562 = vadd.f32 %v106, %v561
  %v563 = vpop.f32.mrf.mxu0
  %v564 = vpop.f32.mrf.mxu0
  %v565 = vadd.f32 %v106, %v564
  %v566 = vpop.f32.mrf.mxu0
  %567 = vmatprep.mubr.bf16.mxu0 0
  %568 = vmatmul.mubr.bf16.gmra.mxu0 %v338
  %v569 = vpop.f32.mrf.mxu0
  %v570 = vadd.f32 %v106, %v569
  %v571 = vpop.f32.mrf.mxu0
  %v572 = vpop.f32.mrf.mxu0
  %v573 = vadd.f32 %v106, %v572
  %v574 = vpop.f32.mrf.mxu0
  %575 = vmatprep.mubr.bf16.mxu0 0
  %576 = vmatmul.mubr.bf16.gmra.mxu0 %v341
  %v577 = vpop.f32.mrf.mxu0
  %v578 = vadd.f32 %v106, %v577
  %v579 = vpop.f32.mrf.mxu0
  %v580 = vpop.f32.mrf.mxu0
  %v581 = vadd.f32 %v106, %v580
  %v582 = vpop.f32.mrf.mxu0
  %583 = vmatprep.mubr.bf16.mxu0 0
  %584 = vmatmul.mubr.bf16.gmra.mxu0 %v344
  %v585 = vpop.f32.mrf.mxu0
  %v586 = vadd.f32 %v106, %v585
  %v587 = vpop.f32.mrf.mxu0
  %v588 = vpop.f32.mrf.mxu0
  %v589 = vadd.f32 %v106, %v588
  %v590 = vpop.f32.mrf.mxu0
  %591 = vmatprep.mubr.bf16.mxu0 0
  %592 = vmatmul.mubr.bf16.gmra.mxu0 %v347
  %v593 = vpop.f32.mrf.mxu0
  %v594 = vadd.f32 %v106, %v593
  %v595 = vpop.f32.mrf.mxu0
  %v596 = vpop.f32.mrf.mxu0
  %v597 = vadd.f32 %v106, %v596
  %v598 = vpop.f32.mrf.mxu0
  %599 = vmatprep.mubr.bf16.mxu0 0
  %600 = vmatmul.mubr.bf16.gmra.mxu0 %v350
  %v601 = vpop.f32.mrf.mxu0
  %v602 = vadd.f32 %v106, %v601
  %v603 = vpop.f32.mrf.mxu0
  %v604 = vpop.f32.mrf.mxu0
  %v605 = vadd.f32 %v106, %v604
  %v606 = vpop.f32.mrf.mxu0
  %607 = vmatprep.mubr.bf16.mxu0 0
  %608 = vmatmul.mubr.bf16.gmra.mxu0 %v353
  %v609 = vpop.f32.mrf.mxu0
  %v610 = vadd.f32 %v106, %v609
  %v611 = vpop.f32.mrf.mxu0
  %v612 = vpop.f32.mrf.mxu0
  %v613 = vadd.f32 %v106, %v612
  %v614 = vpop.f32.mrf.mxu0
  %615 = vmatprep.mubr.bf16.mxu0 0
  %616 = vmatmul.mubr.bf16.gmra.mxu0 %v356
  %v617 = vpop.f32.mrf.mxu0
  %v618 = vadd.f32 %v106, %v617
  %v619 = vpop.f32.mrf.mxu0
  %v620 = vpop.f32.mrf.mxu0
  %v621 = vadd.f32 %v106, %v620
  %v622 = vpop.f32.mrf.mxu0
  %623 = vmatprep.mubr.bf16.mxu0 0
  %624 = vmatmul.mubr.bf16.gmra.mxu0 %v359
  %v625 = vpop.f32.mrf.mxu0
  %v626 = vadd.f32 %v106, %v625
  %v627 = vpop.f32.mrf.mxu0
  %v628 = vpop.f32.mrf.mxu0
  %v629 = vadd.f32 %v106, %v628
  %v630 = vpop.f32.mrf.mxu0
  %631 = vmatprep.mubr.bf16.mxu0 0
  %632 = vmatmul.mubr.bf16.gmra.mxu0 %v362
  %v633 = vpop.f32.mrf.mxu0
  %v634 = vadd.f32 %v106, %v633
  %v635 = vpop.f32.mrf.mxu0
  %v636 = vpop.f32.mrf.mxu0
  %v637 = vadd.f32 %v106, %v636
  %v638 = vpop.f32.mrf.mxu0
  %639 = vmatprep.mubr.bf16.mxu0 0
  %640 = vmatmul.mubr.bf16.gmra.mxu0 %v365
  %v641 = vpop.f32.mrf.mxu0
  %v642 = vadd.f32 %v106, %v641
  %v643 = vpop.f32.mrf.mxu0
  %v644 = vpop.f32.mrf.mxu0
  %v645 = vadd.f32 %v106, %v644
  %v646 = vpop.f32.mrf.mxu0
  %647 = vmatprep.mubr.bf16.mxu0 0
  %648 = vmatmul.mubr.bf16.gmra.mxu0 %v368
  %v649 = vpop.f32.mrf.mxu0
  %v650 = vadd.f32 %v106, %v649
  %v651 = vpop.f32.mrf.mxu0
  %v652 = vpop.f32.mrf.mxu0
  %v653 = vadd.f32 %v106, %v652
  %v654 = vpop.f32.mrf.mxu0
  %655 = vmatprep.mubr.bf16.mxu0 0
  %656 = vmatmul.mubr.bf16.gmra.mxu0 %v371
  %v657 = vpop.f32.mrf.mxu0
  %v658 = vadd.f32 %v106, %v657
  %v659 = vpop.f32.mrf.mxu0
  %v660 = vpop.f32.mrf.mxu0
  %v661 = vadd.f32 %v106, %v660
  %v662 = vpop.f32.mrf.mxu0
  %663 = vmatprep.mubr.bf16.mxu0 0
  %664 = vmatmul.mubr.bf16.gmra.mxu0 %v374
  %v665 = vpop.f32.mrf.mxu0
  %v666 = vadd.f32 %v106, %v665
  %v667 = vpop.f32.mrf.mxu0
  %v668 = vpop.f32.mrf.mxu0
  %v669 = vadd.f32 %v106, %v668
  %v670 = vpop.f32.mrf.mxu0
  %671 = vdwg.mxu0
  %vm672 = vcmask 523264
  %673 = vst.msk [vmem:[#allocation2] sm:$0xff] %vm672, 0.0
  %674 = vst.msk [vmem:[#allocation2 + $0x8] sm:$0xff] %vm672, 0.0
  %vm675 = vcmask 517120
  %676 = vst.msk [vmem:[#allocation2 + $0x10] sm:$0x3] %vm675, 0.0
  %677 = vst.msk [vmem:[#allocation2 + $0x18] sm:$0xff] %vm672, 0.0
  %678 = vst.msk [vmem:[#allocation2 + $0x20] sm:$0xff] %vm672, 0.0
  %679 = vst.msk [vmem:[#allocation2 + $0x28] sm:$0x3] %vm675, 0.0
  %680 = vst.msk [vmem:[#allocation2 + $0x30] sm:$0xff] %vm672, 0.0
  %681 = vst.msk [vmem:[#allocation2 + $0x38] sm:$0xff] %vm672, 0.0
  %682 = vst.msk [vmem:[#allocation2 + $0x40] sm:$0x3] %vm675, 0.0
  %683 = vst.msk [vmem:[#allocation2 + $0x48] sm:$0xff] %vm672, 0.0
  %684 = vst.msk [vmem:[#allocation2 + $0x50] sm:$0xff] %vm672, 0.0
  %685 = vst.msk [vmem:[#allocation2 + $0x58] sm:$0x3] %vm675, 0.0
  %686 = vst.msk [vmem:[#allocation2 + $0x60] sm:$0xff] %vm672, 0.0
  %687 = vst.msk [vmem:[#allocation2 + $0x68] sm:$0xff] %vm672, 0.0
  %688 = vst.msk [vmem:[#allocation2 + $0x70] sm:$0x3] %vm675, 0.0
  %689 = vst.msk [vmem:[#allocation2 + $0x78] sm:$0xff] %vm672, 0.0
  %690 = vst.msk [vmem:[#allocation2 + $0x80] sm:$0xff] %vm672, 0.0
  %691 = vst.msk [vmem:[#allocation2 + $0x88] sm:$0x3] %vm675, 0.0
  %692 = vst.msk [vmem:[#allocation2 + $0x90] sm:$0xff] %vm672, 0.0
  %693 = vst.msk [vmem:[#allocation2 + $0x98] sm:$0xff] %vm672, 0.0
  %694 = vst.msk [vmem:[#allocation2 + $0xa0] sm:$0x3] %vm675, 0.0
  %695 = vst.msk [vmem:[#allocation2 + $0xa8] sm:$0xff] %vm672, 0.0
  %696 = vst.msk [vmem:[#allocation2 + $0xb0] sm:$0xff] %vm672, 0.0
  %697 = vst.msk [vmem:[#allocation2 + $0xb8] sm:$0x3] %vm675, 0.0
  %698 = vst.msk [vmem:[#allocation2 + $0xc0] sm:$0xff] %vm672, 0.0
  %699 = vst.msk [vmem:[#allocation2 + $0xc8] sm:$0xff] %vm672, 0.0
  %700 = vst.msk [vmem:[#allocation2 + $0xd0] sm:$0x3] %vm675, 0.0
  %701 = vst.msk [vmem:[#allocation2 + $0xd8] sm:$0xff] %vm672, 0.0
  %702 = vst.msk [vmem:[#allocation2 + $0xe0] sm:$0xff] %vm672, 0.0
  %703 = vst.msk [vmem:[#allocation2 + $0xe8] sm:$0x3] %vm675, 0.0
  %704 = vst.msk [vmem:[#allocation2 + $0xf0] sm:$0xff] %vm672, 0.0
  %705 = vst.msk [vmem:[#allocation2 + $0xf8] sm:$0xff] %vm672, 0.0
  %706 = vst.msk [vmem:[#allocation2 + $0x100] sm:$0x3] %vm675, 0.0
  %707 = vst.msk [vmem:[#allocation2 + $0x108] sm:$0xff] %vm672, 0.0
  %708 = vst.msk [vmem:[#allocation2 + $0x110] sm:$0xff] %vm672, 0.0
  %709 = vst.msk [vmem:[#allocation2 + $0x118] sm:$0x3] %vm675, 0.0
  %710 = vst.msk [vmem:[#allocation2 + $0x120] sm:$0xff] %vm672, 0.0
  %711 = vst.msk [vmem:[#allocation2 + $0x128] sm:$0xff] %vm672, 0.0
  %712 = vst.msk [vmem:[#allocation2 + $0x130] sm:$0x3] %vm675, 0.0
  %713 = vst.msk [vmem:[#allocation2 + $0x138] sm:$0xff] %vm672, 0.0
  %714 = vst.msk [vmem:[#allocation2 + $0x140] sm:$0xff] %vm672, 0.0
  %715 = vst.msk [vmem:[#allocation2 + $0x148] sm:$0x3] %vm675, 0.0
  %716 = vst.msk [vmem:[#allocation2 + $0x150] sm:$0xff] %vm672, 0.0
  %717 = vst.msk [vmem:[#allocation2 + $0x158] sm:$0xff] %vm672, 0.0
  %718 = vst.msk [vmem:[#allocation2 + $0x160] sm:$0x3] %vm675, 0.0
  %719 = vst.msk [vmem:[#allocation2 + $0x168] sm:$0xff] %vm672, 0.0
  %720 = vst.msk [vmem:[#allocation2 + $0x170] sm:$0xff] %vm672, 0.0
  %721 = vst.msk [vmem:[#allocation2 + $0x178] sm:$0x3] %vm675, 0.0
  %722 = vst.msk [vmem:[#allocation2 + $0x180] sm:$0xff] %vm672, 0.0
  %723 = vst.msk [vmem:[#allocation2 + $0x188] sm:$0xff] %vm672, 0.0
  %724 = vst.msk [vmem:[#allocation2 + $0x190] sm:$0x3] %vm675, 0.0
  %725 = vst.msk [vmem:[#allocation2 + $0x198] sm:$0xff] %vm672, 0.0
  %726 = vst.msk [vmem:[#allocation2 + $0x1a0] sm:$0xff] %vm672, 0.0
  %727 = vst.msk [vmem:[#allocation2 + $0x1a8] sm:$0x3] %vm675, 0.0
  %728 = vst.msk [vmem:[#allocation2 + $0x1b0] sm:$0xff] %vm672, 0.0
  %729 = vst.msk [vmem:[#allocation2 + $0x1b8] sm:$0xff] %vm672, 0.0
  %730 = vst.msk [vmem:[#allocation2 + $0x1c0] sm:$0x3] %vm675, 0.0
  %731 = vst.msk [vmem:[#allocation2 + $0x1c8] sm:$0xff] %vm672, 0.0
  %732 = vst.msk [vmem:[#allocation2 + $0x1d0] sm:$0xff] %vm672, 0.0
  %733 = vst.msk [vmem:[#allocation2 + $0x1d8] sm:$0x3] %vm675, 0.0
  %734 = vst.msk [vmem:[#allocation2 + $0x1e0] sm:$0xff] %vm672, 0.0
  %735 = vst.msk [vmem:[#allocation2 + $0x1e8] sm:$0xff] %vm672, 0.0
  %736 = vst.msk [vmem:[#allocation2 + $0x1f0] sm:$0x3] %vm675, 0.0
  %737 = vst.msk [vmem:[#allocation2 + $0x1f8] sm:$0xff] %vm672, 0.0
  %738 = vst.msk [vmem:[#allocation2 + $0x200] sm:$0xff] %vm672, 0.0
  %739 = vst.msk [vmem:[#allocation2 + $0x208] sm:$0x3] %vm675, 0.0
  %740 = vst.msk [vmem:[#allocation2 + $0x210] sm:$0xff] %vm672, 0.0
  %741 = vst.msk [vmem:[#allocation2 + $0x218] sm:$0xff] %vm672, 0.0
  %742 = vst.msk [vmem:[#allocation2 + $0x220] sm:$0x3] %vm675, 0.0
  %743 = vst.msk [vmem:[#allocation2 + $0x228] sm:$0xff] %vm672, 0.0
  %744 = vst.msk [vmem:[#allocation2 + $0x230] sm:$0xff] %vm672, 0.0
  %745 = vst.msk [vmem:[#allocation2 + $0x238] sm:$0x3] %vm675, 0.0
  %746 = vst.msk [vmem:[#allocation2 + $0x240] sm:$0xff] %vm672, 0.0
  %747 = vst.msk [vmem:[#allocation2 + $0x248] sm:$0xff] %vm672, 0.0
  %748 = vst.msk [vmem:[#allocation2 + $0x250] sm:$0x3] %vm675, 0.0
  %749 = vst.msk [vmem:[#allocation2 + $0x258] sm:$0xff] %vm672, 0.0
  %750 = vst.msk [vmem:[#allocation2 + $0x260] sm:$0xff] %vm672, 0.0
  %751 = vst.msk [vmem:[#allocation2 + $0x268] sm:$0x3] %vm675, 0.0
  %752 = vst.msk [vmem:[#allocation2 + $0x270] sm:$0xff] %vm672, 0.0
  %753 = vst.msk [vmem:[#allocation2 + $0x278] sm:$0xff] %vm672, 0.0
  %754 = vst.msk [vmem:[#allocation2 + $0x280] sm:$0x3] %vm675, 0.0
  %755 = vst.msk [vmem:[#allocation2 + $0x288] sm:$0xff] %vm672, 0.0
  %756 = vst.msk [vmem:[#allocation2 + $0x290] sm:$0xff] %vm672, 0.0
  %757 = vst.msk [vmem:[#allocation2 + $0x298] sm:$0x3] %vm675, 0.0
  %758 = vst.msk [vmem:[#allocation2 + $0x2a0] sm:$0xff] %vm672, 0.0
  %759 = vst.msk [vmem:[#allocation2 + $0x2a8] sm:$0xff] %vm672, 0.0
  %760 = vst.msk [vmem:[#allocation2 + $0x2b0] sm:$0x3] %vm675, 0.0
  %761 = vst.msk [vmem:[#allocation2 + $0x2b8] sm:$0xff] %vm672, 0.0
  %762 = vst.msk [vmem:[#allocation2 + $0x2c0] sm:$0xff] %vm672, 0.0
  %763 = vst.msk [vmem:[#allocation2 + $0x2c8] sm:$0x3] %vm675, 0.0
  %764 = vst.msk [vmem:[#allocation2 + $0x2d0] sm:$0xff] %vm672, 0.0
  %765 = vst.msk [vmem:[#allocation2 + $0x2d8] sm:$0xff] %vm672, 0.0
  %766 = vst.msk [vmem:[#allocation2 + $0x2e0] sm:$0x3] %vm675, 0.0
  %767 = vst.msk [vmem:[#allocation2 + $0x2e8] sm:$0xff] %vm672, 0.0
  %768 = vst.msk [vmem:[#allocation2 + $0x2f0] sm:$0xff] %vm672, 0.0
  %769 = vst.msk [vmem:[#allocation2 + $0x2f8] sm:$0x3] %vm675, 0.0
  %770 = vst.msk [vmem:[#allocation2 + $0x300] sm:$0xff] %vm672, 0.0
  %771 = vst.msk [vmem:[#allocation2 + $0x308] sm:$0xff] %vm672, 0.0
  %772 = vst.msk [vmem:[#allocation2 + $0x310] sm:$0x3] %vm675, 0.0
  %773 = vst.msk [vmem:[#allocation2 + $0x318] sm:$0xff] %vm672, 0.0
  %774 = vst.msk [vmem:[#allocation2 + $0x320] sm:$0xff] %vm672, 0.0
  %775 = vst.msk [vmem:[#allocation2 + $0x328] sm:$0x3] %vm675, 0.0
  %776 = vst.msk [vmem:[#allocation2 + $0x330] sm:$0xff] %vm672, 0.0
  %777 = vst.msk [vmem:[#allocation2 + $0x338] sm:$0xff] %vm672, 0.0
  %778 = vst.msk [vmem:[#allocation2 + $0x340] sm:$0x3] %vm675, 0.0
  %779 = vst.msk [vmem:[#allocation2 + $0x348] sm:$0xff] %vm672, 0.0
  %780 = vst.msk [vmem:[#allocation2 + $0x350] sm:$0xff] %vm672, 0.0
  %781 = vst.msk [vmem:[#allocation2 + $0x358] sm:$0x3] %vm675, 0.0
  %s782 = scalar_lea.vmem [#allocation2], 24
  %783 = vst.msk [vmem:[%s782 + $0x1] sm:$0xff] %vm672, %v418
  %784 = vst.msk [vmem:[%s782 + $0x9] sm:$0xff] %vm672, %v421
  %785 = vst.msk [vmem:[%s782 + $0x19] sm:$0xff] %vm672, %v426
  %786 = vst.msk [vmem:[%s782 + $0x21] sm:$0xff] %vm672, %v429
  %787 = vst.msk [vmem:[%s782 + $0x31] sm:$0xff] %vm672, %v434
  %788 = vst.msk [vmem:[%s782 + $0x39] sm:$0xff] %vm672, %v437
  %789 = vst.msk [vmem:[%s782 + $0x49] sm:$0xff] %vm672, %v442
  %790 = vst.msk [vmem:[%s782 + $0x51] sm:$0xff] %vm672, %v445
  %791 = vst.msk [vmem:[%s782 + $0x61] sm:$0xff] %vm672, %v450
  %792 = vst.msk [vmem:[%s782 + $0x69] sm:$0xff] %vm672, %v453
  %793 = vst.msk [vmem:[%s782 + $0x79] sm:$0xff] %vm672, %v458
  %794 = vst.msk [vmem:[%s782 + $0x81] sm:$0xff] %vm672, %v461
  %795 = vst.msk [vmem:[%s782 + $0x91] sm:$0xff] %vm672, %v466
  %796 = vst.msk [vmem:[%s782 + $0x99] sm:$0xff] %vm672, %v469
  %797 = vst.msk [vmem:[%s782 + $0xa9] sm:$0xff] %vm672, %v474
  %798 = vst.msk [vmem:[%s782 + $0xb1] sm:$0xff] %vm672, %v477
  %799 = vst.msk [vmem:[%s782 + $0xc1] sm:$0xff] %vm672, %v482
  %800 = vst.msk [vmem:[%s782 + $0xc9] sm:$0xff] %vm672, %v485
  %801 = vst.msk [vmem:[%s782 + $0xd9] sm:$0xff] %vm672, %v490
  %802 = vst.msk [vmem:[%s782 + $0xe1] sm:$0xff] %vm672, %v493
  %803 = vst.msk [vmem:[%s782 + $0xf1] sm:$0xff] %vm672, %v498
  %804 = vst.msk [vmem:[%s782 + $0xf9] sm:$0xff] %vm672, %v501
  %805 = vst.msk [vmem:[%s782 + $0x109] sm:$0xff] %vm672, %v506
  %806 = vst.msk [vmem:[%s782 + $0x111] sm:$0xff] %vm672, %v509
  %807 = vst.msk [vmem:[%s782 + $0x121] sm:$0xff] %vm672, %v514
  %808 = vst.msk [vmem:[%s782 + $0x129] sm:$0xff] %vm672, %v517
  %809 = vst.msk [vmem:[%s782 + $0x139] sm:$0xff] %vm672, %v522
  %810 = vst.msk [vmem:[%s782 + $0x141] sm:$0xff] %vm672, %v525
  %811 = vst.msk [vmem:[%s782 + $0x151] sm:$0xff] %vm672, %v530
  %812 = vst.msk [vmem:[%s782 + $0x159] sm:$0xff] %vm672, %v533
  %813 = vst.msk [vmem:[%s782 + $0x169] sm:$0xff] %vm672, %v538
  %814 = vst.msk [vmem:[%s782 + $0x171] sm:$0xff] %vm672, %v541
  %815 = vst.msk [vmem:[%s782 + $0x1b1] sm:$0xff] %vm672, %v546
  %816 = vst.msk [vmem:[%s782 + $0x1b9] sm:$0xff] %vm672, %v549
  %817 = vst.msk [vmem:[%s782 + $0x1c9] sm:$0xff] %vm672, %v554
  %818 = vst.msk [vmem:[%s782 + $0x1d1] sm:$0xff] %vm672, %v557
  %819 = vst.msk [vmem:[%s782 + $0x1e1] sm:$0xff] %vm672, %v562
  %820 = vst.msk [vmem:[%s782 + $0x1e9] sm:$0xff] %vm672, %v565
  %821 = vst.msk [vmem:[%s782 + $0x1f9] sm:$0xff] %vm672, %v570
  %822 = vst.msk [vmem:[%s782 + $0x201] sm:$0xff] %vm672, %v573
  %823 = vst.msk [vmem:[%s782 + $0x211] sm:$0xff] %vm672, %v578
  %824 = vst.msk [vmem:[%s782 + $0x219] sm:$0xff] %vm672, %v581
  %825 = vst.msk [vmem:[%s782 + $0x229] sm:$0xff] %vm672, %v586
  %826 = vst.msk [vmem:[%s782 + $0x231] sm:$0xff] %vm672, %v589
  %827 = vst.msk [vmem:[%s782 + $0x241] sm:$0xff] %vm672, %v594
  %828 = vst.msk [vmem:[%s782 + $0x249] sm:$0xff] %vm672, %v597
  %829 = vst.msk [vmem:[%s782 + $0x259] sm:$0xff] %vm672, %v602
  %830 = vst.msk [vmem:[%s782 + $0x261] sm:$0xff] %vm672, %v605
  %831 = vst.msk [vmem:[%s782 + $0x271] sm:$0xff] %vm672, %v610
  %832 = vst.msk [vmem:[%s782 + $0x279] sm:$0xff] %vm672, %v613
  %833 = vst.msk [vmem:[%s782 + $0x289] sm:$0xff] %vm672, %v618
  %834 = vst.msk [vmem:[%s782 + $0x291] sm:$0xff] %vm672, %v621
  %835 = vst.msk [vmem:[%s782 + $0x2a1] sm:$0xff] %vm672, %v626
  %836 = vst.msk [vmem:[%s782 + $0x2a9] sm:$0xff] %vm672, %v629
  %837 = vst.msk [vmem:[%s782 + $0x2b9] sm:$0xff] %vm672, %v634
  %838 = vst.msk [vmem:[%s782 + $0x2c1] sm:$0xff] %vm672, %v637
  %839 = vst.msk [vmem:[%s782 + $0x2d1] sm:$0xff] %vm672, %v642
  %840 = vst.msk [vmem:[%s782 + $0x2d9] sm:$0xff] %vm672, %v645
  %841 = vst.msk [vmem:[%s782 + $0x2e9] sm:$0xff] %vm672, %v650
  %842 = vst.msk [vmem:[%s782 + $0x2f1] sm:$0xff] %vm672, %v653
  %843 = vst.msk [vmem:[%s782 + $0x301] sm:$0xff] %vm672, %v658
  %844 = vst.msk [vmem:[%s782 + $0x309] sm:$0xff] %vm672, %v661
  %845 = vst.msk [vmem:[%s782 + $0x319] sm:$0xff] %vm672, %v666
  %846 = vst.msk [vmem:[%s782 + $0x321] sm:$0xff] %vm672, %v669
  %v847 = vld [vmem:[#allocation2] sm:$0xff]
  %v848 = vld [vmem:[#allocation2 + $0x8] sm:$0xff]
  %v849 = vld [vmem:[#allocation2 + $0x18] sm:$0xff]
  %v850 = vld [vmem:[#allocation2 + $0x20] sm:$0xff]
  %v851 = vld [vmem:[#allocation2 + $0x30] sm:$0xff]
  %v852 = vld [vmem:[#allocation2 + $0x38] sm:$0xff]
  %v853 = vld [vmem:[#allocation2 + $0x48] sm:$0xff]
  %v854 = vld [vmem:[#allocation2 + $0x50] sm:$0xff]
  %v855 = vld [vmem:[#allocation2 + $0x60] sm:$0xff]
  %v856 = vld [vmem:[#allocation2 + $0x68] sm:$0xff]
  %v857 = vld [vmem:[#allocation2 + $0x78] sm:$0xff]
  %v858 = vld [vmem:[#allocation2 + $0x80] sm:$0xff]
  %v859 = vld [vmem:[#allocation2 + $0x90] sm:$0xff]
  %v860 = vld [vmem:[#allocation2 + $0x98] sm:$0xff]
  %v861 = vld [vmem:[#allocation2 + $0xa8] sm:$0xff]
  %v862 = vld [vmem:[#allocation2 + $0xb0] sm:$0xff]
  %v863 = vld [vmem:[#allocation2 + $0xc0] sm:$0xff]
  %v864 = vld [vmem:[#allocation2 + $0xc8] sm:$0xff]
  %v865 = vld [vmem:[#allocation2 + $0xd8] sm:$0xff]
  %v866 = vld [vmem:[#allocation2 + $0xe0] sm:$0xff]
  %v867 = vld [vmem:[#allocation2 + $0xf0] sm:$0xff]
  %v868 = vld [vmem:[#allocation2 + $0xf8] sm:$0xff]
  %v869 = vld [vmem:[#allocation2 + $0x108] sm:$0xff]
  %v870 = vld [vmem:[#allocation2 + $0x110] sm:$0xff]
  %v871 = vld [vmem:[#allocation2 + $0x120] sm:$0xff]
  %v872 = vld [vmem:[#allocation2 + $0x128] sm:$0xff]
  %v873 = vld [vmem:[#allocation2 + $0x138] sm:$0xff]
  %v874 = vld [vmem:[#allocation2 + $0x140] sm:$0xff]
  %v875 = vld [vmem:[#allocation2 + $0x150] sm:$0xff]
  %v876 = vld [vmem:[#allocation2 + $0x158] sm:$0xff]
  %v877 = vld [vmem:[#allocation2 + $0x168] sm:$0xff]
  %v878 = vld [vmem:[#allocation2 + $0x170] sm:$0xff]
  %v879 = vld [vmem:[#allocation2 + $0x1b0] sm:$0xff]
  %v880 = vld [vmem:[#allocation2 + $0x1b8] sm:$0xff]
  %v881 = vld [vmem:[#allocation2 + $0x1c8] sm:$0xff]
  %v882 = vld [vmem:[#allocation2 + $0x1d0] sm:$0xff]
  %v883 = vld [vmem:[#allocation2 + $0x1e0] sm:$0xff]
  %v884 = vld [vmem:[#allocation2 + $0x1e8] sm:$0xff]
  %v885 = vld [vmem:[#allocation2 + $0x1f8] sm:$0xff]
  %v886 = vld [vmem:[#allocation2 + $0x200] sm:$0xff]
  %v887 = vld [vmem:[#allocation2 + $0x210] sm:$0xff]
  %v888 = vld [vmem:[#allocation2 + $0x218] sm:$0xff]
  %v889 = vld [vmem:[#allocation2 + $0x228] sm:$0xff]
  %v890 = vld [vmem:[#allocation2 + $0x230] sm:$0xff]
  %v891 = vld [vmem:[#allocation2 + $0x240] sm:$0xff]
  %v892 = vld [vmem:[#allocation2 + $0x248] sm:$0xff]
  %v893 = vld [vmem:[#allocation2 + $0x258] sm:$0xff]
  %v894 = vld [vmem:[#allocation2 + $0x260] sm:$0xff]
  %v895 = vld [vmem:[#allocation2 + $0x270] sm:$0xff]
  %v896 = vld [vmem:[#allocation2 + $0x278] sm:$0xff]
  %v897 = vld [vmem:[#allocation2 + $0x288] sm:$0xff]
  %v898 = vld [vmem:[#allocation2 + $0x290] sm:$0xff]
  %v899 = vld [vmem:[#allocation2 + $0x2a0] sm:$0xff]
  %v900 = vld [vmem:[#allocation2 + $0x2a8] sm:$0xff]
  %v901 = vld [vmem:[#allocation2 + $0x2b8] sm:$0xff]
  %v902 = vld [vmem:[#allocation2 + $0x2c0] sm:$0xff]
  %v903 = vld [vmem:[#allocation2 + $0x2d0] sm:$0xff]
  %v904 = vld [vmem:[#allocation2 + $0x2d8] sm:$0xff]
  %v905 = vld [vmem:[#allocation2 + $0x2e8] sm:$0xff]
  %v906 = vld [vmem:[#allocation2 + $0x2f0] sm:$0xff]
  %v907 = vld [vmem:[#allocation2 + $0x300] sm:$0xff]
  %v908 = vld [vmem:[#allocation2 + $0x308] sm:$0xff]
  %v909 = vld [vmem:[#allocation2 + $0x318] sm:$0xff]
  %v910 = vld [vmem:[#allocation2 + $0x320] sm:$0xff]
  %v911 = vpack.c.bf16 %v848, %v847
  %v912 = vpack.c.bf16 %v850, %v849
  %v913 = vpack.c.bf16 %v852, %v851
  %v914 = vpack.c.bf16 %v854, %v853
  %v915 = vpack.c.bf16 %v856, %v855
  %v916 = vpack.c.bf16 %v858, %v857
  %v917 = vpack.c.bf16 %v860, %v859
  %v918 = vpack.c.bf16 %v862, %v861
  %v919 = vpack.c.bf16 %v864, %v863
  %v920 = vpack.c.bf16 %v866, %v865
  %v921 = vpack.c.bf16 %v868, %v867
  %v922 = vpack.c.bf16 %v870, %v869
  %v923 = vpack.c.bf16 %v872, %v871
  %v924 = vpack.c.bf16 %v874, %v873
  %v925 = vpack.c.bf16 %v876, %v875
  %v926 = vpack.c.bf16 %v878, %v877
  %v927 = vpack.c.bf16 %v880, %v879
  %v928 = vpack.c.bf16 %v882, %v881
  %v929 = vpack.c.bf16 %v884, %v883
  %v930 = vpack.c.bf16 %v886, %v885
  %v931 = vpack.c.bf16 %v888, %v887
  %v932 = vpack.c.bf16 %v890, %v889
  %v933 = vpack.c.bf16 %v892, %v891
  %v934 = vpack.c.bf16 %v894, %v893
  %v935 = vpack.c.bf16 %v896, %v895
  %v936 = vpack.c.bf16 %v898, %v897
  %v937 = vpack.c.bf16 %v900, %v899
  %v938 = vpack.c.bf16 %v902, %v901
  %v939 = vpack.c.bf16 %v904, %v903
  %v940 = vpack.c.bf16 %v906, %v905
  %v941 = vpack.c.bf16 %v908, %v907
  %v942 = vpack.c.bf16 %v910, %v909
  %v975 = vunpack.c.l.b16 %v911
  %v976 = vunpack.c.h.b16 %v911
  %v977 = vunpack.c.l.b16 %v912
  %v978 = vunpack.c.h.b16 %v912
  %v979 = vunpack.c.l.b16 %v913
  %v980 = vunpack.c.h.b16 %v913
  %v981 = vunpack.c.l.b16 %v914
  %v982 = vunpack.c.h.b16 %v914
  %v983 = vunpack.c.l.b16 %v915
  %v984 = vunpack.c.h.b16 %v915
  %v985 = vunpack.c.l.b16 %v916
  %v986 = vunpack.c.h.b16 %v916
  %v987 = vunpack.c.l.b16 %v917
  %v988 = vunpack.c.h.b16 %v917
  %v989 = vunpack.c.l.b16 %v918
  %v990 = vunpack.c.h.b16 %v918
  %v991 = vunpack.c.l.b16 %v919
  %v992 = vunpack.c.h.b16 %v919
  %v993 = vunpack.c.l.b16 %v920
  %v994 = vunpack.c.h.b16 %v920
  %v995 = vunpack.c.l.b16 %v921
  %v996 = vunpack.c.h.b16 %v921
  %v997 = vunpack.c.l.b16 %v922
  %v998 = vunpack.c.h.b16 %v922
  %v999 = vunpack.c.l.b16 %v923
  %v1000 = vunpack.c.h.b16 %v923
  %v1001 = vunpack.c.l.b16 %v924
  %v1002 = vunpack.c.h.b16 %v924
  %v1003 = vunpack.c.l.b16 %v925
  %v1004 = vunpack.c.h.b16 %v925
  %v1005 = vunpack.c.l.b16 %v926
  %v1006 = vunpack.c.h.b16 %v926
  %v1007 = vunpack.c.l.b16 %v927
  %v1008 = vunpack.c.h.b16 %v927
  %v1009 = vunpack.c.l.b16 %v928
  %v1010 = vunpack.c.h.b16 %v928
  %v1011 = vunpack.c.l.b16 %v929
  %v1012 = vunpack.c.h.b16 %v929
  %v1013 = vunpack.c.l.b16 %v930
  %v1014 = vunpack.c.h.b16 %v930
  %v1015 = vunpack.c.l.b16 %v931
  %v1016 = vunpack.c.h.b16 %v931
  %v1017 = vunpack.c.l.b16 %v932
  %v1018 = vunpack.c.h.b16 %v932
  %v1019 = vunpack.c.l.b16 %v933
  %v1020 = vunpack.c.h.b16 %v933
  %v1021 = vunpack.c.l.b16 %v934
  %v1022 = vunpack.c.h.b16 %v934
  %v1023 = vunpack.c.l.b16 %v935
  %v1024 = vunpack.c.h.b16 %v935
  %v1025 = vunpack.c.l.b16 %v936
  %v1026 = vunpack.c.h.b16 %v936
  %v1027 = vunpack.c.l.b16 %v937
  %v1028 = vunpack.c.h.b16 %v937
  %v1029 = vunpack.c.l.b16 %v938
  %v1030 = vunpack.c.h.b16 %v938
  %v1031 = vunpack.c.l.b16 %v939
  %v1032 = vunpack.c.h.b16 %v939
  %v1033 = vunpack.c.l.b16 %v940
  %v1034 = vunpack.c.h.b16 %v940
  %v1035 = vunpack.c.l.b16 %v941
  %v1036 = vunpack.c.h.b16 %v941
  %v1037 = vunpack.c.l.b16 %v942
  %v1038 = vunpack.c.h.b16 %v942
  %v1039 = vpack.c.b16 %v975, %v975
  %v1040 = vpack.c.b16 %v976, %v976
  %v1041 = vpack.c.b16 %v977, %v977
  %v1042 = vpack.c.b16 %v978, %v978
  %v1043 = vpack.c.b16 %v979, %v979
  %v1044 = vpack.c.b16 %v980, %v980
  %v1045 = vpack.c.b16 %v981, %v981
  %v1046 = vpack.c.b16 %v982, %v982
  %v1047 = vpack.c.b16 %v983, %v983
  %v1048 = vpack.c.b16 %v984, %v984
  %v1049 = vpack.c.b16 %v985, %v985
  %v1050 = vpack.c.b16 %v986, %v986
  %v1051 = vpack.c.b16 %v987, %v987
  %v1052 = vpack.c.b16 %v988, %v988
  %v1053 = vpack.c.b16 %v989, %v989
  %v1054 = vpack.c.b16 %v990, %v990
  %v1055 = vpack.c.b16 %v991, %v991
  %v1056 = vpack.c.b16 %v992, %v992
  %v1057 = vpack.c.b16 %v993, %v993
  %v1058 = vpack.c.b16 %v994, %v994
  %v1059 = vpack.c.b16 %v995, %v995
  %v1060 = vpack.c.b16 %v996, %v996
  %v1061 = vpack.c.b16 %v997, %v997
  %v1062 = vpack.c.b16 %v998, %v998
  %v1063 = vpack.c.b16 %v999, %v999
  %v1064 = vpack.c.b16 %v1000, %v1000
  %v1065 = vpack.c.b16 %v1001, %v1001
  %v1066 = vpack.c.b16 %v1002, %v1002
  %v1067 = vpack.c.b16 %v1003, %v1003
  %v1068 = vpack.c.b16 %v1004, %v1004
  %v1069 = vpack.c.b16 %v1005, %v1005
  %v1070 = vpack.c.b16 %v1006, %v1006
  %v1071 = vpack.c.b16 %v1007, %v1007
  %v1072 = vpack.c.b16 %v1008, %v1008
  %v1073 = vpack.c.b16 %v1009, %v1009
  %v1074 = vpack.c.b16 %v1010, %v1010
  %v1075 = vpack.c.b16 %v1011, %v1011
  %v1076 = vpack.c.b16 %v1012, %v1012
  %v1077 = vpack.c.b16 %v1013, %v1013
  %v1078 = vpack.c.b16 %v1014, %v1014
  %v1079 = vpack.c.b16 %v1015, %v1015
  %v1080 = vpack.c.b16 %v1016, %v1016
  %v1081 = vpack.c.b16 %v1017, %v1017
  %v1082 = vpack.c.b16 %v1018, %v1018
  %v1083 = vpack.c.b16 %v1019, %v1019
  %v1084 = vpack.c.b16 %v1020, %v1020
  %v1085 = vpack.c.b16 %v1021, %v1021
  %v1086 = vpack.c.b16 %v1022, %v1022
  %v1087 = vpack.c.b16 %v1023, %v1023
  %v1088 = vpack.c.b16 %v1024, %v1024
  %v1089 = vpack.c.b16 %v1025, %v1025
  %v1090 = vpack.c.b16 %v1026, %v1026
  %v1091 = vpack.c.b16 %v1027, %v1027
  %v1092 = vpack.c.b16 %v1028, %v1028
  %v1093 = vpack.c.b16 %v1029, %v1029
  %v1094 = vpack.c.b16 %v1030, %v1030
  %v1095 = vpack.c.b16 %v1031, %v1031
  %v1096 = vpack.c.b16 %v1032, %v1032
  %v1097 = vpack.c.b16 %v1033, %v1033
  %v1098 = vpack.c.b16 %v1034, %v1034
  %v1099 = vpack.c.b16 %v1035, %v1035
  %v1100 = vpack.c.b16 %v1036, %v1036
  %v1101 = vpack.c.b16 %v1037, %v1037
  %v1102 = vpack.c.b16 %v1038, %v1038
  %vm1167 = vcmask 519168
  %1168 = vst.msk [vmem:[#allocation3] sm:$0xf] %vm1167, %v1039
  %1169 = vst.msk [vmem:[#allocation3 + $0x14] sm:$0xf] %vm1167, %v1040
  %1170 = vst.msk [vmem:[#allocation3 + $0x28] sm:$0xf] %vm1167, %v1041
  %1171 = vst.msk [vmem:[#allocation3 + $0x3c] sm:$0xf] %vm1167, %v1042
  %1172 = vst.msk [vmem:[#allocation3 + $0x50] sm:$0xf] %vm1167, %v1043
  %1173 = vst.msk [vmem:[#allocation3 + $0x64] sm:$0xf] %vm1167, %v1044
  %1174 = vst.msk [vmem:[#allocation3 + $0x78] sm:$0xf] %vm1167, %v1045
  %1175 = vst.msk [vmem:[#allocation3 + $0x8c] sm:$0xf] %vm1167, %v1046
  %1176 = vst.msk [vmem:[#allocation3 + $0xa0] sm:$0xf] %vm1167, %v1047
  %1177 = vst.msk [vmem:[#allocation3 + $0xb4] sm:$0xf] %vm1167, %v1048
  %1178 = vst.msk [vmem:[#allocation3 + $0xc8] sm:$0xf] %vm1167, %v1049
  %1179 = vst.msk [vmem:[#allocation3 + $0xdc] sm:$0xf] %vm1167, %v1050
  %1180 = vst.msk [vmem:[#allocation3 + $0xf0] sm:$0xf] %vm1167, %v1051
  %1181 = vst.msk [vmem:[#allocation3 + $0x104] sm:$0xf] %vm1167, %v1052
  %1182 = vst.msk [vmem:[#allocation3 + $0x118] sm:$0xf] %vm1167, %v1053
  %1183 = vst.msk [vmem:[#allocation3 + $0x12c] sm:$0xf] %vm1167, %v1054
  %1184 = vst.msk [vmem:[#allocation3 + $0x140] sm:$0xf] %vm1167, %v1055
  %1185 = vst.msk [vmem:[#allocation3 + $0x154] sm:$0xf] %vm1167, %v1056
  %1186 = vst.msk [vmem:[#allocation3 + $0x168] sm:$0xf] %vm1167, %v1057
  %1187 = vst.msk [vmem:[#allocation3 + $0x17c] sm:$0xf] %vm1167, %v1058
  %1188 = vst.msk [vmem:[#allocation3 + $0x190] sm:$0xf] %vm1167, %v1059
  %1189 = vst.msk [vmem:[#allocation3 + $0x1a4] sm:$0xf] %vm1167, %v1060
  %1190 = vst.msk [vmem:[#allocation3 + $0x1b8] sm:$0xf] %vm1167, %v1061
  %1191 = vst.msk [vmem:[#allocation3 + $0x1cc] sm:$0xf] %vm1167, %v1062
  %1192 = vst.msk [vmem:[#allocation3 + $0x1e0] sm:$0xf] %vm1167, %v1063
  %1193 = vst.msk [vmem:[#allocation3 + $0x1f4] sm:$0xf] %vm1167, %v1064
  %1194 = vst.msk [vmem:[#allocation3 + $0x208] sm:$0xf] %vm1167, %v1065
  %1195 = vst.msk [vmem:[#allocation3 + $0x21c] sm:$0xf] %vm1167, %v1066
  %1196 = vst.msk [vmem:[#allocation3 + $0x230] sm:$0xf] %vm1167, %v1067
  %1197 = vst.msk [vmem:[#allocation3 + $0x244] sm:$0xf] %vm1167, %v1068
  %1198 = vst.msk [vmem:[#allocation3 + $0x258] sm:$0xf] %vm1167, %v1069
  %1199 = vst.msk [vmem:[#allocation3 + $0x26c] sm:$0xf] %vm1167, %v1070
  %1200 = vst.msk [vmem:[#allocation3 + $0x280] sm:$0xf] %vm1167, %v1071
  %1201 = vst.msk [vmem:[#allocation3 + $0x294] sm:$0xf] %vm1167, %v1072
  %1202 = vst.msk [vmem:[#allocation3 + $0x2a8] sm:$0xf] %vm1167, %v1073
  %1203 = vst.msk [vmem:[#allocation3 + $0x2bc] sm:$0xf] %vm1167, %v1074
  %1204 = vst.msk [vmem:[#allocation3 + $0x2d0] sm:$0xf] %vm1167, %v1075
  %1205 = vst.msk [vmem:[#allocation3 + $0x2e4] sm:$0xf] %vm1167, %v1076
  %1206 = vst.msk [vmem:[#allocation3 + $0x2f8] sm:$0xf] %vm1167, %v1077
  %1207 = vst.msk [vmem:[#allocation3 + $0x30c] sm:$0xf] %vm1167, %v1078
  %1208 = vst.msk [vmem:[#allocation3 + $0x320] sm:$0xf] %vm1167, %v1079
  %1209 = vst.msk [vmem:[#allocation3 + $0x334] sm:$0xf] %vm1167, %v1080
  %1210 = vst.msk [vmem:[#allocation3 + $0x348] sm:$0xf] %vm1167, %v1081
  %1211 = vst.msk [vmem:[#allocation3 + $0x35c] sm:$0xf] %vm1167, %v1082
  %1212 = vst.msk [vmem:[#allocation3 + $0x370] sm:$0xf] %vm1167, %v1083
  %1213 = vst.msk [vmem:[#allocation3 + $0x384] sm:$0xf] %vm1167, %v1084
  %1214 = vst.msk [vmem:[#allocation3 + $0x398] sm:$0xf] %vm1167, %v1085
  %1215 = vst.msk [vmem:[#allocation3 + $0x3ac] sm:$0xf] %vm1167, %v1086
  %1216 = vst.msk [vmem:[#allocation3 + $0x3c0] sm:$0xf] %vm1167, %v1087
  %1217 = vst.msk [vmem:[#allocation3 + $0x3d4] sm:$0xf] %vm1167, %v1088
  %1218 = vst.msk [vmem:[#allocation3 + $0x3e8] sm:$0xf] %vm1167, %v1089
  %1219 = vst.msk [vmem:[#allocation3 + $0x3fc] sm:$0xf] %vm1167, %v1090
  %1220 = vst.msk [vmem:[#allocation3 + $0x410] sm:$0xf] %vm1167, %v1091
  %1221 = vst.msk [vmem:[#allocation3 + $0x424] sm:$0xf] %vm1167, %v1092
  %1222 = vst.msk [vmem:[#allocation3 + $0x438] sm:$0xf] %vm1167, %v1093
  %1223 = vst.msk [vmem:[#allocation3 + $0x44c] sm:$0xf] %vm1167, %v1094
  %1224 = vst.msk [vmem:[#allocation3 + $0x460] sm:$0xf] %vm1167, %v1095
  %1225 = vst.msk [vmem:[#allocation3 + $0x474] sm:$0xf] %vm1167, %v1096
  %1226 = vst.msk [vmem:[#allocation3 + $0x488] sm:$0xf] %vm1167, %v1097
  %1227 = vst.msk [vmem:[#allocation3 + $0x49c] sm:$0xf] %vm1167, %v1098
  %1228 = vst.msk [vmem:[#allocation3 + $0x4b0] sm:$0xf] %vm1167, %v1099
  %1229 = vst.msk [vmem:[#allocation3 + $0x4c4] sm:$0xf] %vm1167, %v1100
  %1230 = vst.msk [vmem:[#allocation3 + $0x4d8] sm:$0xf] %vm1167, %v1101
  %1231 = vst.msk [vmem:[#allocation3 + $0x4ec] sm:$0xf] %vm1167, %v1102
  %v1232 = vld [vmem:[#allocation2 + $0x1] sm:$0xff]
  %v1233 = vld [vmem:[#allocation2 + $0x9] sm:$0xff]
  %v1234 = vld [vmem:[#allocation2 + $0x19] sm:$0xff]
  %v1235 = vld [vmem:[#allocation2 + $0x21] sm:$0xff]
  %v1236 = vld [vmem:[#allocation2 + $0x31] sm:$0xff]
  %v1237 = vld [vmem:[#allocation2 + $0x39] sm:$0xff]
  %v1238 = vld [vmem:[#allocation2 + $0x49] sm:$0xff]
  %v1239 = vld [vmem:[#allocation2 + $0x51] sm:$0xff]
  %v1240 = vld [vmem:[#allocation2 + $0x61] sm:$0xff]
  %v1241 = vld [vmem:[#allocation2 + $0x69] sm:$0xff]
  %v1242 = vld [vmem:[#allocation2 + $0x79] sm:$0xff]
  %v1243 = vld [vmem:[#allocation2 + $0x81] sm:$0xff]
  %v1244 = vld [vmem:[#allocation2 + $0x91] sm:$0xff]
  %v1245 = vld [vmem:[#allocation2 + $0x99] sm:$0xff]
  %v1246 = vld [vmem:[#allocation2 + $0xa9] sm:$0xff]
  %v1247 = vld [vmem:[#allocation2 + $0xb1] sm:$0xff]
  %v1248 = vld [vmem:[#allocation2 + $0xc1] sm:$0xff]
  %v1249 = vld [vmem:[#allocation2 + $0xc9] sm:$0xff]
  %v1250 = vld [vmem:[#allocation2 + $0xd9] sm:$0xff]
  %v1251 = vld [vmem:[#allocation2 + $0xe1] sm:$0xff]
  %v1252 = vld [vmem:[#allocation2 + $0xf1] sm:$0xff]
  %v1253 = vld [vmem:[#allocation2 + $0xf9] sm:$0xff]
  %v1254 = vld [vmem:[#allocation2 + $0x109] sm:$0xff]
  %v1255 = vld [vmem:[#allocation2 + $0x111] sm:$0xff]
  %v1256 = vld [vmem:[#allocation2 + $0x121] sm:$0xff]
  %v1257 = vld [vmem:[#allocation2 + $0x129] sm:$0xff]
  %v1258 = vld [vmem:[#allocation2 + $0x139] sm:$0xff]
  %v1259 = vld [vmem:[#allocation2 + $0x141] sm:$0xff]
  %v1260 = vld [vmem:[#allocation2 + $0x151] sm:$0xff]
  %v1261 = vld [vmem:[#allocation2 + $0x159] sm:$0xff]
  %v1262 = vld [vmem:[#allocation2 + $0x169] sm:$0xff]
  %v1263 = vld [vmem:[#allocation2 + $0x171] sm:$0xff]
  %v1264 = vld [vmem:[#allocation2 + $0x1b1] sm:$0xff]
  %v1265 = vld [vmem:[#allocation2 + $0x1b9] sm:$0xff]
  %v1266 = vld [vmem:[#allocation2 + $0x1c9] sm:$0xff]
  %v1267 = vld [vmem:[#allocation2 + $0x1d1] sm:$0xff]
  %v1268 = vld [vmem:[#allocation2 + $0x1e1] sm:$0xff]
  %v1269 = vld [vmem:[#allocation2 + $0x1e9] sm:$0xff]
  %v1270 = vld [vmem:[#allocation2 + $0x1f9] sm:$0xff]
  %v1271 = vld [vmem:[#allocation2 + $0x201] sm:$0xff]
  %v1272 = vld [vmem:[#allocation2 + $0x211] sm:$0xff]
  %v1273 = vld [vmem:[#allocation2 + $0x219] sm:$0xff]
  %v1274 = vld [vmem:[#allocation2 + $0x229] sm:$0xff]
  %v1275 = vld [vmem:[#allocation2 + $0x231] sm:$0xff]
  %v1276 = vld [vmem:[#allocation2 + $0x241] sm:$0xff]
  %v1277 = vld [vmem:[#allocation2 + $0x249] sm:$0xff]
  %v1278 = vld [vmem:[#allocation2 + $0x259] sm:$0xff]
  %v1279 = vld [vmem:[#allocation2 + $0x261] sm:$0xff]
  %v1280 = vld [vmem:[#allocation2 + $0x271] sm:$0xff]
  %v1281 = vld [vmem:[#allocation2 + $0x279] sm:$0xff]
  %v1282 = vld [vmem:[#allocation2 + $0x289] sm:$0xff]
  %v1283 = vld [vmem:[#allocation2 + $0x291] sm:$0xff]
  %v1284 = vld [vmem:[#allocation2 + $0x2a1] sm:$0xff]
  %v1285 = vld [vmem:[#allocation2 + $0x2a9] sm:$0xff]
  %v1286 = vld [vmem:[#allocation2 + $0x2b9] sm:$0xff]
  %v1287 = vld [vmem:[#allocation2 + $0x2c1] sm:$0xff]
  %v1288 = vld [vmem:[#allocation2 + $0x2d1] sm:$0xff]
  %v1289 = vld [vmem:[#allocation2 + $0x2d9] sm:$0xff]
  %v1290 = vld [vmem:[#allocation2 + $0x2e9] sm:$0xff]
  %v1291 = vld [vmem:[#allocation2 + $0x2f1] sm:$0xff]
  %v1292 = vld [vmem:[#allocation2 + $0x301] sm:$0xff]
  %v1293 = vld [vmem:[#allocation2 + $0x309] sm:$0xff]
  %v1294 = vld [vmem:[#allocation2 + $0x319] sm:$0xff]
  %v1295 = vld [vmem:[#allocation2 + $0x321] sm:$0xff]
  %v1296 = vpack.c.bf16 %v1233, %v1232
  %v1297 = vpack.c.bf16 %v1235, %v1234
  %v1298 = vpack.c.bf16 %v1237, %v1236
  %v1299 = vpack.c.bf16 %v1239, %v1238
  %v1300 = vpack.c.bf16 %v1241, %v1240
  %v1301 = vpack.c.bf16 %v1243, %v1242
  %v1302 = vpack.c.bf16 %v1245, %v1244
  %v1303 = vpack.c.bf16 %v1247, %v1246
  %v1304 = vpack.c.bf16 %v1249, %v1248
  %v1305 = vpack.c.bf16 %v1251, %v1250
  %v1306 = vpack.c.bf16 %v1253, %v1252
  %v1307 = vpack.c.bf16 %v1255, %v1254
  %v1308 = vpack.c.bf16 %v1257, %v1256
  %v1309 = vpack.c.bf16 %v1259, %v1258
  %v1310 = vpack.c.bf16 %v1261, %v1260
  %v1311 = vpack.c.bf16 %v1263, %v1262
  %v1312 = vpack.c.bf16 %v1265, %v1264
  %v1313 = vpack.c.bf16 %v1267, %v1266
  %v1314 = vpack.c.bf16 %v1269, %v1268
  %v1315 = vpack.c.bf16 %v1271, %v1270
  %v1316 = vpack.c.bf16 %v1273, %v1272
  %v1317 = vpack.c.bf16 %v1275, %v1274
  %v1318 = vpack.c.bf16 %v1277, %v1276
  %v1319 = vpack.c.bf16 %v1279, %v1278
  %v1320 = vpack.c.bf16 %v1281, %v1280
  %v1321 = vpack.c.bf16 %v1283, %v1282
  %v1322 = vpack.c.bf16 %v1285, %v1284
  %v1323 = vpack.c.bf16 %v1287, %v1286
  %v1324 = vpack.c.bf16 %v1289, %v1288
  %v1325 = vpack.c.bf16 %v1291, %v1290
  %v1326 = vpack.c.bf16 %v1293, %v1292
  %v1327 = vpack.c.bf16 %v1295, %v1294
  %v1360 = vunpack.c.l.b16 %v1296
  %v1361 = vunpack.c.h.b16 %v1296
  %v1362 = vunpack.c.l.b16 %v1297
  %v1363 = vunpack.c.h.b16 %v1297
  %v1364 = vunpack.c.l.b16 %v1298
  %v1365 = vunpack.c.h.b16 %v1298
  %v1366 = vunpack.c.l.b16 %v1299
  %v1367 = vunpack.c.h.b16 %v1299
  %v1368 = vunpack.c.l.b16 %v1300
  %v1369 = vunpack.c.h.b16 %v1300
  %v1370 = vunpack.c.l.b16 %v1301
  %v1371 = vunpack.c.h.b16 %v1301
  %v1372 = vunpack.c.l.b16 %v1302
  %v1373 = vunpack.c.h.b16 %v1302
  %v1374 = vunpack.c.l.b16 %v1303
  %v1375 = vunpack.c.h.b16 %v1303
  %v1376 = vunpack.c.l.b16 %v1304
  %v1377 = vunpack.c.h.b16 %v1304
  %v1378 = vunpack.c.l.b16 %v1305
  %v1379 = vunpack.c.h.b16 %v1305
  %v1380 = vunpack.c.l.b16 %v1306
  %v1381 = vunpack.c.h.b16 %v1306
  %v1382 = vunpack.c.l.b16 %v1307
  %v1383 = vunpack.c.h.b16 %v1307
  %v1384 = vunpack.c.l.b16 %v1308
  %v1385 = vunpack.c.h.b16 %v1308
  %v1386 = vunpack.c.l.b16 %v1309
  %v1387 = vunpack.c.h.b16 %v1309
  %v1388 = vunpack.c.l.b16 %v1310
  %v1389 = vunpack.c.h.b16 %v1310
  %v1390 = vunpack.c.l.b16 %v1311
  %v1391 = vunpack.c.h.b16 %v1311
  %v1392 = vunpack.c.l.b16 %v1312
  %v1393 = vunpack.c.h.b16 %v1312
  %v1394 = vunpack.c.l.b16 %v1313
  %v1395 = vunpack.c.h.b16 %v1313
  %v1396 = vunpack.c.l.b16 %v1314
  %v1397 = vunpack.c.h.b16 %v1314
  %v1398 = vunpack.c.l.b16 %v1315
  %v1399 = vunpack.c.h.b16 %v1315
  %v1400 = vunpack.c.l.b16 %v1316
  %v1401 = vunpack.c.h.b16 %v1316
  %v1402 = vunpack.c.l.b16 %v1317
  %v1403 = vunpack.c.h.b16 %v1317
  %v1404 = vunpack.c.l.b16 %v1318
  %v1405 = vunpack.c.h.b16 %v1318
  %v1406 = vunpack.c.l.b16 %v1319
  %v1407 = vunpack.c.h.b16 %v1319
  %v1408 = vunpack.c.l.b16 %v1320
  %v1409 = vunpack.c.h.b16 %v1320
  %v1410 = vunpack.c.l.b16 %v1321
  %v1411 = vunpack.c.h.b16 %v1321
  %v1412 = vunpack.c.l.b16 %v1322
  %v1413 = vunpack.c.h.b16 %v1322
  %v1414 = vunpack.c.l.b16 %v1323
  %v1415 = vunpack.c.h.b16 %v1323
  %v1416 = vunpack.c.l.b16 %v1324
  %v1417 = vunpack.c.h.b16 %v1324
  %v1418 = vunpack.c.l.b16 %v1325
  %v1419 = vunpack.c.h.b16 %v1325
  %v1420 = vunpack.c.l.b16 %v1326
  %v1421 = vunpack.c.h.b16 %v1326
  %v1422 = vunpack.c.l.b16 %v1327
  %v1423 = vunpack.c.h.b16 %v1327
  %v1424 = vpack.c.b16 %v1360, %v1360
  %v1425 = vpack.c.b16 %v1361, %v1361
  %v1426 = vpack.c.b16 %v1362, %v1362
  %v1427 = vpack.c.b16 %v1363, %v1363
  %v1428 = vpack.c.b16 %v1364, %v1364
  %v1429 = vpack.c.b16 %v1365, %v1365
  %v1430 = vpack.c.b16 %v1366, %v1366
  %v1431 = vpack.c.b16 %v1367, %v1367
  %v1432 = vpack.c.b16 %v1368, %v1368
  %v1433 = vpack.c.b16 %v1369, %v1369
  %v1434 = vpack.c.b16 %v1370, %v1370
  %v1435 = vpack.c.b16 %v1371, %v1371
  %v1436 = vpack.c.b16 %v1372, %v1372
  %v1437 = vpack.c.b16 %v1373, %v1373
  %v1438 = vpack.c.b16 %v1374, %v1374
  %v1439 = vpack.c.b16 %v1375, %v1375
  %v1440 = vpack.c.b16 %v1376, %v1376
  %v1441 = vpack.c.b16 %v1377, %v1377
  %v1442 = vpack.c.b16 %v1378, %v1378
  %v1443 = vpack.c.b16 %v1379, %v1379
  %v1444 = vpack.c.b16 %v1380, %v1380
  %v1445 = vpack.c.b16 %v1381, %v1381
  %v1446 = vpack.c.b16 %v1382, %v1382
  %v1447 = vpack.c.b16 %v1383, %v1383
  %v1448 = vpack.c.b16 %v1384, %v1384
  %v1449 = vpack.c.b16 %v1385, %v1385
  %v1450 = vpack.c.b16 %v1386, %v1386
  %v1451 = vpack.c.b16 %v1387, %v1387
  %v1452 = vpack.c.b16 %v1388, %v1388
  %v1453 = vpack.c.b16 %v1389, %v1389
  %v1454 = vpack.c.b16 %v1390, %v1390
  %v1455 = vpack.c.b16 %v1391, %v1391
  %v1456 = vpack.c.b16 %v1392, %v1392
  %v1457 = vpack.c.b16 %v1393, %v1393
  %v1458 = vpack.c.b16 %v1394, %v1394
  %v1459 = vpack.c.b16 %v1395, %v1395
  %v1460 = vpack.c.b16 %v1396, %v1396
  %v1461 = vpack.c.b16 %v1397, %v1397
  %v1462 = vpack.c.b16 %v1398, %v1398
  %v1463 = vpack.c.b16 %v1399, %v1399
  %v1464 = vpack.c.b16 %v1400, %v1400
  %v1465 = vpack.c.b16 %v1401, %v1401
  %v1466 = vpack.c.b16 %v1402, %v1402
  %v1467 = vpack.c.b16 %v1403, %v1403
  %v1468 = vpack.c.b16 %v1404, %v1404
  %v1469 = vpack.c.b16 %v1405, %v1405
  %v1470 = vpack.c.b16 %v1406, %v1406
  %v1471 = vpack.c.b16 %v1407, %v1407
  %v1472 = vpack.c.b16 %v1408, %v1408
  %v1473 = vpack.c.b16 %v1409, %v1409
  %v1474 = vpack.c.b16 %v1410, %v1410
  %v1475 = vpack.c.b16 %v1411, %v1411
  %v1476 = vpack.c.b16 %v1412, %v1412
  %v1477 = vpack.c.b16 %v1413, %v1413
  %v1478 = vpack.c.b16 %v1414, %v1414
  %v1479 = vpack.c.b16 %v1415, %v1415
  %v1480 = vpack.c.b16 %v1416, %v1416
  %v1481 = vpack.c.b16 %v1417, %v1417
  %v1482 = vpack.c.b16 %v1418, %v1418
  %v1483 = vpack.c.b16 %v1419, %v1419
  %v1484 = vpack.c.b16 %v1420, %v1420
  %v1485 = vpack.c.b16 %v1421, %v1421
  %v1486 = vpack.c.b16 %v1422, %v1422
  %v1487 = vpack.c.b16 %v1423, %v1423
  %1488 = vrot.lane.b32.xlu0 %v1424, 64
  %v1489 = vpop.permute.xlu0 %1488
  %1490 = vrot.lane.b32.xlu0 %v1425, 64
  %v1491 = vpop.permute.xlu0 %1490
  %1492 = vrot.lane.b32.xlu0 %v1426, 64
  %v1493 = vpop.permute.xlu0 %1492
  %1494 = vrot.lane.b32.xlu0 %v1427, 64
  %v1495 = vpop.permute.xlu0 %1494
  %1496 = vrot.lane.b32.xlu0 %v1428, 64
  %v1497 = vpop.permute.xlu0 %1496
  %1498 = vrot.lane.b32.xlu0 %v1429, 64
  %v1499 = vpop.permute.xlu0 %1498
  %1500 = vrot.lane.b32.xlu0 %v1430, 64
  %v1501 = vpop.permute.xlu0 %1500
  %1502 = vrot.lane.b32.xlu0 %v1431, 64
  %v1503 = vpop.permute.xlu0 %1502
  %1504 = vrot.lane.b32.xlu0 %v1432, 64
  %v1505 = vpop.permute.xlu0 %1504
  %1506 = vrot.lane.b32.xlu0 %v1433, 64
  %v1507 = vpop.permute.xlu0 %1506
  %1508 = vrot.lane.b32.xlu0 %v1434, 64
  %v1509 = vpop.permute.xlu0 %1508
  %1510 = vrot.lane.b32.xlu0 %v1435, 64
  %v1511 = vpop.permute.xlu0 %1510
  %1512 = vrot.lane.b32.xlu0 %v1436, 64
  %v1513 = vpop.permute.xlu0 %1512
  %1514 = vrot.lane.b32.xlu0 %v1437, 64
  %v1515 = vpop.permute.xlu0 %1514
  %1516 = vrot.lane.b32.xlu0 %v1438, 64
  %v1517 = vpop.permute.xlu0 %1516
  %1518 = vrot.lane.b32.xlu0 %v1439, 64
  %v1519 = vpop.permute.xlu0 %1518
  %1520 = vrot.lane.b32.xlu0 %v1440, 64
  %v1521 = vpop.permute.xlu0 %1520
  %1522 = vrot.lane.b32.xlu0 %v1441, 64
  %v1523 = vpop.permute.xlu0 %1522
  %1524 = vrot.lane.b32.xlu0 %v1442, 64
  %v1525 = vpop.permute.xlu0 %1524
  %1526 = vrot.lane.b32.xlu0 %v1443, 64
  %v1527 = vpop.permute.xlu0 %1526
  %1528 = vrot.lane.b32.xlu0 %v1444, 64
  %v1529 = vpop.permute.xlu0 %1528
  %1530 = vrot.lane.b32.xlu0 %v1445, 64
  %v1531 = vpop.permute.xlu0 %1530
  %1532 = vrot.lane.b32.xlu0 %v1446, 64
  %v1533 = vpop.permute.xlu0 %1532
  %1534 = vrot.lane.b32.xlu0 %v1447, 64
  %v1535 = vpop.permute.xlu0 %1534
  %1536 = vrot.lane.b32.xlu0 %v1448, 64
  %v1537 = vpop.permute.xlu0 %1536
  %1538 = vrot.lane.b32.xlu0 %v1449, 64
  %v1539 = vpop.permute.xlu0 %1538
  %1540 = vrot.lane.b32.xlu0 %v1450, 64
  %v1541 = vpop.permute.xlu0 %1540
  %1542 = vrot.lane.b32.xlu0 %v1451, 64
  %v1543 = vpop.permute.xlu0 %1542
  %1544 = vrot.lane.b32.xlu0 %v1452, 64
  %v1545 = vpop.permute.xlu0 %1544
  %1546 = vrot.lane.b32.xlu0 %v1453, 64
  %v1547 = vpop.permute.xlu0 %1546
  %1548 = vrot.lane.b32.xlu0 %v1454, 64
  %v1549 = vpop.permute.xlu0 %1548
  %1550 = vrot.lane.b32.xlu0 %v1455, 64
  %v1551 = vpop.permute.xlu0 %1550
  %1552 = vrot.lane.b32.xlu0 %v1456, 64
  %v1553 = vpop.permute.xlu0 %1552
  %1554 = vrot.lane.b32.xlu0 %v1457, 64
  %v1555 = vpop.permute.xlu0 %1554
  %1556 = vrot.lane.b32.xlu0 %v1458, 64
  %v1557 = vpop.permute.xlu0 %1556
  %1558 = vrot.lane.b32.xlu0 %v1459, 64
  %v1559 = vpop.permute.xlu0 %1558
  %1560 = vrot.lane.b32.xlu0 %v1460, 64
  %v1561 = vpop.permute.xlu0 %1560
  %1562 = vrot.lane.b32.xlu0 %v1461, 64
  %v1563 = vpop.permute.xlu0 %1562
  %1564 = vrot.lane.b32.xlu0 %v1462, 64
  %v1565 = vpop.permute.xlu0 %1564
  %1566 = vrot.lane.b32.xlu0 %v1463, 64
  %v1567 = vpop.permute.xlu0 %1566
  %1568 = vrot.lane.b32.xlu0 %v1464, 64
  %v1569 = vpop.permute.xlu0 %1568
  %1570 = vrot.lane.b32.xlu0 %v1465, 64
  %v1571 = vpop.permute.xlu0 %1570
  %1572 = vrot.lane.b32.xlu0 %v1466, 64
  %v1573 = vpop.permute.xlu0 %1572
  %1574 = vrot.lane.b32.xlu0 %v1467, 64
  %v1575 = vpop.permute.xlu0 %1574
  %1576 = vrot.lane.b32.xlu0 %v1468, 64
  %v1577 = vpop.permute.xlu0 %1576
  %1578 = vrot.lane.b32.xlu0 %v1469, 64
  %v1579 = vpop.permute.xlu0 %1578
  %1580 = vrot.lane.b32.xlu0 %v1470, 64
  %v1581 = vpop.permute.xlu0 %1580
  %1582 = vrot.lane.b32.xlu0 %v1471, 64
  %v1583 = vpop.permute.xlu0 %1582
  %1584 = vrot.lane.b32.xlu0 %v1472, 64
  %v1585 = vpop.permute.xlu0 %1584
  %1586 = vrot.lane.b32.xlu0 %v1473, 64
  %v1587 = vpop.permute.xlu0 %1586
  %1588 = vrot.lane.b32.xlu0 %v1474, 64
  %v1589 = vpop.permute.xlu0 %1588
  %1590 = vrot.lane.b32.xlu0 %v1475, 64
  %v1591 = vpop.permute.xlu0 %1590
  %1592 = vrot.lane.b32.xlu0 %v1476, 64
  %v1593 = vpop.permute.xlu0 %1592
  %1594 = vrot.lane.b32.xlu0 %v1477, 64
  %v1595 = vpop.permute.xlu0 %1594
  %1596 = vrot.lane.b32.xlu0 %v1478, 64
  %v1597 = vpop.permute.xlu0 %1596
  %1598 = vrot.lane.b32.xlu0 %v1479, 64
  %v1599 = vpop.permute.xlu0 %1598
  %1600 = vrot.lane.b32.xlu0 %v1480, 64
  %v1601 = vpop.permute.xlu0 %1600
  %1602 = vrot.lane.b32.xlu0 %v1481, 64
  %v1603 = vpop.permute.xlu0 %1602
  %1604 = vrot.lane.b32.xlu0 %v1482, 64
  %v1605 = vpop.permute.xlu0 %1604
  %1606 = vrot.lane.b32.xlu0 %v1483, 64
  %v1607 = vpop.permute.xlu0 %1606
  %1608 = vrot.lane.b32.xlu0 %v1484, 64
  %v1609 = vpop.permute.xlu0 %1608
  %1610 = vrot.lane.b32.xlu0 %v1485, 64
  %v1611 = vpop.permute.xlu0 %1610
  %1612 = vrot.lane.b32.xlu0 %v1486, 64
  %v1613 = vpop.permute.xlu0 %1612
  %1614 = vrot.lane.b32.xlu0 %v1487, 64
  %v1615 = vpop.permute.xlu0 %1614
  %vm1680 = vcmask 1043968
  %1681 = vst.msk [vmem:[#allocation3] sm:$0xf] %vm1680, %v1489
  %1682 = vst.msk [vmem:[#allocation3 + $0x14] sm:$0xf] %vm1680, %v1491
  %1683 = vst.msk [vmem:[#allocation3 + $0x28] sm:$0xf] %vm1680, %v1493
  %1684 = vst.msk [vmem:[#allocation3 + $0x3c] sm:$0xf] %vm1680, %v1495
  %1685 = vst.msk [vmem:[#allocation3 + $0x50] sm:$0xf] %vm1680, %v1497
  %1686 = vst.msk [vmem:[#allocation3 + $0x64] sm:$0xf] %vm1680, %v1499
  %1687 = vst.msk [vmem:[#allocation3 + $0x78] sm:$0xf] %vm1680, %v1501
  %1688 = vst.msk [vmem:[#allocation3 + $0x8c] sm:$0xf] %vm1680, %v1503
  %1689 = vst.msk [vmem:[#allocation3 + $0xa0] sm:$0xf] %vm1680, %v1505
  %1690 = vst.msk [vmem:[#allocation3 + $0xb4] sm:$0xf] %vm1680, %v1507
  %1691 = vst.msk [vmem:[#allocation3 + $0xc8] sm:$0xf] %vm1680, %v1509
  %1692 = vst.msk [vmem:[#allocation3 + $0xdc] sm:$0xf] %vm1680, %v1511
  %1693 = vst.msk [vmem:[#allocation3 + $0xf0] sm:$0xf] %vm1680, %v1513
  %1694 = vst.msk [vmem:[#allocation3 + $0x104] sm:$0xf] %vm1680, %v1515
  %1695 = vst.msk [vmem:[#allocation3 + $0x118] sm:$0xf] %vm1680, %v1517
  %1696 = vst.msk [vmem:[#allocation3 + $0x12c] sm:$0xf] %vm1680, %v1519
  %1697 = vst.msk [vmem:[#allocation3 + $0x140] sm:$0xf] %vm1680, %v1521
  %1698 = vst.msk [vmem:[#allocation3 + $0x154] sm:$0xf] %vm1680, %v1523
  %1699 = vst.msk [vmem:[#allocation3 + $0x168] sm:$0xf] %vm1680, %v1525
  %1700 = vst.msk [vmem:[#allocation3 + $0x17c] sm:$0xf] %vm1680, %v1527
  %1701 = vst.msk [vmem:[#allocation3 + $0x190] sm:$0xf] %vm1680, %v1529
  %1702 = vst.msk [vmem:[#allocation3 + $0x1a4] sm:$0xf] %vm1680, %v1531
  %1703 = vst.msk [vmem:[#allocation3 + $0x1b8] sm:$0xf] %vm1680, %v1533
  %1704 = vst.msk [vmem:[#allocation3 + $0x1cc] sm:$0xf] %vm1680, %v1535
  %1705 = vst.msk [vmem:[#allocation3 + $0x1e0] sm:$0xf] %vm1680, %v1537
  %1706 = vst.msk [vmem:[#allocation3 + $0x1f4] sm:$0xf] %vm1680, %v1539
  %1707 = vst.msk [vmem:[#allocation3 + $0x208] sm:$0xf] %vm1680, %v1541
  %1708 = vst.msk [vmem:[#allocation3 + $0x21c] sm:$0xf] %vm1680, %v1543
  %1709 = vst.msk [vmem:[#allocation3 + $0x230] sm:$0xf] %vm1680, %v1545
  %1710 = vst.msk [vmem:[#allocation3 + $0x244] sm:$0xf] %vm1680, %v1547
  %1711 = vst.msk [vmem:[#allocation3 + $0x258] sm:$0xf] %vm1680, %v1549
  %1712 = vst.msk [vmem:[#allocation3 + $0x26c] sm:$0xf] %vm1680, %v1551
  %1713 = vst.msk [vmem:[#allocation3 + $0x280] sm:$0xf] %vm1680, %v1553
  %1714 = vst.msk [vmem:[#allocation3 + $0x294] sm:$0xf] %vm1680, %v1555
  %1715 = vst.msk [vmem:[#allocation3 + $0x2a8] sm:$0xf] %vm1680, %v1557
  %1716 = vst.msk [vmem:[#allocation3 + $0x2bc] sm:$0xf] %vm1680, %v1559
  %1717 = vst.msk [vmem:[#allocation3 + $0x2d0] sm:$0xf] %vm1680, %v1561
  %1718 = vst.msk [vmem:[#allocation3 + $0x2e4] sm:$0xf] %vm1680, %v1563
  %1719 = vst.msk [vmem:[#allocation3 + $0x2f8] sm:$0xf] %vm1680, %v1565
  %1720 = vst.msk [vmem:[#allocation3 + $0x30c] sm:$0xf] %vm1680, %v1567
  %1721 = vst.msk [vmem:[#allocation3 + $0x320] sm:$0xf] %vm1680, %v1569
  %1722 = vst.msk [vmem:[#allocation3 + $0x334] sm:$0xf] %vm1680, %v1571
  %1723 = vst.msk [vmem:[#allocation3 + $0x348] sm:$0xf] %vm1680, %v1573
  %1724 = vst.msk [vmem:[#allocation3 + $0x35c] sm:$0xf] %vm1680, %v1575
  %1725 = vst.msk [vmem:[#allocation3 + $0x370] sm:$0xf] %vm1680, %v1577
  %1726 = vst.msk [vmem:[#allocation3 + $0x384] sm:$0xf] %vm1680, %v1579
  %1727 = vst.msk [vmem:[#allocation3 + $0x398] sm:$0xf] %vm1680, %v1581
  %1728 = vst.msk [vmem:[#allocation3 + $0x3ac] sm:$0xf] %vm1680, %v1583
  %1729 = vst.msk [vmem:[#allocation3 + $0x3c0] sm:$0xf] %vm1680, %v1585
  %1730 = vst.msk [vmem:[#allocation3 + $0x3d4] sm:$0xf] %vm1680, %v1587
  %1731 = vst.msk [vmem:[#allocation3 + $0x3e8] sm:$0xf] %vm1680, %v1589
  %1732 = vst.msk [vmem:[#allocation3 + $0x3fc] sm:$0xf] %vm1680, %v1591
  %1733 = vst.msk [vmem:[#allocation3 + $0x410] sm:$0xf] %vm1680, %v1593
  %1734 = vst.msk [vmem:[#allocation3 + $0x424] sm:$0xf] %vm1680, %v1595
  %1735 = vst.msk [vmem:[#allocation3 + $0x438] sm:$0xf] %vm1680, %v1597
  %1736 = vst.msk [vmem:[#allocation3 + $0x44c] sm:$0xf] %vm1680, %v1599
  %1737 = vst.msk [vmem:[#allocation3 + $0x460] sm:$0xf] %vm1680, %v1601
  %1738 = vst.msk [vmem:[#allocation3 + $0x474] sm:$0xf] %vm1680, %v1603
  %1739 = vst.msk [vmem:[#allocation3 + $0x488] sm:$0xf] %vm1680, %v1605
  %1740 = vst.msk [vmem:[#allocation3 + $0x49c] sm:$0xf] %vm1680, %v1607
  %1741 = vst.msk [vmem:[#allocation3 + $0x4b0] sm:$0xf] %vm1680, %v1609
  %1742 = vst.msk [vmem:[#allocation3 + $0x4c4] sm:$0xf] %vm1680, %v1611
  %1743 = vst.msk [vmem:[#allocation3 + $0x4d8] sm:$0xf] %vm1680, %v1613
  %1744 = vst.msk [vmem:[#allocation3 + $0x4ec] sm:$0xf] %vm1680, %v1615
  %v1745 = vld [vmem:[#allocation2 + $0x2] sm:$0xff]
  %v1746 = vld [vmem:[#allocation2 + $0xa] sm:$0xff]
  %v1747 = vld [vmem:[#allocation2 + $0x1a] sm:$0xff]
  %v1748 = vld [vmem:[#allocation2 + $0x22] sm:$0xff]
  %v1749 = vld [vmem:[#allocation2 + $0x32] sm:$0xff]
  %v1750 = vld [vmem:[#allocation2 + $0x3a] sm:$0xff]
  %v1751 = vld [vmem:[#allocation2 + $0x4a] sm:$0xff]
  %v1752 = vld [vmem:[#allocation2 + $0x52] sm:$0xff]
  %v1753 = vld [vmem:[#allocation2 + $0x62] sm:$0xff]
  %v1754 = vld [vmem:[#allocation2 + $0x6a] sm:$0xff]
  %v1755 = vld [vmem:[#allocation2 + $0x7a] sm:$0xff]
  %v1756 = vld [vmem:[#allocation2 + $0x82] sm:$0xff]
  %v1757 = vld [vmem:[#allocation2 + $0x92] sm:$0xff]
  %v1758 = vld [vmem:[#allocation2 + $0x9a] sm:$0xff]
  %v1759 = vld [vmem:[#allocation2 + $0xaa] sm:$0xff]
  %v1760 = vld [vmem:[#allocation2 + $0xb2] sm:$0xff]
  %v1761 = vld [vmem:[#allocation2 + $0xc2] sm:$0xff]
  %v1762 = vld [vmem:[#allocation2 + $0xca] sm:$0xff]
  %v1763 = vld [vmem:[#allocation2 + $0xda] sm:$0xff]
  %v1764 = vld [vmem:[#allocation2 + $0xe2] sm:$0xff]
  %v1765 = vld [vmem:[#allocation2 + $0xf2] sm:$0xff]
  %v1766 = vld [vmem:[#allocation2 + $0xfa] sm:$0xff]
  %v1767 = vld [vmem:[#allocation2 + $0x10a] sm:$0xff]
  %v1768 = vld [vmem:[#allocation2 + $0x112] sm:$0xff]
  %v1769 = vld [vmem:[#allocation2 + $0x122] sm:$0xff]
  %v1770 = vld [vmem:[#allocation2 + $0x12a] sm:$0xff]
  %v1771 = vld [vmem:[#allocation2 + $0x13a] sm:$0xff]
  %v1772 = vld [vmem:[#allocation2 + $0x142] sm:$0xff]
  %v1773 = vld [vmem:[#allocation2 + $0x152] sm:$0xff]
  %v1774 = vld [vmem:[#allocation2 + $0x15a] sm:$0xff]
  %v1775 = vld [vmem:[#allocation2 + $0x16a] sm:$0xff]
  %v1776 = vld [vmem:[#allocation2 + $0x172] sm:$0xff]
  %v1777 = vld [vmem:[#allocation2 + $0x1b2] sm:$0xff]
  %v1778 = vld [vmem:[#allocation2 + $0x1ba] sm:$0xff]
  %v1779 = vld [vmem:[#allocation2 + $0x1ca] sm:$0xff]
  %v1780 = vld [vmem:[#allocation2 + $0x1d2] sm:$0xff]
  %v1781 = vld [vmem:[#allocation2 + $0x1e2] sm:$0xff]
  %v1782 = vld [vmem:[#allocation2 + $0x1ea] sm:$0xff]
  %v1783 = vld [vmem:[#allocation2 + $0x1fa] sm:$0xff]
  %v1784 = vld [vmem:[#allocation2 + $0x202] sm:$0xff]
  %v1785 = vld [vmem:[#allocation2 + $0x212] sm:$0xff]
  %v1786 = vld [vmem:[#allocation2 + $0x21a] sm:$0xff]
  %v1787 = vld [vmem:[#allocation2 + $0x22a] sm:$0xff]
  %v1788 = vld [vmem:[#allocation2 + $0x232] sm:$0xff]
  %v1789 = vld [vmem:[#allocation2 + $0x242] sm:$0xff]
  %v1790 = vld [vmem:[#allocation2 + $0x24a] sm:$0xff]
  %v1791 = vld [vmem:[#allocation2 + $0x25a] sm:$0xff]
  %v1792 = vld [vmem:[#allocation2 + $0x262] sm:$0xff]
  %v1793 = vld [vmem:[#allocation2 + $0x272] sm:$0xff]
  %v1794 = vld [vmem:[#allocation2 + $0x27a] sm:$0xff]
  %v1795 = vld [vmem:[#allocation2 + $0x28a] sm:$0xff]
  %v1796 = vld [vmem:[#allocation2 + $0x292] sm:$0xff]
  %v1797 = vld [vmem:[#allocation2 + $0x2a2] sm:$0xff]
  %v1798 = vld [vmem:[#allocation2 + $0x2aa] sm:$0xff]
  %v1799 = vld [vmem:[#allocation2 + $0x2ba] sm:$0xff]
  %v1800 = vld [vmem:[#allocation2 + $0x2c2] sm:$0xff]
  %v1801 = vld [vmem:[#allocation2 + $0x2d2] sm:$0xff]
  %v1802 = vld [vmem:[#allocation2 + $0x2da] sm:$0xff]
  %v1803 = vld [vmem:[#allocation2 + $0x2ea] sm:$0xff]
  %v1804 = vld [vmem:[#allocation2 + $0x2f2] sm:$0xff]
  %v1805 = vld [vmem:[#allocation2 + $0x302] sm:$0xff]
  %v1806 = vld [vmem:[#allocation2 + $0x30a] sm:$0xff]
  %v1807 = vld [vmem:[#allocation2 + $0x31a] sm:$0xff]
  %v1808 = vld [vmem:[#allocation2 + $0x322] sm:$0xff]
  %v1809 = vpack.c.bf16 %v1746, %v1745
  %v1810 = vpack.c.bf16 %v1748, %v1747
  %v1811 = vpack.c.bf16 %v1750, %v1749
  %v1812 = vpack.c.bf16 %v1752, %v1751
  %v1813 = vpack.c.bf16 %v1754, %v1753
  %v1814 = vpack.c.bf16 %v1756, %v1755
  %v1815 = vpack.c.bf16 %v1758, %v1757
  %v1816 = vpack.c.bf16 %v1760, %v1759
  %v1817 = vpack.c.bf16 %v1762, %v1761
  %v1818 = vpack.c.bf16 %v1764, %v1763
  %v1819 = vpack.c.bf16 %v1766, %v1765
  %v1820 = vpack.c.bf16 %v1768, %v1767
  %v1821 = vpack.c.bf16 %v1770, %v1769
  %v1822 = vpack.c.bf16 %v1772, %v1771
  %v1823 = vpack.c.bf16 %v1774, %v1773
  %v1824 = vpack.c.bf16 %v1776, %v1775
  %v1825 = vpack.c.bf16 %v1778, %v1777
  %v1826 = vpack.c.bf16 %v1780, %v1779
  %v1827 = vpack.c.bf16 %v1782, %v1781
  %v1828 = vpack.c.bf16 %v1784, %v1783
  %v1829 = vpack.c.bf16 %v1786, %v1785
  %v1830 = vpack.c.bf16 %v1788, %v1787
  %v1831 = vpack.c.bf16 %v1790, %v1789
  %v1832 = vpack.c.bf16 %v1792, %v1791
  %v1833 = vpack.c.bf16 %v1794, %v1793
  %v1834 = vpack.c.bf16 %v1796, %v1795
  %v1835 = vpack.c.bf16 %v1798, %v1797
  %v1836 = vpack.c.bf16 %v1800, %v1799
  %v1837 = vpack.c.bf16 %v1802, %v1801
  %v1838 = vpack.c.bf16 %v1804, %v1803
  %v1839 = vpack.c.bf16 %v1806, %v1805
  %v1840 = vpack.c.bf16 %v1808, %v1807
  %v1873 = vunpack.c.l.b16 %v1809
  %v1874 = vunpack.c.h.b16 %v1809
  %v1875 = vunpack.c.l.b16 %v1810
  %v1876 = vunpack.c.h.b16 %v1810
  %v1877 = vunpack.c.l.b16 %v1811
  %v1878 = vunpack.c.h.b16 %v1811
  %v1879 = vunpack.c.l.b16 %v1812
  %v1880 = vunpack.c.h.b16 %v1812
  %v1881 = vunpack.c.l.b16 %v1813
  %v1882 = vunpack.c.h.b16 %v1813
  %v1883 = vunpack.c.l.b16 %v1814
  %v1884 = vunpack.c.h.b16 %v1814
  %v1885 = vunpack.c.l.b16 %v1815
  %v1886 = vunpack.c.h.b16 %v1815
  %v1887 = vunpack.c.l.b16 %v1816
  %v1888 = vunpack.c.h.b16 %v1816
  %v1889 = vunpack.c.l.b16 %v1817
  %v1890 = vunpack.c.h.b16 %v1817
  %v1891 = vunpack.c.l.b16 %v1818
  %v1892 = vunpack.c.h.b16 %v1818
  %v1893 = vunpack.c.l.b16 %v1819
  %v1894 = vunpack.c.h.b16 %v1819
  %v1895 = vunpack.c.l.b16 %v1820
  %v1896 = vunpack.c.h.b16 %v1820
  %v1897 = vunpack.c.l.b16 %v1821
  %v1898 = vunpack.c.h.b16 %v1821
  %v1899 = vunpack.c.l.b16 %v1822
  %v1900 = vunpack.c.h.b16 %v1822
  %v1901 = vunpack.c.l.b16 %v1823
  %v1902 = vunpack.c.h.b16 %v1823
  %v1903 = vunpack.c.l.b16 %v1824
  %v1904 = vunpack.c.h.b16 %v1824
  %v1905 = vunpack.c.l.b16 %v1825
  %v1906 = vunpack.c.h.b16 %v1825
  %v1907 = vunpack.c.l.b16 %v1826
  %v1908 = vunpack.c.h.b16 %v1826
  %v1909 = vunpack.c.l.b16 %v1827
  %v1910 = vunpack.c.h.b16 %v1827
  %v1911 = vunpack.c.l.b16 %v1828
  %v1912 = vunpack.c.h.b16 %v1828
  %v1913 = vunpack.c.l.b16 %v1829
  %v1914 = vunpack.c.h.b16 %v1829
  %v1915 = vunpack.c.l.b16 %v1830
  %v1916 = vunpack.c.h.b16 %v1830
  %v1917 = vunpack.c.l.b16 %v1831
  %v1918 = vunpack.c.h.b16 %v1831
  %v1919 = vunpack.c.l.b16 %v1832
  %v1920 = vunpack.c.h.b16 %v1832
  %v1921 = vunpack.c.l.b16 %v1833
  %v1922 = vunpack.c.h.b16 %v1833
  %v1923 = vunpack.c.l.b16 %v1834
  %v1924 = vunpack.c.h.b16 %v1834
  %v1925 = vunpack.c.l.b16 %v1835
  %v1926 = vunpack.c.h.b16 %v1835
  %v1927 = vunpack.c.l.b16 %v1836
  %v1928 = vunpack.c.h.b16 %v1836
  %v1929 = vunpack.c.l.b16 %v1837
  %v1930 = vunpack.c.h.b16 %v1837
  %v1931 = vunpack.c.l.b16 %v1838
  %v1932 = vunpack.c.h.b16 %v1838
  %v1933 = vunpack.c.l.b16 %v1839
  %v1934 = vunpack.c.h.b16 %v1839
  %v1935 = vunpack.c.l.b16 %v1840
  %v1936 = vunpack.c.h.b16 %v1840
  %v1937 = vpack.c.b16 %v1873, %v1873
  %v1938 = vpack.c.b16 %v1874, %v1874
  %v1939 = vpack.c.b16 %v1875, %v1875
  %v1940 = vpack.c.b16 %v1876, %v1876
  %v1941 = vpack.c.b16 %v1877, %v1877
  %v1942 = vpack.c.b16 %v1878, %v1878
  %v1943 = vpack.c.b16 %v1879, %v1879
  %v1944 = vpack.c.b16 %v1880, %v1880
  %v1945 = vpack.c.b16 %v1881, %v1881
  %v1946 = vpack.c.b16 %v1882, %v1882
  %v1947 = vpack.c.b16 %v1883, %v1883
  %v1948 = vpack.c.b16 %v1884, %v1884
  %v1949 = vpack.c.b16 %v1885, %v1885
  %v1950 = vpack.c.b16 %v1886, %v1886
  %v1951 = vpack.c.b16 %v1887, %v1887
  %v1952 = vpack.c.b16 %v1888, %v1888
  %v1953 = vpack.c.b16 %v1889, %v1889
  %v1954 = vpack.c.b16 %v1890, %v1890
  %v1955 = vpack.c.b16 %v1891, %v1891
  %v1956 = vpack.c.b16 %v1892, %v1892
  %v1957 = vpack.c.b16 %v1893, %v1893
  %v1958 = vpack.c.b16 %v1894, %v1894
  %v1959 = vpack.c.b16 %v1895, %v1895
  %v1960 = vpack.c.b16 %v1896, %v1896
  %v1961 = vpack.c.b16 %v1897, %v1897
  %v1962 = vpack.c.b16 %v1898, %v1898
  %v1963 = vpack.c.b16 %v1899, %v1899
  %v1964 = vpack.c.b16 %v1900, %v1900
  %v1965 = vpack.c.b16 %v1901, %v1901
  %v1966 = vpack.c.b16 %v1902, %v1902
  %v1967 = vpack.c.b16 %v1903, %v1903
  %v1968 = vpack.c.b16 %v1904, %v1904
  %v1969 = vpack.c.b16 %v1905, %v1905
  %v1970 = vpack.c.b16 %v1906, %v1906
  %v1971 = vpack.c.b16 %v1907, %v1907
  %v1972 = vpack.c.b16 %v1908, %v1908
  %v1973 = vpack.c.b16 %v1909, %v1909
  %v1974 = vpack.c.b16 %v1910, %v1910
  %v1975 = vpack.c.b16 %v1911, %v1911
  %v1976 = vpack.c.b16 %v1912, %v1912
  %v1977 = vpack.c.b16 %v1913, %v1913
  %v1978 = vpack.c.b16 %v1914, %v1914
  %v1979 = vpack.c.b16 %v1915, %v1915
  %v1980 = vpack.c.b16 %v1916, %v1916
  %v1981 = vpack.c.b16 %v1917, %v1917
  %v1982 = vpack.c.b16 %v1918, %v1918
  %v1983 = vpack.c.b16 %v1919, %v1919
  %v1984 = vpack.c.b16 %v1920, %v1920
  %v1985 = vpack.c.b16 %v1921, %v1921
  %v1986 = vpack.c.b16 %v1922, %v1922
  %v1987 = vpack.c.b16 %v1923, %v1923
  %v1988 = vpack.c.b16 %v1924, %v1924
  %v1989 = vpack.c.b16 %v1925, %v1925
  %v1990 = vpack.c.b16 %v1926, %v1926
  %v1991 = vpack.c.b16 %v1927, %v1927
  %v1992 = vpack.c.b16 %v1928, %v1928
  %v1993 = vpack.c.b16 %v1929, %v1929
  %v1994 = vpack.c.b16 %v1930, %v1930
  %v1995 = vpack.c.b16 %v1931, %v1931
  %v1996 = vpack.c.b16 %v1932, %v1932
  %v1997 = vpack.c.b16 %v1933, %v1933
  %v1998 = vpack.c.b16 %v1934, %v1934
  %v1999 = vpack.c.b16 %v1935, %v1935
  %v2000 = vpack.c.b16 %v1936, %v1936
  %2065 = vst.msk [vmem:[#allocation3 + $0x4] sm:$0xf] %vm1167, %v1937
  %2066 = vst.msk [vmem:[#allocation3 + $0x18] sm:$0xf] %vm1167, %v1938
  %2067 = vst.msk [vmem:[#allocation3 + $0x2c] sm:$0xf] %vm1167, %v1939
  %2068 = vst.msk [vmem:[#allocation3 + $0x40] sm:$0xf] %vm1167, %v1940
  %2069 = vst.msk [vmem:[#allocation3 + $0x54] sm:$0xf] %vm1167, %v1941
  %2070 = vst.msk [vmem:[#allocation3 + $0x68] sm:$0xf] %vm1167, %v1942
  %2071 = vst.msk [vmem:[#allocation3 + $0x7c] sm:$0xf] %vm1167, %v1943
  %2072 = vst.msk [vmem:[#allocation3 + $0x90] sm:$0xf] %vm1167, %v1944
  %2073 = vst.msk [vmem:[#allocation3 + $0xa4] sm:$0xf] %vm1167, %v1945
  %2074 = vst.msk [vmem:[#allocation3 + $0xb8] sm:$0xf] %vm1167, %v1946
  %2075 = vst.msk [vmem:[#allocation3 + $0xcc] sm:$0xf] %vm1167, %v1947
  %2076 = vst.msk [vmem:[#allocation3 + $0xe0] sm:$0xf] %vm1167, %v1948
  %2077 = vst.msk [vmem:[#allocation3 + $0xf4] sm:$0xf] %vm1167, %v1949
  %2078 = vst.msk [vmem:[#allocation3 + $0x108] sm:$0xf] %vm1167, %v1950
  %2079 = vst.msk [vmem:[#allocation3 + $0x11c] sm:$0xf] %vm1167, %v1951
  %2080 = vst.msk [vmem:[#allocation3 + $0x130] sm:$0xf] %vm1167, %v1952
  %2081 = vst.msk [vmem:[#allocation3 + $0x144] sm:$0xf] %vm1167, %v1953
  %2082 = vst.msk [vmem:[#allocation3 + $0x158] sm:$0xf] %vm1167, %v1954
  %2083 = vst.msk [vmem:[#allocation3 + $0x16c] sm:$0xf] %vm1167, %v1955
  %2084 = vst.msk [vmem:[#allocation3 + $0x180] sm:$0xf] %vm1167, %v1956
  %2085 = vst.msk [vmem:[#allocation3 + $0x194] sm:$0xf] %vm1167, %v1957
  %2086 = vst.msk [vmem:[#allocation3 + $0x1a8] sm:$0xf] %vm1167, %v1958
  %2087 = vst.msk [vmem:[#allocation3 + $0x1bc] sm:$0xf] %vm1167, %v1959
  %2088 = vst.msk [vmem:[#allocation3 + $0x1d0] sm:$0xf] %vm1167, %v1960
  %2089 = vst.msk [vmem:[#allocation3 + $0x1e4] sm:$0xf] %vm1167, %v1961
  %2090 = vst.msk [vmem:[#allocation3 + $0x1f8] sm:$0xf] %vm1167, %v1962
  %2091 = vst.msk [vmem:[#allocation3 + $0x20c] sm:$0xf] %vm1167, %v1963
  %2092 = vst.msk [vmem:[#allocation3 + $0x220] sm:$0xf] %vm1167, %v1964
  %2093 = vst.msk [vmem:[#allocation3 + $0x234] sm:$0xf] %vm1167, %v1965
  %2094 = vst.msk [vmem:[#allocation3 + $0x248] sm:$0xf] %vm1167, %v1966
  %2095 = vst.msk [vmem:[#allocation3 + $0x25c] sm:$0xf] %vm1167, %v1967
  %2096 = vst.msk [vmem:[#allocation3 + $0x270] sm:$0xf] %vm1167, %v1968
  %2097 = vst.msk [vmem:[#allocation3 + $0x284] sm:$0xf] %vm1167, %v1969
  %2098 = vst.msk [vmem:[#allocation3 + $0x298] sm:$0xf] %vm1167, %v1970
  %2099 = vst.msk [vmem:[#allocation3 + $0x2ac] sm:$0xf] %vm1167, %v1971
  %2100 = vst.msk [vmem:[#allocation3 + $0x2c0] sm:$0xf] %vm1167, %v1972
  %2101 = vst.msk [vmem:[#allocation3 + $0x2d4] sm:$0xf] %vm1167, %v1973
  %2102 = vst.msk [vmem:[#allocation3 + $0x2e8] sm:$0xf] %vm1167, %v1974
  %2103 = vst.msk [vmem:[#allocation3 + $0x2fc] sm:$0xf] %vm1167, %v1975
  %2104 = vst.msk [vmem:[#allocation3 + $0x310] sm:$0xf] %vm1167, %v1976
  %2105 = vst.msk [vmem:[#allocation3 + $0x324] sm:$0xf] %vm1167, %v1977
  %2106 = vst.msk [vmem:[#allocation3 + $0x338] sm:$0xf] %vm1167, %v1978
  %2107 = vst.msk [vmem:[#allocation3 + $0x34c] sm:$0xf] %vm1167, %v1979
  %2108 = vst.msk [vmem:[#allocation3 + $0x360] sm:$0xf] %vm1167, %v1980
  %2109 = vst.msk [vmem:[#allocation3 + $0x374] sm:$0xf] %vm1167, %v1981
  %2110 = vst.msk [vmem:[#allocation3 + $0x388] sm:$0xf] %vm1167, %v1982
  %2111 = vst.msk [vmem:[#allocation3 + $0x39c] sm:$0xf] %vm1167, %v1983
  %2112 = vst.msk [vmem:[#allocation3 + $0x3b0] sm:$0xf] %vm1167, %v1984
  %2113 = vst.msk [vmem:[#allocation3 + $0x3c4] sm:$0xf] %vm1167, %v1985
  %2114 = vst.msk [vmem:[#allocation3 + $0x3d8] sm:$0xf] %vm1167, %v1986
  %2115 = vst.msk [vmem:[#allocation3 + $0x3ec] sm:$0xf] %vm1167, %v1987
  %2116 = vst.msk [vmem:[#allocation3 + $0x400] sm:$0xf] %vm1167, %v1988
  %2117 = vst.msk [vmem:[#allocation3 + $0x414] sm:$0xf] %vm1167, %v1989
  %2118 = vst.msk [vmem:[#allocation3 + $0x428] sm:$0xf] %vm1167, %v1990
  %2119 = vst.msk [vmem:[#allocation3 + $0x43c] sm:$0xf] %vm1167, %v1991
  %2120 = vst.msk [vmem:[#allocation3 + $0x450] sm:$0xf] %vm1167, %v1992
  %2121 = vst.msk [vmem:[#allocation3 + $0x464] sm:$0xf] %vm1167, %v1993
  %2122 = vst.msk [vmem:[#allocation3 + $0x478] sm:$0xf] %vm1167, %v1994
  %2123 = vst.msk [vmem:[#allocation3 + $0x48c] sm:$0xf] %vm1167, %v1995
  %2124 = vst.msk [vmem:[#allocation3 + $0x4a0] sm:$0xf] %vm1167, %v1996
  %2125 = vst.msk [vmem:[#allocation3 + $0x4b4] sm:$0xf] %vm1167, %v1997
  %2126 = vst.msk [vmem:[#allocation3 + $0x4c8] sm:$0xf] %vm1167, %v1998
  %2127 = vst.msk [vmem:[#allocation3 + $0x4dc] sm:$0xf] %vm1167, %v1999
  %2128 = vst.msk [vmem:[#allocation3 + $0x4f0] sm:$0xf] %vm1167, %v2000
  %v2129 = vld [vmem:[%s782] sm:$0xff]
  %v2130 = vld [vmem:[%s782 + $0x8] sm:$0xff]
  %v2131 = vld [vmem:[%s782 + $0x18] sm:$0xff]
  %v2132 = vld [vmem:[%s782 + $0x20] sm:$0xff]
  %v2133 = vld [vmem:[%s782 + $0x30] sm:$0xff]
  %v2134 = vld [vmem:[%s782 + $0x38] sm:$0xff]
  %v2135 = vld [vmem:[%s782 + $0x48] sm:$0xff]
  %v2136 = vld [vmem:[%s782 + $0x50] sm:$0xff]
  %v2137 = vld [vmem:[%s782 + $0x60] sm:$0xff]
  %v2138 = vld [vmem:[%s782 + $0x68] sm:$0xff]
  %v2139 = vld [vmem:[%s782 + $0x78] sm:$0xff]
  %v2140 = vld [vmem:[%s782 + $0x80] sm:$0xff]
  %v2141 = vld [vmem:[%s782 + $0x90] sm:$0xff]
  %v2142 = vld [vmem:[%s782 + $0x98] sm:$0xff]
  %v2143 = vld [vmem:[%s782 + $0xa8] sm:$0xff]
  %v2144 = vld [vmem:[%s782 + $0xb0] sm:$0xff]
  %v2145 = vld [vmem:[%s782 + $0xc0] sm:$0xff]
  %v2146 = vld [vmem:[%s782 + $0xc8] sm:$0xff]
  %v2147 = vld [vmem:[%s782 + $0xd8] sm:$0xff]
  %v2148 = vld [vmem:[%s782 + $0xe0] sm:$0xff]
  %v2149 = vld [vmem:[%s782 + $0xf0] sm:$0xff]
  %v2150 = vld [vmem:[%s782 + $0xf8] sm:$0xff]
  %v2151 = vld [vmem:[%s782 + $0x108] sm:$0xff]
  %v2152 = vld [vmem:[%s782 + $0x110] sm:$0xff]
  %v2153 = vld [vmem:[%s782 + $0x120] sm:$0xff]
  %v2154 = vld [vmem:[%s782 + $0x128] sm:$0xff]
  %v2155 = vld [vmem:[%s782 + $0x138] sm:$0xff]
  %v2156 = vld [vmem:[%s782 + $0x140] sm:$0xff]
  %v2157 = vld [vmem:[%s782 + $0x150] sm:$0xff]
  %v2158 = vld [vmem:[%s782 + $0x158] sm:$0xff]
  %v2159 = vld [vmem:[%s782 + $0x168] sm:$0xff]
  %v2160 = vld [vmem:[%s782 + $0x170] sm:$0xff]
  %v2161 = vld [vmem:[%s782 + $0x1b0] sm:$0xff]
  %v2162 = vld [vmem:[%s782 + $0x1b8] sm:$0xff]
  %v2163 = vld [vmem:[%s782 + $0x1c8] sm:$0xff]
  %v2164 = vld [vmem:[%s782 + $0x1d0] sm:$0xff]
  %v2165 = vld [vmem:[%s782 + $0x1e0] sm:$0xff]
  %v2166 = vld [vmem:[%s782 + $0x1e8] sm:$0xff]
  %v2167 = vld [vmem:[%s782 + $0x1f8] sm:$0xff]
  %v2168 = vld [vmem:[%s782 + $0x200] sm:$0xff]
  %v2169 = vld [vmem:[%s782 + $0x210] sm:$0xff]
  %v2170 = vld [vmem:[%s782 + $0x218] sm:$0xff]
  %v2171 = vld [vmem:[%s782 + $0x228] sm:$0xff]
  %v2172 = vld [vmem:[%s782 + $0x230] sm:$0xff]
  %v2173 = vld [vmem:[%s782 + $0x240] sm:$0xff]
  %v2174 = vld [vmem:[%s782 + $0x248] sm:$0xff]
  %v2175 = vld [vmem:[%s782 + $0x258] sm:$0xff]
  %v2176 = vld [vmem:[%s782 + $0x260] sm:$0xff]
  %v2177 = vld [vmem:[%s782 + $0x270] sm:$0xff]
  %v2178 = vld [vmem:[%s782 + $0x278] sm:$0xff]
  %v2179 = vld [vmem:[%s782 + $0x288] sm:$0xff]
  %v2180 = vld [vmem:[%s782 + $0x290] sm:$0xff]
  %v2181 = vld [vmem:[%s782 + $0x2a0] sm:$0xff]
  %v2182 = vld [vmem:[%s782 + $0x2a8] sm:$0xff]
  %v2183 = vld [vmem:[%s782 + $0x2b8] sm:$0xff]
  %v2184 = vld [vmem:[%s782 + $0x2c0] sm:$0xff]
  %v2185 = vld [vmem:[%s782 + $0x2d0] sm:$0xff]
  %v2186 = vld [vmem:[%s782 + $0x2d8] sm:$0xff]
  %v2187 = vld [vmem:[%s782 + $0x2e8] sm:$0xff]
  %v2188 = vld [vmem:[%s782 + $0x2f0] sm:$0xff]
  %v2189 = vld [vmem:[%s782 + $0x300] sm:$0xff]
  %v2190 = vld [vmem:[%s782 + $0x308] sm:$0xff]
  %v2191 = vld [vmem:[%s782 + $0x318] sm:$0xff]
  %v2192 = vld [vmem:[%s782 + $0x320] sm:$0xff]
  %v2193 = vpack.c.bf16 %v2130, %v2129
  %v2194 = vpack.c.bf16 %v2132, %v2131
  %v2195 = vpack.c.bf16 %v2134, %v2133
  %v2196 = vpack.c.bf16 %v2136, %v2135
  %v2197 = vpack.c.bf16 %v2138, %v2137
  %v2198 = vpack.c.bf16 %v2140, %v2139
  %v2199 = vpack.c.bf16 %v2142, %v2141
  %v2200 = vpack.c.bf16 %v2144, %v2143
  %v2201 = vpack.c.bf16 %v2146, %v2145
  %v2202 = vpack.c.bf16 %v2148, %v2147
  %v2203 = vpack.c.bf16 %v2150, %v2149
  %v2204 = vpack.c.bf16 %v2152, %v2151
  %v2205 = vpack.c.bf16 %v2154, %v2153
  %v2206 = vpack.c.bf16 %v2156, %v2155
  %v2207 = vpack.c.bf16 %v2158, %v2157
  %v2208 = vpack.c.bf16 %v2160, %v2159
  %v2209 = vpack.c.bf16 %v2162, %v2161
  %v2210 = vpack.c.bf16 %v2164, %v2163
  %v2211 = vpack.c.bf16 %v2166, %v2165
  %v2212 = vpack.c.bf16 %v2168, %v2167
  %v2213 = vpack.c.bf16 %v2170, %v2169
  %v2214 = vpack.c.bf16 %v2172, %v2171
  %v2215 = vpack.c.bf16 %v2174, %v2173
  %v2216 = vpack.c.bf16 %v2176, %v2175
  %v2217 = vpack.c.bf16 %v2178, %v2177
  %v2218 = vpack.c.bf16 %v2180, %v2179
  %v2219 = vpack.c.bf16 %v2182, %v2181
  %v2220 = vpack.c.bf16 %v2184, %v2183
  %v2221 = vpack.c.bf16 %v2186, %v2185
  %v2222 = vpack.c.bf16 %v2188, %v2187
  %v2223 = vpack.c.bf16 %v2190, %v2189
  %v2224 = vpack.c.bf16 %v2192, %v2191
  %v2257 = vunpack.c.l.b16 %v2193
  %v2258 = vunpack.c.h.b16 %v2193
  %v2259 = vunpack.c.l.b16 %v2194
  %v2260 = vunpack.c.h.b16 %v2194
  %v2261 = vunpack.c.l.b16 %v2195
  %v2262 = vunpack.c.h.b16 %v2195
  %v2263 = vunpack.c.l.b16 %v2196
  %v2264 = vunpack.c.h.b16 %v2196
  %v2265 = vunpack.c.l.b16 %v2197
  %v2266 = vunpack.c.h.b16 %v2197
  %v2267 = vunpack.c.l.b16 %v2198
  %v2268 = vunpack.c.h.b16 %v2198
  %v2269 = vunpack.c.l.b16 %v2199
  %v2270 = vunpack.c.h.b16 %v2199
  %v2271 = vunpack.c.l.b16 %v2200
  %v2272 = vunpack.c.h.b16 %v2200
  %v2273 = vunpack.c.l.b16 %v2201
  %v2274 = vunpack.c.h.b16 %v2201
  %v2275 = vunpack.c.l.b16 %v2202
  %v2276 = vunpack.c.h.b16 %v2202
  %v2277 = vunpack.c.l.b16 %v2203
  %v2278 = vunpack.c.h.b16 %v2203
  %v2279 = vunpack.c.l.b16 %v2204
  %v2280 = vunpack.c.h.b16 %v2204
  %v2281 = vunpack.c.l.b16 %v2205
  %v2282 = vunpack.c.h.b16 %v2205
  %v2283 = vunpack.c.l.b16 %v2206
  %v2284 = vunpack.c.h.b16 %v2206
  %v2285 = vunpack.c.l.b16 %v2207
  %v2286 = vunpack.c.h.b16 %v2207
  %v2287 = vunpack.c.l.b16 %v2208
  %v2288 = vunpack.c.h.b16 %v2208
  %v2289 = vunpack.c.l.b16 %v2209
  %v2290 = vunpack.c.h.b16 %v2209
  %v2291 = vunpack.c.l.b16 %v2210
  %v2292 = vunpack.c.h.b16 %v2210
  %v2293 = vunpack.c.l.b16 %v2211
  %v2294 = vunpack.c.h.b16 %v2211
  %v2295 = vunpack.c.l.b16 %v2212
  %v2296 = vunpack.c.h.b16 %v2212
  %v2297 = vunpack.c.l.b16 %v2213
  %v2298 = vunpack.c.h.b16 %v2213
  %v2299 = vunpack.c.l.b16 %v2214
  %v2300 = vunpack.c.h.b16 %v2214
  %v2301 = vunpack.c.l.b16 %v2215
  %v2302 = vunpack.c.h.b16 %v2215
  %v2303 = vunpack.c.l.b16 %v2216
  %v2304 = vunpack.c.h.b16 %v2216
  %v2305 = vunpack.c.l.b16 %v2217
  %v2306 = vunpack.c.h.b16 %v2217
  %v2307 = vunpack.c.l.b16 %v2218
  %v2308 = vunpack.c.h.b16 %v2218
  %v2309 = vunpack.c.l.b16 %v2219
  %v2310 = vunpack.c.h.b16 %v2219
  %v2311 = vunpack.c.l.b16 %v2220
  %v2312 = vunpack.c.h.b16 %v2220
  %v2313 = vunpack.c.l.b16 %v2221
  %v2314 = vunpack.c.h.b16 %v2221
  %v2315 = vunpack.c.l.b16 %v2222
  %v2316 = vunpack.c.h.b16 %v2222
  %v2317 = vunpack.c.l.b16 %v2223
  %v2318 = vunpack.c.h.b16 %v2223
  %v2319 = vunpack.c.l.b16 %v2224
  %v2320 = vunpack.c.h.b16 %v2224
  %v2321 = vpack.c.b16 %v2257, %v2257
  %v2322 = vpack.c.b16 %v2258, %v2258
  %v2323 = vpack.c.b16 %v2259, %v2259
  %v2324 = vpack.c.b16 %v2260, %v2260
  %v2325 = vpack.c.b16 %v2261, %v2261
  %v2326 = vpack.c.b16 %v2262, %v2262
  %v2327 = vpack.c.b16 %v2263, %v2263
  %v2328 = vpack.c.b16 %v2264, %v2264
  %v2329 = vpack.c.b16 %v2265, %v2265
  %v2330 = vpack.c.b16 %v2266, %v2266
  %v2331 = vpack.c.b16 %v2267, %v2267
  %v2332 = vpack.c.b16 %v2268, %v2268
  %v2333 = vpack.c.b16 %v2269, %v2269
  %v2334 = vpack.c.b16 %v2270, %v2270
  %v2335 = vpack.c.b16 %v2271, %v2271
  %v2336 = vpack.c.b16 %v2272, %v2272
  %v2337 = vpack.c.b16 %v2273, %v2273
  %v2338 = vpack.c.b16 %v2274, %v2274
  %v2339 = vpack.c.b16 %v2275, %v2275
  %v2340 = vpack.c.b16 %v2276, %v2276
  %v2341 = vpack.c.b16 %v2277, %v2277
  %v2342 = vpack.c.b16 %v2278, %v2278
  %v2343 = vpack.c.b16 %v2279, %v2279
  %v2344 = vpack.c.b16 %v2280, %v2280
  %v2345 = vpack.c.b16 %v2281, %v2281
  %v2346 = vpack.c.b16 %v2282, %v2282
  %v2347 = vpack.c.b16 %v2283, %v2283
  %v2348 = vpack.c.b16 %v2284, %v2284
  %v2349 = vpack.c.b16 %v2285, %v2285
  %v2350 = vpack.c.b16 %v2286, %v2286
  %v2351 = vpack.c.b16 %v2287, %v2287
  %v2352 = vpack.c.b16 %v2288, %v2288
  %v2353 = vpack.c.b16 %v2289, %v2289
  %v2354 = vpack.c.b16 %v2290, %v2290
  %v2355 = vpack.c.b16 %v2291, %v2291
  %v2356 = vpack.c.b16 %v2292, %v2292
  %v2357 = vpack.c.b16 %v2293, %v2293
  %v2358 = vpack.c.b16 %v2294, %v2294
  %v2359 = vpack.c.b16 %v2295, %v2295
  %v2360 = vpack.c.b16 %v2296, %v2296
  %v2361 = vpack.c.b16 %v2297, %v2297
  %v2362 = vpack.c.b16 %v2298, %v2298
  %v2363 = vpack.c.b16 %v2299, %v2299
  %v2364 = vpack.c.b16 %v2300, %v2300
  %v2365 = vpack.c.b16 %v2301, %v2301
  %v2366 = vpack.c.b16 %v2302, %v2302
  %v2367 = vpack.c.b16 %v2303, %v2303
  %v2368 = vpack.c.b16 %v2304, %v2304
  %v2369 = vpack.c.b16 %v2305, %v2305
  %v2370 = vpack.c.b16 %v2306, %v2306
  %v2371 = vpack.c.b16 %v2307, %v2307
  %v2372 = vpack.c.b16 %v2308, %v2308
  %v2373 = vpack.c.b16 %v2309, %v2309
  %v2374 = vpack.c.b16 %v2310, %v2310
  %v2375 = vpack.c.b16 %v2311, %v2311
  %v2376 = vpack.c.b16 %v2312, %v2312
  %v2377 = vpack.c.b16 %v2313, %v2313
  %v2378 = vpack.c.b16 %v2314, %v2314
  %v2379 = vpack.c.b16 %v2315, %v2315
  %v2380 = vpack.c.b16 %v2316, %v2316
  %v2381 = vpack.c.b16 %v2317, %v2317
  %v2382 = vpack.c.b16 %v2318, %v2318
  %v2383 = vpack.c.b16 %v2319, %v2319
  %v2384 = vpack.c.b16 %v2320, %v2320
  %2385 = vrot.lane.b32.xlu0 %v2321, 64
  %v2386 = vpop.permute.xlu0 %2385
  %2387 = vrot.lane.b32.xlu0 %v2322, 64
  %v2388 = vpop.permute.xlu0 %2387
  %2389 = vrot.lane.b32.xlu0 %v2323, 64
  %v2390 = vpop.permute.xlu0 %2389
  %2391 = vrot.lane.b32.xlu0 %v2324, 64
  %v2392 = vpop.permute.xlu0 %2391
  %2393 = vrot.lane.b32.xlu0 %v2325, 64
  %v2394 = vpop.permute.xlu0 %2393
  %2395 = vrot.lane.b32.xlu0 %v2326, 64
  %v2396 = vpop.permute.xlu0 %2395
  %2397 = vrot.lane.b32.xlu0 %v2327, 64
  %v2398 = vpop.permute.xlu0 %2397
  %2399 = vrot.lane.b32.xlu0 %v2328, 64
  %v2400 = vpop.permute.xlu0 %2399
  %2401 = vrot.lane.b32.xlu0 %v2329, 64
  %v2402 = vpop.permute.xlu0 %2401
  %2403 = vrot.lane.b32.xlu0 %v2330, 64
  %v2404 = vpop.permute.xlu0 %2403
  %2405 = vrot.lane.b32.xlu0 %v2331, 64
  %v2406 = vpop.permute.xlu0 %2405
  %2407 = vrot.lane.b32.xlu0 %v2332, 64
  %v2408 = vpop.permute.xlu0 %2407
  %2409 = vrot.lane.b32.xlu0 %v2333, 64
  %v2410 = vpop.permute.xlu0 %2409
  %2411 = vrot.lane.b32.xlu0 %v2334, 64
  %v2412 = vpop.permute.xlu0 %2411
  %2413 = vrot.lane.b32.xlu0 %v2335, 64
  %v2414 = vpop.permute.xlu0 %2413
  %2415 = vrot.lane.b32.xlu0 %v2336, 64
  %v2416 = vpop.permute.xlu0 %2415
  %2417 = vrot.lane.b32.xlu0 %v2337, 64
  %v2418 = vpop.permute.xlu0 %2417
  %2419 = vrot.lane.b32.xlu0 %v2338, 64
  %v2420 = vpop.permute.xlu0 %2419
  %2421 = vrot.lane.b32.xlu0 %v2339, 64
  %v2422 = vpop.permute.xlu0 %2421
  %2423 = vrot.lane.b32.xlu0 %v2340, 64
  %v2424 = vpop.permute.xlu0 %2423
  %2425 = vrot.lane.b32.xlu0 %v2341, 64
  %v2426 = vpop.permute.xlu0 %2425
  %2427 = vrot.lane.b32.xlu0 %v2342, 64
  %v2428 = vpop.permute.xlu0 %2427
  %2429 = vrot.lane.b32.xlu0 %v2343, 64
  %v2430 = vpop.permute.xlu0 %2429
  %2431 = vrot.lane.b32.xlu0 %v2344, 64
  %v2432 = vpop.permute.xlu0 %2431
  %2433 = vrot.lane.b32.xlu0 %v2345, 64
  %v2434 = vpop.permute.xlu0 %2433
  %2435 = vrot.lane.b32.xlu0 %v2346, 64
  %v2436 = vpop.permute.xlu0 %2435
  %2437 = vrot.lane.b32.xlu0 %v2347, 64
  %v2438 = vpop.permute.xlu0 %2437
  %2439 = vrot.lane.b32.xlu0 %v2348, 64
  %v2440 = vpop.permute.xlu0 %2439
  %2441 = vrot.lane.b32.xlu0 %v2349, 64
  %v2442 = vpop.permute.xlu0 %2441
  %2443 = vrot.lane.b32.xlu0 %v2350, 64
  %v2444 = vpop.permute.xlu0 %2443
  %2445 = vrot.lane.b32.xlu0 %v2351, 64
  %v2446 = vpop.permute.xlu0 %2445
  %2447 = vrot.lane.b32.xlu0 %v2352, 64
  %v2448 = vpop.permute.xlu0 %2447
  %2449 = vrot.lane.b32.xlu0 %v2353, 64
  %v2450 = vpop.permute.xlu0 %2449
  %2451 = vrot.lane.b32.xlu0 %v2354, 64
  %v2452 = vpop.permute.xlu0 %2451
  %2453 = vrot.lane.b32.xlu0 %v2355, 64
  %v2454 = vpop.permute.xlu0 %2453
  %2455 = vrot.lane.b32.xlu0 %v2356, 64
  %v2456 = vpop.permute.xlu0 %2455
  %2457 = vrot.lane.b32.xlu0 %v2357, 64
  %v2458 = vpop.permute.xlu0 %2457
  %2459 = vrot.lane.b32.xlu0 %v2358, 64
  %v2460 = vpop.permute.xlu0 %2459
  %2461 = vrot.lane.b32.xlu0 %v2359, 64
  %v2462 = vpop.permute.xlu0 %2461
  %2463 = vrot.lane.b32.xlu0 %v2360, 64
  %v2464 = vpop.permute.xlu0 %2463
  %2465 = vrot.lane.b32.xlu0 %v2361, 64
  %v2466 = vpop.permute.xlu0 %2465
  %2467 = vrot.lane.b32.xlu0 %v2362, 64
  %v2468 = vpop.permute.xlu0 %2467
  %2469 = vrot.lane.b32.xlu0 %v2363, 64
  %v2470 = vpop.permute.xlu0 %2469
  %2471 = vrot.lane.b32.xlu0 %v2364, 64
  %v2472 = vpop.permute.xlu0 %2471
  %2473 = vrot.lane.b32.xlu0 %v2365, 64
  %v2474 = vpop.permute.xlu0 %2473
  %2475 = vrot.lane.b32.xlu0 %v2366, 64
  %v2476 = vpop.permute.xlu0 %2475
  %2477 = vrot.lane.b32.xlu0 %v2367, 64
  %v2478 = vpop.permute.xlu0 %2477
  %2479 = vrot.lane.b32.xlu0 %v2368, 64
  %v2480 = vpop.permute.xlu0 %2479
  %2481 = vrot.lane.b32.xlu0 %v2369, 64
  %v2482 = vpop.permute.xlu0 %2481
  %2483 = vrot.lane.b32.xlu0 %v2370, 64
  %v2484 = vpop.permute.xlu0 %2483
  %2485 = vrot.lane.b32.xlu0 %v2371, 64
  %v2486 = vpop.permute.xlu0 %2485
  %2487 = vrot.lane.b32.xlu0 %v2372, 64
  %v2488 = vpop.permute.xlu0 %2487
  %2489 = vrot.lane.b32.xlu0 %v2373, 64
  %v2490 = vpop.permute.xlu0 %2489
  %2491 = vrot.lane.b32.xlu0 %v2374, 64
  %v2492 = vpop.permute.xlu0 %2491
  %2493 = vrot.lane.b32.xlu0 %v2375, 64
  %v2494 = vpop.permute.xlu0 %2493
  %2495 = vrot.lane.b32.xlu0 %v2376, 64
  %v2496 = vpop.permute.xlu0 %2495
  %2497 = vrot.lane.b32.xlu0 %v2377, 64
  %v2498 = vpop.permute.xlu0 %2497
  %2499 = vrot.lane.b32.xlu0 %v2378, 64
  %v2500 = vpop.permute.xlu0 %2499
  %2501 = vrot.lane.b32.xlu0 %v2379, 64
  %v2502 = vpop.permute.xlu0 %2501
  %2503 = vrot.lane.b32.xlu0 %v2380, 64
  %v2504 = vpop.permute.xlu0 %2503
  %2505 = vrot.lane.b32.xlu0 %v2381, 64
  %v2506 = vpop.permute.xlu0 %2505
  %2507 = vrot.lane.b32.xlu0 %v2382, 64
  %v2508 = vpop.permute.xlu0 %2507
  %2509 = vrot.lane.b32.xlu0 %v2383, 64
  %v2510 = vpop.permute.xlu0 %2509
  %2511 = vrot.lane.b32.xlu0 %v2384, 64
  %v2512 = vpop.permute.xlu0 %2511
  %2577 = vst.msk [vmem:[#allocation3 + $0x4] sm:$0xf] %vm1680, %v2386
  %2578 = vst.msk [vmem:[#allocation3 + $0x18] sm:$0xf] %vm1680, %v2388
  %2579 = vst.msk [vmem:[#allocation3 + $0x2c] sm:$0xf] %vm1680, %v2390
  %2580 = vst.msk [vmem:[#allocation3 + $0x40] sm:$0xf] %vm1680, %v2392
  %2581 = vst.msk [vmem:[#allocation3 + $0x54] sm:$0xf] %vm1680, %v2394
  %2582 = vst.msk [vmem:[#allocation3 + $0x68] sm:$0xf] %vm1680, %v2396
  %2583 = vst.msk [vmem:[#allocation3 + $0x7c] sm:$0xf] %vm1680, %v2398
  %2584 = vst.msk [vmem:[#allocation3 + $0x90] sm:$0xf] %vm1680, %v2400
  %2585 = vst.msk [vmem:[#allocation3 + $0xa4] sm:$0xf] %vm1680, %v2402
  %2586 = vst.msk [vmem:[#allocation3 + $0xb8] sm:$0xf] %vm1680, %v2404
  %2587 = vst.msk [vmem:[#allocation3 + $0xcc] sm:$0xf] %vm1680, %v2406
  %2588 = vst.msk [vmem:[#allocation3 + $0xe0] sm:$0xf] %vm1680, %v2408
  %2589 = vst.msk [vmem:[#allocation3 + $0xf4] sm:$0xf] %vm1680, %v2410
  %2590 = vst.msk [vmem:[#allocation3 + $0x108] sm:$0xf] %vm1680, %v2412
  %2591 = vst.msk [vmem:[#allocation3 + $0x11c] sm:$0xf] %vm1680, %v2414
  %2592 = vst.msk [vmem:[#allocation3 + $0x130] sm:$0xf] %vm1680, %v2416
  %2593 = vst.msk [vmem:[#allocation3 + $0x144] sm:$0xf] %vm1680, %v2418
  %2594 = vst.msk [vmem:[#allocation3 + $0x158] sm:$0xf] %vm1680, %v2420
  %2595 = vst.msk [vmem:[#allocation3 + $0x16c] sm:$0xf] %vm1680, %v2422
  %2596 = vst.msk [vmem:[#allocation3 + $0x180] sm:$0xf] %vm1680, %v2424
  %2597 = vst.msk [vmem:[#allocation3 + $0x194] sm:$0xf] %vm1680, %v2426
  %2598 = vst.msk [vmem:[#allocation3 + $0x1a8] sm:$0xf] %vm1680, %v2428
  %2599 = vst.msk [vmem:[#allocation3 + $0x1bc] sm:$0xf] %vm1680, %v2430
  %2600 = vst.msk [vmem:[#allocation3 + $0x1d0] sm:$0xf] %vm1680, %v2432
  %2601 = vst.msk [vmem:[#allocation3 + $0x1e4] sm:$0xf] %vm1680, %v2434
  %2602 = vst.msk [vmem:[#allocation3 + $0x1f8] sm:$0xf] %vm1680, %v2436
  %2603 = vst.msk [vmem:[#allocation3 + $0x20c] sm:$0xf] %vm1680, %v2438
  %2604 = vst.msk [vmem:[#allocation3 + $0x220] sm:$0xf] %vm1680, %v2440
  %2605 = vst.msk [vmem:[#allocation3 + $0x234] sm:$0xf] %vm1680, %v2442
  %2606 = vst.msk [vmem:[#allocation3 + $0x248] sm:$0xf] %vm1680, %v2444
  %2607 = vst.msk [vmem:[#allocation3 + $0x25c] sm:$0xf] %vm1680, %v2446
  %2608 = vst.msk [vmem:[#allocation3 + $0x270] sm:$0xf] %vm1680, %v2448
  %2609 = vst.msk [vmem:[#allocation3 + $0x284] sm:$0xf] %vm1680, %v2450
  %2610 = vst.msk [vmem:[#allocation3 + $0x298] sm:$0xf] %vm1680, %v2452
  %2611 = vst.msk [vmem:[#allocation3 + $0x2ac] sm:$0xf] %vm1680, %v2454
  %2612 = vst.msk [vmem:[#allocation3 + $0x2c0] sm:$0xf] %vm1680, %v2456
  %2613 = vst.msk [vmem:[#allocation3 + $0x2d4] sm:$0xf] %vm1680, %v2458
  %2614 = vst.msk [vmem:[#allocation3 + $0x2e8] sm:$0xf] %vm1680, %v2460
  %2615 = vst.msk [vmem:[#allocation3 + $0x2fc] sm:$0xf] %vm1680, %v2462
  %2616 = vst.msk [vmem:[#allocation3 + $0x310] sm:$0xf] %vm1680, %v2464
  %2617 = vst.msk [vmem:[#allocation3 + $0x324] sm:$0xf] %vm1680, %v2466
  %2618 = vst.msk [vmem:[#allocation3 + $0x338] sm:$0xf] %vm1680, %v2468
  %2619 = vst.msk [vmem:[#allocation3 + $0x34c] sm:$0xf] %vm1680, %v2470
  %2620 = vst.msk [vmem:[#allocation3 + $0x360] sm:$0xf] %vm1680, %v2472
  %2621 = vst.msk [vmem:[#allocation3 + $0x374] sm:$0xf] %vm1680, %v2474
  %2622 = vst.msk [vmem:[#allocation3 + $0x388] sm:$0xf] %vm1680, %v2476
  %2623 = vst.msk [vmem:[#allocation3 + $0x39c] sm:$0xf] %vm1680, %v2478
  %2624 = vst.msk [vmem:[#allocation3 + $0x3b0] sm:$0xf] %vm1680, %v2480
  %2625 = vst.msk [vmem:[#allocation3 + $0x3c4] sm:$0xf] %vm1680, %v2482
  %2626 = vst.msk [vmem:[#allocation3 + $0x3d8] sm:$0xf] %vm1680, %v2484
  %2627 = vst.msk [vmem:[#allocation3 + $0x3ec] sm:$0xf] %vm1680, %v2486
  %2628 = vst.msk [vmem:[#allocation3 + $0x400] sm:$0xf] %vm1680, %v2488
  %2629 = vst.msk [vmem:[#allocation3 + $0x414] sm:$0xf] %vm1680, %v2490
  %2630 = vst.msk [vmem:[#allocation3 + $0x428] sm:$0xf] %vm1680, %v2492
  %2631 = vst.msk [vmem:[#allocation3 + $0x43c] sm:$0xf] %vm1680, %v2494
  %2632 = vst.msk [vmem:[#allocation3 + $0x450] sm:$0xf] %vm1680, %v2496
  %2633 = vst.msk [vmem:[#allocation3 + $0x464] sm:$0xf] %vm1680, %v2498
  %2634 = vst.msk [vmem:[#allocation3 + $0x478] sm:$0xf] %vm1680, %v2500
  %2635 = vst.msk [vmem:[#allocation3 + $0x48c] sm:$0xf] %vm1680, %v2502
  %2636 = vst.msk [vmem:[#allocation3 + $0x4a0] sm:$0xf] %vm1680, %v2504
  %2637 = vst.msk [vmem:[#allocation3 + $0x4b4] sm:$0xf] %vm1680, %v2506
  %2638 = vst.msk [vmem:[#allocation3 + $0x4c8] sm:$0xf] %vm1680, %v2508
  %2639 = vst.msk [vmem:[#allocation3 + $0x4dc] sm:$0xf] %vm1680, %v2510
  %2640 = vst.msk [vmem:[#allocation3 + $0x4f0] sm:$0xf] %vm1680, %v2512
  %v2641 = vld [vmem:[%s782 + $0x1] sm:$0xff]
  %v2642 = vld [vmem:[%s782 + $0x9] sm:$0xff]
  %v2643 = vld [vmem:[%s782 + $0x19] sm:$0xff]
  %v2644 = vld [vmem:[%s782 + $0x21] sm:$0xff]
  %v2645 = vld [vmem:[%s782 + $0x31] sm:$0xff]
  %v2646 = vld [vmem:[%s782 + $0x39] sm:$0xff]
  %v2647 = vld [vmem:[%s782 + $0x49] sm:$0xff]
  %v2648 = vld [vmem:[%s782 + $0x51] sm:$0xff]
  %v2649 = vld [vmem:[%s782 + $0x61] sm:$0xff]
  %v2650 = vld [vmem:[%s782 + $0x69] sm:$0xff]
  %v2651 = vld [vmem:[%s782 + $0x79] sm:$0xff]
  %v2652 = vld [vmem:[%s782 + $0x81] sm:$0xff]
  %v2653 = vld [vmem:[%s782 + $0x91] sm:$0xff]
  %v2654 = vld [vmem:[%s782 + $0x99] sm:$0xff]
  %v2655 = vld [vmem:[%s782 + $0xa9] sm:$0xff]
  %v2656 = vld [vmem:[%s782 + $0xb1] sm:$0xff]
  %v2657 = vld [vmem:[%s782 + $0xc1] sm:$0xff]
  %v2658 = vld [vmem:[%s782 + $0xc9] sm:$0xff]
  %v2659 = vld [vmem:[%s782 + $0xd9] sm:$0xff]
  %v2660 = vld [vmem:[%s782 + $0xe1] sm:$0xff]
  %v2661 = vld [vmem:[%s782 + $0xf1] sm:$0xff]
  %v2662 = vld [vmem:[%s782 + $0xf9] sm:$0xff]
  %v2663 = vld [vmem:[%s782 + $0x109] sm:$0xff]
  %v2664 = vld [vmem:[%s782 + $0x111] sm:$0xff]
  %v2665 = vld [vmem:[%s782 + $0x121] sm:$0xff]
  %v2666 = vld [vmem:[%s782 + $0x129] sm:$0xff]
  %v2667 = vld [vmem:[%s782 + $0x139] sm:$0xff]
  %v2668 = vld [vmem:[%s782 + $0x141] sm:$0xff]
  %v2669 = vld [vmem:[%s782 + $0x151] sm:$0xff]
  %v2670 = vld [vmem:[%s782 + $0x159] sm:$0xff]
  %v2671 = vld [vmem:[%s782 + $0x169] sm:$0xff]
  %v2672 = vld [vmem:[%s782 + $0x171] sm:$0xff]
  %v2673 = vld [vmem:[%s782 + $0x1b1] sm:$0xff]
  %v2674 = vld [vmem:[%s782 + $0x1b9] sm:$0xff]
  %v2675 = vld [vmem:[%s782 + $0x1c9] sm:$0xff]
  %v2676 = vld [vmem:[%s782 + $0x1d1] sm:$0xff]
  %v2677 = vld [vmem:[%s782 + $0x1e1] sm:$0xff]
  %v2678 = vld [vmem:[%s782 + $0x1e9] sm:$0xff]
  %v2679 = vld [vmem:[%s782 + $0x1f9] sm:$0xff]
  %v2680 = vld [vmem:[%s782 + $0x201] sm:$0xff]
  %v2681 = vld [vmem:[%s782 + $0x211] sm:$0xff]
  %v2682 = vld [vmem:[%s782 + $0x219] sm:$0xff]
  %v2683 = vld [vmem:[%s782 + $0x229] sm:$0xff]
  %v2684 = vld [vmem:[%s782 + $0x231] sm:$0xff]
  %v2685 = vld [vmem:[%s782 + $0x241] sm:$0xff]
  %v2686 = vld [vmem:[%s782 + $0x249] sm:$0xff]
  %v2687 = vld [vmem:[%s782 + $0x259] sm:$0xff]
  %v2688 = vld [vmem:[%s782 + $0x261] sm:$0xff]
  %v2689 = vld [vmem:[%s782 + $0x271] sm:$0xff]
  %v2690 = vld [vmem:[%s782 + $0x279] sm:$0xff]
  %v2691 = vld [vmem:[%s782 + $0x289] sm:$0xff]
  %v2692 = vld [vmem:[%s782 + $0x291] sm:$0xff]
  %v2693 = vld [vmem:[%s782 + $0x2a1] sm:$0xff]
  %v2694 = vld [vmem:[%s782 + $0x2a9] sm:$0xff]
  %v2695 = vld [vmem:[%s782 + $0x2b9] sm:$0xff]
  %v2696 = vld [vmem:[%s782 + $0x2c1] sm:$0xff]
  %v2697 = vld [vmem:[%s782 + $0x2d1] sm:$0xff]
  %v2698 = vld [vmem:[%s782 + $0x2d9] sm:$0xff]
  %v2699 = vld [vmem:[%s782 + $0x2e9] sm:$0xff]
  %v2700 = vld [vmem:[%s782 + $0x2f1] sm:$0xff]
  %v2701 = vld [vmem:[%s782 + $0x301] sm:$0xff]
  %v2702 = vld [vmem:[%s782 + $0x309] sm:$0xff]
  %v2703 = vld [vmem:[%s782 + $0x319] sm:$0xff]
  %v2704 = vld [vmem:[%s782 + $0x321] sm:$0xff]
  %v2705 = vpack.c.bf16 %v2642, %v2641
  %v2706 = vpack.c.bf16 %v2644, %v2643
  %v2707 = vpack.c.bf16 %v2646, %v2645
  %v2708 = vpack.c.bf16 %v2648, %v2647
  %v2709 = vpack.c.bf16 %v2650, %v2649
  %v2710 = vpack.c.bf16 %v2652, %v2651
  %v2711 = vpack.c.bf16 %v2654, %v2653
  %v2712 = vpack.c.bf16 %v2656, %v2655
  %v2713 = vpack.c.bf16 %v2658, %v2657
  %v2714 = vpack.c.bf16 %v2660, %v2659
  %v2715 = vpack.c.bf16 %v2662, %v2661
  %v2716 = vpack.c.bf16 %v2664, %v2663
  %v2717 = vpack.c.bf16 %v2666, %v2665
  %v2718 = vpack.c.bf16 %v2668, %v2667
  %v2719 = vpack.c.bf16 %v2670, %v2669
  %v2720 = vpack.c.bf16 %v2672, %v2671
  %v2721 = vpack.c.bf16 %v2674, %v2673
  %v2722 = vpack.c.bf16 %v2676, %v2675
  %v2723 = vpack.c.bf16 %v2678, %v2677
  %v2724 = vpack.c.bf16 %v2680, %v2679
  %v2725 = vpack.c.bf16 %v2682, %v2681
  %v2726 = vpack.c.bf16 %v2684, %v2683
  %v2727 = vpack.c.bf16 %v2686, %v2685
  %v2728 = vpack.c.bf16 %v2688, %v2687
  %v2729 = vpack.c.bf16 %v2690, %v2689
  %v2730 = vpack.c.bf16 %v2692, %v2691
  %v2731 = vpack.c.bf16 %v2694, %v2693
  %v2732 = vpack.c.bf16 %v2696, %v2695
  %v2733 = vpack.c.bf16 %v2698, %v2697
  %v2734 = vpack.c.bf16 %v2700, %v2699
  %v2735 = vpack.c.bf16 %v2702, %v2701
  %v2736 = vpack.c.bf16 %v2704, %v2703
  %v2769 = vunpack.c.l.b16 %v2705
  %v2770 = vunpack.c.h.b16 %v2705
  %v2771 = vunpack.c.l.b16 %v2706
  %v2772 = vunpack.c.h.b16 %v2706
  %v2773 = vunpack.c.l.b16 %v2707
  %v2774 = vunpack.c.h.b16 %v2707
  %v2775 = vunpack.c.l.b16 %v2708
  %v2776 = vunpack.c.h.b16 %v2708
  %v2777 = vunpack.c.l.b16 %v2709
  %v2778 = vunpack.c.h.b16 %v2709
  %v2779 = vunpack.c.l.b16 %v2710
  %v2780 = vunpack.c.h.b16 %v2710
  %v2781 = vunpack.c.l.b16 %v2711
  %v2782 = vunpack.c.h.b16 %v2711
  %v2783 = vunpack.c.l.b16 %v2712
  %v2784 = vunpack.c.h.b16 %v2712
  %v2785 = vunpack.c.l.b16 %v2713
  %v2786 = vunpack.c.h.b16 %v2713
  %v2787 = vunpack.c.l.b16 %v2714
  %v2788 = vunpack.c.h.b16 %v2714
  %v2789 = vunpack.c.l.b16 %v2715
  %v2790 = vunpack.c.h.b16 %v2715
  %v2791 = vunpack.c.l.b16 %v2716
  %v2792 = vunpack.c.h.b16 %v2716
  %v2793 = vunpack.c.l.b16 %v2717
  %v2794 = vunpack.c.h.b16 %v2717
  %v2795 = vunpack.c.l.b16 %v2718
  %v2796 = vunpack.c.h.b16 %v2718
  %v2797 = vunpack.c.l.b16 %v2719
  %v2798 = vunpack.c.h.b16 %v2719
  %v2799 = vunpack.c.l.b16 %v2720
  %v2800 = vunpack.c.h.b16 %v2720
  %v2801 = vunpack.c.l.b16 %v2721
  %v2802 = vunpack.c.h.b16 %v2721
  %v2803 = vunpack.c.l.b16 %v2722
  %v2804 = vunpack.c.h.b16 %v2722
  %v2805 = vunpack.c.l.b16 %v2723
  %v2806 = vunpack.c.h.b16 %v2723
  %v2807 = vunpack.c.l.b16 %v2724
  %v2808 = vunpack.c.h.b16 %v2724
  %v2809 = vunpack.c.l.b16 %v2725
  %v2810 = vunpack.c.h.b16 %v2725
  %v2811 = vunpack.c.l.b16 %v2726
  %v2812 = vunpack.c.h.b16 %v2726
  %v2813 = vunpack.c.l.b16 %v2727
  %v2814 = vunpack.c.h.b16 %v2727
  %v2815 = vunpack.c.l.b16 %v2728
  %v2816 = vunpack.c.h.b16 %v2728
  %v2817 = vunpack.c.l.b16 %v2729
  %v2818 = vunpack.c.h.b16 %v2729
  %v2819 = vunpack.c.l.b16 %v2730
  %v2820 = vunpack.c.h.b16 %v2730
  %v2821 = vunpack.c.l.b16 %v2731
  %v2822 = vunpack.c.h.b16 %v2731
  %v2823 = vunpack.c.l.b16 %v2732
  %v2824 = vunpack.c.h.b16 %v2732
  %v2825 = vunpack.c.l.b16 %v2733
  %v2826 = vunpack.c.h.b16 %v2733
  %v2827 = vunpack.c.l.b16 %v2734
  %v2828 = vunpack.c.h.b16 %v2734
  %v2829 = vunpack.c.l.b16 %v2735
  %v2830 = vunpack.c.h.b16 %v2735
  %v2831 = vunpack.c.l.b16 %v2736
  %v2832 = vunpack.c.h.b16 %v2736
  %v2833 = vpack.c.b16 %v2769, %v2769
  %v2834 = vpack.c.b16 %v2770, %v2770
  %v2835 = vpack.c.b16 %v2771, %v2771
  %v2836 = vpack.c.b16 %v2772, %v2772
  %v2837 = vpack.c.b16 %v2773, %v2773
  %v2838 = vpack.c.b16 %v2774, %v2774
  %v2839 = vpack.c.b16 %v2775, %v2775
  %v2840 = vpack.c.b16 %v2776, %v2776
  %v2841 = vpack.c.b16 %v2777, %v2777
  %v2842 = vpack.c.b16 %v2778, %v2778
  %v2843 = vpack.c.b16 %v2779, %v2779
  %v2844 = vpack.c.b16 %v2780, %v2780
  %v2845 = vpack.c.b16 %v2781, %v2781
  %v2846 = vpack.c.b16 %v2782, %v2782
  %v2847 = vpack.c.b16 %v2783, %v2783
  %v2848 = vpack.c.b16 %v2784, %v2784
  %v2849 = vpack.c.b16 %v2785, %v2785
  %v2850 = vpack.c.b16 %v2786, %v2786
  %v2851 = vpack.c.b16 %v2787, %v2787
  %v2852 = vpack.c.b16 %v2788, %v2788
  %v2853 = vpack.c.b16 %v2789, %v2789
  %v2854 = vpack.c.b16 %v2790, %v2790
  %v2855 = vpack.c.b16 %v2791, %v2791
  %v2856 = vpack.c.b16 %v2792, %v2792
  %v2857 = vpack.c.b16 %v2793, %v2793
  %v2858 = vpack.c.b16 %v2794, %v2794
  %v2859 = vpack.c.b16 %v2795, %v2795
  %v2860 = vpack.c.b16 %v2796, %v2796
  %v2861 = vpack.c.b16 %v2797, %v2797
  %v2862 = vpack.c.b16 %v2798, %v2798
  %v2863 = vpack.c.b16 %v2799, %v2799
  %v2864 = vpack.c.b16 %v2800, %v2800
  %v2865 = vpack.c.b16 %v2801, %v2801
  %v2866 = vpack.c.b16 %v2802, %v2802
  %v2867 = vpack.c.b16 %v2803, %v2803
  %v2868 = vpack.c.b16 %v2804, %v2804
  %v2869 = vpack.c.b16 %v2805, %v2805
  %v2870 = vpack.c.b16 %v2806, %v2806
  %v2871 = vpack.c.b16 %v2807, %v2807
  %v2872 = vpack.c.b16 %v2808, %v2808
  %v2873 = vpack.c.b16 %v2809, %v2809
  %v2874 = vpack.c.b16 %v2810, %v2810
  %v2875 = vpack.c.b16 %v2811, %v2811
  %v2876 = vpack.c.b16 %v2812, %v2812
  %v2877 = vpack.c.b16 %v2813, %v2813
  %v2878 = vpack.c.b16 %v2814, %v2814
  %v2879 = vpack.c.b16 %v2815, %v2815
  %v2880 = vpack.c.b16 %v2816, %v2816
  %v2881 = vpack.c.b16 %v2817, %v2817
  %v2882 = vpack.c.b16 %v2818, %v2818
  %v2883 = vpack.c.b16 %v2819, %v2819
  %v2884 = vpack.c.b16 %v2820, %v2820
  %v2885 = vpack.c.b16 %v2821, %v2821
  %v2886 = vpack.c.b16 %v2822, %v2822
  %v2887 = vpack.c.b16 %v2823, %v2823
  %v2888 = vpack.c.b16 %v2824, %v2824
  %v2889 = vpack.c.b16 %v2825, %v2825
  %v2890 = vpack.c.b16 %v2826, %v2826
  %v2891 = vpack.c.b16 %v2827, %v2827
  %v2892 = vpack.c.b16 %v2828, %v2828
  %v2893 = vpack.c.b16 %v2829, %v2829
  %v2894 = vpack.c.b16 %v2830, %v2830
  %v2895 = vpack.c.b16 %v2831, %v2831
  %v2896 = vpack.c.b16 %v2832, %v2832
  %2961 = vst.msk [vmem:[#allocation3 + $0x8] sm:$0xf] %vm1167, %v2833
  %2962 = vst.msk [vmem:[#allocation3 + $0x1c] sm:$0xf] %vm1167, %v2834
  %2963 = vst.msk [vmem:[#allocation3 + $0x30] sm:$0xf] %vm1167, %v2835
  %2964 = vst.msk [vmem:[#allocation3 + $0x44] sm:$0xf] %vm1167, %v2836
  %2965 = vst.msk [vmem:[#allocation3 + $0x58] sm:$0xf] %vm1167, %v2837
  %2966 = vst.msk [vmem:[#allocation3 + $0x6c] sm:$0xf] %vm1167, %v2838
  %2967 = vst.msk [vmem:[#allocation3 + $0x80] sm:$0xf] %vm1167, %v2839
  %2968 = vst.msk [vmem:[#allocation3 + $0x94] sm:$0xf] %vm1167, %v2840
  %2969 = vst.msk [vmem:[#allocation3 + $0xa8] sm:$0xf] %vm1167, %v2841
  %2970 = vst.msk [vmem:[#allocation3 + $0xbc] sm:$0xf] %vm1167, %v2842
  %2971 = vst.msk [vmem:[#allocation3 + $0xd0] sm:$0xf] %vm1167, %v2843
  %2972 = vst.msk [vmem:[#allocation3 + $0xe4] sm:$0xf] %vm1167, %v2844
  %2973 = vst.msk [vmem:[#allocation3 + $0xf8] sm:$0xf] %vm1167, %v2845
  %2974 = vst.msk [vmem:[#allocation3 + $0x10c] sm:$0xf] %vm1167, %v2846
  %2975 = vst.msk [vmem:[#allocation3 + $0x120] sm:$0xf] %vm1167, %v2847
  %2976 = vst.msk [vmem:[#allocation3 + $0x134] sm:$0xf] %vm1167, %v2848
  %2977 = vst.msk [vmem:[#allocation3 + $0x148] sm:$0xf] %vm1167, %v2849
  %2978 = vst.msk [vmem:[#allocation3 + $0x15c] sm:$0xf] %vm1167, %v2850
  %2979 = vst.msk [vmem:[#allocation3 + $0x170] sm:$0xf] %vm1167, %v2851
  %2980 = vst.msk [vmem:[#allocation3 + $0x184] sm:$0xf] %vm1167, %v2852
  %2981 = vst.msk [vmem:[#allocation3 + $0x198] sm:$0xf] %vm1167, %v2853
  %2982 = vst.msk [vmem:[#allocation3 + $0x1ac] sm:$0xf] %vm1167, %v2854
  %2983 = vst.msk [vmem:[#allocation3 + $0x1c0] sm:$0xf] %vm1167, %v2855
  %2984 = vst.msk [vmem:[#allocation3 + $0x1d4] sm:$0xf] %vm1167, %v2856
  %2985 = vst.msk [vmem:[#allocation3 + $0x1e8] sm:$0xf] %vm1167, %v2857
  %2986 = vst.msk [vmem:[#allocation3 + $0x1fc] sm:$0xf] %vm1167, %v2858
  %2987 = vst.msk [vmem:[#allocation3 + $0x210] sm:$0xf] %vm1167, %v2859
  %2988 = vst.msk [vmem:[#allocation3 + $0x224] sm:$0xf] %vm1167, %v2860
  %2989 = vst.msk [vmem:[#allocation3 + $0x238] sm:$0xf] %vm1167, %v2861
  %2990 = vst.msk [vmem:[#allocation3 + $0x24c] sm:$0xf] %vm1167, %v2862
  %2991 = vst.msk [vmem:[#allocation3 + $0x260] sm:$0xf] %vm1167, %v2863
  %2992 = vst.msk [vmem:[#allocation3 + $0x274] sm:$0xf] %vm1167, %v2864
  %2993 = vst.msk [vmem:[#allocation3 + $0x288] sm:$0xf] %vm1167, %v2865
  %2994 = vst.msk [vmem:[#allocation3 + $0x29c] sm:$0xf] %vm1167, %v2866
  %2995 = vst.msk [vmem:[#allocation3 + $0x2b0] sm:$0xf] %vm1167, %v2867
  %2996 = vst.msk [vmem:[#allocation3 + $0x2c4] sm:$0xf] %vm1167, %v2868
  %2997 = vst.msk [vmem:[#allocation3 + $0x2d8] sm:$0xf] %vm1167, %v2869
  %2998 = vst.msk [vmem:[#allocation3 + $0x2ec] sm:$0xf] %vm1167, %v2870
  %2999 = vst.msk [vmem:[#allocation3 + $0x300] sm:$0xf] %vm1167, %v2871
  %3000 = vst.msk [vmem:[#allocation3 + $0x314] sm:$0xf] %vm1167, %v2872
  %3001 = vst.msk [vmem:[#allocation3 + $0x328] sm:$0xf] %vm1167, %v2873
  %3002 = vst.msk [vmem:[#allocation3 + $0x33c] sm:$0xf] %vm1167, %v2874
  %3003 = vst.msk [vmem:[#allocation3 + $0x350] sm:$0xf] %vm1167, %v2875
  %3004 = vst.msk [vmem:[#allocation3 + $0x364] sm:$0xf] %vm1167, %v2876
  %3005 = vst.msk [vmem:[#allocation3 + $0x378] sm:$0xf] %vm1167, %v2877
  %3006 = vst.msk [vmem:[#allocation3 + $0x38c] sm:$0xf] %vm1167, %v2878
  %3007 = vst.msk [vmem:[#allocation3 + $0x3a0] sm:$0xf] %vm1167, %v2879
  %3008 = vst.msk [vmem:[#allocation3 + $0x3b4] sm:$0xf] %vm1167, %v2880
  %3009 = vst.msk [vmem:[#allocation3 + $0x3c8] sm:$0xf] %vm1167, %v2881
  %3010 = vst.msk [vmem:[#allocation3 + $0x3dc] sm:$0xf] %vm1167, %v2882
  %3011 = vst.msk [vmem:[#allocation3 + $0x3f0] sm:$0xf] %vm1167, %v2883
  %3012 = vst.msk [vmem:[#allocation3 + $0x404] sm:$0xf] %vm1167, %v2884
  %3013 = vst.msk [vmem:[#allocation3 + $0x418] sm:$0xf] %vm1167, %v2885
  %3014 = vst.msk [vmem:[#allocation3 + $0x42c] sm:$0xf] %vm1167, %v2886
  %3015 = vst.msk [vmem:[#allocation3 + $0x440] sm:$0xf] %vm1167, %v2887
  %3016 = vst.msk [vmem:[#allocation3 + $0x454] sm:$0xf] %vm1167, %v2888
  %3017 = vst.msk [vmem:[#allocation3 + $0x468] sm:$0xf] %vm1167, %v2889
  %3018 = vst.msk [vmem:[#allocation3 + $0x47c] sm:$0xf] %vm1167, %v2890
  %3019 = vst.msk [vmem:[#allocation3 + $0x490] sm:$0xf] %vm1167, %v2891
  %3020 = vst.msk [vmem:[#allocation3 + $0x4a4] sm:$0xf] %vm1167, %v2892
  %3021 = vst.msk [vmem:[#allocation3 + $0x4b8] sm:$0xf] %vm1167, %v2893
  %3022 = vst.msk [vmem:[#allocation3 + $0x4cc] sm:$0xf] %vm1167, %v2894
  %3023 = vst.msk [vmem:[#allocation3 + $0x4e0] sm:$0xf] %vm1167, %v2895
  %3024 = vst.msk [vmem:[#allocation3 + $0x4f4] sm:$0xf] %vm1167, %v2896
  %v3025 = vld [vmem:[%s782 + $0x2] sm:$0xff]
  %v3026 = vld [vmem:[%s782 + $0xa] sm:$0xff]
  %v3027 = vld [vmem:[%s782 + $0x1a] sm:$0xff]
  %v3028 = vld [vmem:[%s782 + $0x22] sm:$0xff]
  %v3029 = vld [vmem:[%s782 + $0x32] sm:$0xff]
  %v3030 = vld [vmem:[%s782 + $0x3a] sm:$0xff]
  %v3031 = vld [vmem:[%s782 + $0x4a] sm:$0xff]
  %v3032 = vld [vmem:[%s782 + $0x52] sm:$0xff]
  %v3033 = vld [vmem:[%s782 + $0x62] sm:$0xff]
  %v3034 = vld [vmem:[%s782 + $0x6a] sm:$0xff]
  %v3035 = vld [vmem:[%s782 + $0x7a] sm:$0xff]
  %v3036 = vld [vmem:[%s782 + $0x82] sm:$0xff]
  %v3037 = vld [vmem:[%s782 + $0x92] sm:$0xff]
  %v3038 = vld [vmem:[%s782 + $0x9a] sm:$0xff]
  %v3039 = vld [vmem:[%s782 + $0xaa] sm:$0xff]
  %v3040 = vld [vmem:[%s782 + $0xb2] sm:$0xff]
  %v3041 = vld [vmem:[%s782 + $0xc2] sm:$0xff]
  %v3042 = vld [vmem:[%s782 + $0xca] sm:$0xff]
  %v3043 = vld [vmem:[%s782 + $0xda] sm:$0xff]
  %v3044 = vld [vmem:[%s782 + $0xe2] sm:$0xff]
  %v3045 = vld [vmem:[%s782 + $0xf2] sm:$0xff]
  %v3046 = vld [vmem:[%s782 + $0xfa] sm:$0xff]
  %v3047 = vld [vmem:[%s782 + $0x10a] sm:$0xff]
  %v3048 = vld [vmem:[%s782 + $0x112] sm:$0xff]
  %v3049 = vld [vmem:[%s782 + $0x122] sm:$0xff]
  %v3050 = vld [vmem:[%s782 + $0x12a] sm:$0xff]
  %v3051 = vld [vmem:[%s782 + $0x13a] sm:$0xff]
  %v3052 = vld [vmem:[%s782 + $0x142] sm:$0xff]
  %v3053 = vld [vmem:[%s782 + $0x152] sm:$0xff]
  %v3054 = vld [vmem:[%s782 + $0x15a] sm:$0xff]
  %v3055 = vld [vmem:[%s782 + $0x16a] sm:$0xff]
  %v3056 = vld [vmem:[%s782 + $0x172] sm:$0xff]
  %v3057 = vld [vmem:[%s782 + $0x1b2] sm:$0xff]
  %v3058 = vld [vmem:[%s782 + $0x1ba] sm:$0xff]
  %v3059 = vld [vmem:[%s782 + $0x1ca] sm:$0xff]
  %v3060 = vld [vmem:[%s782 + $0x1d2] sm:$0xff]
  %v3061 = vld [vmem:[%s782 + $0x1e2] sm:$0xff]
  %v3062 = vld [vmem:[%s782 + $0x1ea] sm:$0xff]
  %v3063 = vld [vmem:[%s782 + $0x1fa] sm:$0xff]
  %v3064 = vld [vmem:[%s782 + $0x202] sm:$0xff]
  %v3065 = vld [vmem:[%s782 + $0x212] sm:$0xff]
  %v3066 = vld [vmem:[%s782 + $0x21a] sm:$0xff]
  %v3067 = vld [vmem:[%s782 + $0x22a] sm:$0xff]
  %v3068 = vld [vmem:[%s782 + $0x232] sm:$0xff]
  %v3069 = vld [vmem:[%s782 + $0x242] sm:$0xff]
  %v3070 = vld [vmem:[%s782 + $0x24a] sm:$0xff]
  %v3071 = vld [vmem:[%s782 + $0x25a] sm:$0xff]
  %v3072 = vld [vmem:[%s782 + $0x262] sm:$0xff]
  %v3073 = vld [vmem:[%s782 + $0x272] sm:$0xff]
  %v3074 = vld [vmem:[%s782 + $0x27a] sm:$0xff]
  %v3075 = vld [vmem:[%s782 + $0x28a] sm:$0xff]
  %v3076 = vld [vmem:[%s782 + $0x292] sm:$0xff]
  %v3077 = vld [vmem:[%s782 + $0x2a2] sm:$0xff]
  %v3078 = vld [vmem:[%s782 + $0x2aa] sm:$0xff]
  %v3079 = vld [vmem:[%s782 + $0x2ba] sm:$0xff]
  %v3080 = vld [vmem:[%s782 + $0x2c2] sm:$0xff]
  %v3081 = vld [vmem:[%s782 + $0x2d2] sm:$0xff]
  %v3082 = vld [vmem:[%s782 + $0x2da] sm:$0xff]
  %v3083 = vld [vmem:[%s782 + $0x2ea] sm:$0xff]
  %v3084 = vld [vmem:[%s782 + $0x2f2] sm:$0xff]
  %v3085 = vld [vmem:[%s782 + $0x302] sm:$0xff]
  %v3086 = vld [vmem:[%s782 + $0x30a] sm:$0xff]
  %v3087 = vld [vmem:[%s782 + $0x31a] sm:$0xff]
  %v3088 = vld [vmem:[%s782 + $0x322] sm:$0xff]
  %v3089 = vpack.c.bf16 %v3026, %v3025
  %v3090 = vpack.c.bf16 %v3028, %v3027
  %v3091 = vpack.c.bf16 %v3030, %v3029
  %v3092 = vpack.c.bf16 %v3032, %v3031
  %v3093 = vpack.c.bf16 %v3034, %v3033
  %v3094 = vpack.c.bf16 %v3036, %v3035
  %v3095 = vpack.c.bf16 %v3038, %v3037
  %v3096 = vpack.c.bf16 %v3040, %v3039
  %v3097 = vpack.c.bf16 %v3042, %v3041
  %v3098 = vpack.c.bf16 %v3044, %v3043
  %v3099 = vpack.c.bf16 %v3046, %v3045
  %v3100 = vpack.c.bf16 %v3048, %v3047
  %v3101 = vpack.c.bf16 %v3050, %v3049
  %v3102 = vpack.c.bf16 %v3052, %v3051
  %v3103 = vpack.c.bf16 %v3054, %v3053
  %v3104 = vpack.c.bf16 %v3056, %v3055
  %v3105 = vpack.c.bf16 %v3058, %v3057
  %v3106 = vpack.c.bf16 %v3060, %v3059
  %v3107 = vpack.c.bf16 %v3062, %v3061
  %v3108 = vpack.c.bf16 %v3064, %v3063
  %v3109 = vpack.c.bf16 %v3066, %v3065
  %v3110 = vpack.c.bf16 %v3068, %v3067
  %v3111 = vpack.c.bf16 %v3070, %v3069
  %v3112 = vpack.c.bf16 %v3072, %v3071
  %v3113 = vpack.c.bf16 %v3074, %v3073
  %v3114 = vpack.c.bf16 %v3076, %v3075
  %v3115 = vpack.c.bf16 %v3078, %v3077
  %v3116 = vpack.c.bf16 %v3080, %v3079
  %v3117 = vpack.c.bf16 %v3082, %v3081
  %v3118 = vpack.c.bf16 %v3084, %v3083
  %v3119 = vpack.c.bf16 %v3086, %v3085
  %v3120 = vpack.c.bf16 %v3088, %v3087
  %v3153 = vunpack.c.l.b16 %v3089
  %v3154 = vunpack.c.h.b16 %v3089
  %v3155 = vunpack.c.l.b16 %v3090
  %v3156 = vunpack.c.h.b16 %v3090
  %v3157 = vunpack.c.l.b16 %v3091
  %v3158 = vunpack.c.h.b16 %v3091
  %v3159 = vunpack.c.l.b16 %v3092
  %v3160 = vunpack.c.h.b16 %v3092
  %v3161 = vunpack.c.l.b16 %v3093
  %v3162 = vunpack.c.h.b16 %v3093
  %v3163 = vunpack.c.l.b16 %v3094
  %v3164 = vunpack.c.h.b16 %v3094
  %v3165 = vunpack.c.l.b16 %v3095
  %v3166 = vunpack.c.h.b16 %v3095
  %v3167 = vunpack.c.l.b16 %v3096
  %v3168 = vunpack.c.h.b16 %v3096
  %v3169 = vunpack.c.l.b16 %v3097
  %v3170 = vunpack.c.h.b16 %v3097
  %v3171 = vunpack.c.l.b16 %v3098
  %v3172 = vunpack.c.h.b16 %v3098
  %v3173 = vunpack.c.l.b16 %v3099
  %v3174 = vunpack.c.h.b16 %v3099
  %v3175 = vunpack.c.l.b16 %v3100
  %v3176 = vunpack.c.h.b16 %v3100
  %v3177 = vunpack.c.l.b16 %v3101
  %v3178 = vunpack.c.h.b16 %v3101
  %v3179 = vunpack.c.l.b16 %v3102
  %v3180 = vunpack.c.h.b16 %v3102
  %v3181 = vunpack.c.l.b16 %v3103
  %v3182 = vunpack.c.h.b16 %v3103
  %v3183 = vunpack.c.l.b16 %v3104
  %v3184 = vunpack.c.h.b16 %v3104
  %v3185 = vunpack.c.l.b16 %v3105
  %v3186 = vunpack.c.h.b16 %v3105
  %v3187 = vunpack.c.l.b16 %v3106
  %v3188 = vunpack.c.h.b16 %v3106
  %v3189 = vunpack.c.l.b16 %v3107
  %v3190 = vunpack.c.h.b16 %v3107
  %v3191 = vunpack.c.l.b16 %v3108
  %v3192 = vunpack.c.h.b16 %v3108
  %v3193 = vunpack.c.l.b16 %v3109
  %v3194 = vunpack.c.h.b16 %v3109
  %v3195 = vunpack.c.l.b16 %v3110
  %v3196 = vunpack.c.h.b16 %v3110
  %v3197 = vunpack.c.l.b16 %v3111
  %v3198 = vunpack.c.h.b16 %v3111
  %v3199 = vunpack.c.l.b16 %v3112
  %v3200 = vunpack.c.h.b16 %v3112
  %v3201 = vunpack.c.l.b16 %v3113
  %v3202 = vunpack.c.h.b16 %v3113
  %v3203 = vunpack.c.l.b16 %v3114
  %v3204 = vunpack.c.h.b16 %v3114
  %v3205 = vunpack.c.l.b16 %v3115
  %v3206 = vunpack.c.h.b16 %v3115
  %v3207 = vunpack.c.l.b16 %v3116
  %v3208 = vunpack.c.h.b16 %v3116
  %v3209 = vunpack.c.l.b16 %v3117
  %v3210 = vunpack.c.h.b16 %v3117
  %v3211 = vunpack.c.l.b16 %v3118
  %v3212 = vunpack.c.h.b16 %v3118
  %v3213 = vunpack.c.l.b16 %v3119
  %v3214 = vunpack.c.h.b16 %v3119
  %v3215 = vunpack.c.l.b16 %v3120
  %v3216 = vunpack.c.h.b16 %v3120
  %v3217 = vpack.c.b16 %v3153, %v3153
  %v3218 = vpack.c.b16 %v3154, %v3154
  %v3219 = vpack.c.b16 %v3155, %v3155
  %v3220 = vpack.c.b16 %v3156, %v3156
  %v3221 = vpack.c.b16 %v3157, %v3157
  %v3222 = vpack.c.b16 %v3158, %v3158
  %v3223 = vpack.c.b16 %v3159, %v3159
  %v3224 = vpack.c.b16 %v3160, %v3160
  %v3225 = vpack.c.b16 %v3161, %v3161
  %v3226 = vpack.c.b16 %v3162, %v3162
  %v3227 = vpack.c.b16 %v3163, %v3163
  %v3228 = vpack.c.b16 %v3164, %v3164
  %v3229 = vpack.c.b16 %v3165, %v3165
  %v3230 = vpack.c.b16 %v3166, %v3166
  %v3231 = vpack.c.b16 %v3167, %v3167
  %v3232 = vpack.c.b16 %v3168, %v3168
  %v3233 = vpack.c.b16 %v3169, %v3169
  %v3234 = vpack.c.b16 %v3170, %v3170
  %v3235 = vpack.c.b16 %v3171, %v3171
  %v3236 = vpack.c.b16 %v3172, %v3172
  %v3237 = vpack.c.b16 %v3173, %v3173
  %v3238 = vpack.c.b16 %v3174, %v3174
  %v3239 = vpack.c.b16 %v3175, %v3175
  %v3240 = vpack.c.b16 %v3176, %v3176
  %v3241 = vpack.c.b16 %v3177, %v3177
  %v3242 = vpack.c.b16 %v3178, %v3178
  %v3243 = vpack.c.b16 %v3179, %v3179
  %v3244 = vpack.c.b16 %v3180, %v3180
  %v3245 = vpack.c.b16 %v3181, %v3181
  %v3246 = vpack.c.b16 %v3182, %v3182
  %v3247 = vpack.c.b16 %v3183, %v3183
  %v3248 = vpack.c.b16 %v3184, %v3184
  %v3249 = vpack.c.b16 %v3185, %v3185
  %v3250 = vpack.c.b16 %v3186, %v3186
  %v3251 = vpack.c.b16 %v3187, %v3187
  %v3252 = vpack.c.b16 %v3188, %v3188
  %v3253 = vpack.c.b16 %v3189, %v3189
  %v3254 = vpack.c.b16 %v3190, %v3190
  %v3255 = vpack.c.b16 %v3191, %v3191
  %v3256 = vpack.c.b16 %v3192, %v3192
  %v3257 = vpack.c.b16 %v3193, %v3193
  %v3258 = vpack.c.b16 %v3194, %v3194
  %v3259 = vpack.c.b16 %v3195, %v3195
  %v3260 = vpack.c.b16 %v3196, %v3196
  %v3261 = vpack.c.b16 %v3197, %v3197
  %v3262 = vpack.c.b16 %v3198, %v3198
  %v3263 = vpack.c.b16 %v3199, %v3199
  %v3264 = vpack.c.b16 %v3200, %v3200
  %v3265 = vpack.c.b16 %v3201, %v3201
  %v3266 = vpack.c.b16 %v3202, %v3202
  %v3267 = vpack.c.b16 %v3203, %v3203
  %v3268 = vpack.c.b16 %v3204, %v3204
  %v3269 = vpack.c.b16 %v3205, %v3205
  %v3270 = vpack.c.b16 %v3206, %v3206
  %v3271 = vpack.c.b16 %v3207, %v3207
  %v3272 = vpack.c.b16 %v3208, %v3208
  %v3273 = vpack.c.b16 %v3209, %v3209
  %v3274 = vpack.c.b16 %v3210, %v3210
  %v3275 = vpack.c.b16 %v3211, %v3211
  %v3276 = vpack.c.b16 %v3212, %v3212
  %v3277 = vpack.c.b16 %v3213, %v3213
  %v3278 = vpack.c.b16 %v3214, %v3214
  %v3279 = vpack.c.b16 %v3215, %v3215
  %v3280 = vpack.c.b16 %v3216, %v3216
  %3281 = vrot.lane.b32.xlu0 %v3217, 64
  %v3282 = vpop.permute.xlu0 %3281
  %3283 = vrot.lane.b32.xlu0 %v3218, 64
  %v3284 = vpop.permute.xlu0 %3283
  %3285 = vrot.lane.b32.xlu0 %v3219, 64
  %v3286 = vpop.permute.xlu0 %3285
  %3287 = vrot.lane.b32.xlu0 %v3220, 64
  %v3288 = vpop.permute.xlu0 %3287
  %3289 = vrot.lane.b32.xlu0 %v3221, 64
  %v3290 = vpop.permute.xlu0 %3289
  %3291 = vrot.lane.b32.xlu0 %v3222, 64
  %v3292 = vpop.permute.xlu0 %3291
  %3293 = vrot.lane.b32.xlu0 %v3223, 64
  %v3294 = vpop.permute.xlu0 %3293
  %3295 = vrot.lane.b32.xlu0 %v3224, 64
  %v3296 = vpop.permute.xlu0 %3295
  %3297 = vrot.lane.b32.xlu0 %v3225, 64
  %v3298 = vpop.permute.xlu0 %3297
  %3299 = vrot.lane.b32.xlu0 %v3226, 64
  %v3300 = vpop.permute.xlu0 %3299
  %3301 = vrot.lane.b32.xlu0 %v3227, 64
  %v3302 = vpop.permute.xlu0 %3301
  %3303 = vrot.lane.b32.xlu0 %v3228, 64
  %v3304 = vpop.permute.xlu0 %3303
  %3305 = vrot.lane.b32.xlu0 %v3229, 64
  %v3306 = vpop.permute.xlu0 %3305
  %3307 = vrot.lane.b32.xlu0 %v3230, 64
  %v3308 = vpop.permute.xlu0 %3307
  %3309 = vrot.lane.b32.xlu0 %v3231, 64
  %v3310 = vpop.permute.xlu0 %3309
  %3311 = vrot.lane.b32.xlu0 %v3232, 64
  %v3312 = vpop.permute.xlu0 %3311
  %3313 = vrot.lane.b32.xlu0 %v3233, 64
  %v3314 = vpop.permute.xlu0 %3313
  %3315 = vrot.lane.b32.xlu0 %v3234, 64
  %v3316 = vpop.permute.xlu0 %3315
  %3317 = vrot.lane.b32.xlu0 %v3235, 64
  %v3318 = vpop.permute.xlu0 %3317
  %3319 = vrot.lane.b32.xlu0 %v3236, 64
  %v3320 = vpop.permute.xlu0 %3319
  %3321 = vrot.lane.b32.xlu0 %v3237, 64
  %v3322 = vpop.permute.xlu0 %3321
  %3323 = vrot.lane.b32.xlu0 %v3238, 64
  %v3324 = vpop.permute.xlu0 %3323
  %3325 = vrot.lane.b32.xlu0 %v3239, 64
  %v3326 = vpop.permute.xlu0 %3325
  %3327 = vrot.lane.b32.xlu0 %v3240, 64
  %v3328 = vpop.permute.xlu0 %3327
  %3329 = vrot.lane.b32.xlu0 %v3241, 64
  %v3330 = vpop.permute.xlu0 %3329
  %3331 = vrot.lane.b32.xlu0 %v3242, 64
  %v3332 = vpop.permute.xlu0 %3331
  %3333 = vrot.lane.b32.xlu0 %v3243, 64
  %v3334 = vpop.permute.xlu0 %3333
  %3335 = vrot.lane.b32.xlu0 %v3244, 64
  %v3336 = vpop.permute.xlu0 %3335
  %3337 = vrot.lane.b32.xlu0 %v3245, 64
  %v3338 = vpop.permute.xlu0 %3337
  %3339 = vrot.lane.b32.xlu0 %v3246, 64
  %v3340 = vpop.permute.xlu0 %3339
  %3341 = vrot.lane.b32.xlu0 %v3247, 64
  %v3342 = vpop.permute.xlu0 %3341
  %3343 = vrot.lane.b32.xlu0 %v3248, 64
  %v3344 = vpop.permute.xlu0 %3343
  %3345 = vrot.lane.b32.xlu0 %v3249, 64
  %v3346 = vpop.permute.xlu0 %3345
  %3347 = vrot.lane.b32.xlu0 %v3250, 64
  %v3348 = vpop.permute.xlu0 %3347
  %3349 = vrot.lane.b32.xlu0 %v3251, 64
  %v3350 = vpop.permute.xlu0 %3349
  %3351 = vrot.lane.b32.xlu0 %v3252, 64
  %v3352 = vpop.permute.xlu0 %3351
  %3353 = vrot.lane.b32.xlu0 %v3253, 64
  %v3354 = vpop.permute.xlu0 %3353
  %3355 = vrot.lane.b32.xlu0 %v3254, 64
  %v3356 = vpop.permute.xlu0 %3355
  %3357 = vrot.lane.b32.xlu0 %v3255, 64
  %v3358 = vpop.permute.xlu0 %3357
  %3359 = vrot.lane.b32.xlu0 %v3256, 64
  %v3360 = vpop.permute.xlu0 %3359
  %3361 = vrot.lane.b32.xlu0 %v3257, 64
  %v3362 = vpop.permute.xlu0 %3361
  %3363 = vrot.lane.b32.xlu0 %v3258, 64
  %v3364 = vpop.permute.xlu0 %3363
  %3365 = vrot.lane.b32.xlu0 %v3259, 64
  %v3366 = vpop.permute.xlu0 %3365
  %3367 = vrot.lane.b32.xlu0 %v3260, 64
  %v3368 = vpop.permute.xlu0 %3367
  %3369 = vrot.lane.b32.xlu0 %v3261, 64
  %v3370 = vpop.permute.xlu0 %3369
  %3371 = vrot.lane.b32.xlu0 %v3262, 64
  %v3372 = vpop.permute.xlu0 %3371
  %3373 = vrot.lane.b32.xlu0 %v3263, 64
  %v3374 = vpop.permute.xlu0 %3373
  %3375 = vrot.lane.b32.xlu0 %v3264, 64
  %v3376 = vpop.permute.xlu0 %3375
  %3377 = vrot.lane.b32.xlu0 %v3265, 64
  %v3378 = vpop.permute.xlu0 %3377
  %3379 = vrot.lane.b32.xlu0 %v3266, 64
  %v3380 = vpop.permute.xlu0 %3379
  %3381 = vrot.lane.b32.xlu0 %v3267, 64
  %v3382 = vpop.permute.xlu0 %3381
  %3383 = vrot.lane.b32.xlu0 %v3268, 64
  %v3384 = vpop.permute.xlu0 %3383
  %3385 = vrot.lane.b32.xlu0 %v3269, 64
  %v3386 = vpop.permute.xlu0 %3385
  %3387 = vrot.lane.b32.xlu0 %v3270, 64
  %v3388 = vpop.permute.xlu0 %3387
  %3389 = vrot.lane.b32.xlu0 %v3271, 64
  %v3390 = vpop.permute.xlu0 %3389
  %3391 = vrot.lane.b32.xlu0 %v3272, 64
  %v3392 = vpop.permute.xlu0 %3391
  %3393 = vrot.lane.b32.xlu0 %v3273, 64
  %v3394 = vpop.permute.xlu0 %3393
  %3395 = vrot.lane.b32.xlu0 %v3274, 64
  %v3396 = vpop.permute.xlu0 %3395
  %3397 = vrot.lane.b32.xlu0 %v3275, 64
  %v3398 = vpop.permute.xlu0 %3397
  %3399 = vrot.lane.b32.xlu0 %v3276, 64
  %v3400 = vpop.permute.xlu0 %3399
  %3401 = vrot.lane.b32.xlu0 %v3277, 64
  %v3402 = vpop.permute.xlu0 %3401
  %3403 = vrot.lane.b32.xlu0 %v3278, 64
  %v3404 = vpop.permute.xlu0 %3403
  %3405 = vrot.lane.b32.xlu0 %v3279, 64
  %v3406 = vpop.permute.xlu0 %3405
  %3407 = vrot.lane.b32.xlu0 %v3280, 64
  %v3408 = vpop.permute.xlu0 %3407
  %3473 = vst.msk [vmem:[#allocation3 + $0x8] sm:$0xf] %vm1680, %v3282
  %3474 = vst.msk [vmem:[#allocation3 + $0x1c] sm:$0xf] %vm1680, %v3284
  %3475 = vst.msk [vmem:[#allocation3 + $0x30] sm:$0xf] %vm1680, %v3286
  %3476 = vst.msk [vmem:[#allocation3 + $0x44] sm:$0xf] %vm1680, %v3288
  %3477 = vst.msk [vmem:[#allocation3 + $0x58] sm:$0xf] %vm1680, %v3290
  %3478 = vst.msk [vmem:[#allocation3 + $0x6c] sm:$0xf] %vm1680, %v3292
  %3479 = vst.msk [vmem:[#allocation3 + $0x80] sm:$0xf] %vm1680, %v3294
  %3480 = vst.msk [vmem:[#allocation3 + $0x94] sm:$0xf] %vm1680, %v3296
  %3481 = vst.msk [vmem:[#allocation3 + $0xa8] sm:$0xf] %vm1680, %v3298
  %3482 = vst.msk [vmem:[#allocation3 + $0xbc] sm:$0xf] %vm1680, %v3300
  %3483 = vst.msk [vmem:[#allocation3 + $0xd0] sm:$0xf] %vm1680, %v3302
  %3484 = vst.msk [vmem:[#allocation3 + $0xe4] sm:$0xf] %vm1680, %v3304
  %3485 = vst.msk [vmem:[#allocation3 + $0xf8] sm:$0xf] %vm1680, %v3306
  %3486 = vst.msk [vmem:[#allocation3 + $0x10c] sm:$0xf] %vm1680, %v3308
  %3487 = vst.msk [vmem:[#allocation3 + $0x120] sm:$0xf] %vm1680, %v3310
  %3488 = vst.msk [vmem:[#allocation3 + $0x134] sm:$0xf] %vm1680, %v3312
  %3489 = vst.msk [vmem:[#allocation3 + $0x148] sm:$0xf] %vm1680, %v3314
  %3490 = vst.msk [vmem:[#allocation3 + $0x15c] sm:$0xf] %vm1680, %v3316
  %3491 = vst.msk [vmem:[#allocation3 + $0x170] sm:$0xf] %vm1680, %v3318
  %3492 = vst.msk [vmem:[#allocation3 + $0x184] sm:$0xf] %vm1680, %v3320
  %3493 = vst.msk [vmem:[#allocation3 + $0x198] sm:$0xf] %vm1680, %v3322
  %3494 = vst.msk [vmem:[#allocation3 + $0x1ac] sm:$0xf] %vm1680, %v3324
  %3495 = vst.msk [vmem:[#allocation3 + $0x1c0] sm:$0xf] %vm1680, %v3326
  %3496 = vst.msk [vmem:[#allocation3 + $0x1d4] sm:$0xf] %vm1680, %v3328
  %3497 = vst.msk [vmem:[#allocation3 + $0x1e8] sm:$0xf] %vm1680, %v3330
  %3498 = vst.msk [vmem:[#allocation3 + $0x1fc] sm:$0xf] %vm1680, %v3332
  %3499 = vst.msk [vmem:[#allocation3 + $0x210] sm:$0xf] %vm1680, %v3334
  %3500 = vst.msk [vmem:[#allocation3 + $0x224] sm:$0xf] %vm1680, %v3336
  %3501 = vst.msk [vmem:[#allocation3 + $0x238] sm:$0xf] %vm1680, %v3338
  %3502 = vst.msk [vmem:[#allocation3 + $0x24c] sm:$0xf] %vm1680, %v3340
  %3503 = vst.msk [vmem:[#allocation3 + $0x260] sm:$0xf] %vm1680, %v3342
  %3504 = vst.msk [vmem:[#allocation3 + $0x274] sm:$0xf] %vm1680, %v3344
  %3505 = vst.msk [vmem:[#allocation3 + $0x288] sm:$0xf] %vm1680, %v3346
  %3506 = vst.msk [vmem:[#allocation3 + $0x29c] sm:$0xf] %vm1680, %v3348
  %3507 = vst.msk [vmem:[#allocation3 + $0x2b0] sm:$0xf] %vm1680, %v3350
  %3508 = vst.msk [vmem:[#allocation3 + $0x2c4] sm:$0xf] %vm1680, %v3352
  %3509 = vst.msk [vmem:[#allocation3 + $0x2d8] sm:$0xf] %vm1680, %v3354
  %3510 = vst.msk [vmem:[#allocation3 + $0x2ec] sm:$0xf] %vm1680, %v3356
  %3511 = vst.msk [vmem:[#allocation3 + $0x300] sm:$0xf] %vm1680, %v3358
  %3512 = vst.msk [vmem:[#allocation3 + $0x314] sm:$0xf] %vm1680, %v3360
  %3513 = vst.msk [vmem:[#allocation3 + $0x328] sm:$0xf] %vm1680, %v3362
  %3514 = vst.msk [vmem:[#allocation3 + $0x33c] sm:$0xf] %vm1680, %v3364
  %3515 = vst.msk [vmem:[#allocation3 + $0x350] sm:$0xf] %vm1680, %v3366
  %3516 = vst.msk [vmem:[#allocation3 + $0x364] sm:$0xf] %vm1680, %v3368
  %3517 = vst.msk [vmem:[#allocation3 + $0x378] sm:$0xf] %vm1680, %v3370
  %3518 = vst.msk [vmem:[#allocation3 + $0x38c] sm:$0xf] %vm1680, %v3372
  %3519 = vst.msk [vmem:[#allocation3 + $0x3a0] sm:$0xf] %vm1680, %v3374
  %3520 = vst.msk [vmem:[#allocation3 + $0x3b4] sm:$0xf] %vm1680, %v3376
  %3521 = vst.msk [vmem:[#allocation3 + $0x3c8] sm:$0xf] %vm1680, %v3378
  %3522 = vst.msk [vmem:[#allocation3 + $0x3dc] sm:$0xf] %vm1680, %v3380
  %3523 = vst.msk [vmem:[#allocation3 + $0x3f0] sm:$0xf] %vm1680, %v3382
  %3524 = vst.msk [vmem:[#allocation3 + $0x404] sm:$0xf] %vm1680, %v3384
  %3525 = vst.msk [vmem:[#allocation3 + $0x418] sm:$0xf] %vm1680, %v3386
  %3526 = vst.msk [vmem:[#allocation3 + $0x42c] sm:$0xf] %vm1680, %v3388
  %3527 = vst.msk [vmem:[#allocation3 + $0x440] sm:$0xf] %vm1680, %v3390
  %3528 = vst.msk [vmem:[#allocation3 + $0x454] sm:$0xf] %vm1680, %v3392
  %3529 = vst.msk [vmem:[#allocation3 + $0x468] sm:$0xf] %vm1680, %v3394
  %3530 = vst.msk [vmem:[#allocation3 + $0x47c] sm:$0xf] %vm1680, %v3396
  %3531 = vst.msk [vmem:[#allocation3 + $0x490] sm:$0xf] %vm1680, %v3398
  %3532 = vst.msk [vmem:[#allocation3 + $0x4a4] sm:$0xf] %vm1680, %v3400
  %3533 = vst.msk [vmem:[#allocation3 + $0x4b8] sm:$0xf] %vm1680, %v3402
  %3534 = vst.msk [vmem:[#allocation3 + $0x4cc] sm:$0xf] %vm1680, %v3404
  %3535 = vst.msk [vmem:[#allocation3 + $0x4e0] sm:$0xf] %vm1680, %v3406
  %3536 = vst.msk [vmem:[#allocation3 + $0x4f4] sm:$0xf] %vm1680, %v3408
  %s3537 = scalar_lea.vmem [#allocation2], 48
  %v3538 = vld [vmem:[%s3537] sm:$0xff]
  %v3539 = vld [vmem:[%s3537 + $0x8] sm:$0xff]
  %v3540 = vld [vmem:[%s3537 + $0x18] sm:$0xff]
  %v3541 = vld [vmem:[%s3537 + $0x20] sm:$0xff]
  %v3542 = vld [vmem:[%s3537 + $0x30] sm:$0xff]
  %v3543 = vld [vmem:[%s3537 + $0x38] sm:$0xff]
  %v3544 = vld [vmem:[%s3537 + $0x48] sm:$0xff]
  %v3545 = vld [vmem:[%s3537 + $0x50] sm:$0xff]
  %v3546 = vld [vmem:[%s3537 + $0x60] sm:$0xff]
  %v3547 = vld [vmem:[%s3537 + $0x68] sm:$0xff]
  %v3548 = vld [vmem:[%s3537 + $0x78] sm:$0xff]
  %v3549 = vld [vmem:[%s3537 + $0x80] sm:$0xff]
  %v3550 = vld [vmem:[%s3537 + $0x90] sm:$0xff]
  %v3551 = vld [vmem:[%s3537 + $0x98] sm:$0xff]
  %v3552 = vld [vmem:[%s3537 + $0xa8] sm:$0xff]
  %v3553 = vld [vmem:[%s3537 + $0xb0] sm:$0xff]
  %v3554 = vld [vmem:[%s3537 + $0xc0] sm:$0xff]
  %v3555 = vld [vmem:[%s3537 + $0xc8] sm:$0xff]
  %v3556 = vld [vmem:[%s3537 + $0xd8] sm:$0xff]
  %v3557 = vld [vmem:[%s3537 + $0xe0] sm:$0xff]
  %v3558 = vld [vmem:[%s3537 + $0xf0] sm:$0xff]
  %v3559 = vld [vmem:[%s3537 + $0xf8] sm:$0xff]
  %v3560 = vld [vmem:[%s3537 + $0x108] sm:$0xff]
  %v3561 = vld [vmem:[%s3537 + $0x110] sm:$0xff]
  %v3562 = vld [vmem:[%s3537 + $0x120] sm:$0xff]
  %v3563 = vld [vmem:[%s3537 + $0x128] sm:$0xff]
  %v3564 = vld [vmem:[%s3537 + $0x138] sm:$0xff]
  %v3565 = vld [vmem:[%s3537 + $0x140] sm:$0xff]
  %v3566 = vld [vmem:[%s3537 + $0x150] sm:$0xff]
  %v3567 = vld [vmem:[%s3537 + $0x158] sm:$0xff]
  %v3568 = vld [vmem:[%s3537 + $0x168] sm:$0xff]
  %v3569 = vld [vmem:[%s3537 + $0x170] sm:$0xff]
  %v3570 = vld [vmem:[%s3537 + $0x1b0] sm:$0xff]
  %v3571 = vld [vmem:[%s3537 + $0x1b8] sm:$0xff]
  %v3572 = vld [vmem:[%s3537 + $0x1c8] sm:$0xff]
  %v3573 = vld [vmem:[%s3537 + $0x1d0] sm:$0xff]
  %v3574 = vld [vmem:[%s3537 + $0x1e0] sm:$0xff]
  %v3575 = vld [vmem:[%s3537 + $0x1e8] sm:$0xff]
  %v3576 = vld [vmem:[%s3537 + $0x1f8] sm:$0xff]
  %v3577 = vld [vmem:[%s3537 + $0x200] sm:$0xff]
  %v3578 = vld [vmem:[%s3537 + $0x210] sm:$0xff]
  %v3579 = vld [vmem:[%s3537 + $0x218] sm:$0xff]
  %v3580 = vld [vmem:[%s3537 + $0x228] sm:$0xff]
  %v3581 = vld [vmem:[%s3537 + $0x230] sm:$0xff]
  %v3582 = vld [vmem:[%s3537 + $0x240] sm:$0xff]
  %v3583 = vld [vmem:[%s3537 + $0x248] sm:$0xff]
  %v3584 = vld [vmem:[%s3537 + $0x258] sm:$0xff]
  %v3585 = vld [vmem:[%s3537 + $0x260] sm:$0xff]
  %v3586 = vld [vmem:[%s3537 + $0x270] sm:$0xff]
  %v3587 = vld [vmem:[%s3537 + $0x278] sm:$0xff]
  %v3588 = vld [vmem:[%s3537 + $0x288] sm:$0xff]
  %v3589 = vld [vmem:[%s3537 + $0x290] sm:$0xff]
  %v3590 = vld [vmem:[%s3537 + $0x2a0] sm:$0xff]
  %v3591 = vld [vmem:[%s3537 + $0x2a8] sm:$0xff]
  %v3592 = vld [vmem:[%s3537 + $0x2b8] sm:$0xff]
  %v3593 = vld [vmem:[%s3537 + $0x2c0] sm:$0xff]
  %v3594 = vld [vmem:[%s3537 + $0x2d0] sm:$0xff]
  %v3595 = vld [vmem:[%s3537 + $0x2d8] sm:$0xff]
  %v3596 = vld [vmem:[%s3537 + $0x2e8] sm:$0xff]
  %v3597 = vld [vmem:[%s3537 + $0x2f0] sm:$0xff]
  %v3598 = vld [vmem:[%s3537 + $0x300] sm:$0xff]
  %v3599 = vld [vmem:[%s3537 + $0x308] sm:$0xff]
  %v3600 = vld [vmem:[%s3537 + $0x318] sm:$0xff]
  %v3601 = vld [vmem:[%s3537 + $0x320] sm:$0xff]
  %v3602 = vpack.c.bf16 %v3539, %v3538
  %v3603 = vpack.c.bf16 %v3541, %v3540
  %v3604 = vpack.c.bf16 %v3543, %v3542
  %v3605 = vpack.c.bf16 %v3545, %v3544
  %v3606 = vpack.c.bf16 %v3547, %v3546
  %v3607 = vpack.c.bf16 %v3549, %v3548
  %v3608 = vpack.c.bf16 %v3551, %v3550
  %v3609 = vpack.c.bf16 %v3553, %v3552
  %v3610 = vpack.c.bf16 %v3555, %v3554
  %v3611 = vpack.c.bf16 %v3557, %v3556
  %v3612 = vpack.c.bf16 %v3559, %v3558
  %v3613 = vpack.c.bf16 %v3561, %v3560
  %v3614 = vpack.c.bf16 %v3563, %v3562
  %v3615 = vpack.c.bf16 %v3565, %v3564
  %v3616 = vpack.c.bf16 %v3567, %v3566
  %v3617 = vpack.c.bf16 %v3569, %v3568
  %v3618 = vpack.c.bf16 %v3571, %v3570
  %v3619 = vpack.c.bf16 %v3573, %v3572
  %v3620 = vpack.c.bf16 %v3575, %v3574
  %v3621 = vpack.c.bf16 %v3577, %v3576
  %v3622 = vpack.c.bf16 %v3579, %v3578
  %v3623 = vpack.c.bf16 %v3581, %v3580
  %v3624 = vpack.c.bf16 %v3583, %v3582
  %v3625 = vpack.c.bf16 %v3585, %v3584
  %v3626 = vpack.c.bf16 %v3587, %v3586
  %v3627 = vpack.c.bf16 %v3589, %v3588
  %v3628 = vpack.c.bf16 %v3591, %v3590
  %v3629 = vpack.c.bf16 %v3593, %v3592
  %v3630 = vpack.c.bf16 %v3595, %v3594
  %v3631 = vpack.c.bf16 %v3597, %v3596
  %v3632 = vpack.c.bf16 %v3599, %v3598
  %v3633 = vpack.c.bf16 %v3601, %v3600
  %v3666 = vunpack.c.l.b16 %v3602
  %v3667 = vunpack.c.h.b16 %v3602
  %v3668 = vunpack.c.l.b16 %v3603
  %v3669 = vunpack.c.h.b16 %v3603
  %v3670 = vunpack.c.l.b16 %v3604
  %v3671 = vunpack.c.h.b16 %v3604
  %v3672 = vunpack.c.l.b16 %v3605
  %v3673 = vunpack.c.h.b16 %v3605
  %v3674 = vunpack.c.l.b16 %v3606
  %v3675 = vunpack.c.h.b16 %v3606
  %v3676 = vunpack.c.l.b16 %v3607
  %v3677 = vunpack.c.h.b16 %v3607
  %v3678 = vunpack.c.l.b16 %v3608
  %v3679 = vunpack.c.h.b16 %v3608
  %v3680 = vunpack.c.l.b16 %v3609
  %v3681 = vunpack.c.h.b16 %v3609
  %v3682 = vunpack.c.l.b16 %v3610
  %v3683 = vunpack.c.h.b16 %v3610
  %v3684 = vunpack.c.l.b16 %v3611
  %v3685 = vunpack.c.h.b16 %v3611
  %v3686 = vunpack.c.l.b16 %v3612
  %v3687 = vunpack.c.h.b16 %v3612
  %v3688 = vunpack.c.l.b16 %v3613
  %v3689 = vunpack.c.h.b16 %v3613
  %v3690 = vunpack.c.l.b16 %v3614
  %v3691 = vunpack.c.h.b16 %v3614
  %v3692 = vunpack.c.l.b16 %v3615
  %v3693 = vunpack.c.h.b16 %v3615
  %v3694 = vunpack.c.l.b16 %v3616
  %v3695 = vunpack.c.h.b16 %v3616
  %v3696 = vunpack.c.l.b16 %v3617
  %v3697 = vunpack.c.h.b16 %v3617
  %v3698 = vunpack.c.l.b16 %v3618
  %v3699 = vunpack.c.h.b16 %v3618
  %v3700 = vunpack.c.l.b16 %v3619
  %v3701 = vunpack.c.h.b16 %v3619
  %v3702 = vunpack.c.l.b16 %v3620
  %v3703 = vunpack.c.h.b16 %v3620
  %v3704 = vunpack.c.l.b16 %v3621
  %v3705 = vunpack.c.h.b16 %v3621
  %v3706 = vunpack.c.l.b16 %v3622
  %v3707 = vunpack.c.h.b16 %v3622
  %v3708 = vunpack.c.l.b16 %v3623
  %v3709 = vunpack.c.h.b16 %v3623
  %v3710 = vunpack.c.l.b16 %v3624
  %v3711 = vunpack.c.h.b16 %v3624
  %v3712 = vunpack.c.l.b16 %v3625
  %v3713 = vunpack.c.h.b16 %v3625
  %v3714 = vunpack.c.l.b16 %v3626
  %v3715 = vunpack.c.h.b16 %v3626
  %v3716 = vunpack.c.l.b16 %v3627
  %v3717 = vunpack.c.h.b16 %v3627
  %v3718 = vunpack.c.l.b16 %v3628
  %v3719 = vunpack.c.h.b16 %v3628
  %v3720 = vunpack.c.l.b16 %v3629
  %v3721 = vunpack.c.h.b16 %v3629
  %v3722 = vunpack.c.l.b16 %v3630
  %v3723 = vunpack.c.h.b16 %v3630
  %v3724 = vunpack.c.l.b16 %v3631
  %v3725 = vunpack.c.h.b16 %v3631
  %v3726 = vunpack.c.l.b16 %v3632
  %v3727 = vunpack.c.h.b16 %v3632
  %v3728 = vunpack.c.l.b16 %v3633
  %v3729 = vunpack.c.h.b16 %v3633
  %v3730 = vpack.c.b16 %v3666, %v3666
  %v3731 = vpack.c.b16 %v3667, %v3667
  %v3732 = vpack.c.b16 %v3668, %v3668
  %v3733 = vpack.c.b16 %v3669, %v3669
  %v3734 = vpack.c.b16 %v3670, %v3670
  %v3735 = vpack.c.b16 %v3671, %v3671
  %v3736 = vpack.c.b16 %v3672, %v3672
  %v3737 = vpack.c.b16 %v3673, %v3673
  %v3738 = vpack.c.b16 %v3674, %v3674
  %v3739 = vpack.c.b16 %v3675, %v3675
  %v3740 = vpack.c.b16 %v3676, %v3676
  %v3741 = vpack.c.b16 %v3677, %v3677
  %v3742 = vpack.c.b16 %v3678, %v3678
  %v3743 = vpack.c.b16 %v3679, %v3679
  %v3744 = vpack.c.b16 %v3680, %v3680
  %v3745 = vpack.c.b16 %v3681, %v3681
  %v3746 = vpack.c.b16 %v3682, %v3682
  %v3747 = vpack.c.b16 %v3683, %v3683
  %v3748 = vpack.c.b16 %v3684, %v3684
  %v3749 = vpack.c.b16 %v3685, %v3685
  %v3750 = vpack.c.b16 %v3686, %v3686
  %v3751 = vpack.c.b16 %v3687, %v3687
  %v3752 = vpack.c.b16 %v3688, %v3688
  %v3753 = vpack.c.b16 %v3689, %v3689
  %v3754 = vpack.c.b16 %v3690, %v3690
  %v3755 = vpack.c.b16 %v3691, %v3691
  %v3756 = vpack.c.b16 %v3692, %v3692
  %v3757 = vpack.c.b16 %v3693, %v3693
  %v3758 = vpack.c.b16 %v3694, %v3694
  %v3759 = vpack.c.b16 %v3695, %v3695
  %v3760 = vpack.c.b16 %v3696, %v3696
  %v3761 = vpack.c.b16 %v3697, %v3697
  %v3762 = vpack.c.b16 %v3698, %v3698
  %v3763 = vpack.c.b16 %v3699, %v3699
  %v3764 = vpack.c.b16 %v3700, %v3700
  %v3765 = vpack.c.b16 %v3701, %v3701
  %v3766 = vpack.c.b16 %v3702, %v3702
  %v3767 = vpack.c.b16 %v3703, %v3703
  %v3768 = vpack.c.b16 %v3704, %v3704
  %v3769 = vpack.c.b16 %v3705, %v3705
  %v3770 = vpack.c.b16 %v3706, %v3706
  %v3771 = vpack.c.b16 %v3707, %v3707
  %v3772 = vpack.c.b16 %v3708, %v3708
  %v3773 = vpack.c.b16 %v3709, %v3709
  %v3774 = vpack.c.b16 %v3710, %v3710
  %v3775 = vpack.c.b16 %v3711, %v3711
  %v3776 = vpack.c.b16 %v3712, %v3712
  %v3777 = vpack.c.b16 %v3713, %v3713
  %v3778 = vpack.c.b16 %v3714, %v3714
  %v3779 = vpack.c.b16 %v3715, %v3715
  %v3780 = vpack.c.b16 %v3716, %v3716
  %v3781 = vpack.c.b16 %v3717, %v3717
  %v3782 = vpack.c.b16 %v3718, %v3718
  %v3783 = vpack.c.b16 %v3719, %v3719
  %v3784 = vpack.c.b16 %v3720, %v3720
  %v3785 = vpack.c.b16 %v3721, %v3721
  %v3786 = vpack.c.b16 %v3722, %v3722
  %v3787 = vpack.c.b16 %v3723, %v3723
  %v3788 = vpack.c.b16 %v3724, %v3724
  %v3789 = vpack.c.b16 %v3725, %v3725
  %v3790 = vpack.c.b16 %v3726, %v3726
  %v3791 = vpack.c.b16 %v3727, %v3727
  %v3792 = vpack.c.b16 %v3728, %v3728
  %v3793 = vpack.c.b16 %v3729, %v3729
  %3858 = vst.msk [vmem:[#allocation3 + $0xc] sm:$0xf] %vm1167, %v3730
  %3859 = vst.msk [vmem:[#allocation3 + $0x20] sm:$0xf] %vm1167, %v3731
  %3860 = vst.msk [vmem:[#allocation3 + $0x34] sm:$0xf] %vm1167, %v3732
  %3861 = vst.msk [vmem:[#allocation3 + $0x48] sm:$0xf] %vm1167, %v3733
  %3862 = vst.msk [vmem:[#allocation3 + $0x5c] sm:$0xf] %vm1167, %v3734
  %3863 = vst.msk [vmem:[#allocation3 + $0x70] sm:$0xf] %vm1167, %v3735
  %3864 = vst.msk [vmem:[#allocation3 + $0x84] sm:$0xf] %vm1167, %v3736
  %3865 = vst.msk [vmem:[#allocation3 + $0x98] sm:$0xf] %vm1167, %v3737
  %3866 = vst.msk [vmem:[#allocation3 + $0xac] sm:$0xf] %vm1167, %v3738
  %3867 = vst.msk [vmem:[#allocation3 + $0xc0] sm:$0xf] %vm1167, %v3739
  %3868 = vst.msk [vmem:[#allocation3 + $0xd4] sm:$0xf] %vm1167, %v3740
  %3869 = vst.msk [vmem:[#allocation3 + $0xe8] sm:$0xf] %vm1167, %v3741
  %3870 = vst.msk [vmem:[#allocation3 + $0xfc] sm:$0xf] %vm1167, %v3742
  %3871 = vst.msk [vmem:[#allocation3 + $0x110] sm:$0xf] %vm1167, %v3743
  %3872 = vst.msk [vmem:[#allocation3 + $0x124] sm:$0xf] %vm1167, %v3744
  %3873 = vst.msk [vmem:[#allocation3 + $0x138] sm:$0xf] %vm1167, %v3745
  %3874 = vst.msk [vmem:[#allocation3 + $0x14c] sm:$0xf] %vm1167, %v3746
  %3875 = vst.msk [vmem:[#allocation3 + $0x160] sm:$0xf] %vm1167, %v3747
  %3876 = vst.msk [vmem:[#allocation3 + $0x174] sm:$0xf] %vm1167, %v3748
  %3877 = vst.msk [vmem:[#allocation3 + $0x188] sm:$0xf] %vm1167, %v3749
  %3878 = vst.msk [vmem:[#allocation3 + $0x19c] sm:$0xf] %vm1167, %v3750
  %3879 = vst.msk [vmem:[#allocation3 + $0x1b0] sm:$0xf] %vm1167, %v3751
  %3880 = vst.msk [vmem:[#allocation3 + $0x1c4] sm:$0xf] %vm1167, %v3752
  %3881 = vst.msk [vmem:[#allocation3 + $0x1d8] sm:$0xf] %vm1167, %v3753
  %3882 = vst.msk [vmem:[#allocation3 + $0x1ec] sm:$0xf] %vm1167, %v3754
  %3883 = vst.msk [vmem:[#allocation3 + $0x200] sm:$0xf] %vm1167, %v3755
  %3884 = vst.msk [vmem:[#allocation3 + $0x214] sm:$0xf] %vm1167, %v3756
  %3885 = vst.msk [vmem:[#allocation3 + $0x228] sm:$0xf] %vm1167, %v3757
  %3886 = vst.msk [vmem:[#allocation3 + $0x23c] sm:$0xf] %vm1167, %v3758
  %3887 = vst.msk [vmem:[#allocation3 + $0x250] sm:$0xf] %vm1167, %v3759
  %3888 = vst.msk [vmem:[#allocation3 + $0x264] sm:$0xf] %vm1167, %v3760
  %3889 = vst.msk [vmem:[#allocation3 + $0x278] sm:$0xf] %vm1167, %v3761
  %3890 = vst.msk [vmem:[#allocation3 + $0x28c] sm:$0xf] %vm1167, %v3762
  %3891 = vst.msk [vmem:[#allocation3 + $0x2a0] sm:$0xf] %vm1167, %v3763
  %3892 = vst.msk [vmem:[#allocation3 + $0x2b4] sm:$0xf] %vm1167, %v3764
  %3893 = vst.msk [vmem:[#allocation3 + $0x2c8] sm:$0xf] %vm1167, %v3765
  %3894 = vst.msk [vmem:[#allocation3 + $0x2dc] sm:$0xf] %vm1167, %v3766
  %3895 = vst.msk [vmem:[#allocation3 + $0x2f0] sm:$0xf] %vm1167, %v3767
  %3896 = vst.msk [vmem:[#allocation3 + $0x304] sm:$0xf] %vm1167, %v3768
  %3897 = vst.msk [vmem:[#allocation3 + $0x318] sm:$0xf] %vm1167, %v3769
  %3898 = vst.msk [vmem:[#allocation3 + $0x32c] sm:$0xf] %vm1167, %v3770
  %3899 = vst.msk [vmem:[#allocation3 + $0x340] sm:$0xf] %vm1167, %v3771
  %3900 = vst.msk [vmem:[#allocation3 + $0x354] sm:$0xf] %vm1167, %v3772
  %3901 = vst.msk [vmem:[#allocation3 + $0x368] sm:$0xf] %vm1167, %v3773
  %3902 = vst.msk [vmem:[#allocation3 + $0x37c] sm:$0xf] %vm1167, %v3774
  %3903 = vst.msk [vmem:[#allocation3 + $0x390] sm:$0xf] %vm1167, %v3775
  %3904 = vst.msk [vmem:[#allocation3 + $0x3a4] sm:$0xf] %vm1167, %v3776
  %3905 = vst.msk [vmem:[#allocation3 + $0x3b8] sm:$0xf] %vm1167, %v3777
  %3906 = vst.msk [vmem:[#allocation3 + $0x3cc] sm:$0xf] %vm1167, %v3778
  %3907 = vst.msk [vmem:[#allocation3 + $0x3e0] sm:$0xf] %vm1167, %v3779
  %3908 = vst.msk [vmem:[#allocation3 + $0x3f4] sm:$0xf] %vm1167, %v3780
  %3909 = vst.msk [vmem:[#allocation3 + $0x408] sm:$0xf] %vm1167, %v3781
  %3910 = vst.msk [vmem:[#allocation3 + $0x41c] sm:$0xf] %vm1167, %v3782
  %3911 = vst.msk [vmem:[#allocation3 + $0x430] sm:$0xf] %vm1167, %v3783
  %3912 = vst.msk [vmem:[#allocation3 + $0x444] sm:$0xf] %vm1167, %v3784
  %3913 = vst.msk [vmem:[#allocation3 + $0x458] sm:$0xf] %vm1167, %v3785
  %3914 = vst.msk [vmem:[#allocation3 + $0x46c] sm:$0xf] %vm1167, %v3786
  %3915 = vst.msk [vmem:[#allocation3 + $0x480] sm:$0xf] %vm1167, %v3787
  %3916 = vst.msk [vmem:[#allocation3 + $0x494] sm:$0xf] %vm1167, %v3788
  %3917 = vst.msk [vmem:[#allocation3 + $0x4a8] sm:$0xf] %vm1167, %v3789
  %3918 = vst.msk [vmem:[#allocation3 + $0x4bc] sm:$0xf] %vm1167, %v3790
  %3919 = vst.msk [vmem:[#allocation3 + $0x4d0] sm:$0xf] %vm1167, %v3791
  %3920 = vst.msk [vmem:[#allocation3 + $0x4e4] sm:$0xf] %vm1167, %v3792
  %3921 = vst.msk [vmem:[#allocation3 + $0x4f8] sm:$0xf] %vm1167, %v3793
  %v3922 = vld [vmem:[%s3537 + $0x1] sm:$0xff]
  %v3923 = vld [vmem:[%s3537 + $0x9] sm:$0xff]
  %v3924 = vld [vmem:[%s3537 + $0x19] sm:$0xff]
  %v3925 = vld [vmem:[%s3537 + $0x21] sm:$0xff]
  %v3926 = vld [vmem:[%s3537 + $0x31] sm:$0xff]
  %v3927 = vld [vmem:[%s3537 + $0x39] sm:$0xff]
  %v3928 = vld [vmem:[%s3537 + $0x49] sm:$0xff]
  %v3929 = vld [vmem:[%s3537 + $0x51] sm:$0xff]
  %v3930 = vld [vmem:[%s3537 + $0x61] sm:$0xff]
  %v3931 = vld [vmem:[%s3537 + $0x69] sm:$0xff]
  %v3932 = vld [vmem:[%s3537 + $0x79] sm:$0xff]
  %v3933 = vld [vmem:[%s3537 + $0x81] sm:$0xff]
  %v3934 = vld [vmem:[%s3537 + $0x91] sm:$0xff]
  %v3935 = vld [vmem:[%s3537 + $0x99] sm:$0xff]
  %v3936 = vld [vmem:[%s3537 + $0xa9] sm:$0xff]
  %v3937 = vld [vmem:[%s3537 + $0xb1] sm:$0xff]
  %v3938 = vld [vmem:[%s3537 + $0xc1] sm:$0xff]
  %v3939 = vld [vmem:[%s3537 + $0xc9] sm:$0xff]
  %v3940 = vld [vmem:[%s3537 + $0xd9] sm:$0xff]
  %v3941 = vld [vmem:[%s3537 + $0xe1] sm:$0xff]
  %v3942 = vld [vmem:[%s3537 + $0xf1] sm:$0xff]
  %v3943 = vld [vmem:[%s3537 + $0xf9] sm:$0xff]
  %v3944 = vld [vmem:[%s3537 + $0x109] sm:$0xff]
  %v3945 = vld [vmem:[%s3537 + $0x111] sm:$0xff]
  %v3946 = vld [vmem:[%s3537 + $0x121] sm:$0xff]
  %v3947 = vld [vmem:[%s3537 + $0x129] sm:$0xff]
  %v3948 = vld [vmem:[%s3537 + $0x139] sm:$0xff]
  %v3949 = vld [vmem:[%s3537 + $0x141] sm:$0xff]
  %v3950 = vld [vmem:[%s3537 + $0x151] sm:$0xff]
  %v3951 = vld [vmem:[%s3537 + $0x159] sm:$0xff]
  %v3952 = vld [vmem:[%s3537 + $0x169] sm:$0xff]
  %v3953 = vld [vmem:[%s3537 + $0x171] sm:$0xff]
  %v3954 = vld [vmem:[%s3537 + $0x1b1] sm:$0xff]
  %v3955 = vld [vmem:[%s3537 + $0x1b9] sm:$0xff]
  %v3956 = vld [vmem:[%s3537 + $0x1c9] sm:$0xff]
  %v3957 = vld [vmem:[%s3537 + $0x1d1] sm:$0xff]
  %v3958 = vld [vmem:[%s3537 + $0x1e1] sm:$0xff]
  %v3959 = vld [vmem:[%s3537 + $0x1e9] sm:$0xff]
  %v3960 = vld [vmem:[%s3537 + $0x1f9] sm:$0xff]
  %v3961 = vld [vmem:[%s3537 + $0x201] sm:$0xff]
  %v3962 = vld [vmem:[%s3537 + $0x211] sm:$0xff]
  %v3963 = vld [vmem:[%s3537 + $0x219] sm:$0xff]
  %v3964 = vld [vmem:[%s3537 + $0x229] sm:$0xff]
  %v3965 = vld [vmem:[%s3537 + $0x231] sm:$0xff]
  %v3966 = vld [vmem:[%s3537 + $0x241] sm:$0xff]
  %v3967 = vld [vmem:[%s3537 + $0x249] sm:$0xff]
  %v3968 = vld [vmem:[%s3537 + $0x259] sm:$0xff]
  %v3969 = vld [vmem:[%s3537 + $0x261] sm:$0xff]
  %v3970 = vld [vmem:[%s3537 + $0x271] sm:$0xff]
  %v3971 = vld [vmem:[%s3537 + $0x279] sm:$0xff]
  %v3972 = vld [vmem:[%s3537 + $0x289] sm:$0xff]
  %v3973 = vld [vmem:[%s3537 + $0x291] sm:$0xff]
  %v3974 = vld [vmem:[%s3537 + $0x2a1] sm:$0xff]
  %v3975 = vld [vmem:[%s3537 + $0x2a9] sm:$0xff]
  %v3976 = vld [vmem:[%s3537 + $0x2b9] sm:$0xff]
  %v3977 = vld [vmem:[%s3537 + $0x2c1] sm:$0xff]
  %v3978 = vld [vmem:[%s3537 + $0x2d1] sm:$0xff]
  %v3979 = vld [vmem:[%s3537 + $0x2d9] sm:$0xff]
  %v3980 = vld [vmem:[%s3537 + $0x2e9] sm:$0xff]
  %v3981 = vld [vmem:[%s3537 + $0x2f1] sm:$0xff]
  %v3982 = vld [vmem:[%s3537 + $0x301] sm:$0xff]
  %v3983 = vld [vmem:[%s3537 + $0x309] sm:$0xff]
  %v3984 = vld [vmem:[%s3537 + $0x319] sm:$0xff]
  %v3985 = vld [vmem:[%s3537 + $0x321] sm:$0xff]
  %v3986 = vpack.c.bf16 %v3923, %v3922
  %v3987 = vpack.c.bf16 %v3925, %v3924
  %v3988 = vpack.c.bf16 %v3927, %v3926
  %v3989 = vpack.c.bf16 %v3929, %v3928
  %v3990 = vpack.c.bf16 %v3931, %v3930
  %v3991 = vpack.c.bf16 %v3933, %v3932
  %v3992 = vpack.c.bf16 %v3935, %v3934
  %v3993 = vpack.c.bf16 %v3937, %v3936
  %v3994 = vpack.c.bf16 %v3939, %v3938
  %v3995 = vpack.c.bf16 %v3941, %v3940
  %v3996 = vpack.c.bf16 %v3943, %v3942
  %v3997 = vpack.c.bf16 %v3945, %v3944
  %v3998 = vpack.c.bf16 %v3947, %v3946
  %v3999 = vpack.c.bf16 %v3949, %v3948
  %v4000 = vpack.c.bf16 %v3951, %v3950
  %v4001 = vpack.c.bf16 %v3953, %v3952
  %v4002 = vpack.c.bf16 %v3955, %v3954
  %v4003 = vpack.c.bf16 %v3957, %v3956
  %v4004 = vpack.c.bf16 %v3959, %v3958
  %v4005 = vpack.c.bf16 %v3961, %v3960
  %v4006 = vpack.c.bf16 %v3963, %v3962
  %v4007 = vpack.c.bf16 %v3965, %v3964
  %v4008 = vpack.c.bf16 %v3967, %v3966
  %v4009 = vpack.c.bf16 %v3969, %v3968
  %v4010 = vpack.c.bf16 %v3971, %v3970
  %v4011 = vpack.c.bf16 %v3973, %v3972
  %v4012 = vpack.c.bf16 %v3975, %v3974
  %v4013 = vpack.c.bf16 %v3977, %v3976
  %v4014 = vpack.c.bf16 %v3979, %v3978
  %v4015 = vpack.c.bf16 %v3981, %v3980
  %v4016 = vpack.c.bf16 %v3983, %v3982
  %v4017 = vpack.c.bf16 %v3985, %v3984
  %v4050 = vunpack.c.l.b16 %v3986
  %v4051 = vunpack.c.h.b16 %v3986
  %v4052 = vunpack.c.l.b16 %v3987
  %v4053 = vunpack.c.h.b16 %v3987
  %v4054 = vunpack.c.l.b16 %v3988
  %v4055 = vunpack.c.h.b16 %v3988
  %v4056 = vunpack.c.l.b16 %v3989
  %v4057 = vunpack.c.h.b16 %v3989
  %v4058 = vunpack.c.l.b16 %v3990
  %v4059 = vunpack.c.h.b16 %v3990
  %v4060 = vunpack.c.l.b16 %v3991
  %v4061 = vunpack.c.h.b16 %v3991
  %v4062 = vunpack.c.l.b16 %v3992
  %v4063 = vunpack.c.h.b16 %v3992
  %v4064 = vunpack.c.l.b16 %v3993
  %v4065 = vunpack.c.h.b16 %v3993
  %v4066 = vunpack.c.l.b16 %v3994
  %v4067 = vunpack.c.h.b16 %v3994
  %v4068 = vunpack.c.l.b16 %v3995
  %v4069 = vunpack.c.h.b16 %v3995
  %v4070 = vunpack.c.l.b16 %v3996
  %v4071 = vunpack.c.h.b16 %v3996
  %v4072 = vunpack.c.l.b16 %v3997
  %v4073 = vunpack.c.h.b16 %v3997
  %v4074 = vunpack.c.l.b16 %v3998
  %v4075 = vunpack.c.h.b16 %v3998
  %v4076 = vunpack.c.l.b16 %v3999
  %v4077 = vunpack.c.h.b16 %v3999
  %v4078 = vunpack.c.l.b16 %v4000
  %v4079 = vunpack.c.h.b16 %v4000
  %v4080 = vunpack.c.l.b16 %v4001
  %v4081 = vunpack.c.h.b16 %v4001
  %v4082 = vunpack.c.l.b16 %v4002
  %v4083 = vunpack.c.h.b16 %v4002
  %v4084 = vunpack.c.l.b16 %v4003
  %v4085 = vunpack.c.h.b16 %v4003
  %v4086 = vunpack.c.l.b16 %v4004
  %v4087 = vunpack.c.h.b16 %v4004
  %v4088 = vunpack.c.l.b16 %v4005
  %v4089 = vunpack.c.h.b16 %v4005
  %v4090 = vunpack.c.l.b16 %v4006
  %v4091 = vunpack.c.h.b16 %v4006
  %v4092 = vunpack.c.l.b16 %v4007
  %v4093 = vunpack.c.h.b16 %v4007
  %v4094 = vunpack.c.l.b16 %v4008
  %v4095 = vunpack.c.h.b16 %v4008
  %v4096 = vunpack.c.l.b16 %v4009
  %v4097 = vunpack.c.h.b16 %v4009
  %v4098 = vunpack.c.l.b16 %v4010
  %v4099 = vunpack.c.h.b16 %v4010
  %v4100 = vunpack.c.l.b16 %v4011
  %v4101 = vunpack.c.h.b16 %v4011
  %v4102 = vunpack.c.l.b16 %v4012
  %v4103 = vunpack.c.h.b16 %v4012
  %v4104 = vunpack.c.l.b16 %v4013
  %v4105 = vunpack.c.h.b16 %v4013
  %v4106 = vunpack.c.l.b16 %v4014
  %v4107 = vunpack.c.h.b16 %v4014
  %v4108 = vunpack.c.l.b16 %v4015
  %v4109 = vunpack.c.h.b16 %v4015
  %v4110 = vunpack.c.l.b16 %v4016
  %v4111 = vunpack.c.h.b16 %v4016
  %v4112 = vunpack.c.l.b16 %v4017
  %v4113 = vunpack.c.h.b16 %v4017
  %v4114 = vpack.c.b16 %v4050, %v4050
  %v4115 = vpack.c.b16 %v4051, %v4051
  %v4116 = vpack.c.b16 %v4052, %v4052
  %v4117 = vpack.c.b16 %v4053, %v4053
  %v4118 = vpack.c.b16 %v4054, %v4054
  %v4119 = vpack.c.b16 %v4055, %v4055
  %v4120 = vpack.c.b16 %v4056, %v4056
  %v4121 = vpack.c.b16 %v4057, %v4057
  %v4122 = vpack.c.b16 %v4058, %v4058
  %v4123 = vpack.c.b16 %v4059, %v4059
  %v4124 = vpack.c.b16 %v4060, %v4060
  %v4125 = vpack.c.b16 %v4061, %v4061
  %v4126 = vpack.c.b16 %v4062, %v4062
  %v4127 = vpack.c.b16 %v4063, %v4063
  %v4128 = vpack.c.b16 %v4064, %v4064
  %v4129 = vpack.c.b16 %v4065, %v4065
  %v4130 = vpack.c.b16 %v4066, %v4066
  %v4131 = vpack.c.b16 %v4067, %v4067
  %v4132 = vpack.c.b16 %v4068, %v4068
  %v4133 = vpack.c.b16 %v4069, %v4069
  %v4134 = vpack.c.b16 %v4070, %v4070
  %v4135 = vpack.c.b16 %v4071, %v4071
  %v4136 = vpack.c.b16 %v4072, %v4072
  %v4137 = vpack.c.b16 %v4073, %v4073
  %v4138 = vpack.c.b16 %v4074, %v4074
  %v4139 = vpack.c.b16 %v4075, %v4075
  %v4140 = vpack.c.b16 %v4076, %v4076
  %v4141 = vpack.c.b16 %v4077, %v4077
  %v4142 = vpack.c.b16 %v4078, %v4078
  %v4143 = vpack.c.b16 %v4079, %v4079
  %v4144 = vpack.c.b16 %v4080, %v4080
  %v4145 = vpack.c.b16 %v4081, %v4081
  %v4146 = vpack.c.b16 %v4082, %v4082
  %v4147 = vpack.c.b16 %v4083, %v4083
  %v4148 = vpack.c.b16 %v4084, %v4084
  %v4149 = vpack.c.b16 %v4085, %v4085
  %v4150 = vpack.c.b16 %v4086, %v4086
  %v4151 = vpack.c.b16 %v4087, %v4087
  %v4152 = vpack.c.b16 %v4088, %v4088
  %v4153 = vpack.c.b16 %v4089, %v4089
  %v4154 = vpack.c.b16 %v4090, %v4090
  %v4155 = vpack.c.b16 %v4091, %v4091
  %v4156 = vpack.c.b16 %v4092, %v4092
  %v4157 = vpack.c.b16 %v4093, %v4093
  %v4158 = vpack.c.b16 %v4094, %v4094
  %v4159 = vpack.c.b16 %v4095, %v4095
  %v4160 = vpack.c.b16 %v4096, %v4096
  %v4161 = vpack.c.b16 %v4097, %v4097
  %v4162 = vpack.c.b16 %v4098, %v4098
  %v4163 = vpack.c.b16 %v4099, %v4099
  %v4164 = vpack.c.b16 %v4100, %v4100
  %v4165 = vpack.c.b16 %v4101, %v4101
  %v4166 = vpack.c.b16 %v4102, %v4102
  %v4167 = vpack.c.b16 %v4103, %v4103
  %v4168 = vpack.c.b16 %v4104, %v4104
  %v4169 = vpack.c.b16 %v4105, %v4105
  %v4170 = vpack.c.b16 %v4106, %v4106
  %v4171 = vpack.c.b16 %v4107, %v4107
  %v4172 = vpack.c.b16 %v4108, %v4108
  %v4173 = vpack.c.b16 %v4109, %v4109
  %v4174 = vpack.c.b16 %v4110, %v4110
  %v4175 = vpack.c.b16 %v4111, %v4111
  %v4176 = vpack.c.b16 %v4112, %v4112
  %v4177 = vpack.c.b16 %v4113, %v4113
  %4178 = vrot.lane.b32.xlu0 %v4114, 64
  %v4179 = vpop.permute.xlu0 %4178
  %4180 = vrot.lane.b32.xlu0 %v4115, 64
  %v4181 = vpop.permute.xlu0 %4180
  %4182 = vrot.lane.b32.xlu0 %v4116, 64
  %v4183 = vpop.permute.xlu0 %4182
  %4184 = vrot.lane.b32.xlu0 %v4117, 64
  %v4185 = vpop.permute.xlu0 %4184
  %4186 = vrot.lane.b32.xlu0 %v4118, 64
  %v4187 = vpop.permute.xlu0 %4186
  %4188 = vrot.lane.b32.xlu0 %v4119, 64
  %v4189 = vpop.permute.xlu0 %4188
  %4190 = vrot.lane.b32.xlu0 %v4120, 64
  %v4191 = vpop.permute.xlu0 %4190
  %4192 = vrot.lane.b32.xlu0 %v4121, 64
  %v4193 = vpop.permute.xlu0 %4192
  %4194 = vrot.lane.b32.xlu0 %v4122, 64
  %v4195 = vpop.permute.xlu0 %4194
  %4196 = vrot.lane.b32.xlu0 %v4123, 64
  %v4197 = vpop.permute.xlu0 %4196
  %4198 = vrot.lane.b32.xlu0 %v4124, 64
  %v4199 = vpop.permute.xlu0 %4198
  %4200 = vrot.lane.b32.xlu0 %v4125, 64
  %v4201 = vpop.permute.xlu0 %4200
  %4202 = vrot.lane.b32.xlu0 %v4126, 64
  %v4203 = vpop.permute.xlu0 %4202
  %4204 = vrot.lane.b32.xlu0 %v4127, 64
  %v4205 = vpop.permute.xlu0 %4204
  %4206 = vrot.lane.b32.xlu0 %v4128, 64
  %v4207 = vpop.permute.xlu0 %4206
  %4208 = vrot.lane.b32.xlu0 %v4129, 64
  %v4209 = vpop.permute.xlu0 %4208
  %4210 = vrot.lane.b32.xlu0 %v4130, 64
  %v4211 = vpop.permute.xlu0 %4210
  %4212 = vrot.lane.b32.xlu0 %v4131, 64
  %v4213 = vpop.permute.xlu0 %4212
  %4214 = vrot.lane.b32.xlu0 %v4132, 64
  %v4215 = vpop.permute.xlu0 %4214
  %4216 = vrot.lane.b32.xlu0 %v4133, 64
  %v4217 = vpop.permute.xlu0 %4216
  %4218 = vrot.lane.b32.xlu0 %v4134, 64
  %v4219 = vpop.permute.xlu0 %4218
  %4220 = vrot.lane.b32.xlu0 %v4135, 64
  %v4221 = vpop.permute.xlu0 %4220
  %4222 = vrot.lane.b32.xlu0 %v4136, 64
  %v4223 = vpop.permute.xlu0 %4222
  %4224 = vrot.lane.b32.xlu0 %v4137, 64
  %v4225 = vpop.permute.xlu0 %4224
  %4226 = vrot.lane.b32.xlu0 %v4138, 64
  %v4227 = vpop.permute.xlu0 %4226
  %4228 = vrot.lane.b32.xlu0 %v4139, 64
  %v4229 = vpop.permute.xlu0 %4228
  %4230 = vrot.lane.b32.xlu0 %v4140, 64
  %v4231 = vpop.permute.xlu0 %4230
  %4232 = vrot.lane.b32.xlu0 %v4141, 64
  %v4233 = vpop.permute.xlu0 %4232
  %4234 = vrot.lane.b32.xlu0 %v4142, 64
  %v4235 = vpop.permute.xlu0 %4234
  %4236 = vrot.lane.b32.xlu0 %v4143, 64
  %v4237 = vpop.permute.xlu0 %4236
  %4238 = vrot.lane.b32.xlu0 %v4144, 64
  %v4239 = vpop.permute.xlu0 %4238
  %4240 = vrot.lane.b32.xlu0 %v4145, 64
  %v4241 = vpop.permute.xlu0 %4240
  %4242 = vrot.lane.b32.xlu0 %v4146, 64
  %v4243 = vpop.permute.xlu0 %4242
  %4244 = vrot.lane.b32.xlu0 %v4147, 64
  %v4245 = vpop.permute.xlu0 %4244
  %4246 = vrot.lane.b32.xlu0 %v4148, 64
  %v4247 = vpop.permute.xlu0 %4246
  %4248 = vrot.lane.b32.xlu0 %v4149, 64
  %v4249 = vpop.permute.xlu0 %4248
  %4250 = vrot.lane.b32.xlu0 %v4150, 64
  %v4251 = vpop.permute.xlu0 %4250
  %4252 = vrot.lane.b32.xlu0 %v4151, 64
  %v4253 = vpop.permute.xlu0 %4252
  %4254 = vrot.lane.b32.xlu0 %v4152, 64
  %v4255 = vpop.permute.xlu0 %4254
  %4256 = vrot.lane.b32.xlu0 %v4153, 64
  %v4257 = vpop.permute.xlu0 %4256
  %4258 = vrot.lane.b32.xlu0 %v4154, 64
  %v4259 = vpop.permute.xlu0 %4258
  %4260 = vrot.lane.b32.xlu0 %v4155, 64
  %v4261 = vpop.permute.xlu0 %4260
  %4262 = vrot.lane.b32.xlu0 %v4156, 64
  %v4263 = vpop.permute.xlu0 %4262
  %4264 = vrot.lane.b32.xlu0 %v4157, 64
  %v4265 = vpop.permute.xlu0 %4264
  %4266 = vrot.lane.b32.xlu0 %v4158, 64
  %v4267 = vpop.permute.xlu0 %4266
  %4268 = vrot.lane.b32.xlu0 %v4159, 64
  %v4269 = vpop.permute.xlu0 %4268
  %4270 = vrot.lane.b32.xlu0 %v4160, 64
  %v4271 = vpop.permute.xlu0 %4270
  %4272 = vrot.lane.b32.xlu0 %v4161, 64
  %v4273 = vpop.permute.xlu0 %4272
  %4274 = vrot.lane.b32.xlu0 %v4162, 64
  %v4275 = vpop.permute.xlu0 %4274
  %4276 = vrot.lane.b32.xlu0 %v4163, 64
  %v4277 = vpop.permute.xlu0 %4276
  %4278 = vrot.lane.b32.xlu0 %v4164, 64
  %v4279 = vpop.permute.xlu0 %4278
  %4280 = vrot.lane.b32.xlu0 %v4165, 64
  %v4281 = vpop.permute.xlu0 %4280
  %4282 = vrot.lane.b32.xlu0 %v4166, 64
  %v4283 = vpop.permute.xlu0 %4282
  %4284 = vrot.lane.b32.xlu0 %v4167, 64
  %v4285 = vpop.permute.xlu0 %4284
  %4286 = vrot.lane.b32.xlu0 %v4168, 64
  %v4287 = vpop.permute.xlu0 %4286
  %4288 = vrot.lane.b32.xlu0 %v4169, 64
  %v4289 = vpop.permute.xlu0 %4288
  %4290 = vrot.lane.b32.xlu0 %v4170, 64
  %v4291 = vpop.permute.xlu0 %4290
  %4292 = vrot.lane.b32.xlu0 %v4171, 64
  %v4293 = vpop.permute.xlu0 %4292
  %4294 = vrot.lane.b32.xlu0 %v4172, 64
  %v4295 = vpop.permute.xlu0 %4294
  %4296 = vrot.lane.b32.xlu0 %v4173, 64
  %v4297 = vpop.permute.xlu0 %4296
  %4298 = vrot.lane.b32.xlu0 %v4174, 64
  %v4299 = vpop.permute.xlu0 %4298
  %4300 = vrot.lane.b32.xlu0 %v4175, 64
  %v4301 = vpop.permute.xlu0 %4300
  %4302 = vrot.lane.b32.xlu0 %v4176, 64
  %v4303 = vpop.permute.xlu0 %4302
  %4304 = vrot.lane.b32.xlu0 %v4177, 64
  %v4305 = vpop.permute.xlu0 %4304
  %4370 = vst.msk [vmem:[#allocation3 + $0xc] sm:$0xf] %vm1680, %v4179
  %4371 = vst.msk [vmem:[#allocation3 + $0x20] sm:$0xf] %vm1680, %v4181
  %4372 = vst.msk [vmem:[#allocation3 + $0x34] sm:$0xf] %vm1680, %v4183
  %4373 = vst.msk [vmem:[#allocation3 + $0x48] sm:$0xf] %vm1680, %v4185
  %4374 = vst.msk [vmem:[#allocation3 + $0x5c] sm:$0xf] %vm1680, %v4187
  %4375 = vst.msk [vmem:[#allocation3 + $0x70] sm:$0xf] %vm1680, %v4189
  %4376 = vst.msk [vmem:[#allocation3 + $0x84] sm:$0xf] %vm1680, %v4191
  %4377 = vst.msk [vmem:[#allocation3 + $0x98] sm:$0xf] %vm1680, %v4193
  %4378 = vst.msk [vmem:[#allocation3 + $0xac] sm:$0xf] %vm1680, %v4195
  %4379 = vst.msk [vmem:[#allocation3 + $0xc0] sm:$0xf] %vm1680, %v4197
  %4380 = vst.msk [vmem:[#allocation3 + $0xd4] sm:$0xf] %vm1680, %v4199
  %4381 = vst.msk [vmem:[#allocation3 + $0xe8] sm:$0xf] %vm1680, %v4201
  %4382 = vst.msk [vmem:[#allocation3 + $0xfc] sm:$0xf] %vm1680, %v4203
  %4383 = vst.msk [vmem:[#allocation3 + $0x110] sm:$0xf] %vm1680, %v4205
  %4384 = vst.msk [vmem:[#allocation3 + $0x124] sm:$0xf] %vm1680, %v4207
  %4385 = vst.msk [vmem:[#allocation3 + $0x138] sm:$0xf] %vm1680, %v4209
  %4386 = vst.msk [vmem:[#allocation3 + $0x14c] sm:$0xf] %vm1680, %v4211
  %4387 = vst.msk [vmem:[#allocation3 + $0x160] sm:$0xf] %vm1680, %v4213
  %4388 = vst.msk [vmem:[#allocation3 + $0x174] sm:$0xf] %vm1680, %v4215
  %4389 = vst.msk [vmem:[#allocation3 + $0x188] sm:$0xf] %vm1680, %v4217
  %4390 = vst.msk [vmem:[#allocation3 + $0x19c] sm:$0xf] %vm1680, %v4219
  %4391 = vst.msk [vmem:[#allocation3 + $0x1b0] sm:$0xf] %vm1680, %v4221
  %4392 = vst.msk [vmem:[#allocation3 + $0x1c4] sm:$0xf] %vm1680, %v4223
  %4393 = vst.msk [vmem:[#allocation3 + $0x1d8] sm:$0xf] %vm1680, %v4225
  %4394 = vst.msk [vmem:[#allocation3 + $0x1ec] sm:$0xf] %vm1680, %v4227
  %4395 = vst.msk [vmem:[#allocation3 + $0x200] sm:$0xf] %vm1680, %v4229
  %4396 = vst.msk [vmem:[#allocation3 + $0x214] sm:$0xf] %vm1680, %v4231
  %4397 = vst.msk [vmem:[#allocation3 + $0x228] sm:$0xf] %vm1680, %v4233
  %4398 = vst.msk [vmem:[#allocation3 + $0x23c] sm:$0xf] %vm1680, %v4235
  %4399 = vst.msk [vmem:[#allocation3 + $0x250] sm:$0xf] %vm1680, %v4237
  %4400 = vst.msk [vmem:[#allocation3 + $0x264] sm:$0xf] %vm1680, %v4239
  %4401 = vst.msk [vmem:[#allocation3 + $0x278] sm:$0xf] %vm1680, %v4241
  %4402 = vst.msk [vmem:[#allocation3 + $0x28c] sm:$0xf] %vm1680, %v4243
  %4403 = vst.msk [vmem:[#allocation3 + $0x2a0] sm:$0xf] %vm1680, %v4245
  %4404 = vst.msk [vmem:[#allocation3 + $0x2b4] sm:$0xf] %vm1680, %v4247
  %4405 = vst.msk [vmem:[#allocation3 + $0x2c8] sm:$0xf] %vm1680, %v4249
  %4406 = vst.msk [vmem:[#allocation3 + $0x2dc] sm:$0xf] %vm1680, %v4251
  %4407 = vst.msk [vmem:[#allocation3 + $0x2f0] sm:$0xf] %vm1680, %v4253
  %4408 = vst.msk [vmem:[#allocation3 + $0x304] sm:$0xf] %vm1680, %v4255
  %4409 = vst.msk [vmem:[#allocation3 + $0x318] sm:$0xf] %vm1680, %v4257
  %4410 = vst.msk [vmem:[#allocation3 + $0x32c] sm:$0xf] %vm1680, %v4259
  %4411 = vst.msk [vmem:[#allocation3 + $0x340] sm:$0xf] %vm1680, %v4261
  %4412 = vst.msk [vmem:[#allocation3 + $0x354] sm:$0xf] %vm1680, %v4263
  %4413 = vst.msk [vmem:[#allocation3 + $0x368] sm:$0xf] %vm1680, %v4265
  %4414 = vst.msk [vmem:[#allocation3 + $0x37c] sm:$0xf] %vm1680, %v4267
  %4415 = vst.msk [vmem:[#allocation3 + $0x390] sm:$0xf] %vm1680, %v4269
  %4416 = vst.msk [vmem:[#allocation3 + $0x3a4] sm:$0xf] %vm1680, %v4271
  %4417 = vst.msk [vmem:[#allocation3 + $0x3b8] sm:$0xf] %vm1680, %v4273
  %4418 = vst.msk [vmem:[#allocation3 + $0x3cc] sm:$0xf] %vm1680, %v4275
  %4419 = vst.msk [vmem:[#allocation3 + $0x3e0] sm:$0xf] %vm1680, %v4277
  %4420 = vst.msk [vmem:[#allocation3 + $0x3f4] sm:$0xf] %vm1680, %v4279
  %4421 = vst.msk [vmem:[#allocation3 + $0x408] sm:$0xf] %vm1680, %v4281
  %4422 = vst.msk [vmem:[#allocation3 + $0x41c] sm:$0xf] %vm1680, %v4283
  %4423 = vst.msk [vmem:[#allocation3 + $0x430] sm:$0xf] %vm1680, %v4285
  %4424 = vst.msk [vmem:[#allocation3 + $0x444] sm:$0xf] %vm1680, %v4287
  %4425 = vst.msk [vmem:[#allocation3 + $0x458] sm:$0xf] %vm1680, %v4289
  %4426 = vst.msk [vmem:[#allocation3 + $0x46c] sm:$0xf] %vm1680, %v4291
  %4427 = vst.msk [vmem:[#allocation3 + $0x480] sm:$0xf] %vm1680, %v4293
  %4428 = vst.msk [vmem:[#allocation3 + $0x494] sm:$0xf] %vm1680, %v4295
  %4429 = vst.msk [vmem:[#allocation3 + $0x4a8] sm:$0xf] %vm1680, %v4297
  %4430 = vst.msk [vmem:[#allocation3 + $0x4bc] sm:$0xf] %vm1680, %v4299
  %4431 = vst.msk [vmem:[#allocation3 + $0x4d0] sm:$0xf] %vm1680, %v4301
  %4432 = vst.msk [vmem:[#allocation3 + $0x4e4] sm:$0xf] %vm1680, %v4303
  %4433 = vst.msk [vmem:[#allocation3 + $0x4f8] sm:$0xf] %vm1680, %v4305
  %v4434 = vld [vmem:[%s3537 + $0x2] sm:$0xff]
  %v4435 = vld [vmem:[%s3537 + $0xa] sm:$0xff]
  %v4436 = vld [vmem:[%s3537 + $0x1a] sm:$0xff]
  %v4437 = vld [vmem:[%s3537 + $0x22] sm:$0xff]
  %v4438 = vld [vmem:[%s3537 + $0x32] sm:$0xff]
  %v4439 = vld [vmem:[%s3537 + $0x3a] sm:$0xff]
  %v4440 = vld [vmem:[%s3537 + $0x4a] sm:$0xff]
  %v4441 = vld [vmem:[%s3537 + $0x52] sm:$0xff]
  %v4442 = vld [vmem:[%s3537 + $0x62] sm:$0xff]
  %v4443 = vld [vmem:[%s3537 + $0x6a] sm:$0xff]
  %v4444 = vld [vmem:[%s3537 + $0x7a] sm:$0xff]
  %v4445 = vld [vmem:[%s3537 + $0x82] sm:$0xff]
  %v4446 = vld [vmem:[%s3537 + $0x92] sm:$0xff]
  %v4447 = vld [vmem:[%s3537 + $0x9a] sm:$0xff]
  %v4448 = vld [vmem:[%s3537 + $0xaa] sm:$0xff]
  %v4449 = vld [vmem:[%s3537 + $0xb2] sm:$0xff]
  %v4450 = vld [vmem:[%s3537 + $0xc2] sm:$0xff]
  %v4451 = vld [vmem:[%s3537 + $0xca] sm:$0xff]
  %v4452 = vld [vmem:[%s3537 + $0xda] sm:$0xff]
  %v4453 = vld [vmem:[%s3537 + $0xe2] sm:$0xff]
  %v4454 = vld [vmem:[%s3537 + $0xf2] sm:$0xff]
  %v4455 = vld [vmem:[%s3537 + $0xfa] sm:$0xff]
  %v4456 = vld [vmem:[%s3537 + $0x10a] sm:$0xff]
  %v4457 = vld [vmem:[%s3537 + $0x112] sm:$0xff]
  %v4458 = vld [vmem:[%s3537 + $0x122] sm:$0xff]
  %v4459 = vld [vmem:[%s3537 + $0x12a] sm:$0xff]
  %v4460 = vld [vmem:[%s3537 + $0x13a] sm:$0xff]
  %v4461 = vld [vmem:[%s3537 + $0x142] sm:$0xff]
  %v4462 = vld [vmem:[%s3537 + $0x152] sm:$0xff]
  %v4463 = vld [vmem:[%s3537 + $0x15a] sm:$0xff]
  %v4464 = vld [vmem:[%s3537 + $0x16a] sm:$0xff]
  %v4465 = vld [vmem:[%s3537 + $0x172] sm:$0xff]
  %v4466 = vld [vmem:[%s3537 + $0x1b2] sm:$0xff]
  %v4467 = vld [vmem:[%s3537 + $0x1ba] sm:$0xff]
  %v4468 = vld [vmem:[%s3537 + $0x1ca] sm:$0xff]
  %v4469 = vld [vmem:[%s3537 + $0x1d2] sm:$0xff]
  %v4470 = vld [vmem:[%s3537 + $0x1e2] sm:$0xff]
  %v4471 = vld [vmem:[%s3537 + $0x1ea] sm:$0xff]
  %v4472 = vld [vmem:[%s3537 + $0x1fa] sm:$0xff]
  %v4473 = vld [vmem:[%s3537 + $0x202] sm:$0xff]
  %v4474 = vld [vmem:[%s3537 + $0x212] sm:$0xff]
  %v4475 = vld [vmem:[%s3537 + $0x21a] sm:$0xff]
  %v4476 = vld [vmem:[%s3537 + $0x22a] sm:$0xff]
  %v4477 = vld [vmem:[%s3537 + $0x232] sm:$0xff]
  %v4478 = vld [vmem:[%s3537 + $0x242] sm:$0xff]
  %v4479 = vld [vmem:[%s3537 + $0x24a] sm:$0xff]
  %v4480 = vld [vmem:[%s3537 + $0x25a] sm:$0xff]
  %v4481 = vld [vmem:[%s3537 + $0x262] sm:$0xff]
  %v4482 = vld [vmem:[%s3537 + $0x272] sm:$0xff]
  %v4483 = vld [vmem:[%s3537 + $0x27a] sm:$0xff]
  %v4484 = vld [vmem:[%s3537 + $0x28a] sm:$0xff]
  %v4485 = vld [vmem:[%s3537 + $0x292] sm:$0xff]
  %v4486 = vld [vmem:[%s3537 + $0x2a2] sm:$0xff]
  %v4487 = vld [vmem:[%s3537 + $0x2aa] sm:$0xff]
  %v4488 = vld [vmem:[%s3537 + $0x2ba] sm:$0xff]
  %v4489 = vld [vmem:[%s3537 + $0x2c2] sm:$0xff]
  %v4490 = vld [vmem:[%s3537 + $0x2d2] sm:$0xff]
  %v4491 = vld [vmem:[%s3537 + $0x2da] sm:$0xff]
  %v4492 = vld [vmem:[%s3537 + $0x2ea] sm:$0xff]
  %v4493 = vld [vmem:[%s3537 + $0x2f2] sm:$0xff]
  %v4494 = vld [vmem:[%s3537 + $0x302] sm:$0xff]
  %v4495 = vld [vmem:[%s3537 + $0x30a] sm:$0xff]
  %v4496 = vld [vmem:[%s3537 + $0x31a] sm:$0xff]
  %v4497 = vld [vmem:[%s3537 + $0x322] sm:$0xff]
  %v4498 = vpack.c.bf16 %v4435, %v4434
  %v4499 = vpack.c.bf16 %v4437, %v4436
  %v4500 = vpack.c.bf16 %v4439, %v4438
  %v4501 = vpack.c.bf16 %v4441, %v4440
  %v4502 = vpack.c.bf16 %v4443, %v4442
  %v4503 = vpack.c.bf16 %v4445, %v4444
  %v4504 = vpack.c.bf16 %v4447, %v4446
  %v4505 = vpack.c.bf16 %v4449, %v4448
  %v4506 = vpack.c.bf16 %v4451, %v4450
  %v4507 = vpack.c.bf16 %v4453, %v4452
  %v4508 = vpack.c.bf16 %v4455, %v4454
  %v4509 = vpack.c.bf16 %v4457, %v4456
  %v4510 = vpack.c.bf16 %v4459, %v4458
  %v4511 = vpack.c.bf16 %v4461, %v4460
  %v4512 = vpack.c.bf16 %v4463, %v4462
  %v4513 = vpack.c.bf16 %v4465, %v4464
  %v4514 = vpack.c.bf16 %v4467, %v4466
  %v4515 = vpack.c.bf16 %v4469, %v4468
  %v4516 = vpack.c.bf16 %v4471, %v4470
  %v4517 = vpack.c.bf16 %v4473, %v4472
  %v4518 = vpack.c.bf16 %v4475, %v4474
  %v4519 = vpack.c.bf16 %v4477, %v4476
  %v4520 = vpack.c.bf16 %v4479, %v4478
  %v4521 = vpack.c.bf16 %v4481, %v4480
  %v4522 = vpack.c.bf16 %v4483, %v4482
  %v4523 = vpack.c.bf16 %v4485, %v4484
  %v4524 = vpack.c.bf16 %v4487, %v4486
  %v4525 = vpack.c.bf16 %v4489, %v4488
  %v4526 = vpack.c.bf16 %v4491, %v4490
  %v4527 = vpack.c.bf16 %v4493, %v4492
  %v4528 = vpack.c.bf16 %v4495, %v4494
  %v4529 = vpack.c.bf16 %v4497, %v4496
  %v4562 = vunpack.c.l.b16 %v4498
  %v4563 = vunpack.c.h.b16 %v4498
  %v4564 = vunpack.c.l.b16 %v4499
  %v4565 = vunpack.c.h.b16 %v4499
  %v4566 = vunpack.c.l.b16 %v4500
  %v4567 = vunpack.c.h.b16 %v4500
  %v4568 = vunpack.c.l.b16 %v4501
  %v4569 = vunpack.c.h.b16 %v4501
  %v4570 = vunpack.c.l.b16 %v4502
  %v4571 = vunpack.c.h.b16 %v4502
  %v4572 = vunpack.c.l.b16 %v4503
  %v4573 = vunpack.c.h.b16 %v4503
  %v4574 = vunpack.c.l.b16 %v4504
  %v4575 = vunpack.c.h.b16 %v4504
  %v4576 = vunpack.c.l.b16 %v4505
  %v4577 = vunpack.c.h.b16 %v4505
  %v4578 = vunpack.c.l.b16 %v4506
  %v4579 = vunpack.c.h.b16 %v4506
  %v4580 = vunpack.c.l.b16 %v4507
  %v4581 = vunpack.c.h.b16 %v4507
  %v4582 = vunpack.c.l.b16 %v4508
  %v4583 = vunpack.c.h.b16 %v4508
  %v4584 = vunpack.c.l.b16 %v4509
  %v4585 = vunpack.c.h.b16 %v4509
  %v4586 = vunpack.c.l.b16 %v4510
  %v4587 = vunpack.c.h.b16 %v4510
  %v4588 = vunpack.c.l.b16 %v4511
  %v4589 = vunpack.c.h.b16 %v4511
  %v4590 = vunpack.c.l.b16 %v4512
  %v4591 = vunpack.c.h.b16 %v4512
  %v4592 = vunpack.c.l.b16 %v4513
  %v4593 = vunpack.c.h.b16 %v4513
  %v4594 = vunpack.c.l.b16 %v4514
  %v4595 = vunpack.c.h.b16 %v4514
  %v4596 = vunpack.c.l.b16 %v4515
  %v4597 = vunpack.c.h.b16 %v4515
  %v4598 = vunpack.c.l.b16 %v4516
  %v4599 = vunpack.c.h.b16 %v4516
  %v4600 = vunpack.c.l.b16 %v4517
  %v4601 = vunpack.c.h.b16 %v4517
  %v4602 = vunpack.c.l.b16 %v4518
  %v4603 = vunpack.c.h.b16 %v4518
  %v4604 = vunpack.c.l.b16 %v4519
  %v4605 = vunpack.c.h.b16 %v4519
  %v4606 = vunpack.c.l.b16 %v4520
  %v4607 = vunpack.c.h.b16 %v4520
  %v4608 = vunpack.c.l.b16 %v4521
  %v4609 = vunpack.c.h.b16 %v4521
  %v4610 = vunpack.c.l.b16 %v4522
  %v4611 = vunpack.c.h.b16 %v4522
  %v4612 = vunpack.c.l.b16 %v4523
  %v4613 = vunpack.c.h.b16 %v4523
  %v4614 = vunpack.c.l.b16 %v4524
  %v4615 = vunpack.c.h.b16 %v4524
  %v4616 = vunpack.c.l.b16 %v4525
  %v4617 = vunpack.c.h.b16 %v4525
  %v4618 = vunpack.c.l.b16 %v4526
  %v4619 = vunpack.c.h.b16 %v4526
  %v4620 = vunpack.c.l.b16 %v4527
  %v4621 = vunpack.c.h.b16 %v4527
  %v4622 = vunpack.c.l.b16 %v4528
  %v4623 = vunpack.c.h.b16 %v4528
  %v4624 = vunpack.c.l.b16 %v4529
  %v4625 = vunpack.c.h.b16 %v4529
  %v4626 = vpack.c.b16 %v4562, %v4562
  %v4627 = vpack.c.b16 %v4563, %v4563
  %v4628 = vpack.c.b16 %v4564, %v4564
  %v4629 = vpack.c.b16 %v4565, %v4565
  %v4630 = vpack.c.b16 %v4566, %v4566
  %v4631 = vpack.c.b16 %v4567, %v4567
  %v4632 = vpack.c.b16 %v4568, %v4568
  %v4633 = vpack.c.b16 %v4569, %v4569
  %v4634 = vpack.c.b16 %v4570, %v4570
  %v4635 = vpack.c.b16 %v4571, %v4571
  %v4636 = vpack.c.b16 %v4572, %v4572
  %v4637 = vpack.c.b16 %v4573, %v4573
  %v4638 = vpack.c.b16 %v4574, %v4574
  %v4639 = vpack.c.b16 %v4575, %v4575
  %v4640 = vpack.c.b16 %v4576, %v4576
  %v4641 = vpack.c.b16 %v4577, %v4577
  %v4642 = vpack.c.b16 %v4578, %v4578
  %v4643 = vpack.c.b16 %v4579, %v4579
  %v4644 = vpack.c.b16 %v4580, %v4580
  %v4645 = vpack.c.b16 %v4581, %v4581
  %v4646 = vpack.c.b16 %v4582, %v4582
  %v4647 = vpack.c.b16 %v4583, %v4583
  %v4648 = vpack.c.b16 %v4584, %v4584
  %v4649 = vpack.c.b16 %v4585, %v4585
  %v4650 = vpack.c.b16 %v4586, %v4586
  %v4651 = vpack.c.b16 %v4587, %v4587
  %v4652 = vpack.c.b16 %v4588, %v4588
  %v4653 = vpack.c.b16 %v4589, %v4589
  %v4654 = vpack.c.b16 %v4590, %v4590
  %v4655 = vpack.c.b16 %v4591, %v4591
  %v4656 = vpack.c.b16 %v4592, %v4592
  %v4657 = vpack.c.b16 %v4593, %v4593
  %v4658 = vpack.c.b16 %v4594, %v4594
  %v4659 = vpack.c.b16 %v4595, %v4595
  %v4660 = vpack.c.b16 %v4596, %v4596
  %v4661 = vpack.c.b16 %v4597, %v4597
  %v4662 = vpack.c.b16 %v4598, %v4598
  %v4663 = vpack.c.b16 %v4599, %v4599
  %v4664 = vpack.c.b16 %v4600, %v4600
  %v4665 = vpack.c.b16 %v4601, %v4601
  %v4666 = vpack.c.b16 %v4602, %v4602
  %v4667 = vpack.c.b16 %v4603, %v4603
  %v4668 = vpack.c.b16 %v4604, %v4604
  %v4669 = vpack.c.b16 %v4605, %v4605
  %v4670 = vpack.c.b16 %v4606, %v4606
  %v4671 = vpack.c.b16 %v4607, %v4607
  %v4672 = vpack.c.b16 %v4608, %v4608
  %v4673 = vpack.c.b16 %v4609, %v4609
  %v4674 = vpack.c.b16 %v4610, %v4610
  %v4675 = vpack.c.b16 %v4611, %v4611
  %v4676 = vpack.c.b16 %v4612, %v4612
  %v4677 = vpack.c.b16 %v4613, %v4613
  %v4678 = vpack.c.b16 %v4614, %v4614
  %v4679 = vpack.c.b16 %v4615, %v4615
  %v4680 = vpack.c.b16 %v4616, %v4616
  %v4681 = vpack.c.b16 %v4617, %v4617
  %v4682 = vpack.c.b16 %v4618, %v4618
  %v4683 = vpack.c.b16 %v4619, %v4619
  %v4684 = vpack.c.b16 %v4620, %v4620
  %v4685 = vpack.c.b16 %v4621, %v4621
  %v4686 = vpack.c.b16 %v4622, %v4622
  %v4687 = vpack.c.b16 %v4623, %v4623
  %v4688 = vpack.c.b16 %v4624, %v4624
  %v4689 = vpack.c.b16 %v4625, %v4625
  %4754 = vst.msk [vmem:[#allocation3 + $0x10] sm:$0xf] %vm1167, %v4626
  %4755 = vst.msk [vmem:[#allocation3 + $0x24] sm:$0xf] %vm1167, %v4627
  %4756 = vst.msk [vmem:[#allocation3 + $0x38] sm:$0xf] %vm1167, %v4628
  %4757 = vst.msk [vmem:[#allocation3 + $0x4c] sm:$0xf] %vm1167, %v4629
  %4758 = vst.msk [vmem:[#allocation3 + $0x60] sm:$0xf] %vm1167, %v4630
  %4759 = vst.msk [vmem:[#allocation3 + $0x74] sm:$0xf] %vm1167, %v4631
  %4760 = vst.msk [vmem:[#allocation3 + $0x88] sm:$0xf] %vm1167, %v4632
  %4761 = vst.msk [vmem:[#allocation3 + $0x9c] sm:$0xf] %vm1167, %v4633
  %4762 = vst.msk [vmem:[#allocation3 + $0xb0] sm:$0xf] %vm1167, %v4634
  %4763 = vst.msk [vmem:[#allocation3 + $0xc4] sm:$0xf] %vm1167, %v4635
  %4764 = vst.msk [vmem:[#allocation3 + $0xd8] sm:$0xf] %vm1167, %v4636
  %4765 = vst.msk [vmem:[#allocation3 + $0xec] sm:$0xf] %vm1167, %v4637
  %4766 = vst.msk [vmem:[#allocation3 + $0x100] sm:$0xf] %vm1167, %v4638
  %4767 = vst.msk [vmem:[#allocation3 + $0x114] sm:$0xf] %vm1167, %v4639
  %4768 = vst.msk [vmem:[#allocation3 + $0x128] sm:$0xf] %vm1167, %v4640
  %4769 = vst.msk [vmem:[#allocation3 + $0x13c] sm:$0xf] %vm1167, %v4641
  %4770 = vst.msk [vmem:[#allocation3 + $0x150] sm:$0xf] %vm1167, %v4642
  %4771 = vst.msk [vmem:[#allocation3 + $0x164] sm:$0xf] %vm1167, %v4643
  %4772 = vst.msk [vmem:[#allocation3 + $0x178] sm:$0xf] %vm1167, %v4644
  %4773 = vst.msk [vmem:[#allocation3 + $0x18c] sm:$0xf] %vm1167, %v4645
  %4774 = vst.msk [vmem:[#allocation3 + $0x1a0] sm:$0xf] %vm1167, %v4646
  %4775 = vst.msk [vmem:[#allocation3 + $0x1b4] sm:$0xf] %vm1167, %v4647
  %4776 = vst.msk [vmem:[#allocation3 + $0x1c8] sm:$0xf] %vm1167, %v4648
  %4777 = vst.msk [vmem:[#allocation3 + $0x1dc] sm:$0xf] %vm1167, %v4649
  %4778 = vst.msk [vmem:[#allocation3 + $0x1f0] sm:$0xf] %vm1167, %v4650
  %4779 = vst.msk [vmem:[#allocation3 + $0x204] sm:$0xf] %vm1167, %v4651
  %4780 = vst.msk [vmem:[#allocation3 + $0x218] sm:$0xf] %vm1167, %v4652
  %4781 = vst.msk [vmem:[#allocation3 + $0x22c] sm:$0xf] %vm1167, %v4653
  %4782 = vst.msk [vmem:[#allocation3 + $0x240] sm:$0xf] %vm1167, %v4654
  %4783 = vst.msk [vmem:[#allocation3 + $0x254] sm:$0xf] %vm1167, %v4655
  %4784 = vst.msk [vmem:[#allocation3 + $0x268] sm:$0xf] %vm1167, %v4656
  %4785 = vst.msk [vmem:[#allocation3 + $0x27c] sm:$0xf] %vm1167, %v4657
  %4786 = vst.msk [vmem:[#allocation3 + $0x290] sm:$0xf] %vm1167, %v4658
  %4787 = vst.msk [vmem:[#allocation3 + $0x2a4] sm:$0xf] %vm1167, %v4659
  %4788 = vst.msk [vmem:[#allocation3 + $0x2b8] sm:$0xf] %vm1167, %v4660
  %4789 = vst.msk [vmem:[#allocation3 + $0x2cc] sm:$0xf] %vm1167, %v4661
  %4790 = vst.msk [vmem:[#allocation3 + $0x2e0] sm:$0xf] %vm1167, %v4662
  %4791 = vst.msk [vmem:[#allocation3 + $0x2f4] sm:$0xf] %vm1167, %v4663
  %4792 = vst.msk [vmem:[#allocation3 + $0x308] sm:$0xf] %vm1167, %v4664
  %4793 = vst.msk [vmem:[#allocation3 + $0x31c] sm:$0xf] %vm1167, %v4665
  %4794 = vst.msk [vmem:[#allocation3 + $0x330] sm:$0xf] %vm1167, %v4666
  %4795 = vst.msk [vmem:[#allocation3 + $0x344] sm:$0xf] %vm1167, %v4667
  %4796 = vst.msk [vmem:[#allocation3 + $0x358] sm:$0xf] %vm1167, %v4668
  %4797 = vst.msk [vmem:[#allocation3 + $0x36c] sm:$0xf] %vm1167, %v4669
  %4798 = vst.msk [vmem:[#allocation3 + $0x380] sm:$0xf] %vm1167, %v4670
  %4799 = vst.msk [vmem:[#allocation3 + $0x394] sm:$0xf] %vm1167, %v4671
  %4800 = vst.msk [vmem:[#allocation3 + $0x3a8] sm:$0xf] %vm1167, %v4672
  %4801 = vst.msk [vmem:[#allocation3 + $0x3bc] sm:$0xf] %vm1167, %v4673
  %4802 = vst.msk [vmem:[#allocation3 + $0x3d0] sm:$0xf] %vm1167, %v4674
  %4803 = vst.msk [vmem:[#allocation3 + $0x3e4] sm:$0xf] %vm1167, %v4675
  %4804 = vst.msk [vmem:[#allocation3 + $0x3f8] sm:$0xf] %vm1167, %v4676
  %4805 = vst.msk [vmem:[#allocation3 + $0x40c] sm:$0xf] %vm1167, %v4677
  %4806 = vst.msk [vmem:[#allocation3 + $0x420] sm:$0xf] %vm1167, %v4678
  %4807 = vst.msk [vmem:[#allocation3 + $0x434] sm:$0xf] %vm1167, %v4679
  %4808 = vst.msk [vmem:[#allocation3 + $0x448] sm:$0xf] %vm1167, %v4680
  %4809 = vst.msk [vmem:[#allocation3 + $0x45c] sm:$0xf] %vm1167, %v4681
  %4810 = vst.msk [vmem:[#allocation3 + $0x470] sm:$0xf] %vm1167, %v4682
  %4811 = vst.msk [vmem:[#allocation3 + $0x484] sm:$0xf] %vm1167, %v4683
  %4812 = vst.msk [vmem:[#allocation3 + $0x498] sm:$0xf] %vm1167, %v4684
  %4813 = vst.msk [vmem:[#allocation3 + $0x4ac] sm:$0xf] %vm1167, %v4685
  %4814 = vst.msk [vmem:[#allocation3 + $0x4c0] sm:$0xf] %vm1167, %v4686
  %4815 = vst.msk [vmem:[#allocation3 + $0x4d4] sm:$0xf] %vm1167, %v4687
  %4816 = vst.msk [vmem:[#allocation3 + $0x4e8] sm:$0xf] %vm1167, %v4688
  %4817 = vst.msk [vmem:[#allocation3 + $0x4fc] sm:$0xf] %vm1167, %v4689
  %v4818 = vld [vmem:[#allocation3] sm:$0xff]
  %v4819 = vld [vmem:[#allocation3 + $0x8] sm:$0xff]
  %v4820 = vld [vmem:[#allocation3 + $0x10] sm:$0xf]
  %v4821 = vld [vmem:[#allocation3 + $0x14] sm:$0xff]
  %v4822 = vld [vmem:[#allocation3 + $0x1c] sm:$0xff]
  %v4823 = vld [vmem:[#allocation3 + $0x24] sm:$0xf]
  %v4824 = vld [vmem:[#allocation3 + $0x28] sm:$0xff]
  %v4825 = vld [vmem:[#allocation3 + $0x30] sm:$0xff]
  %v4826 = vld [vmem:[#allocation3 + $0x38] sm:$0xf]
  %v4827 = vld [vmem:[#allocation3 + $0x3c] sm:$0xff]
  %v4828 = vld [vmem:[#allocation3 + $0x44] sm:$0xff]
  %v4829 = vld [vmem:[#allocation3 + $0x4c] sm:$0xf]
  %v4830 = vld [vmem:[#allocation3 + $0x50] sm:$0xff]
  %v4831 = vld [vmem:[#allocation3 + $0x58] sm:$0xff]
  %v4832 = vld [vmem:[#allocation3 + $0x60] sm:$0xf]
  %v4833 = vld [vmem:[#allocation3 + $0x64] sm:$0xff]
  %v4834 = vld [vmem:[#allocation3 + $0x6c] sm:$0xff]
  %v4835 = vld [vmem:[#allocation3 + $0x74] sm:$0xf]
  %v4836 = vld [vmem:[#allocation3 + $0x78] sm:$0xff]
  %v4837 = vld [vmem:[#allocation3 + $0x80] sm:$0xff]
  %v4838 = vld [vmem:[#allocation3 + $0x88] sm:$0xf]
  %v4839 = vld [vmem:[#allocation3 + $0x8c] sm:$0xff]
  %v4840 = vld [vmem:[#allocation3 + $0x94] sm:$0xff]
  %v4841 = vld [vmem:[#allocation3 + $0x9c] sm:$0xf]
  %v4842 = vld [vmem:[#allocation3 + $0xa0] sm:$0xff]
  %v4843 = vld [vmem:[#allocation3 + $0xa8] sm:$0xff]
  %v4844 = vld [vmem:[#allocation3 + $0xb0] sm:$0xf]
  %v4845 = vld [vmem:[#allocation3 + $0xb4] sm:$0xff]
  %v4846 = vld [vmem:[#allocation3 + $0xbc] sm:$0xff]
  %v4847 = vld [vmem:[#allocation3 + $0xc4] sm:$0xf]
  %v4848 = vld [vmem:[#allocation3 + $0xc8] sm:$0xff]
  %v4849 = vld [vmem:[#allocation3 + $0xd0] sm:$0xff]
  %v4850 = vld [vmem:[#allocation3 + $0xd8] sm:$0xf]
  %v4851 = vld [vmem:[#allocation3 + $0xdc] sm:$0xff]
  %v4852 = vld [vmem:[#allocation3 + $0xe4] sm:$0xff]
  %v4853 = vld [vmem:[#allocation3 + $0xec] sm:$0xf]
  %v4854 = vld [vmem:[#allocation3 + $0xf0] sm:$0xff]
  %v4855 = vld [vmem:[#allocation3 + $0xf8] sm:$0xff]
  %v4856 = vld [vmem:[#allocation3 + $0x100] sm:$0xf]
  %v4857 = vld [vmem:[#allocation3 + $0x104] sm:$0xff]
  %v4858 = vld [vmem:[#allocation3 + $0x10c] sm:$0xff]
  %v4859 = vld [vmem:[#allocation3 + $0x114] sm:$0xf]
  %v4860 = vld [vmem:[#allocation3 + $0x118] sm:$0xff]
  %v4861 = vld [vmem:[#allocation3 + $0x120] sm:$0xff]
  %v4862 = vld [vmem:[#allocation3 + $0x128] sm:$0xf]
  %v4863 = vld [vmem:[#allocation3 + $0x12c] sm:$0xff]
  %v4864 = vld [vmem:[#allocation3 + $0x134] sm:$0xff]
  %v4865 = vld [vmem:[#allocation3 + $0x13c] sm:$0xf]
  %v4866 = vld [vmem:[#allocation3 + $0x140] sm:$0xff]
  %v4867 = vld [vmem:[#allocation3 + $0x148] sm:$0xff]
  %v4868 = vld [vmem:[#allocation3 + $0x150] sm:$0xf]
  %v4869 = vld [vmem:[#allocation3 + $0x154] sm:$0xff]
  %v4870 = vld [vmem:[#allocation3 + $0x15c] sm:$0xff]
  %v4871 = vld [vmem:[#allocation3 + $0x164] sm:$0xf]
  %v4872 = vld [vmem:[#allocation3 + $0x168] sm:$0xff]
  %v4873 = vld [vmem:[#allocation3 + $0x170] sm:$0xff]
  %v4874 = vld [vmem:[#allocation3 + $0x178] sm:$0xf]
  %v4875 = vld [vmem:[#allocation3 + $0x17c] sm:$0xff]
  %v4876 = vld [vmem:[#allocation3 + $0x184] sm:$0xff]
  %v4877 = vld [vmem:[#allocation3 + $0x18c] sm:$0xf]
  %v4878 = vld [vmem:[#allocation3 + $0x190] sm:$0xff]
  %v4879 = vld [vmem:[#allocation3 + $0x198] sm:$0xff]
  %v4880 = vld [vmem:[#allocation3 + $0x1a0] sm:$0xf]
  %v4881 = vld [vmem:[#allocation3 + $0x1a4] sm:$0xff]
  %v4882 = vld [vmem:[#allocation3 + $0x1ac] sm:$0xff]
  %v4883 = vld [vmem:[#allocation3 + $0x1b4] sm:$0xf]
  %v4884 = vld [vmem:[#allocation3 + $0x1b8] sm:$0xff]
  %v4885 = vld [vmem:[#allocation3 + $0x1c0] sm:$0xff]
  %v4886 = vld [vmem:[#allocation3 + $0x1c8] sm:$0xf]
  %v4887 = vld [vmem:[#allocation3 + $0x1cc] sm:$0xff]
  %v4888 = vld [vmem:[#allocation3 + $0x1d4] sm:$0xff]
  %v4889 = vld [vmem:[#allocation3 + $0x1dc] sm:$0xf]
  %v4890 = vld [vmem:[#allocation3 + $0x1e0] sm:$0xff]
  %v4891 = vld [vmem:[#allocation3 + $0x1e8] sm:$0xff]
  %v4892 = vld [vmem:[#allocation3 + $0x1f0] sm:$0xf]
  %v4893 = vld [vmem:[#allocation3 + $0x1f4] sm:$0xff]
  %v4894 = vld [vmem:[#allocation3 + $0x1fc] sm:$0xff]
  %v4895 = vld [vmem:[#allocation3 + $0x204] sm:$0xf]
  %v4896 = vld [vmem:[#allocation3 + $0x208] sm:$0xff]
  %v4897 = vld [vmem:[#allocation3 + $0x210] sm:$0xff]
  %v4898 = vld [vmem:[#allocation3 + $0x218] sm:$0xf]
  %v4899 = vld [vmem:[#allocation3 + $0x21c] sm:$0xff]
  %v4900 = vld [vmem:[#allocation3 + $0x224] sm:$0xff]
  %v4901 = vld [vmem:[#allocation3 + $0x22c] sm:$0xf]
  %v4902 = vld [vmem:[#allocation3 + $0x230] sm:$0xff]
  %v4903 = vld [vmem:[#allocation3 + $0x238] sm:$0xff]
  %v4904 = vld [vmem:[#allocation3 + $0x240] sm:$0xf]
  %v4905 = vld [vmem:[#allocation3 + $0x244] sm:$0xff]
  %v4906 = vld [vmem:[#allocation3 + $0x24c] sm:$0xff]
  %v4907 = vld [vmem:[#allocation3 + $0x254] sm:$0xf]
  %v4908 = vld [vmem:[#allocation3 + $0x258] sm:$0xff]
  %v4909 = vld [vmem:[#allocation3 + $0x260] sm:$0xff]
  %v4910 = vld [vmem:[#allocation3 + $0x268] sm:$0xf]
  %v4911 = vld [vmem:[#allocation3 + $0x26c] sm:$0xff]
  %v4912 = vld [vmem:[#allocation3 + $0x274] sm:$0xff]
  %v4913 = vld [vmem:[#allocation3 + $0x27c] sm:$0xf]
  %v4914 = vld [vmem:[#allocation3 + $0x280] sm:$0xff]
  %v4915 = vld [vmem:[#allocation3 + $0x288] sm:$0xff]
  %v4916 = vld [vmem:[#allocation3 + $0x290] sm:$0xf]
  %v4917 = vld [vmem:[#allocation3 + $0x294] sm:$0xff]
  %v4918 = vld [vmem:[#allocation3 + $0x29c] sm:$0xff]
  %v4919 = vld [vmem:[#allocation3 + $0x2a4] sm:$0xf]
  %v4920 = vld [vmem:[#allocation3 + $0x2a8] sm:$0xff]
  %v4921 = vld [vmem:[#allocation3 + $0x2b0] sm:$0xff]
  %v4922 = vld [vmem:[#allocation3 + $0x2b8] sm:$0xf]
  %v4923 = vld [vmem:[#allocation3 + $0x2bc] sm:$0xff]
  %v4924 = vld [vmem:[#allocation3 + $0x2c4] sm:$0xff]
  %v4925 = vld [vmem:[#allocation3 + $0x2cc] sm:$0xf]
  %v4926 = vld [vmem:[#allocation3 + $0x2d0] sm:$0xff]
  %v4927 = vld [vmem:[#allocation3 + $0x2d8] sm:$0xff]
  %v4928 = vld [vmem:[#allocation3 + $0x2e0] sm:$0xf]
  %v4929 = vld [vmem:[#allocation3 + $0x2e4] sm:$0xff]
  %v4930 = vld [vmem:[#allocation3 + $0x2ec] sm:$0xff]
  %v4931 = vld [vmem:[#allocation3 + $0x2f4] sm:$0xf]
  %v4932 = vld [vmem:[#allocation3 + $0x2f8] sm:$0xff]
  %v4933 = vld [vmem:[#allocation3 + $0x300] sm:$0xff]
  %v4934 = vld [vmem:[#allocation3 + $0x308] sm:$0xf]
  %v4935 = vld [vmem:[#allocation3 + $0x30c] sm:$0xff]
  %v4936 = vld [vmem:[#allocation3 + $0x314] sm:$0xff]
  %v4937 = vld [vmem:[#allocation3 + $0x31c] sm:$0xf]
  %v4938 = vld [vmem:[#allocation3 + $0x320] sm:$0xff]
  %v4939 = vld [vmem:[#allocation3 + $0x328] sm:$0xff]
  %v4940 = vld [vmem:[#allocation3 + $0x330] sm:$0xf]
  %v4941 = vld [vmem:[#allocation3 + $0x334] sm:$0xff]
  %v4942 = vld [vmem:[#allocation3 + $0x33c] sm:$0xff]
  %v4943 = vld [vmem:[#allocation3 + $0x344] sm:$0xf]
  %v4944 = vld [vmem:[#allocation3 + $0x348] sm:$0xff]
  %v4945 = vld [vmem:[#allocation3 + $0x350] sm:$0xff]
  %v4946 = vld [vmem:[#allocation3 + $0x358] sm:$0xf]
  %v4947 = vld [vmem:[#allocation3 + $0x35c] sm:$0xff]
  %v4948 = vld [vmem:[#allocation3 + $0x364] sm:$0xff]
  %v4949 = vld [vmem:[#allocation3 + $0x36c] sm:$0xf]
  %v4950 = vld [vmem:[#allocation3 + $0x370] sm:$0xff]
  %v4951 = vld [vmem:[#allocation3 + $0x378] sm:$0xff]
  %v4952 = vld [vmem:[#allocation3 + $0x380] sm:$0xf]
  %v4953 = vld [vmem:[#allocation3 + $0x384] sm:$0xff]
  %v4954 = vld [vmem:[#allocation3 + $0x38c] sm:$0xff]
  %v4955 = vld [vmem:[#allocation3 + $0x394] sm:$0xf]
  %v4956 = vld [vmem:[#allocation3 + $0x398] sm:$0xff]
  %v4957 = vld [vmem:[#allocation3 + $0x3a0] sm:$0xff]
  %v4958 = vld [vmem:[#allocation3 + $0x3a8] sm:$0xf]
  %v4959 = vld [vmem:[#allocation3 + $0x3ac] sm:$0xff]
  %v4960 = vld [vmem:[#allocation3 + $0x3b4] sm:$0xff]
  %v4961 = vld [vmem:[#allocation3 + $0x3bc] sm:$0xf]
  %v4962 = vld [vmem:[#allocation3 + $0x3c0] sm:$0xff]
  %v4963 = vld [vmem:[#allocation3 + $0x3c8] sm:$0xff]
  %v4964 = vld [vmem:[#allocation3 + $0x3d0] sm:$0xf]
  %v4965 = vld [vmem:[#allocation3 + $0x3d4] sm:$0xff]
  %v4966 = vld [vmem:[#allocation3 + $0x3dc] sm:$0xff]
  %v4967 = vld [vmem:[#allocation3 + $0x3e4] sm:$0xf]
  %v4968 = vld [vmem:[#allocation3 + $0x3e8] sm:$0xff]
  %v4969 = vld [vmem:[#allocation3 + $0x3f0] sm:$0xff]
  %v4970 = vld [vmem:[#allocation3 + $0x3f8] sm:$0xf]
  %v4971 = vld [vmem:[#allocation3 + $0x3fc] sm:$0xff]
  %v4972 = vld [vmem:[#allocation3 + $0x404] sm:$0xff]
  %v4973 = vld [vmem:[#allocation3 + $0x40c] sm:$0xf]
  %v4974 = vld [vmem:[#allocation3 + $0x410] sm:$0xff]
  %v4975 = vld [vmem:[#allocation3 + $0x418] sm:$0xff]
  %v4976 = vld [vmem:[#allocation3 + $0x420] sm:$0xf]
  %v4977 = vld [vmem:[#allocation3 + $0x424] sm:$0xff]
  %v4978 = vld [vmem:[#allocation3 + $0x42c] sm:$0xff]
  %v4979 = vld [vmem:[#allocation3 + $0x434] sm:$0xf]
  %v4980 = vld [vmem:[#allocation3 + $0x438] sm:$0xff]
  %v4981 = vld [vmem:[#allocation3 + $0x440] sm:$0xff]
  %v4982 = vld [vmem:[#allocation3 + $0x448] sm:$0xf]
  %v4983 = vld [vmem:[#allocation3 + $0x44c] sm:$0xff]
  %v4984 = vld [vmem:[#allocation3 + $0x454] sm:$0xff]
  %v4985 = vld [vmem:[#allocation3 + $0x45c] sm:$0xf]
  %v4986 = vld [vmem:[#allocation3 + $0x460] sm:$0xff]
  %v4987 = vld [vmem:[#allocation3 + $0x468] sm:$0xff]
  %v4988 = vld [vmem:[#allocation3 + $0x470] sm:$0xf]
  %v4989 = vld [vmem:[#allocation3 + $0x474] sm:$0xff]
  %v4990 = vld [vmem:[#allocation3 + $0x47c] sm:$0xff]
  %v4991 = vld [vmem:[#allocation3 + $0x484] sm:$0xf]
  %v4992 = vld [vmem:[#allocation3 + $0x488] sm:$0xff]
  %v4993 = vld [vmem:[#allocation3 + $0x490] sm:$0xff]
  %v4994 = vld [vmem:[#allocation3 + $0x498] sm:$0xf]
  %v4995 = vld [vmem:[#allocation3 + $0x49c] sm:$0xff]
  %v4996 = vld [vmem:[#allocation3 + $0x4a4] sm:$0xff]
  %v4997 = vld [vmem:[#allocation3 + $0x4ac] sm:$0xf]
  %v4998 = vld [vmem:[#allocation3 + $0x4b0] sm:$0xff]
  %v4999 = vld [vmem:[#allocation3 + $0x4b8] sm:$0xff]
  %v5000 = vld [vmem:[#allocation3 + $0x4c0] sm:$0xf]
  %v5001 = vld [vmem:[#allocation3 + $0x4c4] sm:$0xff]
  %v5002 = vld [vmem:[#allocation3 + $0x4cc] sm:$0xff]
  %v5003 = vld [vmem:[#allocation3 + $0x4d4] sm:$0xf]
  %v5004 = vld [vmem:[#allocation3 + $0x4d8] sm:$0xff]
  %v5005 = vld [vmem:[#allocation3 + $0x4e0] sm:$0xff]
  %v5006 = vld [vmem:[#allocation3 + $0x4e8] sm:$0xf]
  %v5007 = vld [vmem:[#allocation3 + $0x4ec] sm:$0xff]
  %v5008 = vld [vmem:[#allocation3 + $0x4f4] sm:$0xff]
  %v5009 = vld [vmem:[#allocation3 + $0x4fc] sm:$0xf]
  %v5010 = vld [vmem:[%s3] sm:$0xf]
  %v5011 = vld [vmem:[%s3 + $0x4] sm:$0xf]
  %v5012 = vld [vmem:[%s3 + $0x8] sm:$0xf]
  %v5013 = vld [vmem:[%s3 + $0xc] sm:$0xf]
  %v5014 = vld [vmem:[%s3 + $0x10] sm:$0xf]
  %v5015 = vld [vmem:[%s3 + $0x14] sm:$0xf]
  %v5016 = vld [vmem:[%s3 + $0x18] sm:$0xf]
  %v5017 = vld [vmem:[%s3 + $0x1c] sm:$0xf]
  %v5018 = vld [vmem:[%s3 + $0x20] sm:$0xf]
  %v5019 = vld [vmem:[%s3 + $0x24] sm:$0xf]
  %v5020 = vld [vmem:[%s3 + $0x28] sm:$0xf]
  %v5021 = vld [vmem:[%s3 + $0x2c] sm:$0xf]
  %v5022 = vld [vmem:[%s3 + $0x30] sm:$0xf]
  %v5023 = vld [vmem:[%s3 + $0x34] sm:$0xf]
  %v5024 = vld [vmem:[%s3 + $0x38] sm:$0xf]
  %v5025 = vld [vmem:[%s3 + $0x3c] sm:$0xf]
  %v5026 = vld [vmem:[%s3 + $0x40] sm:$0xf]
  %v5027 = vld [vmem:[%s3 + $0x44] sm:$0xf]
  %v5028 = vld [vmem:[%s3 + $0x48] sm:$0xf]
  %v5029 = vld [vmem:[%s3 + $0x4c] sm:$0xf]
  %v5030 = vld [vmem:[%s3 + $0x50] sm:$0xf]
  %v5031 = vld [vmem:[%s3 + $0x54] sm:$0xf]
  %v5032 = vld [vmem:[%s3 + $0x58] sm:$0xf]
  %v5033 = vld [vmem:[%s3 + $0x5c] sm:$0xf]
  %v5034 = vld [vmem:[%s3 + $0x60] sm:$0xf]
  %v5035 = vld [vmem:[%s3 + $0x64] sm:$0xf]
  %v5036 = vld [vmem:[%s3 + $0x68] sm:$0xf]
  %v5037 = vld [vmem:[%s3 + $0x6c] sm:$0xf]
  %v5038 = vld [vmem:[%s3 + $0x70] sm:$0xf]
  %v5039 = vld [vmem:[%s3 + $0x74] sm:$0xf]
  %v5040 = vld [vmem:[%s3 + $0x78] sm:$0xf]
  %v5041 = vld [vmem:[%s3 + $0x7c] sm:$0xf]
  %v5042 = vld [vmem:[%s3 + $0x80] sm:$0xf]
  %v5043 = vld [vmem:[%s3 + $0x84] sm:$0xf]
  %v5044 = vld [vmem:[%s3 + $0x88] sm:$0xf]
  %v5045 = vld [vmem:[%s3 + $0x8c] sm:$0xf]
  %v5046 = vld [vmem:[%s3 + $0x90] sm:$0xf]
  %v5047 = vld [vmem:[%s3 + $0x94] sm:$0xf]
  %v5048 = vld [vmem:[%s3 + $0x98] sm:$0xf]
  %v5049 = vld [vmem:[%s3 + $0x9c] sm:$0xf]
  %v5050 = vld [vmem:[%s3 + $0xa0] sm:$0xf]
  %v5051 = vld [vmem:[%s3 + $0xa4] sm:$0xf]
  %v5052 = vld [vmem:[%s3 + $0xa8] sm:$0xf]
  %v5053 = vld [vmem:[%s3 + $0xac] sm:$0xf]
  %v5054 = vld [vmem:[%s3 + $0xb0] sm:$0xf]
  %v5055 = vld [vmem:[%s3 + $0xb4] sm:$0xf]
  %v5056 = vld [vmem:[%s3 + $0xb8] sm:$0xf]
  %v5057 = vld [vmem:[%s3 + $0xbc] sm:$0xf]
  %v5058 = vld [vmem:[%s3 + $0xc0] sm:$0xf]
  %v5059 = vld [vmem:[%s3 + $0xc4] sm:$0xf]
  %v5060 = vld [vmem:[%s3 + $0xc8] sm:$0xf]
  %v5061 = vld [vmem:[%s3 + $0xcc] sm:$0xf]
  %v5062 = vld [vmem:[%s3 + $0xd0] sm:$0xf]
  %v5063 = vld [vmem:[%s3 + $0xd4] sm:$0xf]
  %v5064 = vld [vmem:[%s3 + $0xd8] sm:$0xf]
  %v5065 = vld [vmem:[%s3 + $0xdc] sm:$0xf]
  %v5066 = vld [vmem:[%s3 + $0xe0] sm:$0xf]
  %v5067 = vld [vmem:[%s3 + $0xe4] sm:$0xf]
  %v5068 = vld [vmem:[%s3 + $0xe8] sm:$0xf]
  %v5069 = vld [vmem:[%s3 + $0xec] sm:$0xf]
  %v5070 = vld [vmem:[%s3 + $0xf0] sm:$0xf]
  %v5071 = vld [vmem:[%s3 + $0xf4] sm:$0xf]
  %v5072 = vld [vmem:[%s3 + $0xf8] sm:$0xf]
  %v5073 = vld [vmem:[%s3 + $0xfc] sm:$0xf]
  %v5074 = vld [vmem:[%s3 + $0x100] sm:$0xf]
  %v5075 = vld [vmem:[%s3 + $0x104] sm:$0xf]
  %v5076 = vld [vmem:[%s3 + $0x108] sm:$0xf]
  %v5077 = vld [vmem:[%s3 + $0x10c] sm:$0xf]
  %v5078 = vld [vmem:[%s3 + $0x110] sm:$0xf]
  %v5079 = vld [vmem:[%s3 + $0x114] sm:$0xf]
  %v5080 = vld [vmem:[%s3 + $0x118] sm:$0xf]
  %v5081 = vld [vmem:[%s3 + $0x11c] sm:$0xf]
  %v5082 = vld [vmem:[%s4] sm:$0x1]
  %v5084 = vlaneseq
  %v5085 = vshrl.u32 %v5084, 7
  %v5086 = vsub.s32 0, %v5085
  %v5087 = vrot.slane %v5082, %v5086
  %v5281 = vunpack.c.l.b16 %v4818
  %v5282 = vunpack.c.h.b16 %v4818
  %v5283 = vunpack.c.l.b16 %v4819
  %v5284 = vunpack.c.h.b16 %v4819
  %v5285 = vunpack.c.l.b16 %v4820
  %v5286 = vunpack.c.l.b16 %v4821
  %v5287 = vunpack.c.h.b16 %v4821
  %v5288 = vunpack.c.l.b16 %v4822
  %v5289 = vunpack.c.h.b16 %v4822
  %v5290 = vunpack.c.l.b16 %v4823
  %v5291 = vunpack.c.l.b16 %v4824
  %v5292 = vunpack.c.h.b16 %v4824
  %v5293 = vunpack.c.l.b16 %v4825
  %v5294 = vunpack.c.h.b16 %v4825
  %v5295 = vunpack.c.l.b16 %v4826
  %v5296 = vunpack.c.l.b16 %v4827
  %v5297 = vunpack.c.h.b16 %v4827
  %v5298 = vunpack.c.l.b16 %v4828
  %v5299 = vunpack.c.h.b16 %v4828
  %v5300 = vunpack.c.l.b16 %v4829
  %v5301 = vunpack.c.l.b16 %v4830
  %v5302 = vunpack.c.h.b16 %v4830
  %v5303 = vunpack.c.l.b16 %v4831
  %v5304 = vunpack.c.h.b16 %v4831
  %v5305 = vunpack.c.l.b16 %v4832
  %v5306 = vunpack.c.l.b16 %v4833
  %v5307 = vunpack.c.h.b16 %v4833
  %v5308 = vunpack.c.l.b16 %v4834
  %v5309 = vunpack.c.h.b16 %v4834
  %v5310 = vunpack.c.l.b16 %v4835
  %v5311 = vunpack.c.l.b16 %v4836
  %v5312 = vunpack.c.h.b16 %v4836
  %v5313 = vunpack.c.l.b16 %v4837
  %v5314 = vunpack.c.h.b16 %v4837
  %v5315 = vunpack.c.l.b16 %v4838
  %v5316 = vunpack.c.l.b16 %v4839
  %v5317 = vunpack.c.h.b16 %v4839
  %v5318 = vunpack.c.l.b16 %v4840
  %v5319 = vunpack.c.h.b16 %v4840
  %v5320 = vunpack.c.l.b16 %v4841
  %v5321 = vunpack.c.l.b16 %v4842
  %v5322 = vunpack.c.h.b16 %v4842
  %v5323 = vunpack.c.l.b16 %v4843
  %v5324 = vunpack.c.h.b16 %v4843
  %v5325 = vunpack.c.l.b16 %v4844
  %v5326 = vunpack.c.l.b16 %v4845
  %v5327 = vunpack.c.h.b16 %v4845
  %v5328 = vunpack.c.l.b16 %v4846
  %v5329 = vunpack.c.h.b16 %v4846
  %v5330 = vunpack.c.l.b16 %v4847
  %v5331 = vunpack.c.l.b16 %v4848
  %v5332 = vunpack.c.h.b16 %v4848
  %v5333 = vunpack.c.l.b16 %v4849
  %v5334 = vunpack.c.h.b16 %v4849
  %v5335 = vunpack.c.l.b16 %v4850
  %v5336 = vunpack.c.l.b16 %v4851
  %v5337 = vunpack.c.h.b16 %v4851
  %v5338 = vunpack.c.l.b16 %v4852
  %v5339 = vunpack.c.h.b16 %v4852
  %v5340 = vunpack.c.l.b16 %v4853
  %v5341 = vunpack.c.l.b16 %v4854
  %v5342 = vunpack.c.h.b16 %v4854
  %v5343 = vunpack.c.l.b16 %v4855
  %v5344 = vunpack.c.h.b16 %v4855
  %v5345 = vunpack.c.l.b16 %v4856
  %v5346 = vunpack.c.l.b16 %v4857
  %v5347 = vunpack.c.h.b16 %v4857
  %v5348 = vunpack.c.l.b16 %v4858
  %v5349 = vunpack.c.h.b16 %v4858
  %v5350 = vunpack.c.l.b16 %v4859
  %v5351 = vunpack.c.l.b16 %v4860
  %v5352 = vunpack.c.h.b16 %v4860
  %v5353 = vunpack.c.l.b16 %v4861
  %v5354 = vunpack.c.h.b16 %v4861
  %v5355 = vunpack.c.l.b16 %v4862
  %v5356 = vunpack.c.l.b16 %v4863
  %v5357 = vunpack.c.h.b16 %v4863
  %v5358 = vunpack.c.l.b16 %v4864
  %v5359 = vunpack.c.h.b16 %v4864
  %v5360 = vunpack.c.l.b16 %v4865
  %v5361 = vunpack.c.l.b16 %v4866
  %v5362 = vunpack.c.h.b16 %v4866
  %v5363 = vunpack.c.l.b16 %v4867
  %v5364 = vunpack.c.h.b16 %v4867
  %v5365 = vunpack.c.l.b16 %v4868
  %v5366 = vunpack.c.l.b16 %v4869
  %v5367 = vunpack.c.h.b16 %v4869
  %v5368 = vunpack.c.l.b16 %v4870
  %v5369 = vunpack.c.h.b16 %v4870
  %v5370 = vunpack.c.l.b16 %v4871
  %v5371 = vunpack.c.l.b16 %v4872
  %v5372 = vunpack.c.h.b16 %v4872
  %v5373 = vunpack.c.l.b16 %v4873
  %v5374 = vunpack.c.h.b16 %v4873
  %v5375 = vunpack.c.l.b16 %v4874
  %v5376 = vunpack.c.l.b16 %v4875
  %v5377 = vunpack.c.h.b16 %v4875
  %v5378 = vunpack.c.l.b16 %v4876
  %v5379 = vunpack.c.h.b16 %v4876
  %v5380 = vunpack.c.l.b16 %v4877
  %v5381 = vunpack.c.l.b16 %v4878
  %v5382 = vunpack.c.h.b16 %v4878
  %v5383 = vunpack.c.l.b16 %v4879
  %v5384 = vunpack.c.h.b16 %v4879
  %v5385 = vunpack.c.l.b16 %v4880
  %v5386 = vunpack.c.l.b16 %v4881
  %v5387 = vunpack.c.h.b16 %v4881
  %v5388 = vunpack.c.l.b16 %v4882
  %v5389 = vunpack.c.h.b16 %v4882
  %v5390 = vunpack.c.l.b16 %v4883
  %v5391 = vunpack.c.l.b16 %v4884
  %v5392 = vunpack.c.h.b16 %v4884
  %v5393 = vunpack.c.l.b16 %v4885
  %v5394 = vunpack.c.h.b16 %v4885
  %v5395 = vunpack.c.l.b16 %v4886
  %v5396 = vunpack.c.l.b16 %v4887
  %v5397 = vunpack.c.h.b16 %v4887
  %v5398 = vunpack.c.l.b16 %v4888
  %v5399 = vunpack.c.h.b16 %v4888
  %v5400 = vunpack.c.l.b16 %v4889
  %v5401 = vunpack.c.l.b16 %v4890
  %v5402 = vunpack.c.h.b16 %v4890
  %v5403 = vunpack.c.l.b16 %v4891
  %v5404 = vunpack.c.h.b16 %v4891
  %v5405 = vunpack.c.l.b16 %v4892
  %v5406 = vunpack.c.l.b16 %v4893
  %v5407 = vunpack.c.h.b16 %v4893
  %v5408 = vunpack.c.l.b16 %v4894
  %v5409 = vunpack.c.h.b16 %v4894
  %v5410 = vunpack.c.l.b16 %v4895
  %v5411 = vunpack.c.l.b16 %v4896
  %v5412 = vunpack.c.h.b16 %v4896
  %v5413 = vunpack.c.l.b16 %v4897
  %v5414 = vunpack.c.h.b16 %v4897
  %v5415 = vunpack.c.l.b16 %v4898
  %v5416 = vunpack.c.l.b16 %v4899
  %v5417 = vunpack.c.h.b16 %v4899
  %v5418 = vunpack.c.l.b16 %v4900
  %v5419 = vunpack.c.h.b16 %v4900
  %v5420 = vunpack.c.l.b16 %v4901
  %v5421 = vunpack.c.l.b16 %v4902
  %v5422 = vunpack.c.h.b16 %v4902
  %v5423 = vunpack.c.l.b16 %v4903
  %v5424 = vunpack.c.h.b16 %v4903
  %v5425 = vunpack.c.l.b16 %v4904
  %v5426 = vunpack.c.l.b16 %v4905
  %v5427 = vunpack.c.h.b16 %v4905
  %v5428 = vunpack.c.l.b16 %v4906
  %v5429 = vunpack.c.h.b16 %v4906
  %v5430 = vunpack.c.l.b16 %v4907
  %v5431 = vunpack.c.l.b16 %v4908
  %v5432 = vunpack.c.h.b16 %v4908
  %v5433 = vunpack.c.l.b16 %v4909
  %v5434 = vunpack.c.h.b16 %v4909
  %v5435 = vunpack.c.l.b16 %v4910
  %v5436 = vunpack.c.l.b16 %v4911
  %v5437 = vunpack.c.h.b16 %v4911
  %v5438 = vunpack.c.l.b16 %v4912
  %v5439 = vunpack.c.h.b16 %v4912
  %v5440 = vunpack.c.l.b16 %v4913
  %v5441 = vunpack.c.l.b16 %v4914
  %v5442 = vunpack.c.h.b16 %v4914
  %v5443 = vunpack.c.l.b16 %v4915
  %v5444 = vunpack.c.h.b16 %v4915
  %v5445 = vunpack.c.l.b16 %v4916
  %v5446 = vunpack.c.l.b16 %v4917
  %v5447 = vunpack.c.h.b16 %v4917
  %v5448 = vunpack.c.l.b16 %v4918
  %v5449 = vunpack.c.h.b16 %v4918
  %v5450 = vunpack.c.l.b16 %v4919
  %v5451 = vunpack.c.l.b16 %v4920
  %v5452 = vunpack.c.h.b16 %v4920
  %v5453 = vunpack.c.l.b16 %v4921
  %v5454 = vunpack.c.h.b16 %v4921
  %v5455 = vunpack.c.l.b16 %v4922
  %v5456 = vunpack.c.l.b16 %v4923
  %v5457 = vunpack.c.h.b16 %v4923
  %v5458 = vunpack.c.l.b16 %v4924
  %v5459 = vunpack.c.h.b16 %v4924
  %v5460 = vunpack.c.l.b16 %v4925
  %v5461 = vunpack.c.l.b16 %v4926
  %v5462 = vunpack.c.h.b16 %v4926
  %v5463 = vunpack.c.l.b16 %v4927
  %v5464 = vunpack.c.h.b16 %v4927
  %v5465 = vunpack.c.l.b16 %v4928
  %v5466 = vunpack.c.l.b16 %v4929
  %v5467 = vunpack.c.h.b16 %v4929
  %v5468 = vunpack.c.l.b16 %v4930
  %v5469 = vunpack.c.h.b16 %v4930
  %v5470 = vunpack.c.l.b16 %v4931
  %v5471 = vunpack.c.l.b16 %v4932
  %v5472 = vunpack.c.h.b16 %v4932
  %v5473 = vunpack.c.l.b16 %v4933
  %v5474 = vunpack.c.h.b16 %v4933
  %v5475 = vunpack.c.l.b16 %v4934
  %v5476 = vunpack.c.l.b16 %v4935
  %v5477 = vunpack.c.h.b16 %v4935
  %v5478 = vunpack.c.l.b16 %v4936
  %v5479 = vunpack.c.h.b16 %v4936
  %v5480 = vunpack.c.l.b16 %v4937
  %v5481 = vunpack.c.l.b16 %v4938
  %v5482 = vunpack.c.h.b16 %v4938
  %v5483 = vunpack.c.l.b16 %v4939
  %v5484 = vunpack.c.h.b16 %v4939
  %v5485 = vunpack.c.l.b16 %v4940
  %v5486 = vunpack.c.l.b16 %v4941
  %v5487 = vunpack.c.h.b16 %v4941
  %v5488 = vunpack.c.l.b16 %v4942
  %v5489 = vunpack.c.h.b16 %v4942
  %v5490 = vunpack.c.l.b16 %v4943
  %v5491 = vunpack.c.l.b16 %v4944
  %v5492 = vunpack.c.h.b16 %v4944
  %v5493 = vunpack.c.l.b16 %v4945
  %v5494 = vunpack.c.h.b16 %v4945
  %v5495 = vunpack.c.l.b16 %v4946
  %v5496 = vunpack.c.l.b16 %v4947
  %v5497 = vunpack.c.h.b16 %v4947
  %v5498 = vunpack.c.l.b16 %v4948
  %v5499 = vunpack.c.h.b16 %v4948
  %v5500 = vunpack.c.l.b16 %v4949
  %v5501 = vunpack.c.l.b16 %v4950
  %v5502 = vunpack.c.h.b16 %v4950
  %v5503 = vunpack.c.l.b16 %v4951
  %v5504 = vunpack.c.h.b16 %v4951
  %v5505 = vunpack.c.l.b16 %v4952
  %v5506 = vunpack.c.l.b16 %v4953
  %v5507 = vunpack.c.h.b16 %v4953
  %v5508 = vunpack.c.l.b16 %v4954
  %v5509 = vunpack.c.h.b16 %v4954
  %v5510 = vunpack.c.l.b16 %v4955
  %v5511 = vunpack.c.l.b16 %v4956
  %v5512 = vunpack.c.h.b16 %v4956
  %v5513 = vunpack.c.l.b16 %v4957
  %v5514 = vunpack.c.h.b16 %v4957
  %v5515 = vunpack.c.l.b16 %v4958
  %v5516 = vunpack.c.l.b16 %v4959
  %v5517 = vunpack.c.h.b16 %v4959
  %v5518 = vunpack.c.l.b16 %v4960
  %v5519 = vunpack.c.h.b16 %v4960
  %v5520 = vunpack.c.l.b16 %v4961
  %v5521 = vunpack.c.l.b16 %v4962
  %v5522 = vunpack.c.h.b16 %v4962
  %v5523 = vunpack.c.l.b16 %v4963
  %v5524 = vunpack.c.h.b16 %v4963
  %v5525 = vunpack.c.l.b16 %v4964
  %v5526 = vunpack.c.l.b16 %v4965
  %v5527 = vunpack.c.h.b16 %v4965
  %v5528 = vunpack.c.l.b16 %v4966
  %v5529 = vunpack.c.h.b16 %v4966
  %v5530 = vunpack.c.l.b16 %v4967
  %v5531 = vunpack.c.l.b16 %v4968
  %v5532 = vunpack.c.h.b16 %v4968
  %v5533 = vunpack.c.l.b16 %v4969
  %v5534 = vunpack.c.h.b16 %v4969
  %v5535 = vunpack.c.l.b16 %v4970
  %v5536 = vunpack.c.l.b16 %v4971
  %v5537 = vunpack.c.h.b16 %v4971
  %v5538 = vunpack.c.l.b16 %v4972
  %v5539 = vunpack.c.h.b16 %v4972
  %v5540 = vunpack.c.l.b16 %v4973
  %v5541 = vunpack.c.l.b16 %v4974
  %v5542 = vunpack.c.h.b16 %v4974
  %v5543 = vunpack.c.l.b16 %v4975
  %v5544 = vunpack.c.h.b16 %v4975
  %v5545 = vunpack.c.l.b16 %v4976
  %v5546 = vunpack.c.l.b16 %v4977
  %v5547 = vunpack.c.h.b16 %v4977
  %v5548 = vunpack.c.l.b16 %v4978
  %v5549 = vunpack.c.h.b16 %v4978
  %v5550 = vunpack.c.l.b16 %v4979
  %v5551 = vunpack.c.l.b16 %v4980
  %v5552 = vunpack.c.h.b16 %v4980
  %v5553 = vunpack.c.l.b16 %v4981
  %v5554 = vunpack.c.h.b16 %v4981
  %v5555 = vunpack.c.l.b16 %v4982
  %v5556 = vunpack.c.l.b16 %v4983
  %v5557 = vunpack.c.h.b16 %v4983
  %v5558 = vunpack.c.l.b16 %v4984
  %v5559 = vunpack.c.h.b16 %v4984
  %v5560 = vunpack.c.l.b16 %v4985
  %v5561 = vunpack.c.l.b16 %v4986
  %v5562 = vunpack.c.h.b16 %v4986
  %v5563 = vunpack.c.l.b16 %v4987
  %v5564 = vunpack.c.h.b16 %v4987
  %v5565 = vunpack.c.l.b16 %v4988
  %v5566 = vunpack.c.l.b16 %v4989
  %v5567 = vunpack.c.h.b16 %v4989
  %v5568 = vunpack.c.l.b16 %v4990
  %v5569 = vunpack.c.h.b16 %v4990
  %v5570 = vunpack.c.l.b16 %v4991
  %v5571 = vunpack.c.l.b16 %v4992
  %v5572 = vunpack.c.h.b16 %v4992
  %v5573 = vunpack.c.l.b16 %v4993
  %v5574 = vunpack.c.h.b16 %v4993
  %v5575 = vunpack.c.l.b16 %v4994
  %v5576 = vunpack.c.l.b16 %v4995
  %v5577 = vunpack.c.h.b16 %v4995
  %v5578 = vunpack.c.l.b16 %v4996
  %v5579 = vunpack.c.h.b16 %v4996
  %v5580 = vunpack.c.l.b16 %v4997
  %v5581 = vunpack.c.l.b16 %v4998
  %v5582 = vunpack.c.h.b16 %v4998
  %v5583 = vunpack.c.l.b16 %v4999
  %v5584 = vunpack.c.h.b16 %v4999
  %v5585 = vunpack.c.l.b16 %v5000
  %v5586 = vunpack.c.l.b16 %v5001
  %v5587 = vunpack.c.h.b16 %v5001
  %v5588 = vunpack.c.l.b16 %v5002
  %v5589 = vunpack.c.h.b16 %v5002
  %v5590 = vunpack.c.l.b16 %v5003
  %v5591 = vunpack.c.l.b16 %v5004
  %v5592 = vunpack.c.h.b16 %v5004
  %v5593 = vunpack.c.l.b16 %v5005
  %v5594 = vunpack.c.h.b16 %v5005
  %v5595 = vunpack.c.l.b16 %v5006
  %v5596 = vunpack.c.l.b16 %v5007
  %v5597 = vunpack.c.h.b16 %v5007
  %v5598 = vunpack.c.l.b16 %v5008
  %v5599 = vunpack.c.h.b16 %v5008
  %v5600 = vunpack.c.l.b16 %v5009
  %v5601 = vpack.c.b16 %v5286, %v5281
  %v5602 = vpack.c.b16 %v5287, %v5282
  %v5603 = vpack.c.b16 %v5288, %v5283
  %v5604 = vpack.c.b16 %v5289, %v5284
  %v5605 = vpack.c.b16 %v5290, %v5285
  %v5606 = vpack.c.b16 %v5296, %v5291
  %v5607 = vpack.c.b16 %v5297, %v5292
  %v5608 = vpack.c.b16 %v5298, %v5293
  %v5609 = vpack.c.b16 %v5299, %v5294
  %v5610 = vpack.c.b16 %v5300, %v5295
  %v5611 = vpack.c.b16 %v5306, %v5301
  %v5612 = vpack.c.b16 %v5307, %v5302
  %v5613 = vpack.c.b16 %v5308, %v5303
  %v5614 = vpack.c.b16 %v5309, %v5304
  %v5615 = vpack.c.b16 %v5310, %v5305
  %v5616 = vpack.c.b16 %v5316, %v5311
  %v5617 = vpack.c.b16 %v5317, %v5312
  %v5618 = vpack.c.b16 %v5318, %v5313
  %v5619 = vpack.c.b16 %v5319, %v5314
  %v5620 = vpack.c.b16 %v5320, %v5315
  %v5621 = vpack.c.b16 %v5326, %v5321
  %v5622 = vpack.c.b16 %v5327, %v5322
  %v5623 = vpack.c.b16 %v5328, %v5323
  %v5624 = vpack.c.b16 %v5329, %v5324
  %v5625 = vpack.c.b16 %v5330, %v5325
  %v5626 = vpack.c.b16 %v5336, %v5331
  %v5627 = vpack.c.b16 %v5337, %v5332
  %v5628 = vpack.c.b16 %v5338, %v5333
  %v5629 = vpack.c.b16 %v5339, %v5334
  %v5630 = vpack.c.b16 %v5340, %v5335
  %v5631 = vpack.c.b16 %v5346, %v5341
  %v5632 = vpack.c.b16 %v5347, %v5342
  %v5633 = vpack.c.b16 %v5348, %v5343
  %v5634 = vpack.c.b16 %v5349, %v5344
  %v5635 = vpack.c.b16 %v5350, %v5345
  %v5636 = vpack.c.b16 %v5356, %v5351
  %v5637 = vpack.c.b16 %v5357, %v5352
  %v5638 = vpack.c.b16 %v5358, %v5353
  %v5639 = vpack.c.b16 %v5359, %v5354
  %v5640 = vpack.c.b16 %v5360, %v5355
  %v5641 = vpack.c.b16 %v5366, %v5361
  %v5642 = vpack.c.b16 %v5367, %v5362
  %v5643 = vpack.c.b16 %v5368, %v5363
  %v5644 = vpack.c.b16 %v5369, %v5364
  %v5645 = vpack.c.b16 %v5370, %v5365
  %v5646 = vpack.c.b16 %v5376, %v5371
  %v5647 = vpack.c.b16 %v5377, %v5372
  %v5648 = vpack.c.b16 %v5378, %v5373
  %v5649 = vpack.c.b16 %v5379, %v5374
  %v5650 = vpack.c.b16 %v5380, %v5375
  %v5651 = vpack.c.b16 %v5386, %v5381
  %v5652 = vpack.c.b16 %v5387, %v5382
  %v5653 = vpack.c.b16 %v5388, %v5383
  %v5654 = vpack.c.b16 %v5389, %v5384
  %v5655 = vpack.c.b16 %v5390, %v5385
  %v5656 = vpack.c.b16 %v5396, %v5391
  %v5657 = vpack.c.b16 %v5397, %v5392
  %v5658 = vpack.c.b16 %v5398, %v5393
  %v5659 = vpack.c.b16 %v5399, %v5394
  %v5660 = vpack.c.b16 %v5400, %v5395
  %v5661 = vpack.c.b16 %v5406, %v5401
  %v5662 = vpack.c.b16 %v5407, %v5402
  %v5663 = vpack.c.b16 %v5408, %v5403
  %v5664 = vpack.c.b16 %v5409, %v5404
  %v5665 = vpack.c.b16 %v5410, %v5405
  %v5666 = vpack.c.b16 %v5416, %v5411
  %v5667 = vpack.c.b16 %v5417, %v5412
  %v5668 = vpack.c.b16 %v5418, %v5413
  %v5669 = vpack.c.b16 %v5419, %v5414
  %v5670 = vpack.c.b16 %v5420, %v5415
  %v5671 = vpack.c.b16 %v5426, %v5421
  %v5672 = vpack.c.b16 %v5427, %v5422
  %v5673 = vpack.c.b16 %v5428, %v5423
  %v5674 = vpack.c.b16 %v5429, %v5424
  %v5675 = vpack.c.b16 %v5430, %v5425
  %v5676 = vpack.c.b16 %v5436, %v5431
  %v5677 = vpack.c.b16 %v5437, %v5432
  %v5678 = vpack.c.b16 %v5438, %v5433
  %v5679 = vpack.c.b16 %v5439, %v5434
  %v5680 = vpack.c.b16 %v5440, %v5435
  %v5681 = vpack.c.b16 %v5446, %v5441
  %v5682 = vpack.c.b16 %v5447, %v5442
  %v5683 = vpack.c.b16 %v5448, %v5443
  %v5684 = vpack.c.b16 %v5449, %v5444
  %v5685 = vpack.c.b16 %v5450, %v5445
  %v5686 = vpack.c.b16 %v5456, %v5451
  %v5687 = vpack.c.b16 %v5457, %v5452
  %v5688 = vpack.c.b16 %v5458, %v5453
  %v5689 = vpack.c.b16 %v5459, %v5454
  %v5690 = vpack.c.b16 %v5460, %v5455
  %v5691 = vpack.c.b16 %v5466, %v5461
  %v5692 = vpack.c.b16 %v5467, %v5462
  %v5693 = vpack.c.b16 %v5468, %v5463
  %v5694 = vpack.c.b16 %v5469, %v5464
  %v5695 = vpack.c.b16 %v5470, %v5465
  %v5696 = vpack.c.b16 %v5476, %v5471
  %v5697 = vpack.c.b16 %v5477, %v5472
  %v5698 = vpack.c.b16 %v5478, %v5473
  %v5699 = vpack.c.b16 %v5479, %v5474
  %v5700 = vpack.c.b16 %v5480, %v5475
  %v5701 = vpack.c.b16 %v5486, %v5481
  %v5702 = vpack.c.b16 %v5487, %v5482
  %v5703 = vpack.c.b16 %v5488, %v5483
  %v5704 = vpack.c.b16 %v5489, %v5484
  %v5705 = vpack.c.b16 %v5490, %v5485
  %v5706 = vpack.c.b16 %v5496, %v5491
  %v5707 = vpack.c.b16 %v5497, %v5492
  %v5708 = vpack.c.b16 %v5498, %v5493
  %v5709 = vpack.c.b16 %v5499, %v5494
  %v5710 = vpack.c.b16 %v5500, %v5495
  %v5711 = vpack.c.b16 %v5506, %v5501
  %v5712 = vpack.c.b16 %v5507, %v5502
  %v5713 = vpack.c.b16 %v5508, %v5503
  %v5714 = vpack.c.b16 %v5509, %v5504
  %v5715 = vpack.c.b16 %v5510, %v5505
  %v5716 = vpack.c.b16 %v5516, %v5511
  %v5717 = vpack.c.b16 %v5517, %v5512
  %v5718 = vpack.c.b16 %v5518, %v5513
  %v5719 = vpack.c.b16 %v5519, %v5514
  %v5720 = vpack.c.b16 %v5520, %v5515
  %v5721 = vpack.c.b16 %v5526, %v5521
  %v5722 = vpack.c.b16 %v5527, %v5522
  %v5723 = vpack.c.b16 %v5528, %v5523
  %v5724 = vpack.c.b16 %v5529, %v5524
  %v5725 = vpack.c.b16 %v5530, %v5525
  %v5726 = vpack.c.b16 %v5536, %v5531
  %v5727 = vpack.c.b16 %v5537, %v5532
  %v5728 = vpack.c.b16 %v5538, %v5533
  %v5729 = vpack.c.b16 %v5539, %v5534
  %v5730 = vpack.c.b16 %v5540, %v5535
  %v5731 = vpack.c.b16 %v5546, %v5541
  %v5732 = vpack.c.b16 %v5547, %v5542
  %v5733 = vpack.c.b16 %v5548, %v5543
  %v5734 = vpack.c.b16 %v5549, %v5544
  %v5735 = vpack.c.b16 %v5550, %v5545
  %v5736 = vpack.c.b16 %v5556, %v5551
  %v5737 = vpack.c.b16 %v5557, %v5552
  %v5738 = vpack.c.b16 %v5558, %v5553
  %v5739 = vpack.c.b16 %v5559, %v5554
  %v5740 = vpack.c.b16 %v5560, %v5555
  %v5741 = vpack.c.b16 %v5566, %v5561
  %v5742 = vpack.c.b16 %v5567, %v5562
  %v5743 = vpack.c.b16 %v5568, %v5563
  %v5744 = vpack.c.b16 %v5569, %v5564
  %v5745 = vpack.c.b16 %v5570, %v5565
  %v5746 = vpack.c.b16 %v5576, %v5571
  %v5747 = vpack.c.b16 %v5577, %v5572
  %v5748 = vpack.c.b16 %v5578, %v5573
  %v5749 = vpack.c.b16 %v5579, %v5574
  %v5750 = vpack.c.b16 %v5580, %v5575
  %v5751 = vpack.c.b16 %v5586, %v5581
  %v5752 = vpack.c.b16 %v5587, %v5582
  %v5753 = vpack.c.b16 %v5588, %v5583
  %v5754 = vpack.c.b16 %v5589, %v5584
  %v5755 = vpack.c.b16 %v5590, %v5585
  %v5756 = vpack.c.b16 %v5596, %v5591
  %v5757 = vpack.c.b16 %v5597, %v5592
  %v5758 = vpack.c.b16 %v5598, %v5593
  %v5759 = vpack.c.b16 %v5599, %v5594
  %v5760 = vpack.c.b16 %v5600, %v5595
  %v5961 = vunpack.c.l.b16 %v5010
  %v5962 = vunpack.c.l.b16 %v5011
  %v5963 = vunpack.c.l.b16 %v5012
  %v5964 = vunpack.c.l.b16 %v5013
  %v5965 = vunpack.c.l.b16 %v5014
  %v5966 = vunpack.c.l.b16 %v5015
  %v5967 = vunpack.c.l.b16 %v5016
  %v5968 = vunpack.c.l.b16 %v5017
  %v5969 = vunpack.c.l.b16 %v5018
  %v5970 = vunpack.c.l.b16 %v5019
  %v5971 = vunpack.c.l.b16 %v5020
  %v5972 = vunpack.c.l.b16 %v5021
  %v5973 = vunpack.c.l.b16 %v5022
  %v5974 = vunpack.c.l.b16 %v5023
  %v5975 = vunpack.c.l.b16 %v5024
  %v5976 = vunpack.c.l.b16 %v5025
  %v5977 = vunpack.c.l.b16 %v5026
  %v5978 = vunpack.c.l.b16 %v5027
  %v5979 = vunpack.c.l.b16 %v5028
  %v5980 = vunpack.c.l.b16 %v5029
  %v5981 = vunpack.c.l.b16 %v5030
  %v5982 = vunpack.c.l.b16 %v5031
  %v5983 = vunpack.c.l.b16 %v5032
  %v5984 = vunpack.c.l.b16 %v5033
  %v5985 = vunpack.c.l.b16 %v5034
  %v5986 = vunpack.c.l.b16 %v5035
  %v5987 = vunpack.c.l.b16 %v5036
  %v5988 = vunpack.c.l.b16 %v5037
  %v5989 = vunpack.c.l.b16 %v5038
  %v5990 = vunpack.c.l.b16 %v5039
  %v5991 = vunpack.c.l.b16 %v5040
  %v5992 = vunpack.c.l.b16 %v5041
  %v5993 = vunpack.c.l.b16 %v5042
  %v5994 = vunpack.c.l.b16 %v5043
  %v5995 = vunpack.c.l.b16 %v5044
  %v5996 = vunpack.c.l.b16 %v5045
  %v5997 = vunpack.c.l.b16 %v5046
  %v5998 = vunpack.c.l.b16 %v5047
  %v5999 = vunpack.c.l.b16 %v5048
  %v6000 = vunpack.c.l.b16 %v5049
  %v6001 = vunpack.c.l.b16 %v5050
  %v6002 = vunpack.c.l.b16 %v5051
  %v6003 = vunpack.c.l.b16 %v5052
  %v6004 = vunpack.c.l.b16 %v5053
  %v6005 = vunpack.c.l.b16 %v5054
  %v6006 = vunpack.c.l.b16 %v5055
  %v6007 = vunpack.c.l.b16 %v5056
  %v6008 = vunpack.c.l.b16 %v5057
  %v6009 = vunpack.c.l.b16 %v5058
  %v6010 = vunpack.c.l.b16 %v5059
  %v6011 = vunpack.c.l.b16 %v5060
  %v6012 = vunpack.c.l.b16 %v5061
  %v6013 = vunpack.c.l.b16 %v5062
  %v6014 = vunpack.c.l.b16 %v5063
  %v6015 = vunpack.c.l.b16 %v5064
  %v6016 = vunpack.c.l.b16 %v5065
  %v6017 = vunpack.c.l.b16 %v5066
  %v6018 = vunpack.c.l.b16 %v5067
  %v6019 = vunpack.c.l.b16 %v5068
  %v6020 = vunpack.c.l.b16 %v5069
  %v6021 = vunpack.c.l.b16 %v5070
  %v6022 = vunpack.c.l.b16 %v5071
  %v6023 = vunpack.c.l.b16 %v5072
  %v6024 = vunpack.c.l.b16 %v5073
  %v6025 = vunpack.c.l.b16 %v5074
  %v6026 = vunpack.c.l.b16 %v5075
  %v6027 = vunpack.c.l.b16 %v5076
  %v6028 = vunpack.c.l.b16 %v5077
  %v6029 = vunpack.c.l.b16 %v5078
  %v6030 = vunpack.c.l.b16 %v5079
  %v6031 = vunpack.c.l.b16 %v5080
  %v6032 = vunpack.c.l.b16 %v5081
  %v6033 = vpack.c.b16 %v5962, %v5961
  %v6034 = vpack.c.b16 %v5964, %v5963
  %v6035 = vpack.c.b16 %v5966, %v5965
  %v6036 = vpack.c.b16 %v5968, %v5967
  %v6037 = vpack.c.b16 %v5970, %v5969
  %v6038 = vpack.c.b16 %v5972, %v5971
  %v6039 = vpack.c.b16 %v5974, %v5973
  %v6040 = vpack.c.b16 %v5976, %v5975
  %v6041 = vpack.c.b16 %v5978, %v5977
  %v6042 = vpack.c.b16 %v5980, %v5979
  %v6043 = vpack.c.b16 %v5982, %v5981
  %v6044 = vpack.c.b16 %v5984, %v5983
  %v6045 = vpack.c.b16 %v5986, %v5985
  %v6046 = vpack.c.b16 %v5988, %v5987
  %v6047 = vpack.c.b16 %v5990, %v5989
  %v6048 = vpack.c.b16 %v5992, %v5991
  %v6049 = vpack.c.b16 %v5994, %v5993
  %v6050 = vpack.c.b16 %v5996, %v5995
  %v6051 = vpack.c.b16 %v5998, %v5997
  %v6052 = vpack.c.b16 %v6000, %v5999
  %v6053 = vpack.c.b16 %v6002, %v6001
  %v6054 = vpack.c.b16 %v6004, %v6003
  %v6055 = vpack.c.b16 %v6006, %v6005
  %v6056 = vpack.c.b16 %v6008, %v6007
  %v6057 = vpack.c.b16 %v6010, %v6009
  %v6058 = vpack.c.b16 %v6012, %v6011
  %v6059 = vpack.c.b16 %v6014, %v6013
  %v6060 = vpack.c.b16 %v6016, %v6015
  %v6061 = vpack.c.b16 %v6018, %v6017
  %v6062 = vpack.c.b16 %v6020, %v6019
  %v6063 = vpack.c.b16 %v6022, %v6021
  %v6064 = vpack.c.b16 %v6024, %v6023
  %v6065 = vpack.c.b16 %v6026, %v6025
  %v6066 = vpack.c.b16 %v6028, %v6027
  %v6067 = vpack.c.b16 %v6030, %v6029
  %v6068 = vpack.c.b16 %v6032, %v6031
  %v6106 = vsel %vm672, %v5605, 0
  %v6109 = vsel %vm672, %v5610, 0
  %v6112 = vsel %vm672, %v5615, 0
  %v6115 = vsel %vm672, %v5620, 0
  %v6118 = vsel %vm672, %v5625, 0
  %v6121 = vsel %vm672, %v5630, 0
  %v6124 = vsel %vm672, %v5635, 0
  %v6127 = vsel %vm672, %v5640, 0
  %v6130 = vsel %vm672, %v5645, 0
  %v6133 = vsel %vm672, %v5650, 0
  %v6136 = vsel %vm672, %v5655, 0
  %v6139 = vsel %vm672, %v5660, 0
  %v6142 = vsel %vm672, %v5665, 0
  %v6145 = vsel %vm672, %v5670, 0
  %v6148 = vsel %vm672, %v5675, 0
  %v6151 = vsel %vm672, %v5680, 0
  %v6154 = vsel %vm672, %v5685, 0
  %v6157 = vsel %vm672, %v5690, 0
  %v6160 = vsel %vm672, %v5695, 0
  %v6163 = vsel %vm672, %v5700, 0
  %v6166 = vsel %vm672, %v5705, 0
  %v6169 = vsel %vm672, %v5710, 0
  %v6172 = vsel %vm672, %v5715, 0
  %v6175 = vsel %vm672, %v5720, 0
  %v6178 = vsel %vm672, %v5725, 0
  %v6181 = vsel %vm672, %v5730, 0
  %v6184 = vsel %vm672, %v5735, 0
  %v6187 = vsel %vm672, %v5740, 0
  %v6190 = vsel %vm672, %v5745, 0
  %v6193 = vsel %vm672, %v5750, 0
  %v6196 = vsel %vm672, %v5755, 0
  %v6199 = vsel %vm672, %v5760, 0
  %6201 = vmatprep.subr.bf16.mxu0 0
  %6202 = vmatpush1.bf16.msra.mxu0 %v6040
  %6203 = vmatprep.subr.bf16.mxu0 0
  %6204 = vmatpush1.bf16.msra.mxu0 %v6039
  %6205 = vmatprep.subr.bf16.mxu0 0
  %6206 = vmatpush1.bf16.msra.mxu0 %v6038
  %6207 = vmatprep.subr.bf16.mxu0 0
  %6208 = vmatpush1.bf16.msra.mxu0 %v6037
  %6209 = vmatprep.subr.bf16.mxu0 0
  %6210 = vmatpush1.bf16.msra.mxu0 %v6036
  %6211 = vmatprep.subr.bf16.mxu0 0
  %6212 = vmatpush1.bf16.msra.mxu0 %v6035
  %6213 = vmatprep.subr.bf16.mxu0 0
  %6214 = vmatpush1.bf16.msra.mxu0 %v6034
  %6215 = vmatprep.subr.bf16.mxu0 0
  %6216 = vmatpush1.bf16.msra.mxu0 %v6033
  %6217 = vmatprep.subr.bf16.mxu0 0
  %6218 = vmatpush2.bf16.msra.mxu0 %v6048
  %6219 = vmatprep.subr.bf16.mxu0 0
  %6220 = vmatpush2.bf16.msra.mxu0 %v6047
  %6221 = vmatprep.subr.bf16.mxu0 0
  %6222 = vmatpush2.bf16.msra.mxu0 %v6046
  %6223 = vmatprep.subr.bf16.mxu0 0
  %6224 = vmatpush2.bf16.msra.mxu0 %v6045
  %6225 = vmatprep.subr.bf16.mxu0 0
  %6226 = vmatpush2.bf16.msra.mxu0 %v6044
  %6227 = vmatprep.subr.bf16.mxu0 0
  %6228 = vmatpush2.bf16.msra.mxu0 %v6043
  %6229 = vmatprep.subr.bf16.mxu0 0
  %6230 = vmatpush2.bf16.msra.mxu0 %v6042
  %6231 = vmatprep.subr.bf16.mxu0 0
  %6232 = vmatpush2.bf16.msra.mxu0 %v6041
  %6233 = vmatprep.mubr.bf16.mxu0 %v5602
  %6234 = vmatmul.mubr.bf16.gmra.mxu0 %v5601
  %v6235 = vpop.f32.mrf.mxu0
  %v6236 = vadd.f32 %v5087, %v6235
  %v6237 = vpop.f32.mrf.mxu0
  %v6238 = vpop.f32.mrf.mxu0
  %v6239 = vadd.f32 %v5087, %v6238
  %v6240 = vpop.f32.mrf.mxu0
  %6241 = vmatprep.mubr.bf16.mxu0 %v5607
  %6242 = vmatmul.mubr.bf16.gmra.mxu0 %v5606
  %v6243 = vpop.f32.mrf.mxu0
  %v6244 = vadd.f32 %v5087, %v6243
  %v6245 = vpop.f32.mrf.mxu0
  %v6246 = vpop.f32.mrf.mxu0
  %v6247 = vadd.f32 %v5087, %v6246
  %v6248 = vpop.f32.mrf.mxu0
  %6249 = vmatprep.mubr.bf16.mxu0 %v5612
  %6250 = vmatmul.mubr.bf16.gmra.mxu0 %v5611
  %v6251 = vpop.f32.mrf.mxu0
  %v6252 = vadd.f32 %v5087, %v6251
  %v6253 = vpop.f32.mrf.mxu0
  %v6254 = vpop.f32.mrf.mxu0
  %v6255 = vadd.f32 %v5087, %v6254
  %v6256 = vpop.f32.mrf.mxu0
  %6257 = vmatprep.mubr.bf16.mxu0 %v5617
  %6258 = vmatmul.mubr.bf16.gmra.mxu0 %v5616
  %v6259 = vpop.f32.mrf.mxu0
  %v6260 = vadd.f32 %v5087, %v6259
  %v6261 = vpop.f32.mrf.mxu0
  %v6262 = vpop.f32.mrf.mxu0
  %v6263 = vadd.f32 %v5087, %v6262
  %v6264 = vpop.f32.mrf.mxu0
  %6265 = vmatprep.mubr.bf16.mxu0 %v5622
  %6266 = vmatmul.mubr.bf16.gmra.mxu0 %v5621
  %v6267 = vpop.f32.mrf.mxu0
  %v6268 = vadd.f32 %v5087, %v6267
  %v6269 = vpop.f32.mrf.mxu0
  %v6270 = vpop.f32.mrf.mxu0
  %v6271 = vadd.f32 %v5087, %v6270
  %v6272 = vpop.f32.mrf.mxu0
  %6273 = vmatprep.mubr.bf16.mxu0 %v5627
  %6274 = vmatmul.mubr.bf16.gmra.mxu0 %v5626
  %v6275 = vpop.f32.mrf.mxu0
  %v6276 = vadd.f32 %v5087, %v6275
  %v6277 = vpop.f32.mrf.mxu0
  %v6278 = vpop.f32.mrf.mxu0
  %v6279 = vadd.f32 %v5087, %v6278
  %v6280 = vpop.f32.mrf.mxu0
  %6281 = vmatprep.mubr.bf16.mxu0 %v5632
  %6282 = vmatmul.mubr.bf16.gmra.mxu0 %v5631
  %v6283 = vpop.f32.mrf.mxu0
  %v6284 = vadd.f32 %v5087, %v6283
  %v6285 = vpop.f32.mrf.mxu0
  %v6286 = vpop.f32.mrf.mxu0
  %v6287 = vadd.f32 %v5087, %v6286
  %v6288 = vpop.f32.mrf.mxu0
  %6289 = vmatprep.mubr.bf16.mxu0 %v5637
  %6290 = vmatmul.mubr.bf16.gmra.mxu0 %v5636
  %v6291 = vpop.f32.mrf.mxu0
  %v6292 = vadd.f32 %v5087, %v6291
  %v6293 = vpop.f32.mrf.mxu0
  %v6294 = vpop.f32.mrf.mxu0
  %v6295 = vadd.f32 %v5087, %v6294
  %v6296 = vpop.f32.mrf.mxu0
  %6297 = vmatprep.mubr.bf16.mxu0 %v5642
  %6298 = vmatmul.mubr.bf16.gmra.mxu0 %v5641
  %v6299 = vpop.f32.mrf.mxu0
  %v6300 = vadd.f32 %v5087, %v6299
  %v6301 = vpop.f32.mrf.mxu0
  %v6302 = vpop.f32.mrf.mxu0
  %v6303 = vadd.f32 %v5087, %v6302
  %v6304 = vpop.f32.mrf.mxu0
  %6305 = vmatprep.mubr.bf16.mxu0 %v5647
  %6306 = vmatmul.mubr.bf16.gmra.mxu0 %v5646
  %v6307 = vpop.f32.mrf.mxu0
  %v6308 = vadd.f32 %v5087, %v6307
  %v6309 = vpop.f32.mrf.mxu0
  %v6310 = vpop.f32.mrf.mxu0
  %v6311 = vadd.f32 %v5087, %v6310
  %v6312 = vpop.f32.mrf.mxu0
  %6313 = vmatprep.mubr.bf16.mxu0 %v5652
  %6314 = vmatmul.mubr.bf16.gmra.mxu0 %v5651
  %v6315 = vpop.f32.mrf.mxu0
  %v6316 = vadd.f32 %v5087, %v6315
  %v6317 = vpop.f32.mrf.mxu0
  %v6318 = vpop.f32.mrf.mxu0
  %v6319 = vadd.f32 %v5087, %v6318
  %v6320 = vpop.f32.mrf.mxu0
  %6321 = vmatprep.mubr.bf16.mxu0 %v5657
  %6322 = vmatmul.mubr.bf16.gmra.mxu0 %v5656
  %v6323 = vpop.f32.mrf.mxu0
  %v6324 = vadd.f32 %v5087, %v6323
  %v6325 = vpop.f32.mrf.mxu0
  %v6326 = vpop.f32.mrf.mxu0
  %v6327 = vadd.f32 %v5087, %v6326
  %v6328 = vpop.f32.mrf.mxu0
  %6329 = vmatprep.mubr.bf16.mxu0 %v5662
  %6330 = vmatmul.mubr.bf16.gmra.mxu0 %v5661
  %v6331 = vpop.f32.mrf.mxu0
  %v6332 = vadd.f32 %v5087, %v6331
  %v6333 = vpop.f32.mrf.mxu0
  %v6334 = vpop.f32.mrf.mxu0
  %v6335 = vadd.f32 %v5087, %v6334
  %v6336 = vpop.f32.mrf.mxu0
  %6337 = vmatprep.mubr.bf16.mxu0 %v5667
  %6338 = vmatmul.mubr.bf16.gmra.mxu0 %v5666
  %v6339 = vpop.f32.mrf.mxu0
  %v6340 = vadd.f32 %v5087, %v6339
  %v6341 = vpop.f32.mrf.mxu0
  %v6342 = vpop.f32.mrf.mxu0
  %v6343 = vadd.f32 %v5087, %v6342
  %v6344 = vpop.f32.mrf.mxu0
  %6345 = vmatprep.mubr.bf16.mxu0 %v5672
  %6346 = vmatmul.mubr.bf16.gmra.mxu0 %v5671
  %v6347 = vpop.f32.mrf.mxu0
  %v6348 = vadd.f32 %v5087, %v6347
  %v6349 = vpop.f32.mrf.mxu0
  %v6350 = vpop.f32.mrf.mxu0
  %v6351 = vadd.f32 %v5087, %v6350
  %v6352 = vpop.f32.mrf.mxu0
  %6353 = vmatprep.mubr.bf16.mxu0 %v5677
  %6354 = vmatmul.mubr.bf16.gmra.mxu0 %v5676
  %v6355 = vpop.f32.mrf.mxu0
  %v6356 = vadd.f32 %v5087, %v6355
  %v6357 = vpop.f32.mrf.mxu0
  %v6358 = vpop.f32.mrf.mxu0
  %v6359 = vadd.f32 %v5087, %v6358
  %v6360 = vpop.f32.mrf.mxu0
  %6361 = vmatprep.mubr.bf16.mxu0 %v5682
  %6362 = vmatmul.mubr.bf16.gmra.mxu0 %v5681
  %v6363 = vpop.f32.mrf.mxu0
  %v6364 = vadd.f32 %v5087, %v6363
  %v6365 = vpop.f32.mrf.mxu0
  %v6366 = vpop.f32.mrf.mxu0
  %v6367 = vadd.f32 %v5087, %v6366
  %v6368 = vpop.f32.mrf.mxu0
  %6369 = vmatprep.mubr.bf16.mxu0 %v5687
  %6370 = vmatmul.mubr.bf16.gmra.mxu0 %v5686
  %v6371 = vpop.f32.mrf.mxu0
  %v6372 = vadd.f32 %v5087, %v6371
  %v6373 = vpop.f32.mrf.mxu0
  %v6374 = vpop.f32.mrf.mxu0
  %v6375 = vadd.f32 %v5087, %v6374
  %v6376 = vpop.f32.mrf.mxu0
  %6377 = vmatprep.mubr.bf16.mxu0 %v5692
  %6378 = vmatmul.mubr.bf16.gmra.mxu0 %v5691
  %v6379 = vpop.f32.mrf.mxu0
  %v6380 = vadd.f32 %v5087, %v6379
  %v6381 = vpop.f32.mrf.mxu0
  %v6382 = vpop.f32.mrf.mxu0
  %v6383 = vadd.f32 %v5087, %v6382
  %v6384 = vpop.f32.mrf.mxu0
  %6385 = vmatprep.mubr.bf16.mxu0 %v5697
  %6386 = vmatmul.mubr.bf16.gmra.mxu0 %v5696
  %v6387 = vpop.f32.mrf.mxu0
  %v6388 = vadd.f32 %v5087, %v6387
  %v6389 = vpop.f32.mrf.mxu0
  %v6390 = vpop.f32.mrf.mxu0
  %v6391 = vadd.f32 %v5087, %v6390
  %v6392 = vpop.f32.mrf.mxu0
  %6393 = vmatprep.mubr.bf16.mxu0 %v5702
  %6394 = vmatmul.mubr.bf16.gmra.mxu0 %v5701
  %v6395 = vpop.f32.mrf.mxu0
  %v6396 = vadd.f32 %v5087, %v6395
  %v6397 = vpop.f32.mrf.mxu0
  %v6398 = vpop.f32.mrf.mxu0
  %v6399 = vadd.f32 %v5087, %v6398
  %v6400 = vpop.f32.mrf.mxu0
  %6401 = vmatprep.mubr.bf16.mxu0 %v5707
  %6402 = vmatmul.mubr.bf16.gmra.mxu0 %v5706
  %v6403 = vpop.f32.mrf.mxu0
  %v6404 = vadd.f32 %v5087, %v6403
  %v6405 = vpop.f32.mrf.mxu0
  %v6406 = vpop.f32.mrf.mxu0
  %v6407 = vadd.f32 %v5087, %v6406
  %v6408 = vpop.f32.mrf.mxu0
  %6409 = vmatprep.mubr.bf16.mxu0 %v5712
  %6410 = vmatmul.mubr.bf16.gmra.mxu0 %v5711
  %v6411 = vpop.f32.mrf.mxu0
  %v6412 = vadd.f32 %v5087, %v6411
  %v6413 = vpop.f32.mrf.mxu0
  %v6414 = vpop.f32.mrf.mxu0
  %v6415 = vadd.f32 %v5087, %v6414
  %v6416 = vpop.f32.mrf.mxu0
  %6417 = vmatprep.mubr.bf16.mxu0 %v5717
  %6418 = vmatmul.mubr.bf16.gmra.mxu0 %v5716
  %v6419 = vpop.f32.mrf.mxu0
  %v6420 = vadd.f32 %v5087, %v6419
  %v6421 = vpop.f32.mrf.mxu0
  %v6422 = vpop.f32.mrf.mxu0
  %v6423 = vadd.f32 %v5087, %v6422
  %v6424 = vpop.f32.mrf.mxu0
  %6425 = vmatprep.mubr.bf16.mxu0 %v5722
  %6426 = vmatmul.mubr.bf16.gmra.mxu0 %v5721
  %v6427 = vpop.f32.mrf.mxu0
  %v6428 = vadd.f32 %v5087, %v6427
  %v6429 = vpop.f32.mrf.mxu0
  %v6430 = vpop.f32.mrf.mxu0
  %v6431 = vadd.f32 %v5087, %v6430
  %v6432 = vpop.f32.mrf.mxu0
  %6433 = vmatprep.mubr.bf16.mxu0 %v5727
  %6434 = vmatmul.mubr.bf16.gmra.mxu0 %v5726
  %v6435 = vpop.f32.mrf.mxu0
  %v6436 = vadd.f32 %v5087, %v6435
  %v6437 = vpop.f32.mrf.mxu0
  %v6438 = vpop.f32.mrf.mxu0
  %v6439 = vadd.f32 %v5087, %v6438
  %v6440 = vpop.f32.mrf.mxu0
  %6441 = vmatprep.mubr.bf16.mxu0 %v5732
  %6442 = vmatmul.mubr.bf16.gmra.mxu0 %v5731
  %v6443 = vpop.f32.mrf.mxu0
  %v6444 = vadd.f32 %v5087, %v6443
  %v6445 = vpop.f32.mrf.mxu0
  %v6446 = vpop.f32.mrf.mxu0
  %v6447 = vadd.f32 %v5087, %v6446
  %v6448 = vpop.f32.mrf.mxu0
  %6449 = vmatprep.mubr.bf16.mxu0 %v5737
  %6450 = vmatmul.mubr.bf16.gmra.mxu0 %v5736
  %v6451 = vpop.f32.mrf.mxu0
  %v6452 = vadd.f32 %v5087, %v6451
  %v6453 = vpop.f32.mrf.mxu0
  %v6454 = vpop.f32.mrf.mxu0
  %v6455 = vadd.f32 %v5087, %v6454
  %v6456 = vpop.f32.mrf.mxu0
  %6457 = vmatprep.mubr.bf16.mxu0 %v5742
  %6458 = vmatmul.mubr.bf16.gmra.mxu0 %v5741
  %v6459 = vpop.f32.mrf.mxu0
  %v6460 = vadd.f32 %v5087, %v6459
  %v6461 = vpop.f32.mrf.mxu0
  %v6462 = vpop.f32.mrf.mxu0
  %v6463 = vadd.f32 %v5087, %v6462
  %v6464 = vpop.f32.mrf.mxu0
  %6465 = vmatprep.mubr.bf16.mxu0 %v5747
  %6466 = vmatmul.mubr.bf16.gmra.mxu0 %v5746
  %v6467 = vpop.f32.mrf.mxu0
  %v6468 = vadd.f32 %v5087, %v6467
  %v6469 = vpop.f32.mrf.mxu0
  %v6470 = vpop.f32.mrf.mxu0
  %v6471 = vadd.f32 %v5087, %v6470
  %v6472 = vpop.f32.mrf.mxu0
  %6473 = vmatprep.mubr.bf16.mxu0 %v5752
  %6474 = vmatmul.mubr.bf16.gmra.mxu0 %v5751
  %v6475 = vpop.f32.mrf.mxu0
  %v6476 = vadd.f32 %v5087, %v6475
  %v6477 = vpop.f32.mrf.mxu0
  %v6478 = vpop.f32.mrf.mxu0
  %v6479 = vadd.f32 %v5087, %v6478
  %v6480 = vpop.f32.mrf.mxu0
  %6481 = vmatprep.mubr.bf16.mxu0 %v5757
  %6482 = vmatmul.mubr.bf16.gmra.mxu0 %v5756
  %v6483 = vpop.f32.mrf.mxu0
  %v6484 = vadd.f32 %v5087, %v6483
  %v6485 = vpop.f32.mrf.mxu0
  %v6486 = vpop.f32.mrf.mxu0
  %v6487 = vadd.f32 %v5087, %v6486
  %v6488 = vpop.f32.mrf.mxu0
  %6489 = vdwg.mxu0
  %6490 = vmatprep.subr.bf16.mxu0 0
  %6491 = vmatpush1.bf16.msra.mxu0 %v6056
  %6492 = vmatprep.subr.bf16.mxu0 0
  %6493 = vmatpush1.bf16.msra.mxu0 %v6055
  %6494 = vmatprep.subr.bf16.mxu0 0
  %6495 = vmatpush1.bf16.msra.mxu0 %v6054
  %6496 = vmatprep.subr.bf16.mxu0 0
  %6497 = vmatpush1.bf16.msra.mxu0 %v6053
  %6498 = vmatprep.subr.bf16.mxu0 0
  %6499 = vmatpush1.bf16.msra.mxu0 %v6052
  %6500 = vmatprep.subr.bf16.mxu0 0
  %6501 = vmatpush1.bf16.msra.mxu0 %v6051
  %6502 = vmatprep.subr.bf16.mxu0 0
  %6503 = vmatpush1.bf16.msra.mxu0 %v6050
  %6504 = vmatprep.subr.bf16.mxu0 0
  %6505 = vmatpush1.bf16.msra.mxu0 %v6049
  %6506 = vmatprep.subr.bf16.mxu0 0
  %6507 = vmatpush2.bf16.msra.mxu0 %v6064
  %6508 = vmatprep.subr.bf16.mxu0 0
  %6509 = vmatpush2.bf16.msra.mxu0 %v6063
  %6510 = vmatprep.subr.bf16.mxu0 0
  %6511 = vmatpush2.bf16.msra.mxu0 %v6062
  %6512 = vmatprep.subr.bf16.mxu0 0
  %6513 = vmatpush2.bf16.msra.mxu0 %v6061
  %6514 = vmatprep.subr.bf16.mxu0 0
  %6515 = vmatpush2.bf16.msra.mxu0 %v6060
  %6516 = vmatprep.subr.bf16.mxu0 0
  %6517 = vmatpush2.bf16.msra.mxu0 %v6059
  %6518 = vmatprep.subr.bf16.mxu0 0
  %6519 = vmatpush2.bf16.msra.mxu0 %v6058
  %6520 = vmatprep.subr.bf16.mxu0 0
  %6521 = vmatpush2.bf16.msra.mxu0 %v6057
  %6522 = vmatprep.mubr.bf16.mxu0 %v5604
  %6523 = vmatmul.mubr.bf16.gmra.mxu0 %v5603
  %v6524 = vpop.f32.mrf.mxu0
  %v6525 = vadd.f32 %v6236, %v6524
  %v6526 = vpop.f32.mrf.mxu0
  %v6527 = vpop.f32.mrf.mxu0
  %v6528 = vadd.f32 %v6239, %v6527
  %v6529 = vpop.f32.mrf.mxu0
  %6530 = vmatprep.mubr.bf16.mxu0 %v5609
  %6531 = vmatmul.mubr.bf16.gmra.mxu0 %v5608
  %v6532 = vpop.f32.mrf.mxu0
  %v6533 = vadd.f32 %v6244, %v6532
  %v6534 = vpop.f32.mrf.mxu0
  %v6535 = vpop.f32.mrf.mxu0
  %v6536 = vadd.f32 %v6247, %v6535
  %v6537 = vpop.f32.mrf.mxu0
  %6538 = vmatprep.mubr.bf16.mxu0 %v5614
  %6539 = vmatmul.mubr.bf16.gmra.mxu0 %v5613
  %v6540 = vpop.f32.mrf.mxu0
  %v6541 = vadd.f32 %v6252, %v6540
  %v6542 = vpop.f32.mrf.mxu0
  %v6543 = vpop.f32.mrf.mxu0
  %v6544 = vadd.f32 %v6255, %v6543
  %v6545 = vpop.f32.mrf.mxu0
  %6546 = vmatprep.mubr.bf16.mxu0 %v5619
  %6547 = vmatmul.mubr.bf16.gmra.mxu0 %v5618
  %v6548 = vpop.f32.mrf.mxu0
  %v6549 = vadd.f32 %v6260, %v6548
  %v6550 = vpop.f32.mrf.mxu0
  %v6551 = vpop.f32.mrf.mxu0
  %v6552 = vadd.f32 %v6263, %v6551
  %v6553 = vpop.f32.mrf.mxu0
  %6554 = vmatprep.mubr.bf16.mxu0 %v5624
  %6555 = vmatmul.mubr.bf16.gmra.mxu0 %v5623
  %v6556 = vpop.f32.mrf.mxu0
  %v6557 = vadd.f32 %v6268, %v6556
  %v6558 = vpop.f32.mrf.mxu0
  %v6559 = vpop.f32.mrf.mxu0
  %v6560 = vadd.f32 %v6271, %v6559
  %v6561 = vpop.f32.mrf.mxu0
  %6562 = vmatprep.mubr.bf16.mxu0 %v5629
  %6563 = vmatmul.mubr.bf16.gmra.mxu0 %v5628
  %v6564 = vpop.f32.mrf.mxu0
  %v6565 = vadd.f32 %v6276, %v6564
  %v6566 = vpop.f32.mrf.mxu0
  %v6567 = vpop.f32.mrf.mxu0
  %v6568 = vadd.f32 %v6279, %v6567
  %v6569 = vpop.f32.mrf.mxu0
  %6570 = vmatprep.mubr.bf16.mxu0 %v5634
  %6571 = vmatmul.mubr.bf16.gmra.mxu0 %v5633
  %v6572 = vpop.f32.mrf.mxu0
  %v6573 = vadd.f32 %v6284, %v6572
  %v6574 = vpop.f32.mrf.mxu0
  %v6575 = vpop.f32.mrf.mxu0
  %v6576 = vadd.f32 %v6287, %v6575
  %v6577 = vpop.f32.mrf.mxu0
  %6578 = vmatprep.mubr.bf16.mxu0 %v5639
  %6579 = vmatmul.mubr.bf16.gmra.mxu0 %v5638
  %v6580 = vpop.f32.mrf.mxu0
  %v6581 = vadd.f32 %v6292, %v6580
  %v6582 = vpop.f32.mrf.mxu0
  %v6583 = vpop.f32.mrf.mxu0
  %v6584 = vadd.f32 %v6295, %v6583
  %v6585 = vpop.f32.mrf.mxu0
  %6586 = vmatprep.mubr.bf16.mxu0 %v5644
  %6587 = vmatmul.mubr.bf16.gmra.mxu0 %v5643
  %v6588 = vpop.f32.mrf.mxu0
  %v6589 = vadd.f32 %v6300, %v6588
  %v6590 = vpop.f32.mrf.mxu0
  %v6591 = vpop.f32.mrf.mxu0
  %v6592 = vadd.f32 %v6303, %v6591
  %v6593 = vpop.f32.mrf.mxu0
  %6594 = vmatprep.mubr.bf16.mxu0 %v5649
  %6595 = vmatmul.mubr.bf16.gmra.mxu0 %v5648
  %v6596 = vpop.f32.mrf.mxu0
  %v6597 = vadd.f32 %v6308, %v6596
  %v6598 = vpop.f32.mrf.mxu0
  %v6599 = vpop.f32.mrf.mxu0
  %v6600 = vadd.f32 %v6311, %v6599
  %v6601 = vpop.f32.mrf.mxu0
  %6602 = vmatprep.mubr.bf16.mxu0 %v5654
  %6603 = vmatmul.mubr.bf16.gmra.mxu0 %v5653
  %v6604 = vpop.f32.mrf.mxu0
  %v6605 = vadd.f32 %v6316, %v6604
  %v6606 = vpop.f32.mrf.mxu0
  %v6607 = vpop.f32.mrf.mxu0
  %v6608 = vadd.f32 %v6319, %v6607
  %v6609 = vpop.f32.mrf.mxu0
  %6610 = vmatprep.mubr.bf16.mxu0 %v5659
  %6611 = vmatmul.mubr.bf16.gmra.mxu0 %v5658
  %v6612 = vpop.f32.mrf.mxu0
  %v6613 = vadd.f32 %v6324, %v6612
  %v6614 = vpop.f32.mrf.mxu0
  %v6615 = vpop.f32.mrf.mxu0
  %v6616 = vadd.f32 %v6327, %v6615
  %v6617 = vpop.f32.mrf.mxu0
  %6618 = vmatprep.mubr.bf16.mxu0 %v5664
  %6619 = vmatmul.mubr.bf16.gmra.mxu0 %v5663
  %v6620 = vpop.f32.mrf.mxu0
  %v6621 = vadd.f32 %v6332, %v6620
  %v6622 = vpop.f32.mrf.mxu0
  %v6623 = vpop.f32.mrf.mxu0
  %v6624 = vadd.f32 %v6335, %v6623
  %v6625 = vpop.f32.mrf.mxu0
  %6626 = vmatprep.mubr.bf16.mxu0 %v5669
  %6627 = vmatmul.mubr.bf16.gmra.mxu0 %v5668
  %v6628 = vpop.f32.mrf.mxu0
  %v6629 = vadd.f32 %v6340, %v6628
  %v6630 = vpop.f32.mrf.mxu0
  %v6631 = vpop.f32.mrf.mxu0
  %v6632 = vadd.f32 %v6343, %v6631
  %v6633 = vpop.f32.mrf.mxu0
  %6634 = vmatprep.mubr.bf16.mxu0 %v5674
  %6635 = vmatmul.mubr.bf16.gmra.mxu0 %v5673
  %v6636 = vpop.f32.mrf.mxu0
  %v6637 = vadd.f32 %v6348, %v6636
  %v6638 = vpop.f32.mrf.mxu0
  %v6639 = vpop.f32.mrf.mxu0
  %v6640 = vadd.f32 %v6351, %v6639
  %v6641 = vpop.f32.mrf.mxu0
  %6642 = vmatprep.mubr.bf16.mxu0 %v5679
  %6643 = vmatmul.mubr.bf16.gmra.mxu0 %v5678
  %v6644 = vpop.f32.mrf.mxu0
  %v6645 = vadd.f32 %v6356, %v6644
  %v6646 = vpop.f32.mrf.mxu0
  %v6647 = vpop.f32.mrf.mxu0
  %v6648 = vadd.f32 %v6359, %v6647
  %v6649 = vpop.f32.mrf.mxu0
  %6650 = vmatprep.mubr.bf16.mxu0 %v5684
  %6651 = vmatmul.mubr.bf16.gmra.mxu0 %v5683
  %v6652 = vpop.f32.mrf.mxu0
  %v6653 = vadd.f32 %v6364, %v6652
  %v6654 = vpop.f32.mrf.mxu0
  %v6655 = vpop.f32.mrf.mxu0
  %v6656 = vadd.f32 %v6367, %v6655
  %v6657 = vpop.f32.mrf.mxu0
  %6658 = vmatprep.mubr.bf16.mxu0 %v5689
  %6659 = vmatmul.mubr.bf16.gmra.mxu0 %v5688
  %v6660 = vpop.f32.mrf.mxu0
  %v6661 = vadd.f32 %v6372, %v6660
  %v6662 = vpop.f32.mrf.mxu0
  %v6663 = vpop.f32.mrf.mxu0
  %v6664 = vadd.f32 %v6375, %v6663
  %v6665 = vpop.f32.mrf.mxu0
  %6666 = vmatprep.mubr.bf16.mxu0 %v5694
  %6667 = vmatmul.mubr.bf16.gmra.mxu0 %v5693
  %v6668 = vpop.f32.mrf.mxu0
  %v6669 = vadd.f32 %v6380, %v6668
  %v6670 = vpop.f32.mrf.mxu0
  %v6671 = vpop.f32.mrf.mxu0
  %v6672 = vadd.f32 %v6383, %v6671
  %v6673 = vpop.f32.mrf.mxu0
  %6674 = vmatprep.mubr.bf16.mxu0 %v5699
  %6675 = vmatmul.mubr.bf16.gmra.mxu0 %v5698
  %v6676 = vpop.f32.mrf.mxu0
  %v6677 = vadd.f32 %v6388, %v6676
  %v6678 = vpop.f32.mrf.mxu0
  %v6679 = vpop.f32.mrf.mxu0
  %v6680 = vadd.f32 %v6391, %v6679
  %v6681 = vpop.f32.mrf.mxu0
  %6682 = vmatprep.mubr.bf16.mxu0 %v5704
  %6683 = vmatmul.mubr.bf16.gmra.mxu0 %v5703
  %v6684 = vpop.f32.mrf.mxu0
  %v6685 = vadd.f32 %v6396, %v6684
  %v6686 = vpop.f32.mrf.mxu0
  %v6687 = vpop.f32.mrf.mxu0
  %v6688 = vadd.f32 %v6399, %v6687
  %v6689 = vpop.f32.mrf.mxu0
  %6690 = vmatprep.mubr.bf16.mxu0 %v5709
  %6691 = vmatmul.mubr.bf16.gmra.mxu0 %v5708
  %v6692 = vpop.f32.mrf.mxu0
  %v6693 = vadd.f32 %v6404, %v6692
  %v6694 = vpop.f32.mrf.mxu0
  %v6695 = vpop.f32.mrf.mxu0
  %v6696 = vadd.f32 %v6407, %v6695
  %v6697 = vpop.f32.mrf.mxu0
  %6698 = vmatprep.mubr.bf16.mxu0 %v5714
  %6699 = vmatmul.mubr.bf16.gmra.mxu0 %v5713
  %v6700 = vpop.f32.mrf.mxu0
  %v6701 = vadd.f32 %v6412, %v6700
  %v6702 = vpop.f32.mrf.mxu0
  %v6703 = vpop.f32.mrf.mxu0
  %v6704 = vadd.f32 %v6415, %v6703
  %v6705 = vpop.f32.mrf.mxu0
  %6706 = vmatprep.mubr.bf16.mxu0 %v5719
  %6707 = vmatmul.mubr.bf16.gmra.mxu0 %v5718
  %v6708 = vpop.f32.mrf.mxu0
  %v6709 = vadd.f32 %v6420, %v6708
  %v6710 = vpop.f32.mrf.mxu0
  %v6711 = vpop.f32.mrf.mxu0
  %v6712 = vadd.f32 %v6423, %v6711
  %v6713 = vpop.f32.mrf.mxu0
  %6714 = vmatprep.mubr.bf16.mxu0 %v5724
  %6715 = vmatmul.mubr.bf16.gmra.mxu0 %v5723
  %v6716 = vpop.f32.mrf.mxu0
  %v6717 = vadd.f32 %v6428, %v6716
  %v6718 = vpop.f32.mrf.mxu0
  %v6719 = vpop.f32.mrf.mxu0
  %v6720 = vadd.f32 %v6431, %v6719
  %v6721 = vpop.f32.mrf.mxu0
  %6722 = vmatprep.mubr.bf16.mxu0 %v5729
  %6723 = vmatmul.mubr.bf16.gmra.mxu0 %v5728
  %v6724 = vpop.f32.mrf.mxu0
  %v6725 = vadd.f32 %v6436, %v6724
  %v6726 = vpop.f32.mrf.mxu0
  %v6727 = vpop.f32.mrf.mxu0
  %v6728 = vadd.f32 %v6439, %v6727
  %v6729 = vpop.f32.mrf.mxu0
  %6730 = vmatprep.mubr.bf16.mxu0 %v5734
  %6731 = vmatmul.mubr.bf16.gmra.mxu0 %v5733
  %v6732 = vpop.f32.mrf.mxu0
  %v6733 = vadd.f32 %v6444, %v6732
  %v6734 = vpop.f32.mrf.mxu0
  %v6735 = vpop.f32.mrf.mxu0
  %v6736 = vadd.f32 %v6447, %v6735
  %v6737 = vpop.f32.mrf.mxu0
  %6738 = vmatprep.mubr.bf16.mxu0 %v5739
  %6739 = vmatmul.mubr.bf16.gmra.mxu0 %v5738
  %v6740 = vpop.f32.mrf.mxu0
  %v6741 = vadd.f32 %v6452, %v6740
  %v6742 = vpop.f32.mrf.mxu0
  %v6743 = vpop.f32.mrf.mxu0
  %v6744 = vadd.f32 %v6455, %v6743
  %v6745 = vpop.f32.mrf.mxu0
  %6746 = vmatprep.mubr.bf16.mxu0 %v5744
  %6747 = vmatmul.mubr.bf16.gmra.mxu0 %v5743
  %v6748 = vpop.f32.mrf.mxu0
  %v6749 = vadd.f32 %v6460, %v6748
  %v6750 = vpop.f32.mrf.mxu0
  %v6751 = vpop.f32.mrf.mxu0
  %v6752 = vadd.f32 %v6463, %v6751
  %v6753 = vpop.f32.mrf.mxu0
  %6754 = vmatprep.mubr.bf16.mxu0 %v5749
  %6755 = vmatmul.mubr.bf16.gmra.mxu0 %v5748
  %v6756 = vpop.f32.mrf.mxu0
  %v6757 = vadd.f32 %v6468, %v6756
  %v6758 = vpop.f32.mrf.mxu0
  %v6759 = vpop.f32.mrf.mxu0
  %v6760 = vadd.f32 %v6471, %v6759
  %v6761 = vpop.f32.mrf.mxu0
  %6762 = vmatprep.mubr.bf16.mxu0 %v5754
  %6763 = vmatmul.mubr.bf16.gmra.mxu0 %v5753
  %v6764 = vpop.f32.mrf.mxu0
  %v6765 = vadd.f32 %v6476, %v6764
  %v6766 = vpop.f32.mrf.mxu0
  %v6767 = vpop.f32.mrf.mxu0
  %v6768 = vadd.f32 %v6479, %v6767
  %v6769 = vpop.f32.mrf.mxu0
  %6770 = vmatprep.mubr.bf16.mxu0 %v5759
  %6771 = vmatmul.mubr.bf16.gmra.mxu0 %v5758
  %v6772 = vpop.f32.mrf.mxu0
  %v6773 = vadd.f32 %v6484, %v6772
  %v6774 = vpop.f32.mrf.mxu0
  %v6775 = vpop.f32.mrf.mxu0
  %v6776 = vadd.f32 %v6487, %v6775
  %v6777 = vpop.f32.mrf.mxu0
  %6778 = vdwg.mxu0
  %6779 = vmatprep.subr.bf16.mxu0 0
  %6780 = vmatpush1.bf16.msra.mxu0 0
  %6781 = vmatprep.subr.bf16.mxu0 0
  %6782 = vmatpush1.bf16.msra.mxu0 0
  %6783 = vmatprep.subr.bf16.mxu0 0
  %6784 = vmatpush1.bf16.msra.mxu0 0
  %6785 = vmatprep.subr.bf16.mxu0 0
  %6786 = vmatpush1.bf16.msra.mxu0 0
  %6787 = vmatprep.subr.bf16.mxu0 0
  %6788 = vmatpush1.bf16.msra.mxu0 %v6068
  %6789 = vmatprep.subr.bf16.mxu0 0
  %6790 = vmatpush1.bf16.msra.mxu0 %v6067
  %6791 = vmatprep.subr.bf16.mxu0 0
  %6792 = vmatpush1.bf16.msra.mxu0 %v6066
  %6793 = vmatprep.subr.bf16.mxu0 0
  %6794 = vmatpush1.bf16.msra.mxu0 %v6065
  %6795 = vmatprep.subr.bf16.mxu0 0
  %6796 = vmatpush2.bf16.msra.mxu0 0
  %6797 = vmatprep.subr.bf16.mxu0 0
  %6798 = vmatpush2.bf16.msra.mxu0 0
  %6799 = vmatprep.subr.bf16.mxu0 0
  %6800 = vmatpush2.bf16.msra.mxu0 0
  %6801 = vmatprep.subr.bf16.mxu0 0
  %6802 = vmatpush2.bf16.msra.mxu0 0
  %6803 = vmatprep.subr.bf16.mxu0 0
  %6804 = vmatpush2.bf16.msra.mxu0 0
  %6805 = vmatprep.subr.bf16.mxu0 0
  %6806 = vmatpush2.bf16.msra.mxu0 0
  %6807 = vmatprep.subr.bf16.mxu0 0
  %6808 = vmatpush2.bf16.msra.mxu0 0
  %6809 = vmatprep.subr.bf16.mxu0 0
  %6810 = vmatpush2.bf16.msra.mxu0 0
  %6811 = vmatprep.mubr.bf16.mxu0 0
  %6812 = vmatmul.mubr.bf16.gmra.mxu0 %v6106
  %v6813 = vpop.f32.mrf.mxu0
  %v6814 = vadd.f32 %v6525, %v6813
  %v6815 = vpop.f32.mrf.mxu0
  %v6816 = vpop.f32.mrf.mxu0
  %v6817 = vadd.f32 %v6528, %v6816
  %v6818 = vpop.f32.mrf.mxu0
  %6819 = vmatprep.mubr.bf16.mxu0 0
  %6820 = vmatmul.mubr.bf16.gmra.mxu0 %v6109
  %v6821 = vpop.f32.mrf.mxu0
  %v6822 = vadd.f32 %v6533, %v6821
  %v6823 = vpop.f32.mrf.mxu0
  %v6824 = vpop.f32.mrf.mxu0
  %v6825 = vadd.f32 %v6536, %v6824
  %v6826 = vpop.f32.mrf.mxu0
  %6827 = vmatprep.mubr.bf16.mxu0 0
  %6828 = vmatmul.mubr.bf16.gmra.mxu0 %v6112
  %v6829 = vpop.f32.mrf.mxu0
  %v6830 = vadd.f32 %v6541, %v6829
  %v6831 = vpop.f32.mrf.mxu0
  %v6832 = vpop.f32.mrf.mxu0
  %v6833 = vadd.f32 %v6544, %v6832
  %v6834 = vpop.f32.mrf.mxu0
  %6835 = vmatprep.mubr.bf16.mxu0 0
  %6836 = vmatmul.mubr.bf16.gmra.mxu0 %v6115
  %v6837 = vpop.f32.mrf.mxu0
  %v6838 = vadd.f32 %v6549, %v6837
  %v6839 = vpop.f32.mrf.mxu0
  %v6840 = vpop.f32.mrf.mxu0
  %v6841 = vadd.f32 %v6552, %v6840
  %v6842 = vpop.f32.mrf.mxu0
  %6843 = vmatprep.mubr.bf16.mxu0 0
  %6844 = vmatmul.mubr.bf16.gmra.mxu0 %v6118
  %v6845 = vpop.f32.mrf.mxu0
  %v6846 = vadd.f32 %v6557, %v6845
  %v6847 = vpop.f32.mrf.mxu0
  %v6848 = vpop.f32.mrf.mxu0
  %v6849 = vadd.f32 %v6560, %v6848
  %v6850 = vpop.f32.mrf.mxu0
  %6851 = vmatprep.mubr.bf16.mxu0 0
  %6852 = vmatmul.mubr.bf16.gmra.mxu0 %v6121
  %v6853 = vpop.f32.mrf.mxu0
  %v6854 = vadd.f32 %v6565, %v6853
  %v6855 = vpop.f32.mrf.mxu0
  %v6856 = vpop.f32.mrf.mxu0
  %v6857 = vadd.f32 %v6568, %v6856
  %v6858 = vpop.f32.mrf.mxu0
  %6859 = vmatprep.mubr.bf16.mxu0 0
  %6860 = vmatmul.mubr.bf16.gmra.mxu0 %v6124
  %v6861 = vpop.f32.mrf.mxu0
  %v6862 = vadd.f32 %v6573, %v6861
  %v6863 = vpop.f32.mrf.mxu0
  %v6864 = vpop.f32.mrf.mxu0
  %v6865 = vadd.f32 %v6576, %v6864
  %v6866 = vpop.f32.mrf.mxu0
  %6867 = vmatprep.mubr.bf16.mxu0 0
  %6868 = vmatmul.mubr.bf16.gmra.mxu0 %v6127
  %v6869 = vpop.f32.mrf.mxu0
  %v6870 = vadd.f32 %v6581, %v6869
  %v6871 = vpop.f32.mrf.mxu0
  %v6872 = vpop.f32.mrf.mxu0
  %v6873 = vadd.f32 %v6584, %v6872
  %v6874 = vpop.f32.mrf.mxu0
  %6875 = vmatprep.mubr.bf16.mxu0 0
  %6876 = vmatmul.mubr.bf16.gmra.mxu0 %v6130
  %v6877 = vpop.f32.mrf.mxu0
  %v6878 = vadd.f32 %v6589, %v6877
  %v6879 = vpop.f32.mrf.mxu0
  %v6880 = vpop.f32.mrf.mxu0
  %v6881 = vadd.f32 %v6592, %v6880
  %v6882 = vpop.f32.mrf.mxu0
  %6883 = vmatprep.mubr.bf16.mxu0 0
  %6884 = vmatmul.mubr.bf16.gmra.mxu0 %v6133
  %v6885 = vpop.f32.mrf.mxu0
  %v6886 = vadd.f32 %v6597, %v6885
  %v6887 = vpop.f32.mrf.mxu0
  %v6888 = vpop.f32.mrf.mxu0
  %v6889 = vadd.f32 %v6600, %v6888
  %v6890 = vpop.f32.mrf.mxu0
  %6891 = vmatprep.mubr.bf16.mxu0 0
  %6892 = vmatmul.mubr.bf16.gmra.mxu0 %v6136
  %v6893 = vpop.f32.mrf.mxu0
  %v6894 = vadd.f32 %v6605, %v6893
  %v6895 = vpop.f32.mrf.mxu0
  %v6896 = vpop.f32.mrf.mxu0
  %v6897 = vadd.f32 %v6608, %v6896
  %v6898 = vpop.f32.mrf.mxu0
  %6899 = vmatprep.mubr.bf16.mxu0 0
  %6900 = vmatmul.mubr.bf16.gmra.mxu0 %v6139
  %v6901 = vpop.f32.mrf.mxu0
  %v6902 = vadd.f32 %v6613, %v6901
  %v6903 = vpop.f32.mrf.mxu0
  %v6904 = vpop.f32.mrf.mxu0
  %v6905 = vadd.f32 %v6616, %v6904
  %v6906 = vpop.f32.mrf.mxu0
  %6907 = vmatprep.mubr.bf16.mxu0 0
  %6908 = vmatmul.mubr.bf16.gmra.mxu0 %v6142
  %v6909 = vpop.f32.mrf.mxu0
  %v6910 = vadd.f32 %v6621, %v6909
  %v6911 = vpop.f32.mrf.mxu0
  %v6912 = vpop.f32.mrf.mxu0
  %v6913 = vadd.f32 %v6624, %v6912
  %v6914 = vpop.f32.mrf.mxu0
  %6915 = vmatprep.mubr.bf16.mxu0 0
  %6916 = vmatmul.mubr.bf16.gmra.mxu0 %v6145
  %v6917 = vpop.f32.mrf.mxu0
  %v6918 = vadd.f32 %v6629, %v6917
  %v6919 = vpop.f32.mrf.mxu0
  %v6920 = vpop.f32.mrf.mxu0
  %v6921 = vadd.f32 %v6632, %v6920
  %v6922 = vpop.f32.mrf.mxu0
  %6923 = vmatprep.mubr.bf16.mxu0 0
  %6924 = vmatmul.mubr.bf16.gmra.mxu0 %v6148
  %v6925 = vpop.f32.mrf.mxu0
  %v6926 = vadd.f32 %v6637, %v6925
  %v6927 = vpop.f32.mrf.mxu0
  %v6928 = vpop.f32.mrf.mxu0
  %v6929 = vadd.f32 %v6640, %v6928
  %v6930 = vpop.f32.mrf.mxu0
  %6931 = vmatprep.mubr.bf16.mxu0 0
  %6932 = vmatmul.mubr.bf16.gmra.mxu0 %v6151
  %v6933 = vpop.f32.mrf.mxu0
  %v6934 = vadd.f32 %v6645, %v6933
  %v6935 = vpop.f32.mrf.mxu0
  %v6936 = vpop.f32.mrf.mxu0
  %v6937 = vadd.f32 %v6648, %v6936
  %v6938 = vpop.f32.mrf.mxu0
  %6939 = vmatprep.mubr.bf16.mxu0 0
  %6940 = vmatmul.mubr.bf16.gmra.mxu0 %v6154
  %v6941 = vpop.f32.mrf.mxu0
  %v6942 = vadd.f32 %v6653, %v6941
  %v6943 = vpop.f32.mrf.mxu0
  %v6944 = vpop.f32.mrf.mxu0
  %v6945 = vadd.f32 %v6656, %v6944
  %v6946 = vpop.f32.mrf.mxu0
  %6947 = vmatprep.mubr.bf16.mxu0 0
  %6948 = vmatmul.mubr.bf16.gmra.mxu0 %v6157
  %v6949 = vpop.f32.mrf.mxu0
  %v6950 = vadd.f32 %v6661, %v6949
  %v6951 = vpop.f32.mrf.mxu0
  %v6952 = vpop.f32.mrf.mxu0
  %v6953 = vadd.f32 %v6664, %v6952
  %v6954 = vpop.f32.mrf.mxu0
  %6955 = vmatprep.mubr.bf16.mxu0 0
  %6956 = vmatmul.mubr.bf16.gmra.mxu0 %v6160
  %v6957 = vpop.f32.mrf.mxu0
  %v6958 = vadd.f32 %v6669, %v6957
  %v6959 = vpop.f32.mrf.mxu0
  %v6960 = vpop.f32.mrf.mxu0
  %v6961 = vadd.f32 %v6672, %v6960
  %v6962 = vpop.f32.mrf.mxu0
  %6963 = vmatprep.mubr.bf16.mxu0 0
  %6964 = vmatmul.mubr.bf16.gmra.mxu0 %v6163
  %v6965 = vpop.f32.mrf.mxu0
  %v6966 = vadd.f32 %v6677, %v6965
  %v6967 = vpop.f32.mrf.mxu0
  %v6968 = vpop.f32.mrf.mxu0
  %v6969 = vadd.f32 %v6680, %v6968
  %v6970 = vpop.f32.mrf.mxu0
  %6971 = vmatprep.mubr.bf16.mxu0 0
  %6972 = vmatmul.mubr.bf16.gmra.mxu0 %v6166
  %v6973 = vpop.f32.mrf.mxu0
  %v6974 = vadd.f32 %v6685, %v6973
  %v6975 = vpop.f32.mrf.mxu0
  %v6976 = vpop.f32.mrf.mxu0
  %v6977 = vadd.f32 %v6688, %v6976
  %v6978 = vpop.f32.mrf.mxu0
  %6979 = vmatprep.mubr.bf16.mxu0 0
  %6980 = vmatmul.mubr.bf16.gmra.mxu0 %v6169
  %v6981 = vpop.f32.mrf.mxu0
  %v6982 = vadd.f32 %v6693, %v6981
  %v6983 = vpop.f32.mrf.mxu0
  %v6984 = vpop.f32.mrf.mxu0
  %v6985 = vadd.f32 %v6696, %v6984
  %v6986 = vpop.f32.mrf.mxu0
  %6987 = vmatprep.mubr.bf16.mxu0 0
  %6988 = vmatmul.mubr.bf16.gmra.mxu0 %v6172
  %v6989 = vpop.f32.mrf.mxu0
  %v6990 = vadd.f32 %v6701, %v6989
  %v6991 = vpop.f32.mrf.mxu0
  %v6992 = vpop.f32.mrf.mxu0
  %v6993 = vadd.f32 %v6704, %v6992
  %v6994 = vpop.f32.mrf.mxu0
  %6995 = vmatprep.mubr.bf16.mxu0 0
  %6996 = vmatmul.mubr.bf16.gmra.mxu0 %v6175
  %v6997 = vpop.f32.mrf.mxu0
  %v6998 = vadd.f32 %v6709, %v6997
  %v6999 = vpop.f32.mrf.mxu0
  %v7000 = vpop.f32.mrf.mxu0
  %v7001 = vadd.f32 %v6712, %v7000
  %v7002 = vpop.f32.mrf.mxu0
  %7003 = vmatprep.mubr.bf16.mxu0 0
  %7004 = vmatmul.mubr.bf16.gmra.mxu0 %v6178
  %v7005 = vpop.f32.mrf.mxu0
  %v7006 = vadd.f32 %v6717, %v7005
  %v7007 = vpop.f32.mrf.mxu0
  %v7008 = vpop.f32.mrf.mxu0
  %v7009 = vadd.f32 %v6720, %v7008
  %v7010 = vpop.f32.mrf.mxu0
  %7011 = vmatprep.mubr.bf16.mxu0 0
  %7012 = vmatmul.mubr.bf16.gmra.mxu0 %v6181
  %v7013 = vpop.f32.mrf.mxu0
  %v7014 = vadd.f32 %v6725, %v7013
  %v7015 = vpop.f32.mrf.mxu0
  %v7016 = vpop.f32.mrf.mxu0
  %v7017 = vadd.f32 %v6728, %v7016
  %v7018 = vpop.f32.mrf.mxu0
  %7019 = vmatprep.mubr.bf16.mxu0 0
  %7020 = vmatmul.mubr.bf16.gmra.mxu0 %v6184
  %v7021 = vpop.f32.mrf.mxu0
  %v7022 = vadd.f32 %v6733, %v7021
  %v7023 = vpop.f32.mrf.mxu0
  %v7024 = vpop.f32.mrf.mxu0
  %v7025 = vadd.f32 %v6736, %v7024
  %v7026 = vpop.f32.mrf.mxu0
  %7027 = vmatprep.mubr.bf16.mxu0 0
  %7028 = vmatmul.mubr.bf16.gmra.mxu0 %v6187
  %v7029 = vpop.f32.mrf.mxu0
  %v7030 = vadd.f32 %v6741, %v7029
  %v7031 = vpop.f32.mrf.mxu0
  %v7032 = vpop.f32.mrf.mxu0
  %v7033 = vadd.f32 %v6744, %v7032
  %v7034 = vpop.f32.mrf.mxu0
  %7035 = vmatprep.mubr.bf16.mxu0 0
  %7036 = vmatmul.mubr.bf16.gmra.mxu0 %v6190
  %v7037 = vpop.f32.mrf.mxu0
  %v7038 = vadd.f32 %v6749, %v7037
  %v7039 = vpop.f32.mrf.mxu0
  %v7040 = vpop.f32.mrf.mxu0
  %v7041 = vadd.f32 %v6752, %v7040
  %v7042 = vpop.f32.mrf.mxu0
  %7043 = vmatprep.mubr.bf16.mxu0 0
  %7044 = vmatmul.mubr.bf16.gmra.mxu0 %v6193
  %v7045 = vpop.f32.mrf.mxu0
  %v7046 = vadd.f32 %v6757, %v7045
  %v7047 = vpop.f32.mrf.mxu0
  %v7048 = vpop.f32.mrf.mxu0
  %v7049 = vadd.f32 %v6760, %v7048
  %v7050 = vpop.f32.mrf.mxu0
  %7051 = vmatprep.mubr.bf16.mxu0 0
  %7052 = vmatmul.mubr.bf16.gmra.mxu0 %v6196
  %v7053 = vpop.f32.mrf.mxu0
  %v7054 = vadd.f32 %v6765, %v7053
  %v7055 = vpop.f32.mrf.mxu0
  %v7056 = vpop.f32.mrf.mxu0
  %v7057 = vadd.f32 %v6768, %v7056
  %v7058 = vpop.f32.mrf.mxu0
  %7059 = vmatprep.mubr.bf16.mxu0 0
  %7060 = vmatmul.mubr.bf16.gmra.mxu0 %v6199
  %v7061 = vpop.f32.mrf.mxu0
  %v7062 = vadd.f32 %v6773, %v7061
  %v7063 = vpop.f32.mrf.mxu0
  %v7064 = vpop.f32.mrf.mxu0
  %v7065 = vadd.f32 %v6776, %v7064
  %v7066 = vpop.f32.mrf.mxu0
  %7067 = vdwg.mxu0
  %v7068 = vsel %vm672, %v6814, 0.0
  %v7069 = vsel %vm672, %v6817, 0.0
  %v7070 = vadd.f32 %v7068, %v7069
  %v7071 = vsel %vm672, %v6822, 0.0
  %v7072 = vadd.f32 %v7070, %v7071
  %v7073 = vsel %vm672, %v6825, 0.0
  %v7074 = vadd.f32 %v7072, %v7073
  %v7075 = vsel %vm672, %v6830, 0.0
  %v7076 = vadd.f32 %v7074, %v7075
  %v7077 = vsel %vm672, %v6833, 0.0
  %v7078 = vadd.f32 %v7076, %v7077
  %v7079 = vsel %vm672, %v6838, 0.0
  %v7080 = vadd.f32 %v7078, %v7079
  %v7081 = vsel %vm672, %v6841, 0.0
  %v7082 = vadd.f32 %v7080, %v7081
  %v7083 = vsel %vm672, %v6846, 0.0
  %v7084 = vadd.f32 %v7082, %v7083
  %v7085 = vsel %vm672, %v6849, 0.0
  %v7086 = vadd.f32 %v7084, %v7085
  %v7087 = vsel %vm672, %v6854, 0.0
  %v7088 = vadd.f32 %v7086, %v7087
  %v7089 = vsel %vm672, %v6857, 0.0
  %v7090 = vadd.f32 %v7088, %v7089
  %v7091 = vsel %vm672, %v6862, 0.0
  %v7092 = vadd.f32 %v7090, %v7091
  %v7093 = vsel %vm672, %v6865, 0.0
  %v7094 = vadd.f32 %v7092, %v7093
  %v7095 = vsel %vm672, %v6870, 0.0
  %v7096 = vadd.f32 %v7094, %v7095
  %v7097 = vsel %vm672, %v6873, 0.0
  %v7098 = vadd.f32 %v7096, %v7097
  %v7099 = vsel %vm672, %v6878, 0.0
  %v7100 = vadd.f32 %v7098, %v7099
  %v7101 = vsel %vm672, %v6881, 0.0
  %v7102 = vadd.f32 %v7100, %v7101
  %v7103 = vsel %vm672, %v6886, 0.0
  %v7104 = vadd.f32 %v7102, %v7103
  %v7105 = vsel %vm672, %v6889, 0.0
  %v7106 = vadd.f32 %v7104, %v7105
  %v7107 = vsel %vm672, %v6894, 0.0
  %v7108 = vadd.f32 %v7106, %v7107
  %v7109 = vsel %vm672, %v6897, 0.0
  %v7110 = vadd.f32 %v7108, %v7109
  %v7111 = vsel %vm672, %v6902, 0.0
  %v7112 = vadd.f32 %v7110, %v7111
  %v7113 = vsel %vm672, %v6905, 0.0
  %v7114 = vadd.f32 %v7112, %v7113
  %v7115 = vsel %vm672, %v6910, 0.0
  %v7116 = vadd.f32 %v7114, %v7115
  %v7117 = vsel %vm672, %v6913, 0.0
  %v7118 = vadd.f32 %v7116, %v7117
  %v7119 = vsel %vm672, %v6918, 0.0
  %v7120 = vadd.f32 %v7118, %v7119
  %v7121 = vsel %vm672, %v6921, 0.0
  %v7122 = vadd.f32 %v7120, %v7121
  %v7123 = vsel %vm672, %v6926, 0.0
  %v7124 = vadd.f32 %v7122, %v7123
  %v7125 = vsel %vm672, %v6929, 0.0
  %v7126 = vadd.f32 %v7124, %v7125
  %v7127 = vsel %vm672, %v6934, 0.0
  %v7128 = vadd.f32 %v7126, %v7127
  %v7129 = vsel %vm672, %v6937, 0.0
  %v7130 = vadd.f32 %v7128, %v7129
  %v7131 = vsel %vm672, %v6942, 0.0
  %v7132 = vadd.f32 %v7130, %v7131
  %v7133 = vsel %vm672, %v6945, 0.0
  %v7134 = vadd.f32 %v7132, %v7133
  %v7135 = vsel %vm672, %v6950, 0.0
  %v7136 = vadd.f32 %v7134, %v7135
  %v7137 = vsel %vm672, %v6953, 0.0
  %v7138 = vadd.f32 %v7136, %v7137
  %v7139 = vsel %vm672, %v6958, 0.0
  %v7140 = vadd.f32 %v7138, %v7139
  %v7141 = vsel %vm672, %v6961, 0.0
  %v7142 = vadd.f32 %v7140, %v7141
  %v7143 = vsel %vm672, %v6966, 0.0
  %v7144 = vadd.f32 %v7142, %v7143
  %v7145 = vsel %vm672, %v6969, 0.0
  %v7146 = vadd.f32 %v7144, %v7145
  %v7147 = vsel %vm672, %v6974, 0.0
  %v7148 = vadd.f32 %v7146, %v7147
  %v7149 = vsel %vm672, %v6977, 0.0
  %v7150 = vadd.f32 %v7148, %v7149
  %v7151 = vsel %vm672, %v6982, 0.0
  %v7152 = vadd.f32 %v7150, %v7151
  %v7153 = vsel %vm672, %v6985, 0.0
  %v7154 = vadd.f32 %v7152, %v7153
  %v7155 = vsel %vm672, %v6990, 0.0
  %v7156 = vadd.f32 %v7154, %v7155
  %v7157 = vsel %vm672, %v6993, 0.0
  %v7158 = vadd.f32 %v7156, %v7157
  %v7159 = vsel %vm672, %v6998, 0.0
  %v7160 = vadd.f32 %v7158, %v7159
  %v7161 = vsel %vm672, %v7001, 0.0
  %v7162 = vadd.f32 %v7160, %v7161
  %v7163 = vsel %vm672, %v7006, 0.0
  %v7164 = vadd.f32 %v7162, %v7163
  %v7165 = vsel %vm672, %v7009, 0.0
  %v7166 = vadd.f32 %v7164, %v7165
  %v7167 = vsel %vm672, %v7014, 0.0
  %v7168 = vadd.f32 %v7166, %v7167
  %v7169 = vsel %vm672, %v7017, 0.0
  %v7170 = vadd.f32 %v7168, %v7169
  %v7171 = vsel %vm672, %v7022, 0.0
  %v7172 = vadd.f32 %v7170, %v7171
  %v7173 = vsel %vm672, %v7025, 0.0
  %v7174 = vadd.f32 %v7172, %v7173
  %v7175 = vsel %vm672, %v7030, 0.0
  %v7176 = vadd.f32 %v7174, %v7175
  %v7177 = vsel %vm672, %v7033, 0.0
  %v7178 = vadd.f32 %v7176, %v7177
  %v7179 = vsel %vm672, %v7038, 0.0
  %v7180 = vadd.f32 %v7178, %v7179
  %v7181 = vsel %vm672, %v7041, 0.0
  %v7182 = vadd.f32 %v7180, %v7181
  %v7183 = vsel %vm672, %v7046, 0.0
  %v7184 = vadd.f32 %v7182, %v7183
  %v7185 = vsel %vm672, %v7049, 0.0
  %v7186 = vadd.f32 %v7184, %v7185
  %v7187 = vsel %vm672, %v7054, 0.0
  %v7188 = vadd.f32 %v7186, %v7187
  %v7189 = vsel %vm672, %v7057, 0.0
  %v7190 = vadd.f32 %v7188, %v7189
  %v7191 = vsel %vm672, %v7062, 0.0
  %v7192 = vadd.f32 %v7190, %v7191
  %v7193 = vsel %vm672, %v7065, 0.0
  %v7194 = vadd.f32 %v7192, %v7193
  %v7195 = vrot.slane %v7194, 4
  %v7196 = vadd.f32 %v7194, %v7195
  %v7197 = vrot.slane %v7196, 2
  %v7198 = vadd.f32 %v7196, %v7197
  %v7199 = vrot.slane %v7198, 1
  %v7200 = vadd.f32 %v7198, %v7199
  %v7201 = vmul.f32 %v7200, 0.001953125
  %v7202 = vsub.f32 %v6814, %v7201
  %v7203 = vsub.f32 %v6817, %v7201
  %v7204 = vsub.f32 %v6822, %v7201
  %v7205 = vsub.f32 %v6825, %v7201
  %v7206 = vsub.f32 %v6830, %v7201
  %v7207 = vsub.f32 %v6833, %v7201
  %v7208 = vsub.f32 %v6838, %v7201
  %v7209 = vsub.f32 %v6841, %v7201
  %v7210 = vsub.f32 %v6846, %v7201
  %v7211 = vsub.f32 %v6849, %v7201
  %v7212 = vsub.f32 %v6854, %v7201
  %v7213 = vsub.f32 %v6857, %v7201
  %v7214 = vsub.f32 %v6862, %v7201
  %v7215 = vsub.f32 %v6865, %v7201
  %v7216 = vsub.f32 %v6870, %v7201
  %v7217 = vsub.f32 %v6873, %v7201
  %v7218 = vsub.f32 %v6878, %v7201
  %v7219 = vsub.f32 %v6881, %v7201
  %v7220 = vsub.f32 %v6886, %v7201
  %v7221 = vsub.f32 %v6889, %v7201
  %v7222 = vsub.f32 %v6894, %v7201
  %v7223 = vsub.f32 %v6897, %v7201
  %v7224 = vsub.f32 %v6902, %v7201
  %v7225 = vsub.f32 %v6905, %v7201
  %v7226 = vsub.f32 %v6910, %v7201
  %v7227 = vsub.f32 %v6913, %v7201
  %v7228 = vsub.f32 %v6918, %v7201
  %v7229 = vsub.f32 %v6921, %v7201
  %v7230 = vsub.f32 %v6926, %v7201
  %v7231 = vsub.f32 %v6929, %v7201
  %v7232 = vsub.f32 %v6934, %v7201
  %v7233 = vsub.f32 %v6937, %v7201
  %v7234 = vsub.f32 %v6942, %v7201
  %v7235 = vsub.f32 %v6945, %v7201
  %v7236 = vsub.f32 %v6950, %v7201
  %v7237 = vsub.f32 %v6953, %v7201
  %v7238 = vsub.f32 %v6958, %v7201
  %v7239 = vsub.f32 %v6961, %v7201
  %v7240 = vsub.f32 %v6966, %v7201
  %v7241 = vsub.f32 %v6969, %v7201
  %v7242 = vsub.f32 %v6974, %v7201
  %v7243 = vsub.f32 %v6977, %v7201
  %v7244 = vsub.f32 %v6982, %v7201
  %v7245 = vsub.f32 %v6985, %v7201
  %v7246 = vsub.f32 %v6990, %v7201
  %v7247 = vsub.f32 %v6993, %v7201
  %v7248 = vsub.f32 %v6998, %v7201
  %v7249 = vsub.f32 %v7001, %v7201
  %v7250 = vsub.f32 %v7006, %v7201
  %v7251 = vsub.f32 %v7009, %v7201
  %v7252 = vsub.f32 %v7014, %v7201
  %v7253 = vsub.f32 %v7017, %v7201
  %v7254 = vsub.f32 %v7022, %v7201
  %v7255 = vsub.f32 %v7025, %v7201
  %v7256 = vsub.f32 %v7030, %v7201
  %v7257 = vsub.f32 %v7033, %v7201
  %v7258 = vsub.f32 %v7038, %v7201
  %v7259 = vsub.f32 %v7041, %v7201
  %v7260 = vsub.f32 %v7046, %v7201
  %v7261 = vsub.f32 %v7049, %v7201
  %v7262 = vsub.f32 %v7054, %v7201
  %v7263 = vsub.f32 %v7057, %v7201
  %v7264 = vsub.f32 %v7062, %v7201
  %v7265 = vsub.f32 %v7065, %v7201
  %v7266 = vmul.f32 %v7202, %v7202
  %v7267 = vmul.f32 %v7203, %v7203
  %v7268 = vmul.f32 %v7204, %v7204
  %v7269 = vmul.f32 %v7205, %v7205
  %v7270 = vmul.f32 %v7206, %v7206
  %v7271 = vmul.f32 %v7207, %v7207
  %v7272 = vmul.f32 %v7208, %v7208
  %v7273 = vmul.f32 %v7209, %v7209
  %v7274 = vmul.f32 %v7210, %v7210
  %v7275 = vmul.f32 %v7211, %v7211
  %v7276 = vmul.f32 %v7212, %v7212
  %v7277 = vmul.f32 %v7213, %v7213
  %v7278 = vmul.f32 %v7214, %v7214
  %v7279 = vmul.f32 %v7215, %v7215
  %v7280 = vmul.f32 %v7216, %v7216
  %v7281 = vmul.f32 %v7217, %v7217
  %v7282 = vmul.f32 %v7218, %v7218
  %v7283 = vmul.f32 %v7219, %v7219
  %v7284 = vmul.f32 %v7220, %v7220
  %v7285 = vmul.f32 %v7221, %v7221
  %v7286 = vmul.f32 %v7222, %v7222
  %v7287 = vmul.f32 %v7223, %v7223
  %v7288 = vmul.f32 %v7224, %v7224
  %v7289 = vmul.f32 %v7225, %v7225
  %v7290 = vmul.f32 %v7226, %v7226
  %v7291 = vmul.f32 %v7227, %v7227
  %v7292 = vmul.f32 %v7228, %v7228
  %v7293 = vmul.f32 %v7229, %v7229
  %v7294 = vmul.f32 %v7230, %v7230
  %v7295 = vmul.f32 %v7231, %v7231
  %v7296 = vmul.f32 %v7232, %v7232
  %v7297 = vmul.f32 %v7233, %v7233
  %v7298 = vmul.f32 %v7234, %v7234
  %v7299 = vmul.f32 %v7235, %v7235
  %v7300 = vmul.f32 %v7236, %v7236
  %v7301 = vmul.f32 %v7237, %v7237
  %v7302 = vmul.f32 %v7238, %v7238
  %v7303 = vmul.f32 %v7239, %v7239
  %v7304 = vmul.f32 %v7240, %v7240
  %v7305 = vmul.f32 %v7241, %v7241
  %v7306 = vmul.f32 %v7242, %v7242
  %v7307 = vmul.f32 %v7243, %v7243
  %v7308 = vmul.f32 %v7244, %v7244
  %v7309 = vmul.f32 %v7245, %v7245
  %v7310 = vmul.f32 %v7246, %v7246
  %v7311 = vmul.f32 %v7247, %v7247
  %v7312 = vmul.f32 %v7248, %v7248
  %v7313 = vmul.f32 %v7249, %v7249
  %v7314 = vmul.f32 %v7250, %v7250
  %v7315 = vmul.f32 %v7251, %v7251
  %v7316 = vmul.f32 %v7252, %v7252
  %v7317 = vmul.f32 %v7253, %v7253
  %v7318 = vmul.f32 %v7254, %v7254
  %v7319 = vmul.f32 %v7255, %v7255
  %v7320 = vmul.f32 %v7256, %v7256
  %v7321 = vmul.f32 %v7257, %v7257
  %v7322 = vmul.f32 %v7258, %v7258
  %v7323 = vmul.f32 %v7259, %v7259
  %v7324 = vmul.f32 %v7260, %v7260
  %v7325 = vmul.f32 %v7261, %v7261
  %v7326 = vmul.f32 %v7262, %v7262
  %v7327 = vmul.f32 %v7263, %v7263
  %v7328 = vmul.f32 %v7264, %v7264
  %v7329 = vmul.f32 %v7265, %v7265
  %v7330 = vsel %vm672, %v7266, 0.0
  %v7331 = vsel %vm672, %v7267, 0.0
  %v7332 = vadd.f32 %v7330, %v7331
  %v7333 = vsel %vm672, %v7268, 0.0
  %v7334 = vadd.f32 %v7332, %v7333
  %v7335 = vsel %vm672, %v7269, 0.0
  %v7336 = vadd.f32 %v7334, %v7335
  %v7337 = vsel %vm672, %v7270, 0.0
  %v7338 = vadd.f32 %v7336, %v7337
  %v7339 = vsel %vm672, %v7271, 0.0
  %v7340 = vadd.f32 %v7338, %v7339
  %v7341 = vsel %vm672, %v7272, 0.0
  %v7342 = vadd.f32 %v7340, %v7341
  %v7343 = vsel %vm672, %v7273, 0.0
  %v7344 = vadd.f32 %v7342, %v7343
  %v7345 = vsel %vm672, %v7274, 0.0
  %v7346 = vadd.f32 %v7344, %v7345
  %v7347 = vsel %vm672, %v7275, 0.0
  %v7348 = vadd.f32 %v7346, %v7347
  %v7349 = vsel %vm672, %v7276, 0.0
  %v7350 = vadd.f32 %v7348, %v7349
  %v7351 = vsel %vm672, %v7277, 0.0
  %v7352 = vadd.f32 %v7350, %v7351
  %v7353 = vsel %vm672, %v7278, 0.0
  %v7354 = vadd.f32 %v7352, %v7353
  %v7355 = vsel %vm672, %v7279, 0.0
  %v7356 = vadd.f32 %v7354, %v7355
  %v7357 = vsel %vm672, %v7280, 0.0
  %v7358 = vadd.f32 %v7356, %v7357
  %v7359 = vsel %vm672, %v7281, 0.0
  %v7360 = vadd.f32 %v7358, %v7359
  %v7361 = vsel %vm672, %v7282, 0.0
  %v7362 = vadd.f32 %v7360, %v7361
  %v7363 = vsel %vm672, %v7283, 0.0
  %v7364 = vadd.f32 %v7362, %v7363
  %v7365 = vsel %vm672, %v7284, 0.0
  %v7366 = vadd.f32 %v7364, %v7365
  %v7367 = vsel %vm672, %v7285, 0.0
  %v7368 = vadd.f32 %v7366, %v7367
  %v7369 = vsel %vm672, %v7286, 0.0
  %v7370 = vadd.f32 %v7368, %v7369
  %v7371 = vsel %vm672, %v7287, 0.0
  %v7372 = vadd.f32 %v7370, %v7371
  %v7373 = vsel %vm672, %v7288, 0.0
  %v7374 = vadd.f32 %v7372, %v7373
  %v7375 = vsel %vm672, %v7289, 0.0
  %v7376 = vadd.f32 %v7374, %v7375
  %v7377 = vsel %vm672, %v7290, 0.0
  %v7378 = vadd.f32 %v7376, %v7377
  %v7379 = vsel %vm672, %v7291, 0.0
  %v7380 = vadd.f32 %v7378, %v7379
  %v7381 = vsel %vm672, %v7292, 0.0
  %v7382 = vadd.f32 %v7380, %v7381
  %v7383 = vsel %vm672, %v7293, 0.0
  %v7384 = vadd.f32 %v7382, %v7383
  %v7385 = vsel %vm672, %v7294, 0.0
  %v7386 = vadd.f32 %v7384, %v7385
  %v7387 = vsel %vm672, %v7295, 0.0
  %v7388 = vadd.f32 %v7386, %v7387
  %v7389 = vsel %vm672, %v7296, 0.0
  %v7390 = vadd.f32 %v7388, %v7389
  %v7391 = vsel %vm672, %v7297, 0.0
  %v7392 = vadd.f32 %v7390, %v7391
  %v7393 = vsel %vm672, %v7298, 0.0
  %v7394 = vadd.f32 %v7392, %v7393
  %v7395 = vsel %vm672, %v7299, 0.0
  %v7396 = vadd.f32 %v7394, %v7395
  %v7397 = vsel %vm672, %v7300, 0.0
  %v7398 = vadd.f32 %v7396, %v7397
  %v7399 = vsel %vm672, %v7301, 0.0
  %v7400 = vadd.f32 %v7398, %v7399
  %v7401 = vsel %vm672, %v7302, 0.0
  %v7402 = vadd.f32 %v7400, %v7401
  %v7403 = vsel %vm672, %v7303, 0.0
  %v7404 = vadd.f32 %v7402, %v7403
  %v7405 = vsel %vm672, %v7304, 0.0
  %v7406 = vadd.f32 %v7404, %v7405
  %v7407 = vsel %vm672, %v7305, 0.0
  %v7408 = vadd.f32 %v7406, %v7407
  %v7409 = vsel %vm672, %v7306, 0.0
  %v7410 = vadd.f32 %v7408, %v7409
  %v7411 = vsel %vm672, %v7307, 0.0
  %v7412 = vadd.f32 %v7410, %v7411
  %v7413 = vsel %vm672, %v7308, 0.0
  %v7414 = vadd.f32 %v7412, %v7413
  %v7415 = vsel %vm672, %v7309, 0.0
  %v7416 = vadd.f32 %v7414, %v7415
  %v7417 = vsel %vm672, %v7310, 0.0
  %v7418 = vadd.f32 %v7416, %v7417
  %v7419 = vsel %vm672, %v7311, 0.0
  %v7420 = vadd.f32 %v7418, %v7419
  %v7421 = vsel %vm672, %v7312, 0.0
  %v7422 = vadd.f32 %v7420, %v7421
  %v7423 = vsel %vm672, %v7313, 0.0
  %v7424 = vadd.f32 %v7422, %v7423
  %v7425 = vsel %vm672, %v7314, 0.0
  %v7426 = vadd.f32 %v7424, %v7425
  %v7427 = vsel %vm672, %v7315, 0.0
  %v7428 = vadd.f32 %v7426, %v7427
  %v7429 = vsel %vm672, %v7316, 0.0
  %v7430 = vadd.f32 %v7428, %v7429
  %v7431 = vsel %vm672, %v7317, 0.0
  %v7432 = vadd.f32 %v7430, %v7431
  %v7433 = vsel %vm672, %v7318, 0.0
  %v7434 = vadd.f32 %v7432, %v7433
  %v7435 = vsel %vm672, %v7319, 0.0
  %v7436 = vadd.f32 %v7434, %v7435
  %v7437 = vsel %vm672, %v7320, 0.0
  %v7438 = vadd.f32 %v7436, %v7437
  %v7439 = vsel %vm672, %v7321, 0.0
  %v7440 = vadd.f32 %v7438, %v7439
  %v7441 = vsel %vm672, %v7322, 0.0
  %v7442 = vadd.f32 %v7440, %v7441
  %v7443 = vsel %vm672, %v7323, 0.0
  %v7444 = vadd.f32 %v7442, %v7443
  %v7445 = vsel %vm672, %v7324, 0.0
  %v7446 = vadd.f32 %v7444, %v7445
  %v7447 = vsel %vm672, %v7325, 0.0
  %v7448 = vadd.f32 %v7446, %v7447
  %v7449 = vsel %vm672, %v7326, 0.0
  %v7450 = vadd.f32 %v7448, %v7449
  %v7451 = vsel %vm672, %v7327, 0.0
  %v7452 = vadd.f32 %v7450, %v7451
  %v7453 = vsel %vm672, %v7328, 0.0
  %v7454 = vadd.f32 %v7452, %v7453
  %v7455 = vsel %vm672, %v7329, 0.0
  %v7456 = vadd.f32 %v7454, %v7455
  %v7457 = vrot.slane %v7456, 4
  %v7458 = vadd.f32 %v7456, %v7457
  %v7459 = vrot.slane %v7458, 2
  %v7460 = vadd.f32 %v7458, %v7459
  %v7461 = vrot.slane %v7460, 1
  %v7462 = vadd.f32 %v7460, %v7461
  %v7463 = vmul.f32 %v7462, 0.001953125
  %v7464 = vld [vmem:[%s5] sm:$0x1]
  %v7465 = vadd.f32 %v7463, 1e-05
  %v7466 = vrsqrt.pop %v7465
  %v7467 = vmul.f32 %v7464, %v7466
  %v7469 = vlaneseq
  %v7470 = vshrl.u32 %v7469, 7
  %v7471 = vsub.s32 0, %v7470
  %v7472 = vrot.slane %v7467, %v7471
  %v7474 = vmul.f32 %v7202, %v7472
  %v7475 = vmul.f32 %v7203, %v7472
  %v7476 = vmul.f32 %v7204, %v7472
  %v7477 = vmul.f32 %v7205, %v7472
  %v7478 = vmul.f32 %v7206, %v7472
  %v7479 = vmul.f32 %v7207, %v7472
  %v7480 = vmul.f32 %v7208, %v7472
  %v7481 = vmul.f32 %v7209, %v7472
  %v7482 = vmul.f32 %v7210, %v7472
  %v7483 = vmul.f32 %v7211, %v7472
  %v7484 = vmul.f32 %v7212, %v7472
  %v7485 = vmul.f32 %v7213, %v7472
  %v7486 = vmul.f32 %v7214, %v7472
  %v7487 = vmul.f32 %v7215, %v7472
  %v7488 = vmul.f32 %v7216, %v7472
  %v7489 = vmul.f32 %v7217, %v7472
  %v7490 = vmul.f32 %v7218, %v7472
  %v7491 = vmul.f32 %v7219, %v7472
  %v7492 = vmul.f32 %v7220, %v7472
  %v7493 = vmul.f32 %v7221, %v7472
  %v7494 = vmul.f32 %v7222, %v7472
  %v7495 = vmul.f32 %v7223, %v7472
  %v7496 = vmul.f32 %v7224, %v7472
  %v7497 = vmul.f32 %v7225, %v7472
  %v7498 = vmul.f32 %v7226, %v7472
  %v7499 = vmul.f32 %v7227, %v7472
  %v7500 = vmul.f32 %v7228, %v7472
  %v7501 = vmul.f32 %v7229, %v7472
  %v7502 = vmul.f32 %v7230, %v7472
  %v7503 = vmul.f32 %v7231, %v7472
  %v7504 = vmul.f32 %v7232, %v7472
  %v7505 = vmul.f32 %v7233, %v7472
  %v7506 = vmul.f32 %v7234, %v7472
  %v7507 = vmul.f32 %v7235, %v7472
  %v7508 = vmul.f32 %v7236, %v7472
  %v7509 = vmul.f32 %v7237, %v7472
  %v7510 = vmul.f32 %v7238, %v7472
  %v7511 = vmul.f32 %v7239, %v7472
  %v7512 = vmul.f32 %v7240, %v7472
  %v7513 = vmul.f32 %v7241, %v7472
  %v7514 = vmul.f32 %v7242, %v7472
  %v7515 = vmul.f32 %v7243, %v7472
  %v7516 = vmul.f32 %v7244, %v7472
  %v7517 = vmul.f32 %v7245, %v7472
  %v7518 = vmul.f32 %v7246, %v7472
  %v7519 = vmul.f32 %v7247, %v7472
  %v7520 = vmul.f32 %v7248, %v7472
  %v7521 = vmul.f32 %v7249, %v7472
  %v7522 = vmul.f32 %v7250, %v7472
  %v7523 = vmul.f32 %v7251, %v7472
  %v7524 = vmul.f32 %v7252, %v7472
  %v7525 = vmul.f32 %v7253, %v7472
  %v7526 = vmul.f32 %v7254, %v7472
  %v7527 = vmul.f32 %v7255, %v7472
  %v7528 = vmul.f32 %v7256, %v7472
  %v7529 = vmul.f32 %v7257, %v7472
  %v7530 = vmul.f32 %v7258, %v7472
  %v7531 = vmul.f32 %v7259, %v7472
  %v7532 = vmul.f32 %v7260, %v7472
  %v7533 = vmul.f32 %v7261, %v7472
  %v7534 = vmul.f32 %v7262, %v7472
  %v7535 = vmul.f32 %v7263, %v7472
  %v7536 = vmul.f32 %v7264, %v7472
  %v7537 = vmul.f32 %v7265, %v7472
  %v7538 = vld [vmem:[%s6] sm:$0x1]
  %v7540 = vlaneseq
  %v7541 = vshrl.u32 %v7540, 7
  %v7542 = vsub.s32 0, %v7541
  %v7543 = vrot.slane %v7538, %v7542
  %v7545 = vadd.f32 %v7474, %v7543
  %v7546 = vadd.f32 %v7475, %v7543
  %v7547 = vadd.f32 %v7476, %v7543
  %v7548 = vadd.f32 %v7477, %v7543
  %v7549 = vadd.f32 %v7478, %v7543
  %v7550 = vadd.f32 %v7479, %v7543
  %v7551 = vadd.f32 %v7480, %v7543
  %v7552 = vadd.f32 %v7481, %v7543
  %v7553 = vadd.f32 %v7482, %v7543
  %v7554 = vadd.f32 %v7483, %v7543
  %v7555 = vadd.f32 %v7484, %v7543
  %v7556 = vadd.f32 %v7485, %v7543
  %v7557 = vadd.f32 %v7486, %v7543
  %v7558 = vadd.f32 %v7487, %v7543
  %v7559 = vadd.f32 %v7488, %v7543
  %v7560 = vadd.f32 %v7489, %v7543
  %v7561 = vadd.f32 %v7490, %v7543
  %v7562 = vadd.f32 %v7491, %v7543
  %v7563 = vadd.f32 %v7492, %v7543
  %v7564 = vadd.f32 %v7493, %v7543
  %v7565 = vadd.f32 %v7494, %v7543
  %v7566 = vadd.f32 %v7495, %v7543
  %v7567 = vadd.f32 %v7496, %v7543
  %v7568 = vadd.f32 %v7497, %v7543
  %v7569 = vadd.f32 %v7498, %v7543
  %v7570 = vadd.f32 %v7499, %v7543
  %v7571 = vadd.f32 %v7500, %v7543
  %v7572 = vadd.f32 %v7501, %v7543
  %v7573 = vadd.f32 %v7502, %v7543
  %v7574 = vadd.f32 %v7503, %v7543
  %v7575 = vadd.f32 %v7504, %v7543
  %v7576 = vadd.f32 %v7505, %v7543
  %v7577 = vadd.f32 %v7506, %v7543
  %v7578 = vadd.f32 %v7507, %v7543
  %v7579 = vadd.f32 %v7508, %v7543
  %v7580 = vadd.f32 %v7509, %v7543
  %v7581 = vadd.f32 %v7510, %v7543
  %v7582 = vadd.f32 %v7511, %v7543
  %v7583 = vadd.f32 %v7512, %v7543
  %v7584 = vadd.f32 %v7513, %v7543
  %v7585 = vadd.f32 %v7514, %v7543
  %v7586 = vadd.f32 %v7515, %v7543
  %v7587 = vadd.f32 %v7516, %v7543
  %v7588 = vadd.f32 %v7517, %v7543
  %v7589 = vadd.f32 %v7518, %v7543
  %v7590 = vadd.f32 %v7519, %v7543
  %v7591 = vadd.f32 %v7520, %v7543
  %v7592 = vadd.f32 %v7521, %v7543
  %v7593 = vadd.f32 %v7522, %v7543
  %v7594 = vadd.f32 %v7523, %v7543
  %v7595 = vadd.f32 %v7524, %v7543
  %v7596 = vadd.f32 %v7525, %v7543
  %v7597 = vadd.f32 %v7526, %v7543
  %v7598 = vadd.f32 %v7527, %v7543
  %v7599 = vadd.f32 %v7528, %v7543
  %v7600 = vadd.f32 %v7529, %v7543
  %v7601 = vadd.f32 %v7530, %v7543
  %v7602 = vadd.f32 %v7531, %v7543
  %v7603 = vadd.f32 %v7532, %v7543
  %v7604 = vadd.f32 %v7533, %v7543
  %v7605 = vadd.f32 %v7534, %v7543
  %v7606 = vadd.f32 %v7535, %v7543
  %v7607 = vadd.f32 %v7536, %v7543
  %v7608 = vadd.f32 %v7537, %v7543
  %v7609 = vmax.f32 %v7545, 0.0
  %v7610 = vmax.f32 %v7546, 0.0
  %v7611 = vmax.f32 %v7547, 0.0
  %v7612 = vmax.f32 %v7548, 0.0
  %v7613 = vmax.f32 %v7549, 0.0
  %v7614 = vmax.f32 %v7550, 0.0
  %v7615 = vmax.f32 %v7551, 0.0
  %v7616 = vmax.f32 %v7552, 0.0
  %v7617 = vmax.f32 %v7553, 0.0
  %v7618 = vmax.f32 %v7554, 0.0
  %v7619 = vmax.f32 %v7555, 0.0
  %v7620 = vmax.f32 %v7556, 0.0
  %v7621 = vmax.f32 %v7557, 0.0
  %v7622 = vmax.f32 %v7558, 0.0
  %v7623 = vmax.f32 %v7559, 0.0
  %v7624 = vmax.f32 %v7560, 0.0
  %v7625 = vmax.f32 %v7561, 0.0
  %v7626 = vmax.f32 %v7562, 0.0
  %v7627 = vmax.f32 %v7563, 0.0
  %v7628 = vmax.f32 %v7564, 0.0
  %v7629 = vmax.f32 %v7565, 0.0
  %v7630 = vmax.f32 %v7566, 0.0
  %v7631 = vmax.f32 %v7567, 0.0
  %v7632 = vmax.f32 %v7568, 0.0
  %v7633 = vmax.f32 %v7569, 0.0
  %v7634 = vmax.f32 %v7570, 0.0
  %v7635 = vmax.f32 %v7571, 0.0
  %v7636 = vmax.f32 %v7572, 0.0
  %v7637 = vmax.f32 %v7573, 0.0
  %v7638 = vmax.f32 %v7574, 0.0
  %v7639 = vmax.f32 %v7575, 0.0
  %v7640 = vmax.f32 %v7576, 0.0
  %v7641 = vmax.f32 %v7577, 0.0
  %v7642 = vmax.f32 %v7578, 0.0
  %v7643 = vmax.f32 %v7579, 0.0
  %v7644 = vmax.f32 %v7580, 0.0
  %v7645 = vmax.f32 %v7581, 0.0
  %v7646 = vmax.f32 %v7582, 0.0
  %v7647 = vmax.f32 %v7583, 0.0
  %v7648 = vmax.f32 %v7584, 0.0
  %v7649 = vmax.f32 %v7585, 0.0
  %v7650 = vmax.f32 %v7586, 0.0
  %v7651 = vmax.f32 %v7587, 0.0
  %v7652 = vmax.f32 %v7588, 0.0
  %v7653 = vmax.f32 %v7589, 0.0
  %v7654 = vmax.f32 %v7590, 0.0
  %v7655 = vmax.f32 %v7591, 0.0
  %v7656 = vmax.f32 %v7592, 0.0
  %v7657 = vmax.f32 %v7593, 0.0
  %v7658 = vmax.f32 %v7594, 0.0
  %v7659 = vmax.f32 %v7595, 0.0
  %v7660 = vmax.f32 %v7596, 0.0
  %v7661 = vmax.f32 %v7597, 0.0
  %v7662 = vmax.f32 %v7598, 0.0
  %v7663 = vmax.f32 %v7599, 0.0
  %v7664 = vmax.f32 %v7600, 0.0
  %v7665 = vmax.f32 %v7601, 0.0
  %v7666 = vmax.f32 %v7602, 0.0
  %v7667 = vmax.f32 %v7603, 0.0
  %v7668 = vmax.f32 %v7604, 0.0
  %v7669 = vmax.f32 %v7605, 0.0
  %v7670 = vmax.f32 %v7606, 0.0
  %v7671 = vmax.f32 %v7607, 0.0
  %v7672 = vmax.f32 %v7608, 0.0
  %7673 = vst.msk [vmem:[%s782 + $0x1] sm:$0xff] %vm672, %v7609
  %7674 = vst.msk [vmem:[%s782 + $0x9] sm:$0xff] %vm672, %v7610
  %7675 = vst.msk [vmem:[%s782 + $0x19] sm:$0xff] %vm672, %v7611
  %7676 = vst.msk [vmem:[%s782 + $0x21] sm:$0xff] %vm672, %v7612
  %7677 = vst.msk [vmem:[%s782 + $0x31] sm:$0xff] %vm672, %v7613
  %7678 = vst.msk [vmem:[%s782 + $0x39] sm:$0xff] %vm672, %v7614
  %7679 = vst.msk [vmem:[%s782 + $0x49] sm:$0xff] %vm672, %v7615
  %7680 = vst.msk [vmem:[%s782 + $0x51] sm:$0xff] %vm672, %v7616
  %7681 = vst.msk [vmem:[%s782 + $0x61] sm:$0xff] %vm672, %v7617
  %7682 = vst.msk [vmem:[%s782 + $0x69] sm:$0xff] %vm672, %v7618
  %7683 = vst.msk [vmem:[%s782 + $0x79] sm:$0xff] %vm672, %v7619
  %7684 = vst.msk [vmem:[%s782 + $0x81] sm:$0xff] %vm672, %v7620
  %7685 = vst.msk [vmem:[%s782 + $0x91] sm:$0xff] %vm672, %v7621
  %7686 = vst.msk [vmem:[%s782 + $0x99] sm:$0xff] %vm672, %v7622
  %7687 = vst.msk [vmem:[%s782 + $0xa9] sm:$0xff] %vm672, %v7623
  %7688 = vst.msk [vmem:[%s782 + $0xb1] sm:$0xff] %vm672, %v7624
  %7689 = vst.msk [vmem:[%s782 + $0xc1] sm:$0xff] %vm672, %v7625
  %7690 = vst.msk [vmem:[%s782 + $0xc9] sm:$0xff] %vm672, %v7626
  %7691 = vst.msk [vmem:[%s782 + $0xd9] sm:$0xff] %vm672, %v7627
  %7692 = vst.msk [vmem:[%s782 + $0xe1] sm:$0xff] %vm672, %v7628
  %7693 = vst.msk [vmem:[%s782 + $0xf1] sm:$0xff] %vm672, %v7629
  %7694 = vst.msk [vmem:[%s782 + $0xf9] sm:$0xff] %vm672, %v7630
  %7695 = vst.msk [vmem:[%s782 + $0x109] sm:$0xff] %vm672, %v7631
  %7696 = vst.msk [vmem:[%s782 + $0x111] sm:$0xff] %vm672, %v7632
  %7697 = vst.msk [vmem:[%s782 + $0x121] sm:$0xff] %vm672, %v7633
  %7698 = vst.msk [vmem:[%s782 + $0x129] sm:$0xff] %vm672, %v7634
  %7699 = vst.msk [vmem:[%s782 + $0x139] sm:$0xff] %vm672, %v7635
  %7700 = vst.msk [vmem:[%s782 + $0x141] sm:$0xff] %vm672, %v7636
  %7701 = vst.msk [vmem:[%s782 + $0x151] sm:$0xff] %vm672, %v7637
  %7702 = vst.msk [vmem:[%s782 + $0x159] sm:$0xff] %vm672, %v7638
  %7703 = vst.msk [vmem:[%s782 + $0x169] sm:$0xff] %vm672, %v7639
  %7704 = vst.msk [vmem:[%s782 + $0x171] sm:$0xff] %vm672, %v7640
  %7705 = vst.msk [vmem:[%s782 + $0x1b1] sm:$0xff] %vm672, %v7641
  %7706 = vst.msk [vmem:[%s782 + $0x1b9] sm:$0xff] %vm672, %v7642
  %7707 = vst.msk [vmem:[%s782 + $0x1c9] sm:$0xff] %vm672, %v7643
  %7708 = vst.msk [vmem:[%s782 + $0x1d1] sm:$0xff] %vm672, %v7644
  %7709 = vst.msk [vmem:[%s782 + $0x1e1] sm:$0xff] %vm672, %v7645
  %7710 = vst.msk [vmem:[%s782 + $0x1e9] sm:$0xff] %vm672, %v7646
  %7711 = vst.msk [vmem:[%s782 + $0x1f9] sm:$0xff] %vm672, %v7647
  %7712 = vst.msk [vmem:[%s782 + $0x201] sm:$0xff] %vm672, %v7648
  %7713 = vst.msk [vmem:[%s782 + $0x211] sm:$0xff] %vm672, %v7649
  %7714 = vst.msk [vmem:[%s782 + $0x219] sm:$0xff] %vm672, %v7650
  %7715 = vst.msk [vmem:[%s782 + $0x229] sm:$0xff] %vm672, %v7651
  %7716 = vst.msk [vmem:[%s782 + $0x231] sm:$0xff] %vm672, %v7652
  %7717 = vst.msk [vmem:[%s782 + $0x241] sm:$0xff] %vm672, %v7653
  %7718 = vst.msk [vmem:[%s782 + $0x249] sm:$0xff] %vm672, %v7654
  %7719 = vst.msk [vmem:[%s782 + $0x259] sm:$0xff] %vm672, %v7655
  %7720 = vst.msk [vmem:[%s782 + $0x261] sm:$0xff] %vm672, %v7656
  %7721 = vst.msk [vmem:[%s782 + $0x271] sm:$0xff] %vm672, %v7657
  %7722 = vst.msk [vmem:[%s782 + $0x279] sm:$0xff] %vm672, %v7658
  %7723 = vst.msk [vmem:[%s782 + $0x289] sm:$0xff] %vm672, %v7659
  %7724 = vst.msk [vmem:[%s782 + $0x291] sm:$0xff] %vm672, %v7660
  %7725 = vst.msk [vmem:[%s782 + $0x2a1] sm:$0xff] %vm672, %v7661
  %7726 = vst.msk [vmem:[%s782 + $0x2a9] sm:$0xff] %vm672, %v7662
  %7727 = vst.msk [vmem:[%s782 + $0x2b9] sm:$0xff] %vm672, %v7663
  %7728 = vst.msk [vmem:[%s782 + $0x2c1] sm:$0xff] %vm672, %v7664
  %7729 = vst.msk [vmem:[%s782 + $0x2d1] sm:$0xff] %vm672, %v7665
  %7730 = vst.msk [vmem:[%s782 + $0x2d9] sm:$0xff] %vm672, %v7666
  %7731 = vst.msk [vmem:[%s782 + $0x2e9] sm:$0xff] %vm672, %v7667
  %7732 = vst.msk [vmem:[%s782 + $0x2f1] sm:$0xff] %vm672, %v7668
  %7733 = vst.msk [vmem:[%s782 + $0x301] sm:$0xff] %vm672, %v7669
  %7734 = vst.msk [vmem:[%s782 + $0x309] sm:$0xff] %vm672, %v7670
  %7735 = vst.msk [vmem:[%s782 + $0x319] sm:$0xff] %vm672, %v7671
  %7736 = vst.msk [vmem:[%s782 + $0x321] sm:$0xff] %vm672, %v7672
  %v7737 = vld [vmem:[#allocation2] sm:$0xff]
  %v7738 = vld [vmem:[#allocation2 + $0x8] sm:$0xff]
  %v7739 = vld [vmem:[#allocation2 + $0x18] sm:$0xff]
  %v7740 = vld [vmem:[#allocation2 + $0x20] sm:$0xff]
  %v7741 = vld [vmem:[#allocation2 + $0x30] sm:$0xff]
  %v7742 = vld [vmem:[#allocation2 + $0x38] sm:$0xff]
  %v7743 = vld [vmem:[#allocation2 + $0x48] sm:$0xff]
  %v7744 = vld [vmem:[#allocation2 + $0x50] sm:$0xff]
  %v7745 = vld [vmem:[#allocation2 + $0x60] sm:$0xff]
  %v7746 = vld [vmem:[#allocation2 + $0x68] sm:$0xff]
  %v7747 = vld [vmem:[#allocation2 + $0x78] sm:$0xff]
  %v7748 = vld [vmem:[#allocation2 + $0x80] sm:$0xff]
  %v7749 = vld [vmem:[#allocation2 + $0x90] sm:$0xff]
  %v7750 = vld [vmem:[#allocation2 + $0x98] sm:$0xff]
  %v7751 = vld [vmem:[#allocation2 + $0xa8] sm:$0xff]
  %v7752 = vld [vmem:[#allocation2 + $0xb0] sm:$0xff]
  %v7753 = vld [vmem:[#allocation2 + $0xc0] sm:$0xff]
  %v7754 = vld [vmem:[#allocation2 + $0xc8] sm:$0xff]
  %v7755 = vld [vmem:[#allocation2 + $0xd8] sm:$0xff]
  %v7756 = vld [vmem:[#allocation2 + $0xe0] sm:$0xff]
  %v7757 = vld [vmem:[#allocation2 + $0xf0] sm:$0xff]
  %v7758 = vld [vmem:[#allocation2 + $0xf8] sm:$0xff]
  %v7759 = vld [vmem:[#allocation2 + $0x108] sm:$0xff]
  %v7760 = vld [vmem:[#allocation2 + $0x110] sm:$0xff]
  %v7761 = vld [vmem:[#allocation2 + $0x120] sm:$0xff]
  %v7762 = vld [vmem:[#allocation2 + $0x128] sm:$0xff]
  %v7763 = vld [vmem:[#allocation2 + $0x138] sm:$0xff]
  %v7764 = vld [vmem:[#allocation2 + $0x140] sm:$0xff]
  %v7765 = vld [vmem:[#allocation2 + $0x150] sm:$0xff]
  %v7766 = vld [vmem:[#allocation2 + $0x158] sm:$0xff]
  %v7767 = vld [vmem:[#allocation2 + $0x168] sm:$0xff]
  %v7768 = vld [vmem:[#allocation2 + $0x170] sm:$0xff]
  %v7769 = vld [vmem:[#allocation2 + $0x1b0] sm:$0xff]
  %v7770 = vld [vmem:[#allocation2 + $0x1b8] sm:$0xff]
  %v7771 = vld [vmem:[#allocation2 + $0x1c8] sm:$0xff]
  %v7772 = vld [vmem:[#allocation2 + $0x1d0] sm:$0xff]
  %v7773 = vld [vmem:[#allocation2 + $0x1e0] sm:$0xff]
  %v7774 = vld [vmem:[#allocation2 + $0x1e8] sm:$0xff]
  %v7775 = vld [vmem:[#allocation2 + $0x1f8] sm:$0xff]
  %v7776 = vld [vmem:[#allocation2 + $0x200] sm:$0xff]
  %v7777 = vld [vmem:[#allocation2 + $0x210] sm:$0xff]
  %v7778 = vld [vmem:[#allocation2 + $0x218] sm:$0xff]
  %v7779 = vld [vmem:[#allocation2 + $0x228] sm:$0xff]
  %v7780 = vld [vmem:[#allocation2 + $0x230] sm:$0xff]
  %v7781 = vld [vmem:[#allocation2 + $0x240] sm:$0xff]
  %v7782 = vld [vmem:[#allocation2 + $0x248] sm:$0xff]
  %v7783 = vld [vmem:[#allocation2 + $0x258] sm:$0xff]
  %v7784 = vld [vmem:[#allocation2 + $0x260] sm:$0xff]
  %v7785 = vld [vmem:[#allocation2 + $0x270] sm:$0xff]
  %v7786 = vld [vmem:[#allocation2 + $0x278] sm:$0xff]
  %v7787 = vld [vmem:[#allocation2 + $0x288] sm:$0xff]
  %v7788 = vld [vmem:[#allocation2 + $0x290] sm:$0xff]
  %v7789 = vld [vmem:[#allocation2 + $0x2a0] sm:$0xff]
  %v7790 = vld [vmem:[#allocation2 + $0x2a8] sm:$0xff]
  %v7791 = vld [vmem:[#allocation2 + $0x2b8] sm:$0xff]
  %v7792 = vld [vmem:[#allocation2 + $0x2c0] sm:$0xff]
  %v7793 = vld [vmem:[#allocation2 + $0x2d0] sm:$0xff]
  %v7794 = vld [vmem:[#allocation2 + $0x2d8] sm:$0xff]
  %v7795 = vld [vmem:[#allocation2 + $0x2e8] sm:$0xff]
  %v7796 = vld [vmem:[#allocation2 + $0x2f0] sm:$0xff]
  %v7797 = vld [vmem:[#allocation2 + $0x300] sm:$0xff]
  %v7798 = vld [vmem:[#allocation2 + $0x308] sm:$0xff]
  %v7799 = vld [vmem:[#allocation2 + $0x318] sm:$0xff]
  %v7800 = vld [vmem:[#allocation2 + $0x320] sm:$0xff]
  %v7801 = vpack.c.bf16 %v7738, %v7737
  %v7802 = vpack.c.bf16 %v7740, %v7739
  %v7803 = vpack.c.bf16 %v7742, %v7741
  %v7804 = vpack.c.bf16 %v7744, %v7743
  %v7805 = vpack.c.bf16 %v7746, %v7745
  %v7806 = vpack.c.bf16 %v7748, %v7747
  %v7807 = vpack.c.bf16 %v7750, %v7749
  %v7808 = vpack.c.bf16 %v7752, %v7751
  %v7809 = vpack.c.bf16 %v7754, %v7753
  %v7810 = vpack.c.bf16 %v7756, %v7755
  %v7811 = vpack.c.bf16 %v7758, %v7757
  %v7812 = vpack.c.bf16 %v7760, %v7759
  %v7813 = vpack.c.bf16 %v7762, %v7761
  %v7814 = vpack.c.bf16 %v7764, %v7763
  %v7815 = vpack.c.bf16 %v7766, %v7765
  %v7816 = vpack.c.bf16 %v7768, %v7767
  %v7817 = vpack.c.bf16 %v7770, %v7769
  %v7818 = vpack.c.bf16 %v7772, %v7771
  %v7819 = vpack.c.bf16 %v7774, %v7773
  %v7820 = vpack.c.bf16 %v7776, %v7775
  %v7821 = vpack.c.bf16 %v7778, %v7777
  %v7822 = vpack.c.bf16 %v7780, %v7779
  %v7823 = vpack.c.bf16 %v7782, %v7781
  %v7824 = vpack.c.bf16 %v7784, %v7783
  %v7825 = vpack.c.bf16 %v7786, %v7785
  %v7826 = vpack.c.bf16 %v7788, %v7787
  %v7827 = vpack.c.bf16 %v7790, %v7789
  %v7828 = vpack.c.bf16 %v7792, %v7791
  %v7829 = vpack.c.bf16 %v7794, %v7793
  %v7830 = vpack.c.bf16 %v7796, %v7795
  %v7831 = vpack.c.bf16 %v7798, %v7797
  %v7832 = vpack.c.bf16 %v7800, %v7799
  %v7865 = vunpack.c.l.b16 %v7801
  %v7866 = vunpack.c.h.b16 %v7801
  %v7867 = vunpack.c.l.b16 %v7802
  %v7868 = vunpack.c.h.b16 %v7802
  %v7869 = vunpack.c.l.b16 %v7803
  %v7870 = vunpack.c.h.b16 %v7803
  %v7871 = vunpack.c.l.b16 %v7804
  %v7872 = vunpack.c.h.b16 %v7804
  %v7873 = vunpack.c.l.b16 %v7805
  %v7874 = vunpack.c.h.b16 %v7805
  %v7875 = vunpack.c.l.b16 %v7806
  %v7876 = vunpack.c.h.b16 %v7806
  %v7877 = vunpack.c.l.b16 %v7807
  %v7878 = vunpack.c.h.b16 %v7807
  %v7879 = vunpack.c.l.b16 %v7808
  %v7880 = vunpack.c.h.b16 %v7808
  %v7881 = vunpack.c.l.b16 %v7809
  %v7882 = vunpack.c.h.b16 %v7809
  %v7883 = vunpack.c.l.b16 %v7810
  %v7884 = vunpack.c.h.b16 %v7810
  %v7885 = vunpack.c.l.b16 %v7811
  %v7886 = vunpack.c.h.b16 %v7811
  %v7887 = vunpack.c.l.b16 %v7812
  %v7888 = vunpack.c.h.b16 %v7812
  %v7889 = vunpack.c.l.b16 %v7813
  %v7890 = vunpack.c.h.b16 %v7813
  %v7891 = vunpack.c.l.b16 %v7814
  %v7892 = vunpack.c.h.b16 %v7814
  %v7893 = vunpack.c.l.b16 %v7815
  %v7894 = vunpack.c.h.b16 %v7815
  %v7895 = vunpack.c.l.b16 %v7816
  %v7896 = vunpack.c.h.b16 %v7816
  %v7897 = vunpack.c.l.b16 %v7817
  %v7898 = vunpack.c.h.b16 %v7817
  %v7899 = vunpack.c.l.b16 %v7818
  %v7900 = vunpack.c.h.b16 %v7818
  %v7901 = vunpack.c.l.b16 %v7819
  %v7902 = vunpack.c.h.b16 %v7819
  %v7903 = vunpack.c.l.b16 %v7820
  %v7904 = vunpack.c.h.b16 %v7820
  %v7905 = vunpack.c.l.b16 %v7821
  %v7906 = vunpack.c.h.b16 %v7821
  %v7907 = vunpack.c.l.b16 %v7822
  %v7908 = vunpack.c.h.b16 %v7822
  %v7909 = vunpack.c.l.b16 %v7823
  %v7910 = vunpack.c.h.b16 %v7823
  %v7911 = vunpack.c.l.b16 %v7824
  %v7912 = vunpack.c.h.b16 %v7824
  %v7913 = vunpack.c.l.b16 %v7825
  %v7914 = vunpack.c.h.b16 %v7825
  %v7915 = vunpack.c.l.b16 %v7826
  %v7916 = vunpack.c.h.b16 %v7826
  %v7917 = vunpack.c.l.b16 %v7827
  %v7918 = vunpack.c.h.b16 %v7827
  %v7919 = vunpack.c.l.b16 %v7828
  %v7920 = vunpack.c.h.b16 %v7828
  %v7921 = vunpack.c.l.b16 %v7829
  %v7922 = vunpack.c.h.b16 %v7829
  %v7923 = vunpack.c.l.b16 %v7830
  %v7924 = vunpack.c.h.b16 %v7830
  %v7925 = vunpack.c.l.b16 %v7831
  %v7926 = vunpack.c.h.b16 %v7831
  %v7927 = vunpack.c.l.b16 %v7832
  %v7928 = vunpack.c.h.b16 %v7832
  %v7929 = vpack.c.b16 %v7865, %v7865
  %v7930 = vpack.c.b16 %v7866, %v7866
  %v7931 = vpack.c.b16 %v7867, %v7867
  %v7932 = vpack.c.b16 %v7868, %v7868
  %v7933 = vpack.c.b16 %v7869, %v7869
  %v7934 = vpack.c.b16 %v7870, %v7870
  %v7935 = vpack.c.b16 %v7871, %v7871
  %v7936 = vpack.c.b16 %v7872, %v7872
  %v7937 = vpack.c.b16 %v7873, %v7873
  %v7938 = vpack.c.b16 %v7874, %v7874
  %v7939 = vpack.c.b16 %v7875, %v7875
  %v7940 = vpack.c.b16 %v7876, %v7876
  %v7941 = vpack.c.b16 %v7877, %v7877
  %v7942 = vpack.c.b16 %v7878, %v7878
  %v7943 = vpack.c.b16 %v7879, %v7879
  %v7944 = vpack.c.b16 %v7880, %v7880
  %v7945 = vpack.c.b16 %v7881, %v7881
  %v7946 = vpack.c.b16 %v7882, %v7882
  %v7947 = vpack.c.b16 %v7883, %v7883
  %v7948 = vpack.c.b16 %v7884, %v7884
  %v7949 = vpack.c.b16 %v7885, %v7885
  %v7950 = vpack.c.b16 %v7886, %v7886
  %v7951 = vpack.c.b16 %v7887, %v7887
  %v7952 = vpack.c.b16 %v7888, %v7888
  %v7953 = vpack.c.b16 %v7889, %v7889
  %v7954 = vpack.c.b16 %v7890, %v7890
  %v7955 = vpack.c.b16 %v7891, %v7891
  %v7956 = vpack.c.b16 %v7892, %v7892
  %v7957 = vpack.c.b16 %v7893, %v7893
  %v7958 = vpack.c.b16 %v7894, %v7894
  %v7959 = vpack.c.b16 %v7895, %v7895
  %v7960 = vpack.c.b16 %v7896, %v7896
  %v7961 = vpack.c.b16 %v7897, %v7897
  %v7962 = vpack.c.b16 %v7898, %v7898
  %v7963 = vpack.c.b16 %v7899, %v7899
  %v7964 = vpack.c.b16 %v7900, %v7900
  %v7965 = vpack.c.b16 %v7901, %v7901
  %v7966 = vpack.c.b16 %v7902, %v7902
  %v7967 = vpack.c.b16 %v7903, %v7903
  %v7968 = vpack.c.b16 %v7904, %v7904
  %v7969 = vpack.c.b16 %v7905, %v7905
  %v7970 = vpack.c.b16 %v7906, %v7906
  %v7971 = vpack.c.b16 %v7907, %v7907
  %v7972 = vpack.c.b16 %v7908, %v7908
  %v7973 = vpack.c.b16 %v7909, %v7909
  %v7974 = vpack.c.b16 %v7910, %v7910
  %v7975 = vpack.c.b16 %v7911, %v7911
  %v7976 = vpack.c.b16 %v7912, %v7912
  %v7977 = vpack.c.b16 %v7913, %v7913
  %v7978 = vpack.c.b16 %v7914, %v7914
  %v7979 = vpack.c.b16 %v7915, %v7915
  %v7980 = vpack.c.b16 %v7916, %v7916
  %v7981 = vpack.c.b16 %v7917, %v7917
  %v7982 = vpack.c.b16 %v7918, %v7918
  %v7983 = vpack.c.b16 %v7919, %v7919
  %v7984 = vpack.c.b16 %v7920, %v7920
  %v7985 = vpack.c.b16 %v7921, %v7921
  %v7986 = vpack.c.b16 %v7922, %v7922
  %v7987 = vpack.c.b16 %v7923, %v7923
  %v7988 = vpack.c.b16 %v7924, %v7924
  %v7989 = vpack.c.b16 %v7925, %v7925
  %v7990 = vpack.c.b16 %v7926, %v7926
  %v7991 = vpack.c.b16 %v7927, %v7927
  %v7992 = vpack.c.b16 %v7928, %v7928
  %8057 = vst.msk [vmem:[#allocation3] sm:$0xf] %vm1167, %v7929
  %8058 = vst.msk [vmem:[#allocation3 + $0x14] sm:$0xf] %vm1167, %v7930
  %8059 = vst.msk [vmem:[#allocation3 + $0x28] sm:$0xf] %vm1167, %v7931
  %8060 = vst.msk [vmem:[#allocation3 + $0x3c] sm:$0xf] %vm1167, %v7932
  %8061 = vst.msk [vmem:[#allocation3 + $0x50] sm:$0xf] %vm1167, %v7933
  %8062 = vst.msk [vmem:[#allocation3 + $0x64] sm:$0xf] %vm1167, %v7934
  %8063 = vst.msk [vmem:[#allocation3 + $0x78] sm:$0xf] %vm1167, %v7935
  %8064 = vst.msk [vmem:[#allocation3 + $0x8c] sm:$0xf] %vm1167, %v7936
  %8065 = vst.msk [vmem:[#allocation3 + $0xa0] sm:$0xf] %vm1167, %v7937
  %8066 = vst.msk [vmem:[#allocation3 + $0xb4] sm:$0xf] %vm1167, %v7938
  %8067 = vst.msk [vmem:[#allocation3 + $0xc8] sm:$0xf] %vm1167, %v7939
  %8068 = vst.msk [vmem:[#allocation3 + $0xdc] sm:$0xf] %vm1167, %v7940
  %8069 = vst.msk [vmem:[#allocation3 + $0xf0] sm:$0xf] %vm1167, %v7941
  %8070 = vst.msk [vmem:[#allocation3 + $0x104] sm:$0xf] %vm1167, %v7942
  %8071 = vst.msk [vmem:[#allocation3 + $0x118] sm:$0xf] %vm1167, %v7943
  %8072 = vst.msk [vmem:[#allocation3 + $0x12c] sm:$0xf] %vm1167, %v7944
  %8073 = vst.msk [vmem:[#allocation3 + $0x140] sm:$0xf] %vm1167, %v7945
  %8074 = vst.msk [vmem:[#allocation3 + $0x154] sm:$0xf] %vm1167, %v7946
  %8075 = vst.msk [vmem:[#allocation3 + $0x168] sm:$0xf] %vm1167, %v7947
  %8076 = vst.msk [vmem:[#allocation3 + $0x17c] sm:$0xf] %vm1167, %v7948
  %8077 = vst.msk [vmem:[#allocation3 + $0x190] sm:$0xf] %vm1167, %v7949
  %8078 = vst.msk [vmem:[#allocation3 + $0x1a4] sm:$0xf] %vm1167, %v7950
  %8079 = vst.msk [vmem:[#allocation3 + $0x1b8] sm:$0xf] %vm1167, %v7951
  %8080 = vst.msk [vmem:[#allocation3 + $0x1cc] sm:$0xf] %vm1167, %v7952
  %8081 = vst.msk [vmem:[#allocation3 + $0x1e0] sm:$0xf] %vm1167, %v7953
  %8082 = vst.msk [vmem:[#allocation3 + $0x1f4] sm:$0xf] %vm1167, %v7954
  %8083 = vst.msk [vmem:[#allocation3 + $0x208] sm:$0xf] %vm1167, %v7955
  %8084 = vst.msk [vmem:[#allocation3 + $0x21c] sm:$0xf] %vm1167, %v7956
  %8085 = vst.msk [vmem:[#allocation3 + $0x230] sm:$0xf] %vm1167, %v7957
  %8086 = vst.msk [vmem:[#allocation3 + $0x244] sm:$0xf] %vm1167, %v7958
  %8087 = vst.msk [vmem:[#allocation3 + $0x258] sm:$0xf] %vm1167, %v7959
  %8088 = vst.msk [vmem:[#allocation3 + $0x26c] sm:$0xf] %vm1167, %v7960
  %8089 = vst.msk [vmem:[#allocation3 + $0x280] sm:$0xf] %vm1167, %v7961
  %8090 = vst.msk [vmem:[#allocation3 + $0x294] sm:$0xf] %vm1167, %v7962
  %8091 = vst.msk [vmem:[#allocation3 + $0x2a8] sm:$0xf] %vm1167, %v7963
  %8092 = vst.msk [vmem:[#allocation3 + $0x2bc] sm:$0xf] %vm1167, %v7964
  %8093 = vst.msk [vmem:[#allocation3 + $0x2d0] sm:$0xf] %vm1167, %v7965
  %8094 = vst.msk [vmem:[#allocation3 + $0x2e4] sm:$0xf] %vm1167, %v7966
  %8095 = vst.msk [vmem:[#allocation3 + $0x2f8] sm:$0xf] %vm1167, %v7967
  %8096 = vst.msk [vmem:[#allocation3 + $0x30c] sm:$0xf] %vm1167, %v7968
  %8097 = vst.msk [vmem:[#allocation3 + $0x320] sm:$0xf] %vm1167, %v7969
  %8098 = vst.msk [vmem:[#allocation3 + $0x334] sm:$0xf] %vm1167, %v7970
  %8099 = vst.msk [vmem:[#allocation3 + $0x348] sm:$0xf] %vm1167, %v7971
  %8100 = vst.msk [vmem:[#allocation3 + $0x35c] sm:$0xf] %vm1167, %v7972
  %8101 = vst.msk [vmem:[#allocation3 + $0x370] sm:$0xf] %vm1167, %v7973
  %8102 = vst.msk [vmem:[#allocation3 + $0x384] sm:$0xf] %vm1167, %v7974
  %8103 = vst.msk [vmem:[#allocation3 + $0x398] sm:$0xf] %vm1167, %v7975
  %8104 = vst.msk [vmem:[#allocation3 + $0x3ac] sm:$0xf] %vm1167, %v7976
  %8105 = vst.msk [vmem:[#allocation3 + $0x3c0] sm:$0xf] %vm1167, %v7977
  %8106 = vst.msk [vmem:[#allocation3 + $0x3d4] sm:$0xf] %vm1167, %v7978
  %8107 = vst.msk [vmem:[#allocation3 + $0x3e8] sm:$0xf] %vm1167, %v7979
  %8108 = vst.msk [vmem:[#allocation3 + $0x3fc] sm:$0xf] %vm1167, %v7980
  %8109 = vst.msk [vmem:[#allocation3 + $0x410] sm:$0xf] %vm1167, %v7981
  %8110 = vst.msk [vmem:[#allocation3 + $0x424] sm:$0xf] %vm1167, %v7982
  %8111 = vst.msk [vmem:[#allocation3 + $0x438] sm:$0xf] %vm1167, %v7983
  %8112 = vst.msk [vmem:[#allocation3 + $0x44c] sm:$0xf] %vm1167, %v7984
  %8113 = vst.msk [vmem:[#allocation3 + $0x460] sm:$0xf] %vm1167, %v7985
  %8114 = vst.msk [vmem:[#allocation3 + $0x474] sm:$0xf] %vm1167, %v7986
  %8115 = vst.msk [vmem:[#allocation3 + $0x488] sm:$0xf] %vm1167, %v7987
  %8116 = vst.msk [vmem:[#allocation3 + $0x49c] sm:$0xf] %vm1167, %v7988
  %8117 = vst.msk [vmem:[#allocation3 + $0x4b0] sm:$0xf] %vm1167, %v7989
  %8118 = vst.msk [vmem:[#allocation3 + $0x4c4] sm:$0xf] %vm1167, %v7990
  %8119 = vst.msk [vmem:[#allocation3 + $0x4d8] sm:$0xf] %vm1167, %v7991
  %8120 = vst.msk [vmem:[#allocation3 + $0x4ec] sm:$0xf] %vm1167, %v7992
  %v8121 = vld [vmem:[#allocation2 + $0x1] sm:$0xff]
  %v8122 = vld [vmem:[#allocation2 + $0x9] sm:$0xff]
  %v8123 = vld [vmem:[#allocation2 + $0x19] sm:$0xff]
  %v8124 = vld [vmem:[#allocation2 + $0x21] sm:$0xff]
  %v8125 = vld [vmem:[#allocation2 + $0x31] sm:$0xff]
  %v8126 = vld [vmem:[#allocation2 + $0x39] sm:$0xff]
  %v8127 = vld [vmem:[#allocation2 + $0x49] sm:$0xff]
  %v8128 = vld [vmem:[#allocation2 + $0x51] sm:$0xff]
  %v8129 = vld [vmem:[#allocation2 + $0x61] sm:$0xff]
  %v8130 = vld [vmem:[#allocation2 + $0x69] sm:$0xff]
  %v8131 = vld [vmem:[#allocation2 + $0x79] sm:$0xff]
  %v8132 = vld [vmem:[#allocation2 + $0x81] sm:$0xff]
  %v8133 = vld [vmem:[#allocation2 + $0x91] sm:$0xff]
  %v8134 = vld [vmem:[#allocation2 + $0x99] sm:$0xff]
  %v8135 = vld [vmem:[#allocation2 + $0xa9] sm:$0xff]
  %v8136 = vld [vmem:[#allocation2 + $0xb1] sm:$0xff]
  %v8137 = vld [vmem:[#allocation2 + $0xc1] sm:$0xff]
  %v8138 = vld [vmem:[#allocation2 + $0xc9] sm:$0xff]
  %v8139 = vld [vmem:[#allocation2 + $0xd9] sm:$0xff]
  %v8140 = vld [vmem:[#allocation2 + $0xe1] sm:$0xff]
  %v8141 = vld [vmem:[#allocation2 + $0xf1] sm:$0xff]
  %v8142 = vld [vmem:[#allocation2 + $0xf9] sm:$0xff]
  %v8143 = vld [vmem:[#allocation2 + $0x109] sm:$0xff]
  %v8144 = vld [vmem:[#allocation2 + $0x111] sm:$0xff]
  %v8145 = vld [vmem:[#allocation2 + $0x121] sm:$0xff]
  %v8146 = vld [vmem:[#allocation2 + $0x129] sm:$0xff]
  %v8147 = vld [vmem:[#allocation2 + $0x139] sm:$0xff]
  %v8148 = vld [vmem:[#allocation2 + $0x141] sm:$0xff]
  %v8149 = vld [vmem:[#allocation2 + $0x151] sm:$0xff]
  %v8150 = vld [vmem:[#allocation2 + $0x159] sm:$0xff]
  %v8151 = vld [vmem:[#allocation2 + $0x169] sm:$0xff]
  %v8152 = vld [vmem:[#allocation2 + $0x171] sm:$0xff]
  %v8153 = vld [vmem:[#allocation2 + $0x1b1] sm:$0xff]
  %v8154 = vld [vmem:[#allocation2 + $0x1b9] sm:$0xff]
  %v8155 = vld [vmem:[#allocation2 + $0x1c9] sm:$0xff]
  %v8156 = vld [vmem:[#allocation2 + $0x1d1] sm:$0xff]
  %v8157 = vld [vmem:[#allocation2 + $0x1e1] sm:$0xff]
  %v8158 = vld [vmem:[#allocation2 + $0x1e9] sm:$0xff]
  %v8159 = vld [vmem:[#allocation2 + $0x1f9] sm:$0xff]
  %v8160 = vld [vmem:[#allocation2 + $0x201] sm:$0xff]
  %v8161 = vld [vmem:[#allocation2 + $0x211] sm:$0xff]
  %v8162 = vld [vmem:[#allocation2 + $0x219] sm:$0xff]
  %v8163 = vld [vmem:[#allocation2 + $0x229] sm:$0xff]
  %v8164 = vld [vmem:[#allocation2 + $0x231] sm:$0xff]
  %v8165 = vld [vmem:[#allocation2 + $0x241] sm:$0xff]
  %v8166 = vld [vmem:[#allocation2 + $0x249] sm:$0xff]
  %v8167 = vld [vmem:[#allocation2 + $0x259] sm:$0xff]
  %v8168 = vld [vmem:[#allocation2 + $0x261] sm:$0xff]
  %v8169 = vld [vmem:[#allocation2 + $0x271] sm:$0xff]
  %v8170 = vld [vmem:[#allocation2 + $0x279] sm:$0xff]
  %v8171 = vld [vmem:[#allocation2 + $0x289] sm:$0xff]
  %v8172 = vld [vmem:[#allocation2 + $0x291] sm:$0xff]
  %v8173 = vld [vmem:[#allocation2 + $0x2a1] sm:$0xff]
  %v8174 = vld [vmem:[#allocation2 + $0x2a9] sm:$0xff]
  %v8175 = vld [vmem:[#allocation2 + $0x2b9] sm:$0xff]
  %v8176 = vld [vmem:[#allocation2 + $0x2c1] sm:$0xff]
  %v8177 = vld [vmem:[#allocation2 + $0x2d1] sm:$0xff]
  %v8178 = vld [vmem:[#allocation2 + $0x2d9] sm:$0xff]
  %v8179 = vld [vmem:[#allocation2 + $0x2e9] sm:$0xff]
  %v8180 = vld [vmem:[#allocation2 + $0x2f1] sm:$0xff]
  %v8181 = vld [vmem:[#allocation2 + $0x301] sm:$0xff]
  %v8182 = vld [vmem:[#allocation2 + $0x309] sm:$0xff]
  %v8183 = vld [vmem:[#allocation2 + $0x319] sm:$0xff]
  %v8184 = vld [vmem:[#allocation2 + $0x321] sm:$0xff]
  %v8185 = vpack.c.bf16 %v8122, %v8121
  %v8186 = vpack.c.bf16 %v8124, %v8123
  %v8187 = vpack.c.bf16 %v8126, %v8125
  %v8188 = vpack.c.bf16 %v8128, %v8127
  %v8189 = vpack.c.bf16 %v8130, %v8129
  %v8190 = vpack.c.bf16 %v8132, %v8131
  %v8191 = vpack.c.bf16 %v8134, %v8133
  %v8192 = vpack.c.bf16 %v8136, %v8135
  %v8193 = vpack.c.bf16 %v8138, %v8137
  %v8194 = vpack.c.bf16 %v8140, %v8139
  %v8195 = vpack.c.bf16 %v8142, %v8141
  %v8196 = vpack.c.bf16 %v8144, %v8143
  %v8197 = vpack.c.bf16 %v8146, %v8145
  %v8198 = vpack.c.bf16 %v8148, %v8147
  %v8199 = vpack.c.bf16 %v8150, %v8149
  %v8200 = vpack.c.bf16 %v8152, %v8151
  %v8201 = vpack.c.bf16 %v8154, %v8153
  %v8202 = vpack.c.bf16 %v8156, %v8155
  %v8203 = vpack.c.bf16 %v8158, %v8157
  %v8204 = vpack.c.bf16 %v8160, %v8159
  %v8205 = vpack.c.bf16 %v8162, %v8161
  %v8206 = vpack.c.bf16 %v8164, %v8163
  %v8207 = vpack.c.bf16 %v8166, %v8165
  %v8208 = vpack.c.bf16 %v8168, %v8167
  %v8209 = vpack.c.bf16 %v8170, %v8169
  %v8210 = vpack.c.bf16 %v8172, %v8171
  %v8211 = vpack.c.bf16 %v8174, %v8173
  %v8212 = vpack.c.bf16 %v8176, %v8175
  %v8213 = vpack.c.bf16 %v8178, %v8177
  %v8214 = vpack.c.bf16 %v8180, %v8179
  %v8215 = vpack.c.bf16 %v8182, %v8181
  %v8216 = vpack.c.bf16 %v8184, %v8183
  %v8249 = vunpack.c.l.b16 %v8185
  %v8250 = vunpack.c.h.b16 %v8185
  %v8251 = vunpack.c.l.b16 %v8186
  %v8252 = vunpack.c.h.b16 %v8186
  %v8253 = vunpack.c.l.b16 %v8187
  %v8254 = vunpack.c.h.b16 %v8187
  %v8255 = vunpack.c.l.b16 %v8188
  %v8256 = vunpack.c.h.b16 %v8188
  %v8257 = vunpack.c.l.b16 %v8189
  %v8258 = vunpack.c.h.b16 %v8189
  %v8259 = vunpack.c.l.b16 %v8190
  %v8260 = vunpack.c.h.b16 %v8190
  %v8261 = vunpack.c.l.b16 %v8191
  %v8262 = vunpack.c.h.b16 %v8191
  %v8263 = vunpack.c.l.b16 %v8192
  %v8264 = vunpack.c.h.b16 %v8192
  %v8265 = vunpack.c.l.b16 %v8193
  %v8266 = vunpack.c.h.b16 %v8193
  %v8267 = vunpack.c.l.b16 %v8194
  %v8268 = vunpack.c.h.b16 %v8194
  %v8269 = vunpack.c.l.b16 %v8195
  %v8270 = vunpack.c.h.b16 %v8195
  %v8271 = vunpack.c.l.b16 %v8196
  %v8272 = vunpack.c.h.b16 %v8196
  %v8273 = vunpack.c.l.b16 %v8197
  %v8274 = vunpack.c.h.b16 %v8197
  %v8275 = vunpack.c.l.b16 %v8198
  %v8276 = vunpack.c.h.b16 %v8198
  %v8277 = vunpack.c.l.b16 %v8199
  %v8278 = vunpack.c.h.b16 %v8199
  %v8279 = vunpack.c.l.b16 %v8200
  %v8280 = vunpack.c.h.b16 %v8200
  %v8281 = vunpack.c.l.b16 %v8201
  %v8282 = vunpack.c.h.b16 %v8201
  %v8283 = vunpack.c.l.b16 %v8202
  %v8284 = vunpack.c.h.b16 %v8202
  %v8285 = vunpack.c.l.b16 %v8203
  %v8286 = vunpack.c.h.b16 %v8203
  %v8287 = vunpack.c.l.b16 %v8204
  %v8288 = vunpack.c.h.b16 %v8204
  %v8289 = vunpack.c.l.b16 %v8205
  %v8290 = vunpack.c.h.b16 %v8205
  %v8291 = vunpack.c.l.b16 %v8206
  %v8292 = vunpack.c.h.b16 %v8206
  %v8293 = vunpack.c.l.b16 %v8207
  %v8294 = vunpack.c.h.b16 %v8207
  %v8295 = vunpack.c.l.b16 %v8208
  %v8296 = vunpack.c.h.b16 %v8208
  %v8297 = vunpack.c.l.b16 %v8209
  %v8298 = vunpack.c.h.b16 %v8209
  %v8299 = vunpack.c.l.b16 %v8210
  %v8300 = vunpack.c.h.b16 %v8210
  %v8301 = vunpack.c.l.b16 %v8211
  %v8302 = vunpack.c.h.b16 %v8211
  %v8303 = vunpack.c.l.b16 %v8212
  %v8304 = vunpack.c.h.b16 %v8212
  %v8305 = vunpack.c.l.b16 %v8213
  %v8306 = vunpack.c.h.b16 %v8213
  %v8307 = vunpack.c.l.b16 %v8214
  %v8308 = vunpack.c.h.b16 %v8214
  %v8309 = vunpack.c.l.b16 %v8215
  %v8310 = vunpack.c.h.b16 %v8215
  %v8311 = vunpack.c.l.b16 %v8216
  %v8312 = vunpack.c.h.b16 %v8216
  %v8313 = vpack.c.b16 %v8249, %v8249
  %v8314 = vpack.c.b16 %v8250, %v8250
  %v8315 = vpack.c.b16 %v8251, %v8251
  %v8316 = vpack.c.b16 %v8252, %v8252
  %v8317 = vpack.c.b16 %v8253, %v8253
  %v8318 = vpack.c.b16 %v8254, %v8254
  %v8319 = vpack.c.b16 %v8255, %v8255
  %v8320 = vpack.c.b16 %v8256, %v8256
  %v8321 = vpack.c.b16 %v8257, %v8257
  %v8322 = vpack.c.b16 %v8258, %v8258
  %v8323 = vpack.c.b16 %v8259, %v8259
  %v8324 = vpack.c.b16 %v8260, %v8260
  %v8325 = vpack.c.b16 %v8261, %v8261
  %v8326 = vpack.c.b16 %v8262, %v8262
  %v8327 = vpack.c.b16 %v8263, %v8263
  %v8328 = vpack.c.b16 %v8264, %v8264
  %v8329 = vpack.c.b16 %v8265, %v8265
  %v8330 = vpack.c.b16 %v8266, %v8266
  %v8331 = vpack.c.b16 %v8267, %v8267
  %v8332 = vpack.c.b16 %v8268, %v8268
  %v8333 = vpack.c.b16 %v8269, %v8269
  %v8334 = vpack.c.b16 %v8270, %v8270
  %v8335 = vpack.c.b16 %v8271, %v8271
  %v8336 = vpack.c.b16 %v8272, %v8272
  %v8337 = vpack.c.b16 %v8273, %v8273
  %v8338 = vpack.c.b16 %v8274, %v8274
  %v8339 = vpack.c.b16 %v8275, %v8275
  %v8340 = vpack.c.b16 %v8276, %v8276
  %v8341 = vpack.c.b16 %v8277, %v8277
  %v8342 = vpack.c.b16 %v8278, %v8278
  %v8343 = vpack.c.b16 %v8279, %v8279
  %v8344 = vpack.c.b16 %v8280, %v8280
  %v8345 = vpack.c.b16 %v8281, %v8281
  %v8346 = vpack.c.b16 %v8282, %v8282
  %v8347 = vpack.c.b16 %v8283, %v8283
  %v8348 = vpack.c.b16 %v8284, %v8284
  %v8349 = vpack.c.b16 %v8285, %v8285
  %v8350 = vpack.c.b16 %v8286, %v8286
  %v8351 = vpack.c.b16 %v8287, %v8287
  %v8352 = vpack.c.b16 %v8288, %v8288
  %v8353 = vpack.c.b16 %v8289, %v8289
  %v8354 = vpack.c.b16 %v8290, %v8290
  %v8355 = vpack.c.b16 %v8291, %v8291
  %v8356 = vpack.c.b16 %v8292, %v8292
  %v8357 = vpack.c.b16 %v8293, %v8293
  %v8358 = vpack.c.b16 %v8294, %v8294
  %v8359 = vpack.c.b16 %v8295, %v8295
  %v8360 = vpack.c.b16 %v8296, %v8296
  %v8361 = vpack.c.b16 %v8297, %v8297
  %v8362 = vpack.c.b16 %v8298, %v8298
  %v8363 = vpack.c.b16 %v8299, %v8299
  %v8364 = vpack.c.b16 %v8300, %v8300
  %v8365 = vpack.c.b16 %v8301, %v8301
  %v8366 = vpack.c.b16 %v8302, %v8302
  %v8367 = vpack.c.b16 %v8303, %v8303
  %v8368 = vpack.c.b16 %v8304, %v8304
  %v8369 = vpack.c.b16 %v8305, %v8305
  %v8370 = vpack.c.b16 %v8306, %v8306
  %v8371 = vpack.c.b16 %v8307, %v8307
  %v8372 = vpack.c.b16 %v8308, %v8308
  %v8373 = vpack.c.b16 %v8309, %v8309
  %v8374 = vpack.c.b16 %v8310, %v8310
  %v8375 = vpack.c.b16 %v8311, %v8311
  %v8376 = vpack.c.b16 %v8312, %v8312
  %8377 = vrot.lane.b32.xlu0 %v8313, 64
  %v8378 = vpop.permute.xlu0 %8377
  %8379 = vrot.lane.b32.xlu0 %v8314, 64
  %v8380 = vpop.permute.xlu0 %8379
  %8381 = vrot.lane.b32.xlu0 %v8315, 64
  %v8382 = vpop.permute.xlu0 %8381
  %8383 = vrot.lane.b32.xlu0 %v8316, 64
  %v8384 = vpop.permute.xlu0 %8383
  %8385 = vrot.lane.b32.xlu0 %v8317, 64
  %v8386 = vpop.permute.xlu0 %8385
  %8387 = vrot.lane.b32.xlu0 %v8318, 64
  %v8388 = vpop.permute.xlu0 %8387
  %8389 = vrot.lane.b32.xlu0 %v8319, 64
  %v8390 = vpop.permute.xlu0 %8389
  %8391 = vrot.lane.b32.xlu0 %v8320, 64
  %v8392 = vpop.permute.xlu0 %8391
  %8393 = vrot.lane.b32.xlu0 %v8321, 64
  %v8394 = vpop.permute.xlu0 %8393
  %8395 = vrot.lane.b32.xlu0 %v8322, 64
  %v8396 = vpop.permute.xlu0 %8395
  %8397 = vrot.lane.b32.xlu0 %v8323, 64
  %v8398 = vpop.permute.xlu0 %8397
  %8399 = vrot.lane.b32.xlu0 %v8324, 64
  %v8400 = vpop.permute.xlu0 %8399
  %8401 = vrot.lane.b32.xlu0 %v8325, 64
  %v8402 = vpop.permute.xlu0 %8401
  %8403 = vrot.lane.b32.xlu0 %v8326, 64
  %v8404 = vpop.permute.xlu0 %8403
  %8405 = vrot.lane.b32.xlu0 %v8327, 64
  %v8406 = vpop.permute.xlu0 %8405
  %8407 = vrot.lane.b32.xlu0 %v8328, 64
  %v8408 = vpop.permute.xlu0 %8407
  %8409 = vrot.lane.b32.xlu0 %v8329, 64
  %v8410 = vpop.permute.xlu0 %8409
  %8411 = vrot.lane.b32.xlu0 %v8330, 64
  %v8412 = vpop.permute.xlu0 %8411
  %8413 = vrot.lane.b32.xlu0 %v8331, 64
  %v8414 = vpop.permute.xlu0 %8413
  %8415 = vrot.lane.b32.xlu0 %v8332, 64
  %v8416 = vpop.permute.xlu0 %8415
  %8417 = vrot.lane.b32.xlu0 %v8333, 64
  %v8418 = vpop.permute.xlu0 %8417
  %8419 = vrot.lane.b32.xlu0 %v8334, 64
  %v8420 = vpop.permute.xlu0 %8419
  %8421 = vrot.lane.b32.xlu0 %v8335, 64
  %v8422 = vpop.permute.xlu0 %8421
  %8423 = vrot.lane.b32.xlu0 %v8336, 64
  %v8424 = vpop.permute.xlu0 %8423
  %8425 = vrot.lane.b32.xlu0 %v8337, 64
  %v8426 = vpop.permute.xlu0 %8425
  %8427 = vrot.lane.b32.xlu0 %v8338, 64
  %v8428 = vpop.permute.xlu0 %8427
  %8429 = vrot.lane.b32.xlu0 %v8339, 64
  %v8430 = vpop.permute.xlu0 %8429
  %8431 = vrot.lane.b32.xlu0 %v8340, 64
  %v8432 = vpop.permute.xlu0 %8431
  %8433 = vrot.lane.b32.xlu0 %v8341, 64
  %v8434 = vpop.permute.xlu0 %8433
  %8435 = vrot.lane.b32.xlu0 %v8342, 64
  %v8436 = vpop.permute.xlu0 %8435
  %8437 = vrot.lane.b32.xlu0 %v8343, 64
  %v8438 = vpop.permute.xlu0 %8437
  %8439 = vrot.lane.b32.xlu0 %v8344, 64
  %v8440 = vpop.permute.xlu0 %8439
  %8441 = vrot.lane.b32.xlu0 %v8345, 64
  %v8442 = vpop.permute.xlu0 %8441
  %8443 = vrot.lane.b32.xlu0 %v8346, 64
  %v8444 = vpop.permute.xlu0 %8443
  %8445 = vrot.lane.b32.xlu0 %v8347, 64
  %v8446 = vpop.permute.xlu0 %8445
  %8447 = vrot.lane.b32.xlu0 %v8348, 64
  %v8448 = vpop.permute.xlu0 %8447
  %8449 = vrot.lane.b32.xlu0 %v8349, 64
  %v8450 = vpop.permute.xlu0 %8449
  %8451 = vrot.lane.b32.xlu0 %v8350, 64
  %v8452 = vpop.permute.xlu0 %8451
  %8453 = vrot.lane.b32.xlu0 %v8351, 64
  %v8454 = vpop.permute.xlu0 %8453
  %8455 = vrot.lane.b32.xlu0 %v8352, 64
  %v8456 = vpop.permute.xlu0 %8455
  %8457 = vrot.lane.b32.xlu0 %v8353, 64
  %v8458 = vpop.permute.xlu0 %8457
  %8459 = vrot.lane.b32.xlu0 %v8354, 64
  %v8460 = vpop.permute.xlu0 %8459
  %8461 = vrot.lane.b32.xlu0 %v8355, 64
  %v8462 = vpop.permute.xlu0 %8461
  %8463 = vrot.lane.b32.xlu0 %v8356, 64
  %v8464 = vpop.permute.xlu0 %8463
  %8465 = vrot.lane.b32.xlu0 %v8357, 64
  %v8466 = vpop.permute.xlu0 %8465
  %8467 = vrot.lane.b32.xlu0 %v8358, 64
  %v8468 = vpop.permute.xlu0 %8467
  %8469 = vrot.lane.b32.xlu0 %v8359, 64
  %v8470 = vpop.permute.xlu0 %8469
  %8471 = vrot.lane.b32.xlu0 %v8360, 64
  %v8472 = vpop.permute.xlu0 %8471
  %8473 = vrot.lane.b32.xlu0 %v8361, 64
  %v8474 = vpop.permute.xlu0 %8473
  %8475 = vrot.lane.b32.xlu0 %v8362, 64
  %v8476 = vpop.permute.xlu0 %8475
  %8477 = vrot.lane.b32.xlu0 %v8363, 64
  %v8478 = vpop.permute.xlu0 %8477
  %8479 = vrot.lane.b32.xlu0 %v8364, 64
  %v8480 = vpop.permute.xlu0 %8479
  %8481 = vrot.lane.b32.xlu0 %v8365, 64
  %v8482 = vpop.permute.xlu0 %8481
  %8483 = vrot.lane.b32.xlu0 %v8366, 64
  %v8484 = vpop.permute.xlu0 %8483
  %8485 = vrot.lane.b32.xlu0 %v8367, 64
  %v8486 = vpop.permute.xlu0 %8485
  %8487 = vrot.lane.b32.xlu0 %v8368, 64
  %v8488 = vpop.permute.xlu0 %8487
  %8489 = vrot.lane.b32.xlu0 %v8369, 64
  %v8490 = vpop.permute.xlu0 %8489
  %8491 = vrot.lane.b32.xlu0 %v8370, 64
  %v8492 = vpop.permute.xlu0 %8491
  %8493 = vrot.lane.b32.xlu0 %v8371, 64
  %v8494 = vpop.permute.xlu0 %8493
  %8495 = vrot.lane.b32.xlu0 %v8372, 64
  %v8496 = vpop.permute.xlu0 %8495
  %8497 = vrot.lane.b32.xlu0 %v8373, 64
  %v8498 = vpop.permute.xlu0 %8497
  %8499 = vrot.lane.b32.xlu0 %v8374, 64
  %v8500 = vpop.permute.xlu0 %8499
  %8501 = vrot.lane.b32.xlu0 %v8375, 64
  %v8502 = vpop.permute.xlu0 %8501
  %8503 = vrot.lane.b32.xlu0 %v8376, 64
  %v8504 = vpop.permute.xlu0 %8503
  %8569 = vst.msk [vmem:[#allocation3] sm:$0xf] %vm1680, %v8378
  %8570 = vst.msk [vmem:[#allocation3 + $0x14] sm:$0xf] %vm1680, %v8380
  %8571 = vst.msk [vmem:[#allocation3 + $0x28] sm:$0xf] %vm1680, %v8382
  %8572 = vst.msk [vmem:[#allocation3 + $0x3c] sm:$0xf] %vm1680, %v8384
  %8573 = vst.msk [vmem:[#allocation3 + $0x50] sm:$0xf] %vm1680, %v8386
  %8574 = vst.msk [vmem:[#allocation3 + $0x64] sm:$0xf] %vm1680, %v8388
  %8575 = vst.msk [vmem:[#allocation3 + $0x78] sm:$0xf] %vm1680, %v8390
  %8576 = vst.msk [vmem:[#allocation3 + $0x8c] sm:$0xf] %vm1680, %v8392
  %8577 = vst.msk [vmem:[#allocation3 + $0xa0] sm:$0xf] %vm1680, %v8394
  %8578 = vst.msk [vmem:[#allocation3 + $0xb4] sm:$0xf] %vm1680, %v8396
  %8579 = vst.msk [vmem:[#allocation3 + $0xc8] sm:$0xf] %vm1680, %v8398
  %8580 = vst.msk [vmem:[#allocation3 + $0xdc] sm:$0xf] %vm1680, %v8400
  %8581 = vst.msk [vmem:[#allocation3 + $0xf0] sm:$0xf] %vm1680, %v8402
  %8582 = vst.msk [vmem:[#allocation3 + $0x104] sm:$0xf] %vm1680, %v8404
  %8583 = vst.msk [vmem:[#allocation3 + $0x118] sm:$0xf] %vm1680, %v8406
  %8584 = vst.msk [vmem:[#allocation3 + $0x12c] sm:$0xf] %vm1680, %v8408
  %8585 = vst.msk [vmem:[#allocation3 + $0x140] sm:$0xf] %vm1680, %v8410
  %8586 = vst.msk [vmem:[#allocation3 + $0x154] sm:$0xf] %vm1680, %v8412
  %8587 = vst.msk [vmem:[#allocation3 + $0x168] sm:$0xf] %vm1680, %v8414
  %8588 = vst.msk [vmem:[#allocation3 + $0x17c] sm:$0xf] %vm1680, %v8416
  %8589 = vst.msk [vmem:[#allocation3 + $0x190] sm:$0xf] %vm1680, %v8418
  %8590 = vst.msk [vmem:[#allocation3 + $0x1a4] sm:$0xf] %vm1680, %v8420
  %8591 = vst.msk [vmem:[#allocation3 + $0x1b8] sm:$0xf] %vm1680, %v8422
  %8592 = vst.msk [vmem:[#allocation3 + $0x1cc] sm:$0xf] %vm1680, %v8424
  %8593 = vst.msk [vmem:[#allocation3 + $0x1e0] sm:$0xf] %vm1680, %v8426
  %8594 = vst.msk [vmem:[#allocation3 + $0x1f4] sm:$0xf] %vm1680, %v8428
  %8595 = vst.msk [vmem:[#allocation3 + $0x208] sm:$0xf] %vm1680, %v8430
  %8596 = vst.msk [vmem:[#allocation3 + $0x21c] sm:$0xf] %vm1680, %v8432
  %8597 = vst.msk [vmem:[#allocation3 + $0x230] sm:$0xf] %vm1680, %v8434
  %8598 = vst.msk [vmem:[#allocation3 + $0x244] sm:$0xf] %vm1680, %v8436
  %8599 = vst.msk [vmem:[#allocation3 + $0x258] sm:$0xf] %vm1680, %v8438
  %8600 = vst.msk [vmem:[#allocation3 + $0x26c] sm:$0xf] %vm1680, %v8440
  %8601 = vst.msk [vmem:[#allocation3 + $0x280] sm:$0xf] %vm1680, %v8442
  %8602 = vst.msk [vmem:[#allocation3 + $0x294] sm:$0xf] %vm1680, %v8444
  %8603 = vst.msk [vmem:[#allocation3 + $0x2a8] sm:$0xf] %vm1680, %v8446
  %8604 = vst.msk [vmem:[#allocation3 + $0x2bc] sm:$0xf] %vm1680, %v8448
  %8605 = vst.msk [vmem:[#allocation3 + $0x2d0] sm:$0xf] %vm1680, %v8450
  %8606 = vst.msk [vmem:[#allocation3 + $0x2e4] sm:$0xf] %vm1680, %v8452
  %8607 = vst.msk [vmem:[#allocation3 + $0x2f8] sm:$0xf] %vm1680, %v8454
  %8608 = vst.msk [vmem:[#allocation3 + $0x30c] sm:$0xf] %vm1680, %v8456
  %8609 = vst.msk [vmem:[#allocation3 + $0x320] sm:$0xf] %vm1680, %v8458
  %8610 = vst.msk [vmem:[#allocation3 + $0x334] sm:$0xf] %vm1680, %v8460
  %8611 = vst.msk [vmem:[#allocation3 + $0x348] sm:$0xf] %vm1680, %v8462
  %8612 = vst.msk [vmem:[#allocation3 + $0x35c] sm:$0xf] %vm1680, %v8464
  %8613 = vst.msk [vmem:[#allocation3 + $0x370] sm:$0xf] %vm1680, %v8466
  %8614 = vst.msk [vmem:[#allocation3 + $0x384] sm:$0xf] %vm1680, %v8468
  %8615 = vst.msk [vmem:[#allocation3 + $0x398] sm:$0xf] %vm1680, %v8470
  %8616 = vst.msk [vmem:[#allocation3 + $0x3ac] sm:$0xf] %vm1680, %v8472
  %8617 = vst.msk [vmem:[#allocation3 + $0x3c0] sm:$0xf] %vm1680, %v8474
  %8618 = vst.msk [vmem:[#allocation3 + $0x3d4] sm:$0xf] %vm1680, %v8476
  %8619 = vst.msk [vmem:[#allocation3 + $0x3e8] sm:$0xf] %vm1680, %v8478
  %8620 = vst.msk [vmem:[#allocation3 + $0x3fc] sm:$0xf] %vm1680, %v8480
  %8621 = vst.msk [vmem:[#allocation3 + $0x410] sm:$0xf] %vm1680, %v8482
  %8622 = vst.msk [vmem:[#allocation3 + $0x424] sm:$0xf] %vm1680, %v8484
  %8623 = vst.msk [vmem:[#allocation3 + $0x438] sm:$0xf] %vm1680, %v8486
  %8624 = vst.msk [vmem:[#allocation3 + $0x44c] sm:$0xf] %vm1680, %v8488
  %8625 = vst.msk [vmem:[#allocation3 + $0x460] sm:$0xf] %vm1680, %v8490
  %8626 = vst.msk [vmem:[#allocation3 + $0x474] sm:$0xf] %vm1680, %v8492
  %8627 = vst.msk [vmem:[#allocation3 + $0x488] sm:$0xf] %vm1680, %v8494
  %8628 = vst.msk [vmem:[#allocation3 + $0x49c] sm:$0xf] %vm1680, %v8496
  %8629 = vst.msk [vmem:[#allocation3 + $0x4b0] sm:$0xf] %vm1680, %v8498
  %8630 = vst.msk [vmem:[#allocation3 + $0x4c4] sm:$0xf] %vm1680, %v8500
  %8631 = vst.msk [vmem:[#allocation3 + $0x4d8] sm:$0xf] %vm1680, %v8502
  %8632 = vst.msk [vmem:[#allocation3 + $0x4ec] sm:$0xf] %vm1680, %v8504
  %v8633 = vld [vmem:[#allocation2 + $0x2] sm:$0xff]
  %v8634 = vld [vmem:[#allocation2 + $0xa] sm:$0xff]
  %v8635 = vld [vmem:[#allocation2 + $0x1a] sm:$0xff]
  %v8636 = vld [vmem:[#allocation2 + $0x22] sm:$0xff]
  %v8637 = vld [vmem:[#allocation2 + $0x32] sm:$0xff]
  %v8638 = vld [vmem:[#allocation2 + $0x3a] sm:$0xff]
  %v8639 = vld [vmem:[#allocation2 + $0x4a] sm:$0xff]
  %v8640 = vld [vmem:[#allocation2 + $0x52] sm:$0xff]
  %v8641 = vld [vmem:[#allocation2 + $0x62] sm:$0xff]
  %v8642 = vld [vmem:[#allocation2 + $0x6a] sm:$0xff]
  %v8643 = vld [vmem:[#allocation2 + $0x7a] sm:$0xff]
  %v8644 = vld [vmem:[#allocation2 + $0x82] sm:$0xff]
  %v8645 = vld [vmem:[#allocation2 + $0x92] sm:$0xff]
  %v8646 = vld [vmem:[#allocation2 + $0x9a] sm:$0xff]
  %v8647 = vld [vmem:[#allocation2 + $0xaa] sm:$0xff]
  %v8648 = vld [vmem:[#allocation2 + $0xb2] sm:$0xff]
  %v8649 = vld [vmem:[#allocation2 + $0xc2] sm:$0xff]
  %v8650 = vld [vmem:[#allocation2 + $0xca] sm:$0xff]
  %v8651 = vld [vmem:[#allocation2 + $0xda] sm:$0xff]
  %v8652 = vld [vmem:[#allocation2 + $0xe2] sm:$0xff]
  %v8653 = vld [vmem:[#allocation2 + $0xf2] sm:$0xff]
  %v8654 = vld [vmem:[#allocation2 + $0xfa] sm:$0xff]
  %v8655 = vld [vmem:[#allocation2 + $0x10a] sm:$0xff]
  %v8656 = vld [vmem:[#allocation2 + $0x112] sm:$0xff]
  %v8657 = vld [vmem:[#allocation2 + $0x122] sm:$0xff]
  %v8658 = vld [vmem:[#allocation2 + $0x12a] sm:$0xff]
  %v8659 = vld [vmem:[#allocation2 + $0x13a] sm:$0xff]
  %v8660 = vld [vmem:[#allocation2 + $0x142] sm:$0xff]
  %v8661 = vld [vmem:[#allocation2 + $0x152] sm:$0xff]
  %v8662 = vld [vmem:[#allocation2 + $0x15a] sm:$0xff]
  %v8663 = vld [vmem:[#allocation2 + $0x16a] sm:$0xff]
  %v8664 = vld [vmem:[#allocation2 + $0x172] sm:$0xff]
  %v8665 = vld [vmem:[#allocation2 + $0x1b2] sm:$0xff]
  %v8666 = vld [vmem:[#allocation2 + $0x1ba] sm:$0xff]
  %v8667 = vld [vmem:[#allocation2 + $0x1ca] sm:$0xff]
  %v8668 = vld [vmem:[#allocation2 + $0x1d2] sm:$0xff]
  %v8669 = vld [vmem:[#allocation2 + $0x1e2] sm:$0xff]
  %v8670 = vld [vmem:[#allocation2 + $0x1ea] sm:$0xff]
  %v8671 = vld [vmem:[#allocation2 + $0x1fa] sm:$0xff]
  %v8672 = vld [vmem:[#allocation2 + $0x202] sm:$0xff]
  %v8673 = vld [vmem:[#allocation2 + $0x212] sm:$0xff]
  %v8674 = vld [vmem:[#allocation2 + $0x21a] sm:$0xff]
  %v8675 = vld [vmem:[#allocation2 + $0x22a] sm:$0xff]
  %v8676 = vld [vmem:[#allocation2 + $0x232] sm:$0xff]
  %v8677 = vld [vmem:[#allocation2 + $0x242] sm:$0xff]
  %v8678 = vld [vmem:[#allocation2 + $0x24a] sm:$0xff]
  %v8679 = vld [vmem:[#allocation2 + $0x25a] sm:$0xff]
  %v8680 = vld [vmem:[#allocation2 + $0x262] sm:$0xff]
  %v8681 = vld [vmem:[#allocation2 + $0x272] sm:$0xff]
  %v8682 = vld [vmem:[#allocation2 + $0x27a] sm:$0xff]
  %v8683 = vld [vmem:[#allocation2 + $0x28a] sm:$0xff]
  %v8684 = vld [vmem:[#allocation2 + $0x292] sm:$0xff]
  %v8685 = vld [vmem:[#allocation2 + $0x2a2] sm:$0xff]
  %v8686 = vld [vmem:[#allocation2 + $0x2aa] sm:$0xff]
  %v8687 = vld [vmem:[#allocation2 + $0x2ba] sm:$0xff]
  %v8688 = vld [vmem:[#allocation2 + $0x2c2] sm:$0xff]
  %v8689 = vld [vmem:[#allocation2 + $0x2d2] sm:$0xff]
  %v8690 = vld [vmem:[#allocation2 + $0x2da] sm:$0xff]
  %v8691 = vld [vmem:[#allocation2 + $0x2ea] sm:$0xff]
  %v8692 = vld [vmem:[#allocation2 + $0x2f2] sm:$0xff]
  %v8693 = vld [vmem:[#allocation2 + $0x302] sm:$0xff]
  %v8694 = vld [vmem:[#allocation2 + $0x30a] sm:$0xff]
  %v8695 = vld [vmem:[#allocation2 + $0x31a] sm:$0xff]
  %v8696 = vld [vmem:[#allocation2 + $0x322] sm:$0xff]
  %v8697 = vpack.c.bf16 %v8634, %v8633
  %v8698 = vpack.c.bf16 %v8636, %v8635
  %v8699 = vpack.c.bf16 %v8638, %v8637
  %v8700 = vpack.c.bf16 %v8640, %v8639
  %v8701 = vpack.c.bf16 %v8642, %v8641
  %v8702 = vpack.c.bf16 %v8644, %v8643
  %v8703 = vpack.c.bf16 %v8646, %v8645
  %v8704 = vpack.c.bf16 %v8648, %v8647
  %v8705 = vpack.c.bf16 %v8650, %v8649
  %v8706 = vpack.c.bf16 %v8652, %v8651
  %v8707 = vpack.c.bf16 %v8654, %v8653
  %v8708 = vpack.c.bf16 %v8656, %v8655
  %v8709 = vpack.c.bf16 %v8658, %v8657
  %v8710 = vpack.c.bf16 %v8660, %v8659
  %v8711 = vpack.c.bf16 %v8662, %v8661
  %v8712 = vpack.c.bf16 %v8664, %v8663
  %v8713 = vpack.c.bf16 %v8666, %v8665
  %v8714 = vpack.c.bf16 %v8668, %v8667
  %v8715 = vpack.c.bf16 %v8670, %v8669
  %v8716 = vpack.c.bf16 %v8672, %v8671
  %v8717 = vpack.c.bf16 %v8674, %v8673
  %v8718 = vpack.c.bf16 %v8676, %v8675
  %v8719 = vpack.c.bf16 %v8678, %v8677
  %v8720 = vpack.c.bf16 %v8680, %v8679
  %v8721 = vpack.c.bf16 %v8682, %v8681
  %v8722 = vpack.c.bf16 %v8684, %v8683
  %v8723 = vpack.c.bf16 %v8686, %v8685
  %v8724 = vpack.c.bf16 %v8688, %v8687
  %v8725 = vpack.c.bf16 %v8690, %v8689
  %v8726 = vpack.c.bf16 %v8692, %v8691
  %v8727 = vpack.c.bf16 %v8694, %v8693
  %v8728 = vpack.c.bf16 %v8696, %v8695
  %v8761 = vunpack.c.l.b16 %v8697
  %v8762 = vunpack.c.h.b16 %v8697
  %v8763 = vunpack.c.l.b16 %v8698
  %v8764 = vunpack.c.h.b16 %v8698
  %v8765 = vunpack.c.l.b16 %v8699
  %v8766 = vunpack.c.h.b16 %v8699
  %v8767 = vunpack.c.l.b16 %v8700
  %v8768 = vunpack.c.h.b16 %v8700
  %v8769 = vunpack.c.l.b16 %v8701
  %v8770 = vunpack.c.h.b16 %v8701
  %v8771 = vunpack.c.l.b16 %v8702
  %v8772 = vunpack.c.h.b16 %v8702
  %v8773 = vunpack.c.l.b16 %v8703
  %v8774 = vunpack.c.h.b16 %v8703
  %v8775 = vunpack.c.l.b16 %v8704
  %v8776 = vunpack.c.h.b16 %v8704
  %v8777 = vunpack.c.l.b16 %v8705
  %v8778 = vunpack.c.h.b16 %v8705
  %v8779 = vunpack.c.l.b16 %v8706
  %v8780 = vunpack.c.h.b16 %v8706
  %v8781 = vunpack.c.l.b16 %v8707
  %v8782 = vunpack.c.h.b16 %v8707
  %v8783 = vunpack.c.l.b16 %v8708
  %v8784 = vunpack.c.h.b16 %v8708
  %v8785 = vunpack.c.l.b16 %v8709
  %v8786 = vunpack.c.h.b16 %v8709
  %v8787 = vunpack.c.l.b16 %v8710
  %v8788 = vunpack.c.h.b16 %v8710
  %v8789 = vunpack.c.l.b16 %v8711
  %v8790 = vunpack.c.h.b16 %v8711
  %v8791 = vunpack.c.l.b16 %v8712
  %v8792 = vunpack.c.h.b16 %v8712
  %v8793 = vunpack.c.l.b16 %v8713
  %v8794 = vunpack.c.h.b16 %v8713
  %v8795 = vunpack.c.l.b16 %v8714
  %v8796 = vunpack.c.h.b16 %v8714
  %v8797 = vunpack.c.l.b16 %v8715
  %v8798 = vunpack.c.h.b16 %v8715
  %v8799 = vunpack.c.l.b16 %v8716
  %v8800 = vunpack.c.h.b16 %v8716
  %v8801 = vunpack.c.l.b16 %v8717
  %v8802 = vunpack.c.h.b16 %v8717
  %v8803 = vunpack.c.l.b16 %v8718
  %v8804 = vunpack.c.h.b16 %v8718
  %v8805 = vunpack.c.l.b16 %v8719
  %v8806 = vunpack.c.h.b16 %v8719
  %v8807 = vunpack.c.l.b16 %v8720
  %v8808 = vunpack.c.h.b16 %v8720
  %v8809 = vunpack.c.l.b16 %v8721
  %v8810 = vunpack.c.h.b16 %v8721
  %v8811 = vunpack.c.l.b16 %v8722
  %v8812 = vunpack.c.h.b16 %v8722
  %v8813 = vunpack.c.l.b16 %v8723
  %v8814 = vunpack.c.h.b16 %v8723
  %v8815 = vunpack.c.l.b16 %v8724
  %v8816 = vunpack.c.h.b16 %v8724
  %v8817 = vunpack.c.l.b16 %v8725
  %v8818 = vunpack.c.h.b16 %v8725
  %v8819 = vunpack.c.l.b16 %v8726
  %v8820 = vunpack.c.h.b16 %v8726
  %v8821 = vunpack.c.l.b16 %v8727
  %v8822 = vunpack.c.h.b16 %v8727
  %v8823 = vunpack.c.l.b16 %v8728
  %v8824 = vunpack.c.h.b16 %v8728
  %v8825 = vpack.c.b16 %v8761, %v8761
  %v8826 = vpack.c.b16 %v8762, %v8762
  %v8827 = vpack.c.b16 %v8763, %v8763
  %v8828 = vpack.c.b16 %v8764, %v8764
  %v8829 = vpack.c.b16 %v8765, %v8765
  %v8830 = vpack.c.b16 %v8766, %v8766
  %v8831 = vpack.c.b16 %v8767, %v8767
  %v8832 = vpack.c.b16 %v8768, %v8768
  %v8833 = vpack.c.b16 %v8769, %v8769
  %v8834 = vpack.c.b16 %v8770, %v8770
  %v8835 = vpack.c.b16 %v8771, %v8771
  %v8836 = vpack.c.b16 %v8772, %v8772
  %v8837 = vpack.c.b16 %v8773, %v8773
  %v8838 = vpack.c.b16 %v8774, %v8774
  %v8839 = vpack.c.b16 %v8775, %v8775
  %v8840 = vpack.c.b16 %v8776, %v8776
  %v8841 = vpack.c.b16 %v8777, %v8777
  %v8842 = vpack.c.b16 %v8778, %v8778
  %v8843 = vpack.c.b16 %v8779, %v8779
  %v8844 = vpack.c.b16 %v8780, %v8780
  %v8845 = vpack.c.b16 %v8781, %v8781
  %v8846 = vpack.c.b16 %v8782, %v8782
  %v8847 = vpack.c.b16 %v8783, %v8783
  %v8848 = vpack.c.b16 %v8784, %v8784
  %v8849 = vpack.c.b16 %v8785, %v8785
  %v8850 = vpack.c.b16 %v8786, %v8786
  %v8851 = vpack.c.b16 %v8787, %v8787
  %v8852 = vpack.c.b16 %v8788, %v8788
  %v8853 = vpack.c.b16 %v8789, %v8789
  %v8854 = vpack.c.b16 %v8790, %v8790
  %v8855 = vpack.c.b16 %v8791, %v8791
  %v8856 = vpack.c.b16 %v8792, %v8792
  %v8857 = vpack.c.b16 %v8793, %v8793
  %v8858 = vpack.c.b16 %v8794, %v8794
  %v8859 = vpack.c.b16 %v8795, %v8795
  %v8860 = vpack.c.b16 %v8796, %v8796
  %v8861 = vpack.c.b16 %v8797, %v8797
  %v8862 = vpack.c.b16 %v8798, %v8798
  %v8863 = vpack.c.b16 %v8799, %v8799
  %v8864 = vpack.c.b16 %v8800, %v8800
  %v8865 = vpack.c.b16 %v8801, %v8801
  %v8866 = vpack.c.b16 %v8802, %v8802
  %v8867 = vpack.c.b16 %v8803, %v8803
  %v8868 = vpack.c.b16 %v8804, %v8804
  %v8869 = vpack.c.b16 %v8805, %v8805
  %v8870 = vpack.c.b16 %v8806, %v8806
  %v8871 = vpack.c.b16 %v8807, %v8807
  %v8872 = vpack.c.b16 %v8808, %v8808
  %v8873 = vpack.c.b16 %v8809, %v8809
  %v8874 = vpack.c.b16 %v8810, %v8810
  %v8875 = vpack.c.b16 %v8811, %v8811
  %v8876 = vpack.c.b16 %v8812, %v8812
  %v8877 = vpack.c.b16 %v8813, %v8813
  %v8878 = vpack.c.b16 %v8814, %v8814
  %v8879 = vpack.c.b16 %v8815, %v8815
  %v8880 = vpack.c.b16 %v8816, %v8816
  %v8881 = vpack.c.b16 %v8817, %v8817
  %v8882 = vpack.c.b16 %v8818, %v8818
  %v8883 = vpack.c.b16 %v8819, %v8819
  %v8884 = vpack.c.b16 %v8820, %v8820
  %v8885 = vpack.c.b16 %v8821, %v8821
  %v8886 = vpack.c.b16 %v8822, %v8822
  %v8887 = vpack.c.b16 %v8823, %v8823
  %v8888 = vpack.c.b16 %v8824, %v8824
  %8953 = vst.msk [vmem:[#allocation3 + $0x4] sm:$0xf] %vm1167, %v8825
  %8954 = vst.msk [vmem:[#allocation3 + $0x18] sm:$0xf] %vm1167, %v8826
  %8955 = vst.msk [vmem:[#allocation3 + $0x2c] sm:$0xf] %vm1167, %v8827
  %8956 = vst.msk [vmem:[#allocation3 + $0x40] sm:$0xf] %vm1167, %v8828
  %8957 = vst.msk [vmem:[#allocation3 + $0x54] sm:$0xf] %vm1167, %v8829
  %8958 = vst.msk [vmem:[#allocation3 + $0x68] sm:$0xf] %vm1167, %v8830
  %8959 = vst.msk [vmem:[#allocation3 + $0x7c] sm:$0xf] %vm1167, %v8831
  %8960 = vst.msk [vmem:[#allocation3 + $0x90] sm:$0xf] %vm1167, %v8832
  %8961 = vst.msk [vmem:[#allocation3 + $0xa4] sm:$0xf] %vm1167, %v8833
  %8962 = vst.msk [vmem:[#allocation3 + $0xb8] sm:$0xf] %vm1167, %v8834
  %8963 = vst.msk [vmem:[#allocation3 + $0xcc] sm:$0xf] %vm1167, %v8835
  %8964 = vst.msk [vmem:[#allocation3 + $0xe0] sm:$0xf] %vm1167, %v8836
  %8965 = vst.msk [vmem:[#allocation3 + $0xf4] sm:$0xf] %vm1167, %v8837
  %8966 = vst.msk [vmem:[#allocation3 + $0x108] sm:$0xf] %vm1167, %v8838
  %8967 = vst.msk [vmem:[#allocation3 + $0x11c] sm:$0xf] %vm1167, %v8839
  %8968 = vst.msk [vmem:[#allocation3 + $0x130] sm:$0xf] %vm1167, %v8840
  %8969 = vst.msk [vmem:[#allocation3 + $0x144] sm:$0xf] %vm1167, %v8841
  %8970 = vst.msk [vmem:[#allocation3 + $0x158] sm:$0xf] %vm1167, %v8842
  %8971 = vst.msk [vmem:[#allocation3 + $0x16c] sm:$0xf] %vm1167, %v8843
  %8972 = vst.msk [vmem:[#allocation3 + $0x180] sm:$0xf] %vm1167, %v8844
  %8973 = vst.msk [vmem:[#allocation3 + $0x194] sm:$0xf] %vm1167, %v8845
  %8974 = vst.msk [vmem:[#allocation3 + $0x1a8] sm:$0xf] %vm1167, %v8846
  %8975 = vst.msk [vmem:[#allocation3 + $0x1bc] sm:$0xf] %vm1167, %v8847
  %8976 = vst.msk [vmem:[#allocation3 + $0x1d0] sm:$0xf] %vm1167, %v8848
  %8977 = vst.msk [vmem:[#allocation3 + $0x1e4] sm:$0xf] %vm1167, %v8849
  %8978 = vst.msk [vmem:[#allocation3 + $0x1f8] sm:$0xf] %vm1167, %v8850
  %8979 = vst.msk [vmem:[#allocation3 + $0x20c] sm:$0xf] %vm1167, %v8851
  %8980 = vst.msk [vmem:[#allocation3 + $0x220] sm:$0xf] %vm1167, %v8852
  %8981 = vst.msk [vmem:[#allocation3 + $0x234] sm:$0xf] %vm1167, %v8853
  %8982 = vst.msk [vmem:[#allocation3 + $0x248] sm:$0xf] %vm1167, %v8854
  %8983 = vst.msk [vmem:[#allocation3 + $0x25c] sm:$0xf] %vm1167, %v8855
  %8984 = vst.msk [vmem:[#allocation3 + $0x270] sm:$0xf] %vm1167, %v8856
  %8985 = vst.msk [vmem:[#allocation3 + $0x284] sm:$0xf] %vm1167, %v8857
  %8986 = vst.msk [vmem:[#allocation3 + $0x298] sm:$0xf] %vm1167, %v8858
  %8987 = vst.msk [vmem:[#allocation3 + $0x2ac] sm:$0xf] %vm1167, %v8859
  %8988 = vst.msk [vmem:[#allocation3 + $0x2c0] sm:$0xf] %vm1167, %v8860
  %8989 = vst.msk [vmem:[#allocation3 + $0x2d4] sm:$0xf] %vm1167, %v8861
  %8990 = vst.msk [vmem:[#allocation3 + $0x2e8] sm:$0xf] %vm1167, %v8862
  %8991 = vst.msk [vmem:[#allocation3 + $0x2fc] sm:$0xf] %vm1167, %v8863
  %8992 = vst.msk [vmem:[#allocation3 + $0x310] sm:$0xf] %vm1167, %v8864
  %8993 = vst.msk [vmem:[#allocation3 + $0x324] sm:$0xf] %vm1167, %v8865
  %8994 = vst.msk [vmem:[#allocation3 + $0x338] sm:$0xf] %vm1167, %v8866
  %8995 = vst.msk [vmem:[#allocation3 + $0x34c] sm:$0xf] %vm1167, %v8867
  %8996 = vst.msk [vmem:[#allocation3 + $0x360] sm:$0xf] %vm1167, %v8868
  %8997 = vst.msk [vmem:[#allocation3 + $0x374] sm:$0xf] %vm1167, %v8869
  %8998 = vst.msk [vmem:[#allocation3 + $0x388] sm:$0xf] %vm1167, %v8870
  %8999 = vst.msk [vmem:[#allocation3 + $0x39c] sm:$0xf] %vm1167, %v8871
  %9000 = vst.msk [vmem:[#allocation3 + $0x3b0] sm:$0xf] %vm1167, %v8872
  %9001 = vst.msk [vmem:[#allocation3 + $0x3c4] sm:$0xf] %vm1167, %v8873
  %9002 = vst.msk [vmem:[#allocation3 + $0x3d8] sm:$0xf] %vm1167, %v8874
  %9003 = vst.msk [vmem:[#allocation3 + $0x3ec] sm:$0xf] %vm1167, %v8875
  %9004 = vst.msk [vmem:[#allocation3 + $0x400] sm:$0xf] %vm1167, %v8876
  %9005 = vst.msk [vmem:[#allocation3 + $0x414] sm:$0xf] %vm1167, %v8877
  %9006 = vst.msk [vmem:[#allocation3 + $0x428] sm:$0xf] %vm1167, %v8878
  %9007 = vst.msk [vmem:[#allocation3 + $0x43c] sm:$0xf] %vm1167, %v8879
  %9008 = vst.msk [vmem:[#allocation3 + $0x450] sm:$0xf] %vm1167, %v8880
  %9009 = vst.msk [vmem:[#allocation3 + $0x464] sm:$0xf] %vm1167, %v8881
  %9010 = vst.msk [vmem:[#allocation3 + $0x478] sm:$0xf] %vm1167, %v8882
  %9011 = vst.msk [vmem:[#allocation3 + $0x48c] sm:$0xf] %vm1167, %v8883
  %9012 = vst.msk [vmem:[#allocation3 + $0x4a0] sm:$0xf] %vm1167, %v8884
  %9013 = vst.msk [vmem:[#allocation3 + $0x4b4] sm:$0xf] %vm1167, %v8885
  %9014 = vst.msk [vmem:[#allocation3 + $0x4c8] sm:$0xf] %vm1167, %v8886
  %9015 = vst.msk [vmem:[#allocation3 + $0x4dc] sm:$0xf] %vm1167, %v8887
  %9016 = vst.msk [vmem:[#allocation3 + $0x4f0] sm:$0xf] %vm1167, %v8888
  %v9017 = vld [vmem:[%s782] sm:$0xff]
  %v9018 = vld [vmem:[%s782 + $0x8] sm:$0xff]
  %v9019 = vld [vmem:[%s782 + $0x18] sm:$0xff]
  %v9020 = vld [vmem:[%s782 + $0x20] sm:$0xff]
  %v9021 = vld [vmem:[%s782 + $0x30] sm:$0xff]
  %v9022 = vld [vmem:[%s782 + $0x38] sm:$0xff]
  %v9023 = vld [vmem:[%s782 + $0x48] sm:$0xff]
  %v9024 = vld [vmem:[%s782 + $0x50] sm:$0xff]
  %v9025 = vld [vmem:[%s782 + $0x60] sm:$0xff]
  %v9026 = vld [vmem:[%s782 + $0x68] sm:$0xff]
  %v9027 = vld [vmem:[%s782 + $0x78] sm:$0xff]
  %v9028 = vld [vmem:[%s782 + $0x80] sm:$0xff]
  %v9029 = vld [vmem:[%s782 + $0x90] sm:$0xff]
  %v9030 = vld [vmem:[%s782 + $0x98] sm:$0xff]
  %v9031 = vld [vmem:[%s782 + $0xa8] sm:$0xff]
  %v9032 = vld [vmem:[%s782 + $0xb0] sm:$0xff]
  %v9033 = vld [vmem:[%s782 + $0xc0] sm:$0xff]
  %v9034 = vld [vmem:[%s782 + $0xc8] sm:$0xff]
  %v9035 = vld [vmem:[%s782 + $0xd8] sm:$0xff]
  %v9036 = vld [vmem:[%s782 + $0xe0] sm:$0xff]
  %v9037 = vld [vmem:[%s782 + $0xf0] sm:$0xff]
  %v9038 = vld [vmem:[%s782 + $0xf8] sm:$0xff]
  %v9039 = vld [vmem:[%s782 + $0x108] sm:$0xff]
  %v9040 = vld [vmem:[%s782 + $0x110] sm:$0xff]
  %v9041 = vld [vmem:[%s782 + $0x120] sm:$0xff]
  %v9042 = vld [vmem:[%s782 + $0x128] sm:$0xff]
  %v9043 = vld [vmem:[%s782 + $0x138] sm:$0xff]
  %v9044 = vld [vmem:[%s782 + $0x140] sm:$0xff]
  %v9045 = vld [vmem:[%s782 + $0x150] sm:$0xff]
  %v9046 = vld [vmem:[%s782 + $0x158] sm:$0xff]
  %v9047 = vld [vmem:[%s782 + $0x168] sm:$0xff]
  %v9048 = vld [vmem:[%s782 + $0x170] sm:$0xff]
  %v9049 = vld [vmem:[%s782 + $0x1b0] sm:$0xff]
  %v9050 = vld [vmem:[%s782 + $0x1b8] sm:$0xff]
  %v9051 = vld [vmem:[%s782 + $0x1c8] sm:$0xff]
  %v9052 = vld [vmem:[%s782 + $0x1d0] sm:$0xff]
  %v9053 = vld [vmem:[%s782 + $0x1e0] sm:$0xff]
  %v9054 = vld [vmem:[%s782 + $0x1e8] sm:$0xff]
  %v9055 = vld [vmem:[%s782 + $0x1f8] sm:$0xff]
  %v9056 = vld [vmem:[%s782 + $0x200] sm:$0xff]
  %v9057 = vld [vmem:[%s782 + $0x210] sm:$0xff]
  %v9058 = vld [vmem:[%s782 + $0x218] sm:$0xff]
  %v9059 = vld [vmem:[%s782 + $0x228] sm:$0xff]
  %v9060 = vld [vmem:[%s782 + $0x230] sm:$0xff]
  %v9061 = vld [vmem:[%s782 + $0x240] sm:$0xff]
  %v9062 = vld [vmem:[%s782 + $0x248] sm:$0xff]
  %v9063 = vld [vmem:[%s782 + $0x258] sm:$0xff]
  %v9064 = vld [vmem:[%s782 + $0x260] sm:$0xff]
  %v9065 = vld [vmem:[%s782 + $0x270] sm:$0xff]
  %v9066 = vld [vmem:[%s782 + $0x278] sm:$0xff]
  %v9067 = vld [vmem:[%s782 + $0x288] sm:$0xff]
  %v9068 = vld [vmem:[%s782 + $0x290] sm:$0xff]
  %v9069 = vld [vmem:[%s782 + $0x2a0] sm:$0xff]
  %v9070 = vld [vmem:[%s782 + $0x2a8] sm:$0xff]
  %v9071 = vld [vmem:[%s782 + $0x2b8] sm:$0xff]
  %v9072 = vld [vmem:[%s782 + $0x2c0] sm:$0xff]
  %v9073 = vld [vmem:[%s782 + $0x2d0] sm:$0xff]
  %v9074 = vld [vmem:[%s782 + $0x2d8] sm:$0xff]
  %v9075 = vld [vmem:[%s782 + $0x2e8] sm:$0xff]
  %v9076 = vld [vmem:[%s782 + $0x2f0] sm:$0xff]
  %v9077 = vld [vmem:[%s782 + $0x300] sm:$0xff]
  %v9078 = vld [vmem:[%s782 + $0x308] sm:$0xff]
  %v9079 = vld [vmem:[%s782 + $0x318] sm:$0xff]
  %v9080 = vld [vmem:[%s782 + $0x320] sm:$0xff]
  %v9081 = vpack.c.bf16 %v9018, %v9017
  %v9082 = vpack.c.bf16 %v9020, %v9019
  %v9083 = vpack.c.bf16 %v9022, %v9021
  %v9084 = vpack.c.bf16 %v9024, %v9023
  %v9085 = vpack.c.bf16 %v9026, %v9025
  %v9086 = vpack.c.bf16 %v9028, %v9027
  %v9087 = vpack.c.bf16 %v9030, %v9029
  %v9088 = vpack.c.bf16 %v9032, %v9031
  %v9089 = vpack.c.bf16 %v9034, %v9033
  %v9090 = vpack.c.bf16 %v9036, %v9035
  %v9091 = vpack.c.bf16 %v9038, %v9037
  %v9092 = vpack.c.bf16 %v9040, %v9039
  %v9093 = vpack.c.bf16 %v9042, %v9041
  %v9094 = vpack.c.bf16 %v9044, %v9043
  %v9095 = vpack.c.bf16 %v9046, %v9045
  %v9096 = vpack.c.bf16 %v9048, %v9047
  %v9097 = vpack.c.bf16 %v9050, %v9049
  %v9098 = vpack.c.bf16 %v9052, %v9051
  %v9099 = vpack.c.bf16 %v9054, %v9053
  %v9100 = vpack.c.bf16 %v9056, %v9055
  %v9101 = vpack.c.bf16 %v9058, %v9057
  %v9102 = vpack.c.bf16 %v9060, %v9059
  %v9103 = vpack.c.bf16 %v9062, %v9061
  %v9104 = vpack.c.bf16 %v9064, %v9063
  %v9105 = vpack.c.bf16 %v9066, %v9065
  %v9106 = vpack.c.bf16 %v9068, %v9067
  %v9107 = vpack.c.bf16 %v9070, %v9069
  %v9108 = vpack.c.bf16 %v9072, %v9071
  %v9109 = vpack.c.bf16 %v9074, %v9073
  %v9110 = vpack.c.bf16 %v9076, %v9075
  %v9111 = vpack.c.bf16 %v9078, %v9077
  %v9112 = vpack.c.bf16 %v9080, %v9079
  %v9145 = vunpack.c.l.b16 %v9081
  %v9146 = vunpack.c.h.b16 %v9081
  %v9147 = vunpack.c.l.b16 %v9082
  %v9148 = vunpack.c.h.b16 %v9082
  %v9149 = vunpack.c.l.b16 %v9083
  %v9150 = vunpack.c.h.b16 %v9083
  %v9151 = vunpack.c.l.b16 %v9084
  %v9152 = vunpack.c.h.b16 %v9084
  %v9153 = vunpack.c.l.b16 %v9085
  %v9154 = vunpack.c.h.b16 %v9085
  %v9155 = vunpack.c.l.b16 %v9086
  %v9156 = vunpack.c.h.b16 %v9086
  %v9157 = vunpack.c.l.b16 %v9087
  %v9158 = vunpack.c.h.b16 %v9087
  %v9159 = vunpack.c.l.b16 %v9088
  %v9160 = vunpack.c.h.b16 %v9088
  %v9161 = vunpack.c.l.b16 %v9089
  %v9162 = vunpack.c.h.b16 %v9089
  %v9163 = vunpack.c.l.b16 %v9090
  %v9164 = vunpack.c.h.b16 %v9090
  %v9165 = vunpack.c.l.b16 %v9091
  %v9166 = vunpack.c.h.b16 %v9091
  %v9167 = vunpack.c.l.b16 %v9092
  %v9168 = vunpack.c.h.b16 %v9092
  %v9169 = vunpack.c.l.b16 %v9093
  %v9170 = vunpack.c.h.b16 %v9093
  %v9171 = vunpack.c.l.b16 %v9094
  %v9172 = vunpack.c.h.b16 %v9094
  %v9173 = vunpack.c.l.b16 %v9095
  %v9174 = vunpack.c.h.b16 %v9095
  %v9175 = vunpack.c.l.b16 %v9096
  %v9176 = vunpack.c.h.b16 %v9096
  %v9177 = vunpack.c.l.b16 %v9097
  %v9178 = vunpack.c.h.b16 %v9097
  %v9179 = vunpack.c.l.b16 %v9098
  %v9180 = vunpack.c.h.b16 %v9098
  %v9181 = vunpack.c.l.b16 %v9099
  %v9182 = vunpack.c.h.b16 %v9099
  %v9183 = vunpack.c.l.b16 %v9100
  %v9184 = vunpack.c.h.b16 %v9100
  %v9185 = vunpack.c.l.b16 %v9101
  %v9186 = vunpack.c.h.b16 %v9101
  %v9187 = vunpack.c.l.b16 %v9102
  %v9188 = vunpack.c.h.b16 %v9102
  %v9189 = vunpack.c.l.b16 %v9103
  %v9190 = vunpack.c.h.b16 %v9103
  %v9191 = vunpack.c.l.b16 %v9104
  %v9192 = vunpack.c.h.b16 %v9104
  %v9193 = vunpack.c.l.b16 %v9105
  %v9194 = vunpack.c.h.b16 %v9105
  %v9195 = vunpack.c.l.b16 %v9106
  %v9196 = vunpack.c.h.b16 %v9106
  %v9197 = vunpack.c.l.b16 %v9107
  %v9198 = vunpack.c.h.b16 %v9107
  %v9199 = vunpack.c.l.b16 %v9108
  %v9200 = vunpack.c.h.b16 %v9108
  %v9201 = vunpack.c.l.b16 %v9109
  %v9202 = vunpack.c.h.b16 %v9109
  %v9203 = vunpack.c.l.b16 %v9110
  %v9204 = vunpack.c.h.b16 %v9110
  %v9205 = vunpack.c.l.b16 %v9111
  %v9206 = vunpack.c.h.b16 %v9111
  %v9207 = vunpack.c.l.b16 %v9112
  %v9208 = vunpack.c.h.b16 %v9112
  %v9209 = vpack.c.b16 %v9145, %v9145
  %v9210 = vpack.c.b16 %v9146, %v9146
  %v9211 = vpack.c.b16 %v9147, %v9147
  %v9212 = vpack.c.b16 %v9148, %v9148
  %v9213 = vpack.c.b16 %v9149, %v9149
  %v9214 = vpack.c.b16 %v9150, %v9150
  %v9215 = vpack.c.b16 %v9151, %v9151
  %v9216 = vpack.c.b16 %v9152, %v9152
  %v9217 = vpack.c.b16 %v9153, %v9153
  %v9218 = vpack.c.b16 %v9154, %v9154
  %v9219 = vpack.c.b16 %v9155, %v9155
  %v9220 = vpack.c.b16 %v9156, %v9156
  %v9221 = vpack.c.b16 %v9157, %v9157
  %v9222 = vpack.c.b16 %v9158, %v9158
  %v9223 = vpack.c.b16 %v9159, %v9159
  %v9224 = vpack.c.b16 %v9160, %v9160
  %v9225 = vpack.c.b16 %v9161, %v9161
  %v9226 = vpack.c.b16 %v9162, %v9162
  %v9227 = vpack.c.b16 %v9163, %v9163
  %v9228 = vpack.c.b16 %v9164, %v9164
  %v9229 = vpack.c.b16 %v9165, %v9165
  %v9230 = vpack.c.b16 %v9166, %v9166
  %v9231 = vpack.c.b16 %v9167, %v9167
  %v9232 = vpack.c.b16 %v9168, %v9168
  %v9233 = vpack.c.b16 %v9169, %v9169
  %v9234 = vpack.c.b16 %v9170, %v9170
  %v9235 = vpack.c.b16 %v9171, %v9171
  %v9236 = vpack.c.b16 %v9172, %v9172
  %v9237 = vpack.c.b16 %v9173, %v9173
  %v9238 = vpack.c.b16 %v9174, %v9174
  %v9239 = vpack.c.b16 %v9175, %v9175
  %v9240 = vpack.c.b16 %v9176, %v9176
  %v9241 = vpack.c.b16 %v9177, %v9177
  %v9242 = vpack.c.b16 %v9178, %v9178
  %v9243 = vpack.c.b16 %v9179, %v9179
  %v9244 = vpack.c.b16 %v9180, %v9180
  %v9245 = vpack.c.b16 %v9181, %v9181
  %v9246 = vpack.c.b16 %v9182, %v9182
  %v9247 = vpack.c.b16 %v9183, %v9183
  %v9248 = vpack.c.b16 %v9184, %v9184
  %v9249 = vpack.c.b16 %v9185, %v9185
  %v9250 = vpack.c.b16 %v9186, %v9186
  %v9251 = vpack.c.b16 %v9187, %v9187
  %v9252 = vpack.c.b16 %v9188, %v9188
  %v9253 = vpack.c.b16 %v9189, %v9189
  %v9254 = vpack.c.b16 %v9190, %v9190
  %v9255 = vpack.c.b16 %v9191, %v9191
  %v9256 = vpack.c.b16 %v9192, %v9192
  %v9257 = vpack.c.b16 %v9193, %v9193
  %v9258 = vpack.c.b16 %v9194, %v9194
  %v9259 = vpack.c.b16 %v9195, %v9195
  %v9260 = vpack.c.b16 %v9196, %v9196
  %v9261 = vpack.c.b16 %v9197, %v9197
  %v9262 = vpack.c.b16 %v9198, %v9198
  %v9263 = vpack.c.b16 %v9199, %v9199
  %v9264 = vpack.c.b16 %v9200, %v9200
  %v9265 = vpack.c.b16 %v9201, %v9201
  %v9266 = vpack.c.b16 %v9202, %v9202
  %v9267 = vpack.c.b16 %v9203, %v9203
  %v9268 = vpack.c.b16 %v9204, %v9204
  %v9269 = vpack.c.b16 %v9205, %v9205
  %v9270 = vpack.c.b16 %v9206, %v9206
  %v9271 = vpack.c.b16 %v9207, %v9207
  %v9272 = vpack.c.b16 %v9208, %v9208
  %9273 = vrot.lane.b32.xlu0 %v9209, 64
  %v9274 = vpop.permute.xlu0 %9273
  %9275 = vrot.lane.b32.xlu0 %v9210, 64
  %v9276 = vpop.permute.xlu0 %9275
  %9277 = vrot.lane.b32.xlu0 %v9211, 64
  %v9278 = vpop.permute.xlu0 %9277
  %9279 = vrot.lane.b32.xlu0 %v9212, 64
  %v9280 = vpop.permute.xlu0 %9279
  %9281 = vrot.lane.b32.xlu0 %v9213, 64
  %v9282 = vpop.permute.xlu0 %9281
  %9283 = vrot.lane.b32.xlu0 %v9214, 64
  %v9284 = vpop.permute.xlu0 %9283
  %9285 = vrot.lane.b32.xlu0 %v9215, 64
  %v9286 = vpop.permute.xlu0 %9285
  %9287 = vrot.lane.b32.xlu0 %v9216, 64
  %v9288 = vpop.permute.xlu0 %9287
  %9289 = vrot.lane.b32.xlu0 %v9217, 64
  %v9290 = vpop.permute.xlu0 %9289
  %9291 = vrot.lane.b32.xlu0 %v9218, 64
  %v9292 = vpop.permute.xlu0 %9291
  %9293 = vrot.lane.b32.xlu0 %v9219, 64
  %v9294 = vpop.permute.xlu0 %9293
  %9295 = vrot.lane.b32.xlu0 %v9220, 64
  %v9296 = vpop.permute.xlu0 %9295
  %9297 = vrot.lane.b32.xlu0 %v9221, 64
  %v9298 = vpop.permute.xlu0 %9297
  %9299 = vrot.lane.b32.xlu0 %v9222, 64
  %v9300 = vpop.permute.xlu0 %9299
  %9301 = vrot.lane.b32.xlu0 %v9223, 64
  %v9302 = vpop.permute.xlu0 %9301
  %9303 = vrot.lane.b32.xlu0 %v9224, 64
  %v9304 = vpop.permute.xlu0 %9303
  %9305 = vrot.lane.b32.xlu0 %v9225, 64
  %v9306 = vpop.permute.xlu0 %9305
  %9307 = vrot.lane.b32.xlu0 %v9226, 64
  %v9308 = vpop.permute.xlu0 %9307
  %9309 = vrot.lane.b32.xlu0 %v9227, 64
  %v9310 = vpop.permute.xlu0 %9309
  %9311 = vrot.lane.b32.xlu0 %v9228, 64
  %v9312 = vpop.permute.xlu0 %9311
  %9313 = vrot.lane.b32.xlu0 %v9229, 64
  %v9314 = vpop.permute.xlu0 %9313
  %9315 = vrot.lane.b32.xlu0 %v9230, 64
  %v9316 = vpop.permute.xlu0 %9315
  %9317 = vrot.lane.b32.xlu0 %v9231, 64
  %v9318 = vpop.permute.xlu0 %9317
  %9319 = vrot.lane.b32.xlu0 %v9232, 64
  %v9320 = vpop.permute.xlu0 %9319
  %9321 = vrot.lane.b32.xlu0 %v9233, 64
  %v9322 = vpop.permute.xlu0 %9321
  %9323 = vrot.lane.b32.xlu0 %v9234, 64
  %v9324 = vpop.permute.xlu0 %9323
  %9325 = vrot.lane.b32.xlu0 %v9235, 64
  %v9326 = vpop.permute.xlu0 %9325
  %9327 = vrot.lane.b32.xlu0 %v9236, 64
  %v9328 = vpop.permute.xlu0 %9327
  %9329 = vrot.lane.b32.xlu0 %v9237, 64
  %v9330 = vpop.permute.xlu0 %9329
  %9331 = vrot.lane.b32.xlu0 %v9238, 64
  %v9332 = vpop.permute.xlu0 %9331
  %9333 = vrot.lane.b32.xlu0 %v9239, 64
  %v9334 = vpop.permute.xlu0 %9333
  %9335 = vrot.lane.b32.xlu0 %v9240, 64
  %v9336 = vpop.permute.xlu0 %9335
  %9337 = vrot.lane.b32.xlu0 %v9241, 64
  %v9338 = vpop.permute.xlu0 %9337
  %9339 = vrot.lane.b32.xlu0 %v9242, 64
  %v9340 = vpop.permute.xlu0 %9339
  %9341 = vrot.lane.b32.xlu0 %v9243, 64
  %v9342 = vpop.permute.xlu0 %9341
  %9343 = vrot.lane.b32.xlu0 %v9244, 64
  %v9344 = vpop.permute.xlu0 %9343
  %9345 = vrot.lane.b32.xlu0 %v9245, 64
  %v9346 = vpop.permute.xlu0 %9345
  %9347 = vrot.lane.b32.xlu0 %v9246, 64
  %v9348 = vpop.permute.xlu0 %9347
  %9349 = vrot.lane.b32.xlu0 %v9247, 64
  %v9350 = vpop.permute.xlu0 %9349
  %9351 = vrot.lane.b32.xlu0 %v9248, 64
  %v9352 = vpop.permute.xlu0 %9351
  %9353 = vrot.lane.b32.xlu0 %v9249, 64
  %v9354 = vpop.permute.xlu0 %9353
  %9355 = vrot.lane.b32.xlu0 %v9250, 64
  %v9356 = vpop.permute.xlu0 %9355
  %9357 = vrot.lane.b32.xlu0 %v9251, 64
  %v9358 = vpop.permute.xlu0 %9357
  %9359 = vrot.lane.b32.xlu0 %v9252, 64
  %v9360 = vpop.permute.xlu0 %9359
  %9361 = vrot.lane.b32.xlu0 %v9253, 64
  %v9362 = vpop.permute.xlu0 %9361
  %9363 = vrot.lane.b32.xlu0 %v9254, 64
  %v9364 = vpop.permute.xlu0 %9363
  %9365 = vrot.lane.b32.xlu0 %v9255, 64
  %v9366 = vpop.permute.xlu0 %9365
  %9367 = vrot.lane.b32.xlu0 %v9256, 64
  %v9368 = vpop.permute.xlu0 %9367
  %9369 = vrot.lane.b32.xlu0 %v9257, 64
  %v9370 = vpop.permute.xlu0 %9369
  %9371 = vrot.lane.b32.xlu0 %v9258, 64
  %v9372 = vpop.permute.xlu0 %9371
  %9373 = vrot.lane.b32.xlu0 %v9259, 64
  %v9374 = vpop.permute.xlu0 %9373
  %9375 = vrot.lane.b32.xlu0 %v9260, 64
  %v9376 = vpop.permute.xlu0 %9375
  %9377 = vrot.lane.b32.xlu0 %v9261, 64
  %v9378 = vpop.permute.xlu0 %9377
  %9379 = vrot.lane.b32.xlu0 %v9262, 64
  %v9380 = vpop.permute.xlu0 %9379
  %9381 = vrot.lane.b32.xlu0 %v9263, 64
  %v9382 = vpop.permute.xlu0 %9381
  %9383 = vrot.lane.b32.xlu0 %v9264, 64
  %v9384 = vpop.permute.xlu0 %9383
  %9385 = vrot.lane.b32.xlu0 %v9265, 64
  %v9386 = vpop.permute.xlu0 %9385
  %9387 = vrot.lane.b32.xlu0 %v9266, 64
  %v9388 = vpop.permute.xlu0 %9387
  %9389 = vrot.lane.b32.xlu0 %v9267, 64
  %v9390 = vpop.permute.xlu0 %9389
  %9391 = vrot.lane.b32.xlu0 %v9268, 64
  %v9392 = vpop.permute.xlu0 %9391
  %9393 = vrot.lane.b32.xlu0 %v9269, 64
  %v9394 = vpop.permute.xlu0 %9393
  %9395 = vrot.lane.b32.xlu0 %v9270, 64
  %v9396 = vpop.permute.xlu0 %9395
  %9397 = vrot.lane.b32.xlu0 %v9271, 64
  %v9398 = vpop.permute.xlu0 %9397
  %9399 = vrot.lane.b32.xlu0 %v9272, 64
  %v9400 = vpop.permute.xlu0 %9399
  %9465 = vst.msk [vmem:[#allocation3 + $0x4] sm:$0xf] %vm1680, %v9274
  %9466 = vst.msk [vmem:[#allocation3 + $0x18] sm:$0xf] %vm1680, %v9276
  %9467 = vst.msk [vmem:[#allocation3 + $0x2c] sm:$0xf] %vm1680, %v9278
  %9468 = vst.msk [vmem:[#allocation3 + $0x40] sm:$0xf] %vm1680, %v9280
  %9469 = vst.msk [vmem:[#allocation3 + $0x54] sm:$0xf] %vm1680, %v9282
  %9470 = vst.msk [vmem:[#allocation3 + $0x68] sm:$0xf] %vm1680, %v9284
  %9471 = vst.msk [vmem:[#allocation3 + $0x7c] sm:$0xf] %vm1680, %v9286
  %9472 = vst.msk [vmem:[#allocation3 + $0x90] sm:$0xf] %vm1680, %v9288
  %9473 = vst.msk [vmem:[#allocation3 + $0xa4] sm:$0xf] %vm1680, %v9290
  %9474 = vst.msk [vmem:[#allocation3 + $0xb8] sm:$0xf] %vm1680, %v9292
  %9475 = vst.msk [vmem:[#allocation3 + $0xcc] sm:$0xf] %vm1680, %v9294
  %9476 = vst.msk [vmem:[#allocation3 + $0xe0] sm:$0xf] %vm1680, %v9296
  %9477 = vst.msk [vmem:[#allocation3 + $0xf4] sm:$0xf] %vm1680, %v9298
  %9478 = vst.msk [vmem:[#allocation3 + $0x108] sm:$0xf] %vm1680, %v9300
  %9479 = vst.msk [vmem:[#allocation3 + $0x11c] sm:$0xf] %vm1680, %v9302
  %9480 = vst.msk [vmem:[#allocation3 + $0x130] sm:$0xf] %vm1680, %v9304
  %9481 = vst.msk [vmem:[#allocation3 + $0x144] sm:$0xf] %vm1680, %v9306
  %9482 = vst.msk [vmem:[#allocation3 + $0x158] sm:$0xf] %vm1680, %v9308
  %9483 = vst.msk [vmem:[#allocation3 + $0x16c] sm:$0xf] %vm1680, %v9310
  %9484 = vst.msk [vmem:[#allocation3 + $0x180] sm:$0xf] %vm1680, %v9312
  %9485 = vst.msk [vmem:[#allocation3 + $0x194] sm:$0xf] %vm1680, %v9314
  %9486 = vst.msk [vmem:[#allocation3 + $0x1a8] sm:$0xf] %vm1680, %v9316
  %9487 = vst.msk [vmem:[#allocation3 + $0x1bc] sm:$0xf] %vm1680, %v9318
  %9488 = vst.msk [vmem:[#allocation3 + $0x1d0] sm:$0xf] %vm1680, %v9320
  %9489 = vst.msk [vmem:[#allocation3 + $0x1e4] sm:$0xf] %vm1680, %v9322
  %9490 = vst.msk [vmem:[#allocation3 + $0x1f8] sm:$0xf] %vm1680, %v9324
  %9491 = vst.msk [vmem:[#allocation3 + $0x20c] sm:$0xf] %vm1680, %v9326
  %9492 = vst.msk [vmem:[#allocation3 + $0x220] sm:$0xf] %vm1680, %v9328
  %9493 = vst.msk [vmem:[#allocation3 + $0x234] sm:$0xf] %vm1680, %v9330
  %9494 = vst.msk [vmem:[#allocation3 + $0x248] sm:$0xf] %vm1680, %v9332
  %9495 = vst.msk [vmem:[#allocation3 + $0x25c] sm:$0xf] %vm1680, %v9334
  %9496 = vst.msk [vmem:[#allocation3 + $0x270] sm:$0xf] %vm1680, %v9336
  %9497 = vst.msk [vmem:[#allocation3 + $0x284] sm:$0xf] %vm1680, %v9338
  %9498 = vst.msk [vmem:[#allocation3 + $0x298] sm:$0xf] %vm1680, %v9340
  %9499 = vst.msk [vmem:[#allocation3 + $0x2ac] sm:$0xf] %vm1680, %v9342
  %9500 = vst.msk [vmem:[#allocation3 + $0x2c0] sm:$0xf] %vm1680, %v9344
  %9501 = vst.msk [vmem:[#allocation3 + $0x2d4] sm:$0xf] %vm1680, %v9346
  %9502 = vst.msk [vmem:[#allocation3 + $0x2e8] sm:$0xf] %vm1680, %v9348
  %9503 = vst.msk [vmem:[#allocation3 + $0x2fc] sm:$0xf] %vm1680, %v9350
  %9504 = vst.msk [vmem:[#allocation3 + $0x310] sm:$0xf] %vm1680, %v9352
  %9505 = vst.msk [vmem:[#allocation3 + $0x324] sm:$0xf] %vm1680, %v9354
  %9506 = vst.msk [vmem:[#allocation3 + $0x338] sm:$0xf] %vm1680, %v9356
  %9507 = vst.msk [vmem:[#allocation3 + $0x34c] sm:$0xf] %vm1680, %v9358
  %9508 = vst.msk [vmem:[#allocation3 + $0x360] sm:$0xf] %vm1680, %v9360
  %9509 = vst.msk [vmem:[#allocation3 + $0x374] sm:$0xf] %vm1680, %v9362
  %9510 = vst.msk [vmem:[#allocation3 + $0x388] sm:$0xf] %vm1680, %v9364
  %9511 = vst.msk [vmem:[#allocation3 + $0x39c] sm:$0xf] %vm1680, %v9366
  %9512 = vst.msk [vmem:[#allocation3 + $0x3b0] sm:$0xf] %vm1680, %v9368
  %9513 = vst.msk [vmem:[#allocation3 + $0x3c4] sm:$0xf] %vm1680, %v9370
  %9514 = vst.msk [vmem:[#allocation3 + $0x3d8] sm:$0xf] %vm1680, %v9372
  %9515 = vst.msk [vmem:[#allocation3 + $0x3ec] sm:$0xf] %vm1680, %v9374
  %9516 = vst.msk [vmem:[#allocation3 + $0x400] sm:$0xf] %vm1680, %v9376
  %9517 = vst.msk [vmem:[#allocation3 + $0x414] sm:$0xf] %vm1680, %v9378
  %9518 = vst.msk [vmem:[#allocation3 + $0x428] sm:$0xf] %vm1680, %v9380
  %9519 = vst.msk [vmem:[#allocation3 + $0x43c] sm:$0xf] %vm1680, %v9382
  %9520 = vst.msk [vmem:[#allocation3 + $0x450] sm:$0xf] %vm1680, %v9384
  %9521 = vst.msk [vmem:[#allocation3 + $0x464] sm:$0xf] %vm1680, %v9386
  %9522 = vst.msk [vmem:[#allocation3 + $0x478] sm:$0xf] %vm1680, %v9388
  %9523 = vst.msk [vmem:[#allocation3 + $0x48c] sm:$0xf] %vm1680, %v9390
  %9524 = vst.msk [vmem:[#allocation3 + $0x4a0] sm:$0xf] %vm1680, %v9392
  %9525 = vst.msk [vmem:[#allocation3 + $0x4b4] sm:$0xf] %vm1680, %v9394
  %9526 = vst.msk [vmem:[#allocation3 + $0x4c8] sm:$0xf] %vm1680, %v9396
  %9527 = vst.msk [vmem:[#allocation3 + $0x4dc] sm:$0xf] %vm1680, %v9398
  %9528 = vst.msk [vmem:[#allocation3 + $0x4f0] sm:$0xf] %vm1680, %v9400
  %v9529 = vld [vmem:[%s782 + $0x1] sm:$0xff]
  %v9530 = vld [vmem:[%s782 + $0x9] sm:$0xff]
  %v9531 = vld [vmem:[%s782 + $0x19] sm:$0xff]
  %v9532 = vld [vmem:[%s782 + $0x21] sm:$0xff]
  %v9533 = vld [vmem:[%s782 + $0x31] sm:$0xff]
  %v9534 = vld [vmem:[%s782 + $0x39] sm:$0xff]
  %v9535 = vld [vmem:[%s782 + $0x49] sm:$0xff]
  %v9536 = vld [vmem:[%s782 + $0x51] sm:$0xff]
  %v9537 = vld [vmem:[%s782 + $0x61] sm:$0xff]
  %v9538 = vld [vmem:[%s782 + $0x69] sm:$0xff]
  %v9539 = vld [vmem:[%s782 + $0x79] sm:$0xff]
  %v9540 = vld [vmem:[%s782 + $0x81] sm:$0xff]
  %v9541 = vld [vmem:[%s782 + $0x91] sm:$0xff]
  %v9542 = vld [vmem:[%s782 + $0x99] sm:$0xff]
  %v9543 = vld [vmem:[%s782 + $0xa9] sm:$0xff]
  %v9544 = vld [vmem:[%s782 + $0xb1] sm:$0xff]
  %v9545 = vld [vmem:[%s782 + $0xc1] sm:$0xff]
  %v9546 = vld [vmem:[%s782 + $0xc9] sm:$0xff]
  %v9547 = vld [vmem:[%s782 + $0xd9] sm:$0xff]
  %v9548 = vld [vmem:[%s782 + $0xe1] sm:$0xff]
  %v9549 = vld [vmem:[%s782 + $0xf1] sm:$0xff]
  %v9550 = vld [vmem:[%s782 + $0xf9] sm:$0xff]
  %v9551 = vld [vmem:[%s782 + $0x109] sm:$0xff]
  %v9552 = vld [vmem:[%s782 + $0x111] sm:$0xff]
  %v9553 = vld [vmem:[%s782 + $0x121] sm:$0xff]
  %v9554 = vld [vmem:[%s782 + $0x129] sm:$0xff]
  %v9555 = vld [vmem:[%s782 + $0x139] sm:$0xff]
  %v9556 = vld [vmem:[%s782 + $0x141] sm:$0xff]
  %v9557 = vld [vmem:[%s782 + $0x151] sm:$0xff]
  %v9558 = vld [vmem:[%s782 + $0x159] sm:$0xff]
  %v9559 = vld [vmem:[%s782 + $0x169] sm:$0xff]
  %v9560 = vld [vmem:[%s782 + $0x171] sm:$0xff]
  %v9561 = vld [vmem:[%s782 + $0x1b1] sm:$0xff]
  %v9562 = vld [vmem:[%s782 + $0x1b9] sm:$0xff]
  %v9563 = vld [vmem:[%s782 + $0x1c9] sm:$0xff]
  %v9564 = vld [vmem:[%s782 + $0x1d1] sm:$0xff]
  %v9565 = vld [vmem:[%s782 + $0x1e1] sm:$0xff]
  %v9566 = vld [vmem:[%s782 + $0x1e9] sm:$0xff]
  %v9567 = vld [vmem:[%s782 + $0x1f9] sm:$0xff]
  %v9568 = vld [vmem:[%s782 + $0x201] sm:$0xff]
  %v9569 = vld [vmem:[%s782 + $0x211] sm:$0xff]
  %v9570 = vld [vmem:[%s782 + $0x219] sm:$0xff]
  %v9571 = vld [vmem:[%s782 + $0x229] sm:$0xff]
  %v9572 = vld [vmem:[%s782 + $0x231] sm:$0xff]
  %v9573 = vld [vmem:[%s782 + $0x241] sm:$0xff]
  %v9574 = vld [vmem:[%s782 + $0x249] sm:$0xff]
  %v9575 = vld [vmem:[%s782 + $0x259] sm:$0xff]
  %v9576 = vld [vmem:[%s782 + $0x261] sm:$0xff]
  %v9577 = vld [vmem:[%s782 + $0x271] sm:$0xff]
  %v9578 = vld [vmem:[%s782 + $0x279] sm:$0xff]
  %v9579 = vld [vmem:[%s782 + $0x289] sm:$0xff]
  %v9580 = vld [vmem:[%s782 + $0x291] sm:$0xff]
  %v9581 = vld [vmem:[%s782 + $0x2a1] sm:$0xff]
  %v9582 = vld [vmem:[%s782 + $0x2a9] sm:$0xff]
  %v9583 = vld [vmem:[%s782 + $0x2b9] sm:$0xff]
  %v9584 = vld [vmem:[%s782 + $0x2c1] sm:$0xff]
  %v9585 = vld [vmem:[%s782 + $0x2d1] sm:$0xff]
  %v9586 = vld [vmem:[%s782 + $0x2d9] sm:$0xff]
  %v9587 = vld [vmem:[%s782 + $0x2e9] sm:$0xff]
  %v9588 = vld [vmem:[%s782 + $0x2f1] sm:$0xff]
  %v9589 = vld [vmem:[%s782 + $0x301] sm:$0xff]
  %v9590 = vld [vmem:[%s782 + $0x309] sm:$0xff]
  %v9591 = vld [vmem:[%s782 + $0x319] sm:$0xff]
  %v9592 = vld [vmem:[%s782 + $0x321] sm:$0xff]
  %v9593 = vpack.c.bf16 %v9530, %v9529
  %v9594 = vpack.c.bf16 %v9532, %v9531
  %v9595 = vpack.c.bf16 %v9534, %v9533
  %v9596 = vpack.c.bf16 %v9536, %v9535
  %v9597 = vpack.c.bf16 %v9538, %v9537
  %v9598 = vpack.c.bf16 %v9540, %v9539
  %v9599 = vpack.c.bf16 %v9542, %v9541
  %v9600 = vpack.c.bf16 %v9544, %v9543
  %v9601 = vpack.c.bf16 %v9546, %v9545
  %v9602 = vpack.c.bf16 %v9548, %v9547
  %v9603 = vpack.c.bf16 %v9550, %v9549
  %v9604 = vpack.c.bf16 %v9552, %v9551
  %v9605 = vpack.c.bf16 %v9554, %v9553
  %v9606 = vpack.c.bf16 %v9556, %v9555
  %v9607 = vpack.c.bf16 %v9558, %v9557
  %v9608 = vpack.c.bf16 %v9560, %v9559
  %v9609 = vpack.c.bf16 %v9562, %v9561
  %v9610 = vpack.c.bf16 %v9564, %v9563
  %v9611 = vpack.c.bf16 %v9566, %v9565
  %v9612 = vpack.c.bf16 %v9568, %v9567
  %v9613 = vpack.c.bf16 %v9570, %v9569
  %v9614 = vpack.c.bf16 %v9572, %v9571
  %v9615 = vpack.c.bf16 %v9574, %v9573
  %v9616 = vpack.c.bf16 %v9576, %v9575
  %v9617 = vpack.c.bf16 %v9578, %v9577
  %v9618 = vpack.c.bf16 %v9580, %v9579
  %v9619 = vpack.c.bf16 %v9582, %v9581
  %v9620 = vpack.c.bf16 %v9584, %v9583
  %v9621 = vpack.c.bf16 %v9586, %v9585
  %v9622 = vpack.c.bf16 %v9588, %v9587
  %v9623 = vpack.c.bf16 %v9590, %v9589
  %v9624 = vpack.c.bf16 %v9592, %v9591
  %v9657 = vunpack.c.l.b16 %v9593
  %v9658 = vunpack.c.h.b16 %v9593
  %v9659 = vunpack.c.l.b16 %v9594
  %v9660 = vunpack.c.h.b16 %v9594
  %v9661 = vunpack.c.l.b16 %v9595
  %v9662 = vunpack.c.h.b16 %v9595
  %v9663 = vunpack.c.l.b16 %v9596
  %v9664 = vunpack.c.h.b16 %v9596
  %v9665 = vunpack.c.l.b16 %v9597
  %v9666 = vunpack.c.h.b16 %v9597
  %v9667 = vunpack.c.l.b16 %v9598
  %v9668 = vunpack.c.h.b16 %v9598
  %v9669 = vunpack.c.l.b16 %v9599
  %v9670 = vunpack.c.h.b16 %v9599
  %v9671 = vunpack.c.l.b16 %v9600
  %v9672 = vunpack.c.h.b16 %v9600
  %v9673 = vunpack.c.l.b16 %v9601
  %v9674 = vunpack.c.h.b16 %v9601
  %v9675 = vunpack.c.l.b16 %v9602
  %v9676 = vunpack.c.h.b16 %v9602
  %v9677 = vunpack.c.l.b16 %v9603
  %v9678 = vunpack.c.h.b16 %v9603
  %v9679 = vunpack.c.l.b16 %v9604
  %v9680 = vunpack.c.h.b16 %v9604
  %v9681 = vunpack.c.l.b16 %v9605
  %v9682 = vunpack.c.h.b16 %v9605
  %v9683 = vunpack.c.l.b16 %v9606
  %v9684 = vunpack.c.h.b16 %v9606
  %v9685 = vunpack.c.l.b16 %v9607
  %v9686 = vunpack.c.h.b16 %v9607
  %v9687 = vunpack.c.l.b16 %v9608
  %v9688 = vunpack.c.h.b16 %v9608
  %v9689 = vunpack.c.l.b16 %v9609
  %v9690 = vunpack.c.h.b16 %v9609
  %v9691 = vunpack.c.l.b16 %v9610
  %v9692 = vunpack.c.h.b16 %v9610
  %v9693 = vunpack.c.l.b16 %v9611
  %v9694 = vunpack.c.h.b16 %v9611
  %v9695 = vunpack.c.l.b16 %v9612
  %v9696 = vunpack.c.h.b16 %v9612
  %v9697 = vunpack.c.l.b16 %v9613
  %v9698 = vunpack.c.h.b16 %v9613
  %v9699 = vunpack.c.l.b16 %v9614
  %v9700 = vunpack.c.h.b16 %v9614
  %v9701 = vunpack.c.l.b16 %v9615
  %v9702 = vunpack.c.h.b16 %v9615
  %v9703 = vunpack.c.l.b16 %v9616
  %v9704 = vunpack.c.h.b16 %v9616
  %v9705 = vunpack.c.l.b16 %v9617
  %v9706 = vunpack.c.h.b16 %v9617
  %v9707 = vunpack.c.l.b16 %v9618
  %v9708 = vunpack.c.h.b16 %v9618
  %v9709 = vunpack.c.l.b16 %v9619
  %v9710 = vunpack.c.h.b16 %v9619
  %v9711 = vunpack.c.l.b16 %v9620
  %v9712 = vunpack.c.h.b16 %v9620
  %v9713 = vunpack.c.l.b16 %v9621
  %v9714 = vunpack.c.h.b16 %v9621
  %v9715 = vunpack.c.l.b16 %v9622
  %v9716 = vunpack.c.h.b16 %v9622
  %v9717 = vunpack.c.l.b16 %v9623
  %v9718 = vunpack.c.h.b16 %v9623
  %v9719 = vunpack.c.l.b16 %v9624
  %v9720 = vunpack.c.h.b16 %v9624
  %v9721 = vpack.c.b16 %v9657, %v9657
  %v9722 = vpack.c.b16 %v9658, %v9658
  %v9723 = vpack.c.b16 %v9659, %v9659
  %v9724 = vpack.c.b16 %v9660, %v9660
  %v9725 = vpack.c.b16 %v9661, %v9661
  %v9726 = vpack.c.b16 %v9662, %v9662
  %v9727 = vpack.c.b16 %v9663, %v9663
  %v9728 = vpack.c.b16 %v9664, %v9664
  %v9729 = vpack.c.b16 %v9665, %v9665
  %v9730 = vpack.c.b16 %v9666, %v9666
  %v9731 = vpack.c.b16 %v9667, %v9667
  %v9732 = vpack.c.b16 %v9668, %v9668
  %v9733 = vpack.c.b16 %v9669, %v9669
  %v9734 = vpack.c.b16 %v9670, %v9670
  %v9735 = vpack.c.b16 %v9671, %v9671
  %v9736 = vpack.c.b16 %v9672, %v9672
  %v9737 = vpack.c.b16 %v9673, %v9673
  %v9738 = vpack.c.b16 %v9674, %v9674
  %v9739 = vpack.c.b16 %v9675, %v9675
  %v9740 = vpack.c.b16 %v9676, %v9676
  %v9741 = vpack.c.b16 %v9677, %v9677
  %v9742 = vpack.c.b16 %v9678, %v9678
  %v9743 = vpack.c.b16 %v9679, %v9679
  %v9744 = vpack.c.b16 %v9680, %v9680
  %v9745 = vpack.c.b16 %v9681, %v9681
  %v9746 = vpack.c.b16 %v9682, %v9682
  %v9747 = vpack.c.b16 %v9683, %v9683
  %v9748 = vpack.c.b16 %v9684, %v9684
  %v9749 = vpack.c.b16 %v9685, %v9685
  %v9750 = vpack.c.b16 %v9686, %v9686
  %v9751 = vpack.c.b16 %v9687, %v9687
  %v9752 = vpack.c.b16 %v9688, %v9688
  %v9753 = vpack.c.b16 %v9689, %v9689
  %v9754 = vpack.c.b16 %v9690, %v9690
  %v9755 = vpack.c.b16 %v9691, %v9691
  %v9756 = vpack.c.b16 %v9692, %v9692
  %v9757 = vpack.c.b16 %v9693, %v9693
  %v9758 = vpack.c.b16 %v9694, %v9694
  %v9759 = vpack.c.b16 %v9695, %v9695
  %v9760 = vpack.c.b16 %v9696, %v9696
  %v9761 = vpack.c.b16 %v9697, %v9697
  %v9762 = vpack.c.b16 %v9698, %v9698
  %v9763 = vpack.c.b16 %v9699, %v9699
  %v9764 = vpack.c.b16 %v9700, %v9700
  %v9765 = vpack.c.b16 %v9701, %v9701
  %v9766 = vpack.c.b16 %v9702, %v9702
  %v9767 = vpack.c.b16 %v9703, %v9703
  %v9768 = vpack.c.b16 %v9704, %v9704
  %v9769 = vpack.c.b16 %v9705, %v9705
  %v9770 = vpack.c.b16 %v9706, %v9706
  %v9771 = vpack.c.b16 %v9707, %v9707
  %v9772 = vpack.c.b16 %v9708, %v9708
  %v9773 = vpack.c.b16 %v9709, %v9709
  %v9774 = vpack.c.b16 %v9710, %v9710
  %v9775 = vpack.c.b16 %v9711, %v9711
  %v9776 = vpack.c.b16 %v9712, %v9712
  %v9777 = vpack.c.b16 %v9713, %v9713
  %v9778 = vpack.c.b16 %v9714, %v9714
  %v9779 = vpack.c.b16 %v9715, %v9715
  %v9780 = vpack.c.b16 %v9716, %v9716
  %v9781 = vpack.c.b16 %v9717, %v9717
  %v9782 = vpack.c.b16 %v9718, %v9718
  %v9783 = vpack.c.b16 %v9719, %v9719
  %v9784 = vpack.c.b16 %v9720, %v9720
  %9849 = vst.msk [vmem:[#allocation3 + $0x8] sm:$0xf] %vm1167, %v9721
  %9850 = vst.msk [vmem:[#allocation3 + $0x1c] sm:$0xf] %vm1167, %v9722
  %9851 = vst.msk [vmem:[#allocation3 + $0x30] sm:$0xf] %vm1167, %v9723
  %9852 = vst.msk [vmem:[#allocation3 + $0x44] sm:$0xf] %vm1167, %v9724
  %9853 = vst.msk [vmem:[#allocation3 + $0x58] sm:$0xf] %vm1167, %v9725
  %9854 = vst.msk [vmem:[#allocation3 + $0x6c] sm:$0xf] %vm1167, %v9726
  %9855 = vst.msk [vmem:[#allocation3 + $0x80] sm:$0xf] %vm1167, %v9727
  %9856 = vst.msk [vmem:[#allocation3 + $0x94] sm:$0xf] %vm1167, %v9728
  %9857 = vst.msk [vmem:[#allocation3 + $0xa8] sm:$0xf] %vm1167, %v9729
  %9858 = vst.msk [vmem:[#allocation3 + $0xbc] sm:$0xf] %vm1167, %v9730
  %9859 = vst.msk [vmem:[#allocation3 + $0xd0] sm:$0xf] %vm1167, %v9731
  %9860 = vst.msk [vmem:[#allocation3 + $0xe4] sm:$0xf] %vm1167, %v9732
  %9861 = vst.msk [vmem:[#allocation3 + $0xf8] sm:$0xf] %vm1167, %v9733
  %9862 = vst.msk [vmem:[#allocation3 + $0x10c] sm:$0xf] %vm1167, %v9734
  %9863 = vst.msk [vmem:[#allocation3 + $0x120] sm:$0xf] %vm1167, %v9735
  %9864 = vst.msk [vmem:[#allocation3 + $0x134] sm:$0xf] %vm1167, %v9736
  %9865 = vst.msk [vmem:[#allocation3 + $0x148] sm:$0xf] %vm1167, %v9737
  %9866 = vst.msk [vmem:[#allocation3 + $0x15c] sm:$0xf] %vm1167, %v9738
  %9867 = vst.msk [vmem:[#allocation3 + $0x170] sm:$0xf] %vm1167, %v9739
  %9868 = vst.msk [vmem:[#allocation3 + $0x184] sm:$0xf] %vm1167, %v9740
  %9869 = vst.msk [vmem:[#allocation3 + $0x198] sm:$0xf] %vm1167, %v9741
  %9870 = vst.msk [vmem:[#allocation3 + $0x1ac] sm:$0xf] %vm1167, %v9742
  %9871 = vst.msk [vmem:[#allocation3 + $0x1c0] sm:$0xf] %vm1167, %v9743
  %9872 = vst.msk [vmem:[#allocation3 + $0x1d4] sm:$0xf] %vm1167, %v9744
  %9873 = vst.msk [vmem:[#allocation3 + $0x1e8] sm:$0xf] %vm1167, %v9745
  %9874 = vst.msk [vmem:[#allocation3 + $0x1fc] sm:$0xf] %vm1167, %v9746
  %9875 = vst.msk [vmem:[#allocation3 + $0x210] sm:$0xf] %vm1167, %v9747
  %9876 = vst.msk [vmem:[#allocation3 + $0x224] sm:$0xf] %vm1167, %v9748
  %9877 = vst.msk [vmem:[#allocation3 + $0x238] sm:$0xf] %vm1167, %v9749
  %9878 = vst.msk [vmem:[#allocation3 + $0x24c] sm:$0xf] %vm1167, %v9750
  %9879 = vst.msk [vmem:[#allocation3 + $0x260] sm:$0xf] %vm1167, %v9751
  %9880 = vst.msk [vmem:[#allocation3 + $0x274] sm:$0xf] %vm1167, %v9752
  %9881 = vst.msk [vmem:[#allocation3 + $0x288] sm:$0xf] %vm1167, %v9753
  %9882 = vst.msk [vmem:[#allocation3 + $0x29c] sm:$0xf] %vm1167, %v9754
  %9883 = vst.msk [vmem:[#allocation3 + $0x2b0] sm:$0xf] %vm1167, %v9755
  %9884 = vst.msk [vmem:[#allocation3 + $0x2c4] sm:$0xf] %vm1167, %v9756
  %9885 = vst.msk [vmem:[#allocation3 + $0x2d8] sm:$0xf] %vm1167, %v9757
  %9886 = vst.msk [vmem:[#allocation3 + $0x2ec] sm:$0xf] %vm1167, %v9758
  %9887 = vst.msk [vmem:[#allocation3 + $0x300] sm:$0xf] %vm1167, %v9759
  %9888 = vst.msk [vmem:[#allocation3 + $0x314] sm:$0xf] %vm1167, %v9760
  %9889 = vst.msk [vmem:[#allocation3 + $0x328] sm:$0xf] %vm1167, %v9761
  %9890 = vst.msk [vmem:[#allocation3 + $0x33c] sm:$0xf] %vm1167, %v9762
  %9891 = vst.msk [vmem:[#allocation3 + $0x350] sm:$0xf] %vm1167, %v9763
  %9892 = vst.msk [vmem:[#allocation3 + $0x364] sm:$0xf] %vm1167, %v9764
  %9893 = vst.msk [vmem:[#allocation3 + $0x378] sm:$0xf] %vm1167, %v9765
  %9894 = vst.msk [vmem:[#allocation3 + $0x38c] sm:$0xf] %vm1167, %v9766
  %9895 = vst.msk [vmem:[#allocation3 + $0x3a0] sm:$0xf] %vm1167, %v9767
  %9896 = vst.msk [vmem:[#allocation3 + $0x3b4] sm:$0xf] %vm1167, %v9768
  %9897 = vst.msk [vmem:[#allocation3 + $0x3c8] sm:$0xf] %vm1167, %v9769
  %9898 = vst.msk [vmem:[#allocation3 + $0x3dc] sm:$0xf] %vm1167, %v9770
  %9899 = vst.msk [vmem:[#allocation3 + $0x3f0] sm:$0xf] %vm1167, %v9771
  %9900 = vst.msk [vmem:[#allocation3 + $0x404] sm:$0xf] %vm1167, %v9772
  %9901 = vst.msk [vmem:[#allocation3 + $0x418] sm:$0xf] %vm1167, %v9773
  %9902 = vst.msk [vmem:[#allocation3 + $0x42c] sm:$0xf] %vm1167, %v9774
  %9903 = vst.msk [vmem:[#allocation3 + $0x440] sm:$0xf] %vm1167, %v9775
  %9904 = vst.msk [vmem:[#allocation3 + $0x454] sm:$0xf] %vm1167, %v9776
  %9905 = vst.msk [vmem:[#allocation3 + $0x468] sm:$0xf] %vm1167, %v9777
  %9906 = vst.msk [vmem:[#allocation3 + $0x47c] sm:$0xf] %vm1167, %v9778
  %9907 = vst.msk [vmem:[#allocation3 + $0x490] sm:$0xf] %vm1167, %v9779
  %9908 = vst.msk [vmem:[#allocation3 + $0x4a4] sm:$0xf] %vm1167, %v9780
  %9909 = vst.msk [vmem:[#allocation3 + $0x4b8] sm:$0xf] %vm1167, %v9781
  %9910 = vst.msk [vmem:[#allocation3 + $0x4cc] sm:$0xf] %vm1167, %v9782
  %9911 = vst.msk [vmem:[#allocation3 + $0x4e0] sm:$0xf] %vm1167, %v9783
  %9912 = vst.msk [vmem:[#allocation3 + $0x4f4] sm:$0xf] %vm1167, %v9784
  %v9913 = vld [vmem:[%s782 + $0x2] sm:$0xff]
  %v9914 = vld [vmem:[%s782 + $0xa] sm:$0xff]
  %v9915 = vld [vmem:[%s782 + $0x1a] sm:$0xff]
  %v9916 = vld [vmem:[%s782 + $0x22] sm:$0xff]
  %v9917 = vld [vmem:[%s782 + $0x32] sm:$0xff]
  %v9918 = vld [vmem:[%s782 + $0x3a] sm:$0xff]
  %v9919 = vld [vmem:[%s782 + $0x4a] sm:$0xff]
  %v9920 = vld [vmem:[%s782 + $0x52] sm:$0xff]
  %v9921 = vld [vmem:[%s782 + $0x62] sm:$0xff]
  %v9922 = vld [vmem:[%s782 + $0x6a] sm:$0xff]
  %v9923 = vld [vmem:[%s782 + $0x7a] sm:$0xff]
  %v9924 = vld [vmem:[%s782 + $0x82] sm:$0xff]
  %v9925 = vld [vmem:[%s782 + $0x92] sm:$0xff]
  %v9926 = vld [vmem:[%s782 + $0x9a] sm:$0xff]
  %v9927 = vld [vmem:[%s782 + $0xaa] sm:$0xff]
  %v9928 = vld [vmem:[%s782 + $0xb2] sm:$0xff]
  %v9929 = vld [vmem:[%s782 + $0xc2] sm:$0xff]
  %v9930 = vld [vmem:[%s782 + $0xca] sm:$0xff]
  %v9931 = vld [vmem:[%s782 + $0xda] sm:$0xff]
  %v9932 = vld [vmem:[%s782 + $0xe2] sm:$0xff]
  %v9933 = vld [vmem:[%s782 + $0xf2] sm:$0xff]
  %v9934 = vld [vmem:[%s782 + $0xfa] sm:$0xff]
  %v9935 = vld [vmem:[%s782 + $0x10a] sm:$0xff]
  %v9936 = vld [vmem:[%s782 + $0x112] sm:$0xff]
  %v9937 = vld [vmem:[%s782 + $0x122] sm:$0xff]
  %v9938 = vld [vmem:[%s782 + $0x12a] sm:$0xff]
  %v9939 = vld [vmem:[%s782 + $0x13a] sm:$0xff]
  %v9940 = vld [vmem:[%s782 + $0x142] sm:$0xff]
  %v9941 = vld [vmem:[%s782 + $0x152] sm:$0xff]
  %v9942 = vld [vmem:[%s782 + $0x15a] sm:$0xff]
  %v9943 = vld [vmem:[%s782 + $0x16a] sm:$0xff]
  %v9944 = vld [vmem:[%s782 + $0x172] sm:$0xff]
  %v9945 = vld [vmem:[%s782 + $0x1b2] sm:$0xff]
  %v9946 = vld [vmem:[%s782 + $0x1ba] sm:$0xff]
  %v9947 = vld [vmem:[%s782 + $0x1ca] sm:$0xff]
  %v9948 = vld [vmem:[%s782 + $0x1d2] sm:$0xff]
  %v9949 = vld [vmem:[%s782 + $0x1e2] sm:$0xff]
  %v9950 = vld [vmem:[%s782 + $0x1ea] sm:$0xff]
  %v9951 = vld [vmem:[%s782 + $0x1fa] sm:$0xff]
  %v9952 = vld [vmem:[%s782 + $0x202] sm:$0xff]
  %v9953 = vld [vmem:[%s782 + $0x212] sm:$0xff]
  %v9954 = vld [vmem:[%s782 + $0x21a] sm:$0xff]
  %v9955 = vld [vmem:[%s782 + $0x22a] sm:$0xff]
  %v9956 = vld [vmem:[%s782 + $0x232] sm:$0xff]
  %v9957 = vld [vmem:[%s782 + $0x242] sm:$0xff]
  %v9958 = vld [vmem:[%s782 + $0x24a] sm:$0xff]
  %v9959 = vld [vmem:[%s782 + $0x25a] sm:$0xff]
  %v9960 = vld [vmem:[%s782 + $0x262] sm:$0xff]
  %v9961 = vld [vmem:[%s782 + $0x272] sm:$0xff]
  %v9962 = vld [vmem:[%s782 + $0x27a] sm:$0xff]
  %v9963 = vld [vmem:[%s782 + $0x28a] sm:$0xff]
  %v9964 = vld [vmem:[%s782 + $0x292] sm:$0xff]
  %v9965 = vld [vmem:[%s782 + $0x2a2] sm:$0xff]
  %v9966 = vld [vmem:[%s782 + $0x2aa] sm:$0xff]
  %v9967 = vld [vmem:[%s782 + $0x2ba] sm:$0xff]
  %v9968 = vld [vmem:[%s782 + $0x2c2] sm:$0xff]
  %v9969 = vld [vmem:[%s782 + $0x2d2] sm:$0xff]
  %v9970 = vld [vmem:[%s782 + $0x2da] sm:$0xff]
  %v9971 = vld [vmem:[%s782 + $0x2ea] sm:$0xff]
  %v9972 = vld [vmem:[%s782 + $0x2f2] sm:$0xff]
  %v9973 = vld [vmem:[%s782 + $0x302] sm:$0xff]
  %v9974 = vld [vmem:[%s782 + $0x30a] sm:$0xff]
  %v9975 = vld [vmem:[%s782 + $0x31a] sm:$0xff]
  %v9976 = vld [vmem:[%s782 + $0x322] sm:$0xff]
  %v9977 = vpack.c.bf16 %v9914, %v9913
  %v9978 = vpack.c.bf16 %v9916, %v9915
  %v9979 = vpack.c.bf16 %v9918, %v9917
  %v9980 = vpack.c.bf16 %v9920, %v9919
  %v9981 = vpack.c.bf16 %v9922, %v9921
  %v9982 = vpack.c.bf16 %v9924, %v9923
  %v9983 = vpack.c.bf16 %v9926, %v9925
  %v9984 = vpack.c.bf16 %v9928, %v9927
  %v9985 = vpack.c.bf16 %v9930, %v9929
  %v9986 = vpack.c.bf16 %v9932, %v9931
  %v9987 = vpack.c.bf16 %v9934, %v9933
  %v9988 = vpack.c.bf16 %v9936, %v9935
  %v9989 = vpack.c.bf16 %v9938, %v9937
  %v9990 = vpack.c.bf16 %v9940, %v9939
  %v9991 = vpack.c.bf16 %v9942, %v9941
  %v9992 = vpack.c.bf16 %v9944, %v9943
  %v9993 = vpack.c.bf16 %v9946, %v9945
  %v9994 = vpack.c.bf16 %v9948, %v9947
  %v9995 = vpack.c.bf16 %v9950, %v9949
  %v9996 = vpack.c.bf16 %v9952, %v9951
  %v9997 = vpack.c.bf16 %v9954, %v9953
  %v9998 = vpack.c.bf16 %v9956, %v9955
  %v9999 = vpack.c.bf16 %v9958, %v9957
  %v10000 = vpack.c.bf16 %v9960, %v9959
  %v10001 = vpack.c.bf16 %v9962, %v9961
  %v10002 = vpack.c.bf16 %v9964, %v9963
  %v10003 = vpack.c.bf16 %v9966, %v9965
  %v10004 = vpack.c.bf16 %v9968, %v9967
  %v10005 = vpack.c.bf16 %v9970, %v9969
  %v10006 = vpack.c.bf16 %v9972, %v9971
  %v10007 = vpack.c.bf16 %v9974, %v9973
  %v10008 = vpack.c.bf16 %v9976, %v9975
  %v10041 = vunpack.c.l.b16 %v9977
  %v10042 = vunpack.c.h.b16 %v9977
  %v10043 = vunpack.c.l.b16 %v9978
  %v10044 = vunpack.c.h.b16 %v9978
  %v10045 = vunpack.c.l.b16 %v9979
  %v10046 = vunpack.c.h.b16 %v9979
  %v10047 = vunpack.c.l.b16 %v9980
  %v10048 = vunpack.c.h.b16 %v9980
  %v10049 = vunpack.c.l.b16 %v9981
  %v10050 = vunpack.c.h.b16 %v9981
  %v10051 = vunpack.c.l.b16 %v9982
  %v10052 = vunpack.c.h.b16 %v9982
  %v10053 = vunpack.c.l.b16 %v9983
  %v10054 = vunpack.c.h.b16 %v9983
  %v10055 = vunpack.c.l.b16 %v9984
  %v10056 = vunpack.c.h.b16 %v9984
  %v10057 = vunpack.c.l.b16 %v9985
  %v10058 = vunpack.c.h.b16 %v9985
  %v10059 = vunpack.c.l.b16 %v9986
  %v10060 = vunpack.c.h.b16 %v9986
  %v10061 = vunpack.c.l.b16 %v9987
  %v10062 = vunpack.c.h.b16 %v9987
  %v10063 = vunpack.c.l.b16 %v9988
  %v10064 = vunpack.c.h.b16 %v9988
  %v10065 = vunpack.c.l.b16 %v9989
  %v10066 = vunpack.c.h.b16 %v9989
  %v10067 = vunpack.c.l.b16 %v9990
  %v10068 = vunpack.c.h.b16 %v9990
  %v10069 = vunpack.c.l.b16 %v9991
  %v10070 = vunpack.c.h.b16 %v9991
  %v10071 = vunpack.c.l.b16 %v9992
  %v10072 = vunpack.c.h.b16 %v9992
  %v10073 = vunpack.c.l.b16 %v9993
  %v10074 = vunpack.c.h.b16 %v9993
  %v10075 = vunpack.c.l.b16 %v9994
  %v10076 = vunpack.c.h.b16 %v9994
  %v10077 = vunpack.c.l.b16 %v9995
  %v10078 = vunpack.c.h.b16 %v9995
  %v10079 = vunpack.c.l.b16 %v9996
  %v10080 = vunpack.c.h.b16 %v9996
  %v10081 = vunpack.c.l.b16 %v9997
  %v10082 = vunpack.c.h.b16 %v9997
  %v10083 = vunpack.c.l.b16 %v9998
  %v10084 = vunpack.c.h.b16 %v9998
  %v10085 = vunpack.c.l.b16 %v9999
  %v10086 = vunpack.c.h.b16 %v9999
  %v10087 = vunpack.c.l.b16 %v10000
  %v10088 = vunpack.c.h.b16 %v10000
  %v10089 = vunpack.c.l.b16 %v10001
  %v10090 = vunpack.c.h.b16 %v10001
  %v10091 = vunpack.c.l.b16 %v10002
  %v10092 = vunpack.c.h.b16 %v10002
  %v10093 = vunpack.c.l.b16 %v10003
  %v10094 = vunpack.c.h.b16 %v10003
  %v10095 = vunpack.c.l.b16 %v10004
  %v10096 = vunpack.c.h.b16 %v10004
  %v10097 = vunpack.c.l.b16 %v10005
  %v10098 = vunpack.c.h.b16 %v10005
  %v10099 = vunpack.c.l.b16 %v10006
  %v10100 = vunpack.c.h.b16 %v10006
  %v10101 = vunpack.c.l.b16 %v10007
  %v10102 = vunpack.c.h.b16 %v10007
  %v10103 = vunpack.c.l.b16 %v10008
  %v10104 = vunpack.c.h.b16 %v10008
  %v10105 = vpack.c.b16 %v10041, %v10041
  %v10106 = vpack.c.b16 %v10042, %v10042
  %v10107 = vpack.c.b16 %v10043, %v10043
  %v10108 = vpack.c.b16 %v10044, %v10044
  %v10109 = vpack.c.b16 %v10045, %v10045
  %v10110 = vpack.c.b16 %v10046, %v10046
  %v10111 = vpack.c.b16 %v10047, %v10047
  %v10112 = vpack.c.b16 %v10048, %v10048
  %v10113 = vpack.c.b16 %v10049, %v10049
  %v10114 = vpack.c.b16 %v10050, %v10050
  %v10115 = vpack.c.b16 %v10051, %v10051
  %v10116 = vpack.c.b16 %v10052, %v10052
  %v10117 = vpack.c.b16 %v10053, %v10053
  %v10118 = vpack.c.b16 %v10054, %v10054
  %v10119 = vpack.c.b16 %v10055, %v10055
  %v10120 = vpack.c.b16 %v10056, %v10056
  %v10121 = vpack.c.b16 %v10057, %v10057
  %v10122 = vpack.c.b16 %v10058, %v10058
  %v10123 = vpack.c.b16 %v10059, %v10059
  %v10124 = vpack.c.b16 %v10060, %v10060
  %v10125 = vpack.c.b16 %v10061, %v10061
  %v10126 = vpack.c.b16 %v10062, %v10062
  %v10127 = vpack.c.b16 %v10063, %v10063
  %v10128 = vpack.c.b16 %v10064, %v10064
  %v10129 = vpack.c.b16 %v10065, %v10065
  %v10130 = vpack.c.b16 %v10066, %v10066
  %v10131 = vpack.c.b16 %v10067, %v10067
  %v10132 = vpack.c.b16 %v10068, %v10068
  %v10133 = vpack.c.b16 %v10069, %v10069
  %v10134 = vpack.c.b16 %v10070, %v10070
  %v10135 = vpack.c.b16 %v10071, %v10071
  %v10136 = vpack.c.b16 %v10072, %v10072
  %v10137 = vpack.c.b16 %v10073, %v10073
  %v10138 = vpack.c.b16 %v10074, %v10074
  %v10139 = vpack.c.b16 %v10075, %v10075
  %v10140 = vpack.c.b16 %v10076, %v10076
  %v10141 = vpack.c.b16 %v10077, %v10077
  %v10142 = vpack.c.b16 %v10078, %v10078
  %v10143 = vpack.c.b16 %v10079, %v10079
  %v10144 = vpack.c.b16 %v10080, %v10080
  %v10145 = vpack.c.b16 %v10081, %v10081
  %v10146 = vpack.c.b16 %v10082, %v10082
  %v10147 = vpack.c.b16 %v10083, %v10083
  %v10148 = vpack.c.b16 %v10084, %v10084
  %v10149 = vpack.c.b16 %v10085, %v10085
  %v10150 = vpack.c.b16 %v10086, %v10086
  %v10151 = vpack.c.b16 %v10087, %v10087
  %v10152 = vpack.c.b16 %v10088, %v10088
  %v10153 = vpack.c.b16 %v10089, %v10089
  %v10154 = vpack.c.b16 %v10090, %v10090
  %v10155 = vpack.c.b16 %v10091, %v10091
  %v10156 = vpack.c.b16 %v10092, %v10092
  %v10157 = vpack.c.b16 %v10093, %v10093
  %v10158 = vpack.c.b16 %v10094, %v10094
  %v10159 = vpack.c.b16 %v10095, %v10095
  %v10160 = vpack.c.b16 %v10096, %v10096
  %v10161 = vpack.c.b16 %v10097, %v10097
  %v10162 = vpack.c.b16 %v10098, %v10098
  %v10163 = vpack.c.b16 %v10099, %v10099
  %v10164 = vpack.c.b16 %v10100, %v10100
  %v10165 = vpack.c.b16 %v10101, %v10101
  %v10166 = vpack.c.b16 %v10102, %v10102
  %v10167 = vpack.c.b16 %v10103, %v10103
  %v10168 = vpack.c.b16 %v10104, %v10104
  %10169 = vrot.lane.b32.xlu0 %v10105, 64
  %v10170 = vpop.permute.xlu0 %10169
  %10171 = vrot.lane.b32.xlu0 %v10106, 64
  %v10172 = vpop.permute.xlu0 %10171
  %10173 = vrot.lane.b32.xlu0 %v10107, 64
  %v10174 = vpop.permute.xlu0 %10173
  %10175 = vrot.lane.b32.xlu0 %v10108, 64
  %v10176 = vpop.permute.xlu0 %10175
  %10177 = vrot.lane.b32.xlu0 %v10109, 64
  %v10178 = vpop.permute.xlu0 %10177
  %10179 = vrot.lane.b32.xlu0 %v10110, 64
  %v10180 = vpop.permute.xlu0 %10179
  %10181 = vrot.lane.b32.xlu0 %v10111, 64
  %v10182 = vpop.permute.xlu0 %10181
  %10183 = vrot.lane.b32.xlu0 %v10112, 64
  %v10184 = vpop.permute.xlu0 %10183
  %10185 = vrot.lane.b32.xlu0 %v10113, 64
  %v10186 = vpop.permute.xlu0 %10185
  %10187 = vrot.lane.b32.xlu0 %v10114, 64
  %v10188 = vpop.permute.xlu0 %10187
  %10189 = vrot.lane.b32.xlu0 %v10115, 64
  %v10190 = vpop.permute.xlu0 %10189
  %10191 = vrot.lane.b32.xlu0 %v10116, 64
  %v10192 = vpop.permute.xlu0 %10191
  %10193 = vrot.lane.b32.xlu0 %v10117, 64
  %v10194 = vpop.permute.xlu0 %10193
  %10195 = vrot.lane.b32.xlu0 %v10118, 64
  %v10196 = vpop.permute.xlu0 %10195
  %10197 = vrot.lane.b32.xlu0 %v10119, 64
  %v10198 = vpop.permute.xlu0 %10197
  %10199 = vrot.lane.b32.xlu0 %v10120, 64
  %v10200 = vpop.permute.xlu0 %10199
  %10201 = vrot.lane.b32.xlu0 %v10121, 64
  %v10202 = vpop.permute.xlu0 %10201
  %10203 = vrot.lane.b32.xlu0 %v10122, 64
  %v10204 = vpop.permute.xlu0 %10203
  %10205 = vrot.lane.b32.xlu0 %v10123, 64
  %v10206 = vpop.permute.xlu0 %10205
  %10207 = vrot.lane.b32.xlu0 %v10124, 64
  %v10208 = vpop.permute.xlu0 %10207
  %10209 = vrot.lane.b32.xlu0 %v10125, 64
  %v10210 = vpop.permute.xlu0 %10209
  %10211 = vrot.lane.b32.xlu0 %v10126, 64
  %v10212 = vpop.permute.xlu0 %10211
  %10213 = vrot.lane.b32.xlu0 %v10127, 64
  %v10214 = vpop.permute.xlu0 %10213
  %10215 = vrot.lane.b32.xlu0 %v10128, 64
  %v10216 = vpop.permute.xlu0 %10215
  %10217 = vrot.lane.b32.xlu0 %v10129, 64
  %v10218 = vpop.permute.xlu0 %10217
  %10219 = vrot.lane.b32.xlu0 %v10130, 64
  %v10220 = vpop.permute.xlu0 %10219
  %10221 = vrot.lane.b32.xlu0 %v10131, 64
  %v10222 = vpop.permute.xlu0 %10221
  %10223 = vrot.lane.b32.xlu0 %v10132, 64
  %v10224 = vpop.permute.xlu0 %10223
  %10225 = vrot.lane.b32.xlu0 %v10133, 64
  %v10226 = vpop.permute.xlu0 %10225
  %10227 = vrot.lane.b32.xlu0 %v10134, 64
  %v10228 = vpop.permute.xlu0 %10227
  %10229 = vrot.lane.b32.xlu0 %v10135, 64
  %v10230 = vpop.permute.xlu0 %10229
  %10231 = vrot.lane.b32.xlu0 %v10136, 64
  %v10232 = vpop.permute.xlu0 %10231
  %10233 = vrot.lane.b32.xlu0 %v10137, 64
  %v10234 = vpop.permute.xlu0 %10233
  %10235 = vrot.lane.b32.xlu0 %v10138, 64
  %v10236 = vpop.permute.xlu0 %10235
  %10237 = vrot.lane.b32.xlu0 %v10139, 64
  %v10238 = vpop.permute.xlu0 %10237
  %10239 = vrot.lane.b32.xlu0 %v10140, 64
  %v10240 = vpop.permute.xlu0 %10239
  %10241 = vrot.lane.b32.xlu0 %v10141, 64
  %v10242 = vpop.permute.xlu0 %10241
  %10243 = vrot.lane.b32.xlu0 %v10142, 64
  %v10244 = vpop.permute.xlu0 %10243
  %10245 = vrot.lane.b32.xlu0 %v10143, 64
  %v10246 = vpop.permute.xlu0 %10245
  %10247 = vrot.lane.b32.xlu0 %v10144, 64
  %v10248 = vpop.permute.xlu0 %10247
  %10249 = vrot.lane.b32.xlu0 %v10145, 64
  %v10250 = vpop.permute.xlu0 %10249
  %10251 = vrot.lane.b32.xlu0 %v10146, 64
  %v10252 = vpop.permute.xlu0 %10251
  %10253 = vrot.lane.b32.xlu0 %v10147, 64
  %v10254 = vpop.permute.xlu0 %10253
  %10255 = vrot.lane.b32.xlu0 %v10148, 64
  %v10256 = vpop.permute.xlu0 %10255
  %10257 = vrot.lane.b32.xlu0 %v10149, 64
  %v10258 = vpop.permute.xlu0 %10257
  %10259 = vrot.lane.b32.xlu0 %v10150, 64
  %v10260 = vpop.permute.xlu0 %10259
  %10261 = vrot.lane.b32.xlu0 %v10151, 64
  %v10262 = vpop.permute.xlu0 %10261
  %10263 = vrot.lane.b32.xlu0 %v10152, 64
  %v10264 = vpop.permute.xlu0 %10263
  %10265 = vrot.lane.b32.xlu0 %v10153, 64
  %v10266 = vpop.permute.xlu0 %10265
  %10267 = vrot.lane.b32.xlu0 %v10154, 64
  %v10268 = vpop.permute.xlu0 %10267
  %10269 = vrot.lane.b32.xlu0 %v10155, 64
  %v10270 = vpop.permute.xlu0 %10269
  %10271 = vrot.lane.b32.xlu0 %v10156, 64
  %v10272 = vpop.permute.xlu0 %10271
  %10273 = vrot.lane.b32.xlu0 %v10157, 64
  %v10274 = vpop.permute.xlu0 %10273
  %10275 = vrot.lane.b32.xlu0 %v10158, 64
  %v10276 = vpop.permute.xlu0 %10275
  %10277 = vrot.lane.b32.xlu0 %v10159, 64
  %v10278 = vpop.permute.xlu0 %10277
  %10279 = vrot.lane.b32.xlu0 %v10160, 64
  %v10280 = vpop.permute.xlu0 %10279
  %10281 = vrot.lane.b32.xlu0 %v10161, 64
  %v10282 = vpop.permute.xlu0 %10281
  %10283 = vrot.lane.b32.xlu0 %v10162, 64
  %v10284 = vpop.permute.xlu0 %10283
  %10285 = vrot.lane.b32.xlu0 %v10163, 64
  %v10286 = vpop.permute.xlu0 %10285
  %10287 = vrot.lane.b32.xlu0 %v10164, 64
  %v10288 = vpop.permute.xlu0 %10287
  %10289 = vrot.lane.b32.xlu0 %v10165, 64
  %v10290 = vpop.permute.xlu0 %10289
  %10291 = vrot.lane.b32.xlu0 %v10166, 64
  %v10292 = vpop.permute.xlu0 %10291
  %10293 = vrot.lane.b32.xlu0 %v10167, 64
  %v10294 = vpop.permute.xlu0 %10293
  %10295 = vrot.lane.b32.xlu0 %v10168, 64
  %v10296 = vpop.permute.xlu0 %10295
  %10361 = vst.msk [vmem:[#allocation3 + $0x8] sm:$0xf] %vm1680, %v10170
  %10362 = vst.msk [vmem:[#allocation3 + $0x1c] sm:$0xf] %vm1680, %v10172
  %10363 = vst.msk [vmem:[#allocation3 + $0x30] sm:$0xf] %vm1680, %v10174
  %10364 = vst.msk [vmem:[#allocation3 + $0x44] sm:$0xf] %vm1680, %v10176
  %10365 = vst.msk [vmem:[#allocation3 + $0x58] sm:$0xf] %vm1680, %v10178
  %10366 = vst.msk [vmem:[#allocation3 + $0x6c] sm:$0xf] %vm1680, %v10180
  %10367 = vst.msk [vmem:[#allocation3 + $0x80] sm:$0xf] %vm1680, %v10182
  %10368 = vst.msk [vmem:[#allocation3 + $0x94] sm:$0xf] %vm1680, %v10184
  %10369 = vst.msk [vmem:[#allocation3 + $0xa8] sm:$0xf] %vm1680, %v10186
  %10370 = vst.msk [vmem:[#allocation3 + $0xbc] sm:$0xf] %vm1680, %v10188
  %10371 = vst.msk [vmem:[#allocation3 + $0xd0] sm:$0xf] %vm1680, %v10190
  %10372 = vst.msk [vmem:[#allocation3 + $0xe4] sm:$0xf] %vm1680, %v10192
  %10373 = vst.msk [vmem:[#allocation3 + $0xf8] sm:$0xf] %vm1680, %v10194
  %10374 = vst.msk [vmem:[#allocation3 + $0x10c] sm:$0xf] %vm1680, %v10196
  %10375 = vst.msk [vmem:[#allocation3 + $0x120] sm:$0xf] %vm1680, %v10198
  %10376 = vst.msk [vmem:[#allocation3 + $0x134] sm:$0xf] %vm1680, %v10200
  %10377 = vst.msk [vmem:[#allocation3 + $0x148] sm:$0xf] %vm1680, %v10202
  %10378 = vst.msk [vmem:[#allocation3 + $0x15c] sm:$0xf] %vm1680, %v10204
  %10379 = vst.msk [vmem:[#allocation3 + $0x170] sm:$0xf] %vm1680, %v10206
  %10380 = vst.msk [vmem:[#allocation3 + $0x184] sm:$0xf] %vm1680, %v10208
  %10381 = vst.msk [vmem:[#allocation3 + $0x198] sm:$0xf] %vm1680, %v10210
  %10382 = vst.msk [vmem:[#allocation3 + $0x1ac] sm:$0xf] %vm1680, %v10212
  %10383 = vst.msk [vmem:[#allocation3 + $0x1c0] sm:$0xf] %vm1680, %v10214
  %10384 = vst.msk [vmem:[#allocation3 + $0x1d4] sm:$0xf] %vm1680, %v10216
  %10385 = vst.msk [vmem:[#allocation3 + $0x1e8] sm:$0xf] %vm1680, %v10218
  %10386 = vst.msk [vmem:[#allocation3 + $0x1fc] sm:$0xf] %vm1680, %v10220
  %10387 = vst.msk [vmem:[#allocation3 + $0x210] sm:$0xf] %vm1680, %v10222
  %10388 = vst.msk [vmem:[#allocation3 + $0x224] sm:$0xf] %vm1680, %v10224
  %10389 = vst.msk [vmem:[#allocation3 + $0x238] sm:$0xf] %vm1680, %v10226
  %10390 = vst.msk [vmem:[#allocation3 + $0x24c] sm:$0xf] %vm1680, %v10228
  %10391 = vst.msk [vmem:[#allocation3 + $0x260] sm:$0xf] %vm1680, %v10230
  %10392 = vst.msk [vmem:[#allocation3 + $0x274] sm:$0xf] %vm1680, %v10232
  %10393 = vst.msk [vmem:[#allocation3 + $0x288] sm:$0xf] %vm1680, %v10234
  %10394 = vst.msk [vmem:[#allocation3 + $0x29c] sm:$0xf] %vm1680, %v10236
  %10395 = vst.msk [vmem:[#allocation3 + $0x2b0] sm:$0xf] %vm1680, %v10238
  %10396 = vst.msk [vmem:[#allocation3 + $0x2c4] sm:$0xf] %vm1680, %v10240
  %10397 = vst.msk [vmem:[#allocation3 + $0x2d8] sm:$0xf] %vm1680, %v10242
  %10398 = vst.msk [vmem:[#allocation3 + $0x2ec] sm:$0xf] %vm1680, %v10244
  %10399 = vst.msk [vmem:[#allocation3 + $0x300] sm:$0xf] %vm1680, %v10246
  %10400 = vst.msk [vmem:[#allocation3 + $0x314] sm:$0xf] %vm1680, %v10248
  %10401 = vst.msk [vmem:[#allocation3 + $0x328] sm:$0xf] %vm1680, %v10250
  %10402 = vst.msk [vmem:[#allocation3 + $0x33c] sm:$0xf] %vm1680, %v10252
  %10403 = vst.msk [vmem:[#allocation3 + $0x350] sm:$0xf] %vm1680, %v10254
  %10404 = vst.msk [vmem:[#allocation3 + $0x364] sm:$0xf] %vm1680, %v10256
  %10405 = vst.msk [vmem:[#allocation3 + $0x378] sm:$0xf] %vm1680, %v10258
  %10406 = vst.msk [vmem:[#allocation3 + $0x38c] sm:$0xf] %vm1680, %v10260
  %10407 = vst.msk [vmem:[#allocation3 + $0x3a0] sm:$0xf] %vm1680, %v10262
  %10408 = vst.msk [vmem:[#allocation3 + $0x3b4] sm:$0xf] %vm1680, %v10264
  %10409 = vst.msk [vmem:[#allocation3 + $0x3c8] sm:$0xf] %vm1680, %v10266
  %10410 = vst.msk [vmem:[#allocation3 + $0x3dc] sm:$0xf] %vm1680, %v10268
  %10411 = vst.msk [vmem:[#allocation3 + $0x3f0] sm:$0xf] %vm1680, %v10270
  %10412 = vst.msk [vmem:[#allocation3 + $0x404] sm:$0xf] %vm1680, %v10272
  %10413 = vst.msk [vmem:[#allocation3 + $0x418] sm:$0xf] %vm1680, %v10274
  %10414 = vst.msk [vmem:[#allocation3 + $0x42c] sm:$0xf] %vm1680, %v10276
  %10415 = vst.msk [vmem:[#allocation3 + $0x440] sm:$0xf] %vm1680, %v10278
  %10416 = vst.msk [vmem:[#allocation3 + $0x454] sm:$0xf] %vm1680, %v10280
  %10417 = vst.msk [vmem:[#allocation3 + $0x468] sm:$0xf] %vm1680, %v10282
  %10418 = vst.msk [vmem:[#allocation3 + $0x47c] sm:$0xf] %vm1680, %v10284
  %10419 = vst.msk [vmem:[#allocation3 + $0x490] sm:$0xf] %vm1680, %v10286
  %10420 = vst.msk [vmem:[#allocation3 + $0x4a4] sm:$0xf] %vm1680, %v10288
  %10421 = vst.msk [vmem:[#allocation3 + $0x4b8] sm:$0xf] %vm1680, %v10290
  %10422 = vst.msk [vmem:[#allocation3 + $0x4cc] sm:$0xf] %vm1680, %v10292
  %10423 = vst.msk [vmem:[#allocation3 + $0x4e0] sm:$0xf] %vm1680, %v10294
  %10424 = vst.msk [vmem:[#allocation3 + $0x4f4] sm:$0xf] %vm1680, %v10296
  %v10425 = vld [vmem:[%s3537] sm:$0xff]
  %v10426 = vld [vmem:[%s3537 + $0x8] sm:$0xff]
  %v10427 = vld [vmem:[%s3537 + $0x18] sm:$0xff]
  %v10428 = vld [vmem:[%s3537 + $0x20] sm:$0xff]
  %v10429 = vld [vmem:[%s3537 + $0x30] sm:$0xff]
  %v10430 = vld [vmem:[%s3537 + $0x38] sm:$0xff]
  %v10431 = vld [vmem:[%s3537 + $0x48] sm:$0xff]
  %v10432 = vld [vmem:[%s3537 + $0x50] sm:$0xff]
  %v10433 = vld [vmem:[%s3537 + $0x60] sm:$0xff]
  %v10434 = vld [vmem:[%s3537 + $0x68] sm:$0xff]
  %v10435 = vld [vmem:[%s3537 + $0x78] sm:$0xff]
  %v10436 = vld [vmem:[%s3537 + $0x80] sm:$0xff]
  %v10437 = vld [vmem:[%s3537 + $0x90] sm:$0xff]
  %v10438 = vld [vmem:[%s3537 + $0x98] sm:$0xff]
  %v10439 = vld [vmem:[%s3537 + $0xa8] sm:$0xff]
  %v10440 = vld [vmem:[%s3537 + $0xb0] sm:$0xff]
  %v10441 = vld [vmem:[%s3537 + $0xc0] sm:$0xff]
  %v10442 = vld [vmem:[%s3537 + $0xc8] sm:$0xff]
  %v10443 = vld [vmem:[%s3537 + $0xd8] sm:$0xff]
  %v10444 = vld [vmem:[%s3537 + $0xe0] sm:$0xff]
  %v10445 = vld [vmem:[%s3537 + $0xf0] sm:$0xff]
  %v10446 = vld [vmem:[%s3537 + $0xf8] sm:$0xff]
  %v10447 = vld [vmem:[%s3537 + $0x108] sm:$0xff]
  %v10448 = vld [vmem:[%s3537 + $0x110] sm:$0xff]
  %v10449 = vld [vmem:[%s3537 + $0x120] sm:$0xff]
  %v10450 = vld [vmem:[%s3537 + $0x128] sm:$0xff]
  %v10451 = vld [vmem:[%s3537 + $0x138] sm:$0xff]
  %v10452 = vld [vmem:[%s3537 + $0x140] sm:$0xff]
  %v10453 = vld [vmem:[%s3537 + $0x150] sm:$0xff]
  %v10454 = vld [vmem:[%s3537 + $0x158] sm:$0xff]
  %v10455 = vld [vmem:[%s3537 + $0x168] sm:$0xff]
  %v10456 = vld [vmem:[%s3537 + $0x170] sm:$0xff]
  %v10457 = vld [vmem:[%s3537 + $0x1b0] sm:$0xff]
  %v10458 = vld [vmem:[%s3537 + $0x1b8] sm:$0xff]
  %v10459 = vld [vmem:[%s3537 + $0x1c8] sm:$0xff]
  %v10460 = vld [vmem:[%s3537 + $0x1d0] sm:$0xff]
  %v10461 = vld [vmem:[%s3537 + $0x1e0] sm:$0xff]
  %v10462 = vld [vmem:[%s3537 + $0x1e8] sm:$0xff]
  %v10463 = vld [vmem:[%s3537 + $0x1f8] sm:$0xff]
  %v10464 = vld [vmem:[%s3537 + $0x200] sm:$0xff]
  %v10465 = vld [vmem:[%s3537 + $0x210] sm:$0xff]
  %v10466 = vld [vmem:[%s3537 + $0x218] sm:$0xff]
  %v10467 = vld [vmem:[%s3537 + $0x228] sm:$0xff]
  %v10468 = vld [vmem:[%s3537 + $0x230] sm:$0xff]
  %v10469 = vld [vmem:[%s3537 + $0x240] sm:$0xff]
  %v10470 = vld [vmem:[%s3537 + $0x248] sm:$0xff]
  %v10471 = vld [vmem:[%s3537 + $0x258] sm:$0xff]
  %v10472 = vld [vmem:[%s3537 + $0x260] sm:$0xff]
  %v10473 = vld [vmem:[%s3537 + $0x270] sm:$0xff]
  %v10474 = vld [vmem:[%s3537 + $0x278] sm:$0xff]
  %v10475 = vld [vmem:[%s3537 + $0x288] sm:$0xff]
  %v10476 = vld [vmem:[%s3537 + $0x290] sm:$0xff]
  %v10477 = vld [vmem:[%s3537 + $0x2a0] sm:$0xff]
  %v10478 = vld [vmem:[%s3537 + $0x2a8] sm:$0xff]
  %v10479 = vld [vmem:[%s3537 + $0x2b8] sm:$0xff]
  %v10480 = vld [vmem:[%s3537 + $0x2c0] sm:$0xff]
  %v10481 = vld [vmem:[%s3537 + $0x2d0] sm:$0xff]
  %v10482 = vld [vmem:[%s3537 + $0x2d8] sm:$0xff]
  %v10483 = vld [vmem:[%s3537 + $0x2e8] sm:$0xff]
  %v10484 = vld [vmem:[%s3537 + $0x2f0] sm:$0xff]
  %v10485 = vld [vmem:[%s3537 + $0x300] sm:$0xff]
  %v10486 = vld [vmem:[%s3537 + $0x308] sm:$0xff]
  %v10487 = vld [vmem:[%s3537 + $0x318] sm:$0xff]
  %v10488 = vld [vmem:[%s3537 + $0x320] sm:$0xff]
  %v10489 = vpack.c.bf16 %v10426, %v10425
  %v10490 = vpack.c.bf16 %v10428, %v10427
  %v10491 = vpack.c.bf16 %v10430, %v10429
  %v10492 = vpack.c.bf16 %v10432, %v10431
  %v10493 = vpack.c.bf16 %v10434, %v10433
  %v10494 = vpack.c.bf16 %v10436, %v10435
  %v10495 = vpack.c.bf16 %v10438, %v10437
  %v10496 = vpack.c.bf16 %v10440, %v10439
  %v10497 = vpack.c.bf16 %v10442, %v10441
  %v10498 = vpack.c.bf16 %v10444, %v10443
  %v10499 = vpack.c.bf16 %v10446, %v10445
  %v10500 = vpack.c.bf16 %v10448, %v10447
  %v10501 = vpack.c.bf16 %v10450, %v10449
  %v10502 = vpack.c.bf16 %v10452, %v10451
  %v10503 = vpack.c.bf16 %v10454, %v10453
  %v10504 = vpack.c.bf16 %v10456, %v10455
  %v10505 = vpack.c.bf16 %v10458, %v10457
  %v10506 = vpack.c.bf16 %v10460, %v10459
  %v10507 = vpack.c.bf16 %v10462, %v10461
  %v10508 = vpack.c.bf16 %v10464, %v10463
  %v10509 = vpack.c.bf16 %v10466, %v10465
  %v10510 = vpack.c.bf16 %v10468, %v10467
  %v10511 = vpack.c.bf16 %v10470, %v10469
  %v10512 = vpack.c.bf16 %v10472, %v10471
  %v10513 = vpack.c.bf16 %v10474, %v10473
  %v10514 = vpack.c.bf16 %v10476, %v10475
  %v10515 = vpack.c.bf16 %v10478, %v10477
  %v10516 = vpack.c.bf16 %v10480, %v10479
  %v10517 = vpack.c.bf16 %v10482, %v10481
  %v10518 = vpack.c.bf16 %v10484, %v10483
  %v10519 = vpack.c.bf16 %v10486, %v10485
  %v10520 = vpack.c.bf16 %v10488, %v10487
  %v10553 = vunpack.c.l.b16 %v10489
  %v10554 = vunpack.c.h.b16 %v10489
  %v10555 = vunpack.c.l.b16 %v10490
  %v10556 = vunpack.c.h.b16 %v10490
  %v10557 = vunpack.c.l.b16 %v10491
  %v10558 = vunpack.c.h.b16 %v10491
  %v10559 = vunpack.c.l.b16 %v10492
  %v10560 = vunpack.c.h.b16 %v10492
  %v10561 = vunpack.c.l.b16 %v10493
  %v10562 = vunpack.c.h.b16 %v10493
  %v10563 = vunpack.c.l.b16 %v10494
  %v10564 = vunpack.c.h.b16 %v10494
  %v10565 = vunpack.c.l.b16 %v10495
  %v10566 = vunpack.c.h.b16 %v10495
  %v10567 = vunpack.c.l.b16 %v10496
  %v10568 = vunpack.c.h.b16 %v10496
  %v10569 = vunpack.c.l.b16 %v10497
  %v10570 = vunpack.c.h.b16 %v10497
  %v10571 = vunpack.c.l.b16 %v10498
  %v10572 = vunpack.c.h.b16 %v10498
  %v10573 = vunpack.c.l.b16 %v10499
  %v10574 = vunpack.c.h.b16 %v10499
  %v10575 = vunpack.c.l.b16 %v10500
  %v10576 = vunpack.c.h.b16 %v10500
  %v10577 = vunpack.c.l.b16 %v10501
  %v10578 = vunpack.c.h.b16 %v10501
  %v10579 = vunpack.c.l.b16 %v10502
  %v10580 = vunpack.c.h.b16 %v10502
  %v10581 = vunpack.c.l.b16 %v10503
  %v10582 = vunpack.c.h.b16 %v10503
  %v10583 = vunpack.c.l.b16 %v10504
  %v10584 = vunpack.c.h.b16 %v10504
  %v10585 = vunpack.c.l.b16 %v10505
  %v10586 = vunpack.c.h.b16 %v10505
  %v10587 = vunpack.c.l.b16 %v10506
  %v10588 = vunpack.c.h.b16 %v10506
  %v10589 = vunpack.c.l.b16 %v10507
  %v10590 = vunpack.c.h.b16 %v10507
  %v10591 = vunpack.c.l.b16 %v10508
  %v10592 = vunpack.c.h.b16 %v10508
  %v10593 = vunpack.c.l.b16 %v10509
  %v10594 = vunpack.c.h.b16 %v10509
  %v10595 = vunpack.c.l.b16 %v10510
  %v10596 = vunpack.c.h.b16 %v10510
  %v10597 = vunpack.c.l.b16 %v10511
  %v10598 = vunpack.c.h.b16 %v10511
  %v10599 = vunpack.c.l.b16 %v10512
  %v10600 = vunpack.c.h.b16 %v10512
  %v10601 = vunpack.c.l.b16 %v10513
  %v10602 = vunpack.c.h.b16 %v10513
  %v10603 = vunpack.c.l.b16 %v10514
  %v10604 = vunpack.c.h.b16 %v10514
  %v10605 = vunpack.c.l.b16 %v10515
  %v10606 = vunpack.c.h.b16 %v10515
  %v10607 = vunpack.c.l.b16 %v10516
  %v10608 = vunpack.c.h.b16 %v10516
  %v10609 = vunpack.c.l.b16 %v10517
  %v10610 = vunpack.c.h.b16 %v10517
  %v10611 = vunpack.c.l.b16 %v10518
  %v10612 = vunpack.c.h.b16 %v10518
  %v10613 = vunpack.c.l.b16 %v10519
  %v10614 = vunpack.c.h.b16 %v10519
  %v10615 = vunpack.c.l.b16 %v10520
  %v10616 = vunpack.c.h.b16 %v10520
  %v10617 = vpack.c.b16 %v10553, %v10553
  %v10618 = vpack.c.b16 %v10554, %v10554
  %v10619 = vpack.c.b16 %v10555, %v10555
  %v10620 = vpack.c.b16 %v10556, %v10556
  %v10621 = vpack.c.b16 %v10557, %v10557
  %v10622 = vpack.c.b16 %v10558, %v10558
  %v10623 = vpack.c.b16 %v10559, %v10559
  %v10624 = vpack.c.b16 %v10560, %v10560
  %v10625 = vpack.c.b16 %v10561, %v10561
  %v10626 = vpack.c.b16 %v10562, %v10562
  %v10627 = vpack.c.b16 %v10563, %v10563
  %v10628 = vpack.c.b16 %v10564, %v10564
  %v10629 = vpack.c.b16 %v10565, %v10565
  %v10630 = vpack.c.b16 %v10566, %v10566
  %v10631 = vpack.c.b16 %v10567, %v10567
  %v10632 = vpack.c.b16 %v10568, %v10568
  %v10633 = vpack.c.b16 %v10569, %v10569
  %v10634 = vpack.c.b16 %v10570, %v10570
  %v10635 = vpack.c.b16 %v10571, %v10571
  %v10636 = vpack.c.b16 %v10572, %v10572
  %v10637 = vpack.c.b16 %v10573, %v10573
  %v10638 = vpack.c.b16 %v10574, %v10574
  %v10639 = vpack.c.b16 %v10575, %v10575
  %v10640 = vpack.c.b16 %v10576, %v10576
  %v10641 = vpack.c.b16 %v10577, %v10577
  %v10642 = vpack.c.b16 %v10578, %v10578
  %v10643 = vpack.c.b16 %v10579, %v10579
  %v10644 = vpack.c.b16 %v10580, %v10580
  %v10645 = vpack.c.b16 %v10581, %v10581
  %v10646 = vpack.c.b16 %v10582, %v10582
  %v10647 = vpack.c.b16 %v10583, %v10583
  %v10648 = vpack.c.b16 %v10584, %v10584
  %v10649 = vpack.c.b16 %v10585, %v10585
  %v10650 = vpack.c.b16 %v10586, %v10586
  %v10651 = vpack.c.b16 %v10587, %v10587
  %v10652 = vpack.c.b16 %v10588, %v10588
  %v10653 = vpack.c.b16 %v10589, %v10589
  %v10654 = vpack.c.b16 %v10590, %v10590
  %v10655 = vpack.c.b16 %v10591, %v10591
  %v10656 = vpack.c.b16 %v10592, %v10592
  %v10657 = vpack.c.b16 %v10593, %v10593
  %v10658 = vpack.c.b16 %v10594, %v10594
  %v10659 = vpack.c.b16 %v10595, %v10595
  %v10660 = vpack.c.b16 %v10596, %v10596
  %v10661 = vpack.c.b16 %v10597, %v10597
  %v10662 = vpack.c.b16 %v10598, %v10598
  %v10663 = vpack.c.b16 %v10599, %v10599
  %v10664 = vpack.c.b16 %v10600, %v10600
  %v10665 = vpack.c.b16 %v10601, %v10601
  %v10666 = vpack.c.b16 %v10602, %v10602
  %v10667 = vpack.c.b16 %v10603, %v10603
  %v10668 = vpack.c.b16 %v10604, %v10604
  %v10669 = vpack.c.b16 %v10605, %v10605
  %v10670 = vpack.c.b16 %v10606, %v10606
  %v10671 = vpack.c.b16 %v10607, %v10607
  %v10672 = vpack.c.b16 %v10608, %v10608
  %v10673 = vpack.c.b16 %v10609, %v10609
  %v10674 = vpack.c.b16 %v10610, %v10610
  %v10675 = vpack.c.b16 %v10611, %v10611
  %v10676 = vpack.c.b16 %v10612, %v10612
  %v10677 = vpack.c.b16 %v10613, %v10613
  %v10678 = vpack.c.b16 %v10614, %v10614
  %v10679 = vpack.c.b16 %v10615, %v10615
  %v10680 = vpack.c.b16 %v10616, %v10616
  %10745 = vst.msk [vmem:[#allocation3 + $0xc] sm:$0xf] %vm1167, %v10617
  %10746 = vst.msk [vmem:[#allocation3 + $0x20] sm:$0xf] %vm1167, %v10618
  %10747 = vst.msk [vmem:[#allocation3 + $0x34] sm:$0xf] %vm1167, %v10619
  %10748 = vst.msk [vmem:[#allocation3 + $0x48] sm:$0xf] %vm1167, %v10620
  %10749 = vst.msk [vmem:[#allocation3 + $0x5c] sm:$0xf] %vm1167, %v10621
  %10750 = vst.msk [vmem:[#allocation3 + $0x70] sm:$0xf] %vm1167, %v10622
  %10751 = vst.msk [vmem:[#allocation3 + $0x84] sm:$0xf] %vm1167, %v10623
  %10752 = vst.msk [vmem:[#allocation3 + $0x98] sm:$0xf] %vm1167, %v10624
  %10753 = vst.msk [vmem:[#allocation3 + $0xac] sm:$0xf] %vm1167, %v10625
  %10754 = vst.msk [vmem:[#allocation3 + $0xc0] sm:$0xf] %vm1167, %v10626
  %10755 = vst.msk [vmem:[#allocation3 + $0xd4] sm:$0xf] %vm1167, %v10627
  %10756 = vst.msk [vmem:[#allocation3 + $0xe8] sm:$0xf] %vm1167, %v10628
  %10757 = vst.msk [vmem:[#allocation3 + $0xfc] sm:$0xf] %vm1167, %v10629
  %10758 = vst.msk [vmem:[#allocation3 + $0x110] sm:$0xf] %vm1167, %v10630
  %10759 = vst.msk [vmem:[#allocation3 + $0x124] sm:$0xf] %vm1167, %v10631
  %10760 = vst.msk [vmem:[#allocation3 + $0x138] sm:$0xf] %vm1167, %v10632
  %10761 = vst.msk [vmem:[#allocation3 + $0x14c] sm:$0xf] %vm1167, %v10633
  %10762 = vst.msk [vmem:[#allocation3 + $0x160] sm:$0xf] %vm1167, %v10634
  %10763 = vst.msk [vmem:[#allocation3 + $0x174] sm:$0xf] %vm1167, %v10635
  %10764 = vst.msk [vmem:[#allocation3 + $0x188] sm:$0xf] %vm1167, %v10636
  %10765 = vst.msk [vmem:[#allocation3 + $0x19c] sm:$0xf] %vm1167, %v10637
  %10766 = vst.msk [vmem:[#allocation3 + $0x1b0] sm:$0xf] %vm1167, %v10638
  %10767 = vst.msk [vmem:[#allocation3 + $0x1c4] sm:$0xf] %vm1167, %v10639
  %10768 = vst.msk [vmem:[#allocation3 + $0x1d8] sm:$0xf] %vm1167, %v10640
  %10769 = vst.msk [vmem:[#allocation3 + $0x1ec] sm:$0xf] %vm1167, %v10641
  %10770 = vst.msk [vmem:[#allocation3 + $0x200] sm:$0xf] %vm1167, %v10642
  %10771 = vst.msk [vmem:[#allocation3 + $0x214] sm:$0xf] %vm1167, %v10643
  %10772 = vst.msk [vmem:[#allocation3 + $0x228] sm:$0xf] %vm1167, %v10644
  %10773 = vst.msk [vmem:[#allocation3 + $0x23c] sm:$0xf] %vm1167, %v10645
  %10774 = vst.msk [vmem:[#allocation3 + $0x250] sm:$0xf] %vm1167, %v10646
  %10775 = vst.msk [vmem:[#allocation3 + $0x264] sm:$0xf] %vm1167, %v10647
  %10776 = vst.msk [vmem:[#allocation3 + $0x278] sm:$0xf] %vm1167, %v10648
  %10777 = vst.msk [vmem:[#allocation3 + $0x28c] sm:$0xf] %vm1167, %v10649
  %10778 = vst.msk [vmem:[#allocation3 + $0x2a0] sm:$0xf] %vm1167, %v10650
  %10779 = vst.msk [vmem:[#allocation3 + $0x2b4] sm:$0xf] %vm1167, %v10651
  %10780 = vst.msk [vmem:[#allocation3 + $0x2c8] sm:$0xf] %vm1167, %v10652
  %10781 = vst.msk [vmem:[#allocation3 + $0x2dc] sm:$0xf] %vm1167, %v10653
  %10782 = vst.msk [vmem:[#allocation3 + $0x2f0] sm:$0xf] %vm1167, %v10654
  %10783 = vst.msk [vmem:[#allocation3 + $0x304] sm:$0xf] %vm1167, %v10655
  %10784 = vst.msk [vmem:[#allocation3 + $0x318] sm:$0xf] %vm1167, %v10656
  %10785 = vst.msk [vmem:[#allocation3 + $0x32c] sm:$0xf] %vm1167, %v10657
  %10786 = vst.msk [vmem:[#allocation3 + $0x340] sm:$0xf] %vm1167, %v10658
  %10787 = vst.msk [vmem:[#allocation3 + $0x354] sm:$0xf] %vm1167, %v10659
  %10788 = vst.msk [vmem:[#allocation3 + $0x368] sm:$0xf] %vm1167, %v10660
  %10789 = vst.msk [vmem:[#allocation3 + $0x37c] sm:$0xf] %vm1167, %v10661
  %10790 = vst.msk [vmem:[#allocation3 + $0x390] sm:$0xf] %vm1167, %v10662
  %10791 = vst.msk [vmem:[#allocation3 + $0x3a4] sm:$0xf] %vm1167, %v10663
  %10792 = vst.msk [vmem:[#allocation3 + $0x3b8] sm:$0xf] %vm1167, %v10664
  %10793 = vst.msk [vmem:[#allocation3 + $0x3cc] sm:$0xf] %vm1167, %v10665
  %10794 = vst.msk [vmem:[#allocation3 + $0x3e0] sm:$0xf] %vm1167, %v10666
  %10795 = vst.msk [vmem:[#allocation3 + $0x3f4] sm:$0xf] %vm1167, %v10667
  %10796 = vst.msk [vmem:[#allocation3 + $0x408] sm:$0xf] %vm1167, %v10668
  %10797 = vst.msk [vmem:[#allocation3 + $0x41c] sm:$0xf] %vm1167, %v10669
  %10798 = vst.msk [vmem:[#allocation3 + $0x430] sm:$0xf] %vm1167, %v10670
  %10799 = vst.msk [vmem:[#allocation3 + $0x444] sm:$0xf] %vm1167, %v10671
  %10800 = vst.msk [vmem:[#allocation3 + $0x458] sm:$0xf] %vm1167, %v10672
  %10801 = vst.msk [vmem:[#allocation3 + $0x46c] sm:$0xf] %vm1167, %v10673
  %10802 = vst.msk [vmem:[#allocation3 + $0x480] sm:$0xf] %vm1167, %v10674
  %10803 = vst.msk [vmem:[#allocation3 + $0x494] sm:$0xf] %vm1167, %v10675
  %10804 = vst.msk [vmem:[#allocation3 + $0x4a8] sm:$0xf] %vm1167, %v10676
  %10805 = vst.msk [vmem:[#allocation3 + $0x4bc] sm:$0xf] %vm1167, %v10677
  %10806 = vst.msk [vmem:[#allocation3 + $0x4d0] sm:$0xf] %vm1167, %v10678
  %10807 = vst.msk [vmem:[#allocation3 + $0x4e4] sm:$0xf] %vm1167, %v10679
  %10808 = vst.msk [vmem:[#allocation3 + $0x4f8] sm:$0xf] %vm1167, %v10680
  %v10809 = vld [vmem:[%s3537 + $0x1] sm:$0xff]
  %v10810 = vld [vmem:[%s3537 + $0x9] sm:$0xff]
  %v10811 = vld [vmem:[%s3537 + $0x19] sm:$0xff]
  %v10812 = vld [vmem:[%s3537 + $0x21] sm:$0xff]
  %v10813 = vld [vmem:[%s3537 + $0x31] sm:$0xff]
  %v10814 = vld [vmem:[%s3537 + $0x39] sm:$0xff]
  %v10815 = vld [vmem:[%s3537 + $0x49] sm:$0xff]
  %v10816 = vld [vmem:[%s3537 + $0x51] sm:$0xff]
  %v10817 = vld [vmem:[%s3537 + $0x61] sm:$0xff]
  %v10818 = vld [vmem:[%s3537 + $0x69] sm:$0xff]
  %v10819 = vld [vmem:[%s3537 + $0x79] sm:$0xff]
  %v10820 = vld [vmem:[%s3537 + $0x81] sm:$0xff]
  %v10821 = vld [vmem:[%s3537 + $0x91] sm:$0xff]
  %v10822 = vld [vmem:[%s3537 + $0x99] sm:$0xff]
  %v10823 = vld [vmem:[%s3537 + $0xa9] sm:$0xff]
  %v10824 = vld [vmem:[%s3537 + $0xb1] sm:$0xff]
  %v10825 = vld [vmem:[%s3537 + $0xc1] sm:$0xff]
  %v10826 = vld [vmem:[%s3537 + $0xc9] sm:$0xff]
  %v10827 = vld [vmem:[%s3537 + $0xd9] sm:$0xff]
  %v10828 = vld [vmem:[%s3537 + $0xe1] sm:$0xff]
  %v10829 = vld [vmem:[%s3537 + $0xf1] sm:$0xff]
  %v10830 = vld [vmem:[%s3537 + $0xf9] sm:$0xff]
  %v10831 = vld [vmem:[%s3537 + $0x109] sm:$0xff]
  %v10832 = vld [vmem:[%s3537 + $0x111] sm:$0xff]
  %v10833 = vld [vmem:[%s3537 + $0x121] sm:$0xff]
  %v10834 = vld [vmem:[%s3537 + $0x129] sm:$0xff]
  %v10835 = vld [vmem:[%s3537 + $0x139] sm:$0xff]
  %v10836 = vld [vmem:[%s3537 + $0x141] sm:$0xff]
  %v10837 = vld [vmem:[%s3537 + $0x151] sm:$0xff]
  %v10838 = vld [vmem:[%s3537 + $0x159] sm:$0xff]
  %v10839 = vld [vmem:[%s3537 + $0x169] sm:$0xff]
  %v10840 = vld [vmem:[%s3537 + $0x171] sm:$0xff]
  %v10841 = vld [vmem:[%s3537 + $0x1b1] sm:$0xff]
  %v10842 = vld [vmem:[%s3537 + $0x1b9] sm:$0xff]
  %v10843 = vld [vmem:[%s3537 + $0x1c9] sm:$0xff]
  %v10844 = vld [vmem:[%s3537 + $0x1d1] sm:$0xff]
  %v10845 = vld [vmem:[%s3537 + $0x1e1] sm:$0xff]
  %v10846 = vld [vmem:[%s3537 + $0x1e9] sm:$0xff]
  %v10847 = vld [vmem:[%s3537 + $0x1f9] sm:$0xff]
  %v10848 = vld [vmem:[%s3537 + $0x201] sm:$0xff]
  %v10849 = vld [vmem:[%s3537 + $0x211] sm:$0xff]
  %v10850 = vld [vmem:[%s3537 + $0x219] sm:$0xff]
  %v10851 = vld [vmem:[%s3537 + $0x229] sm:$0xff]
  %v10852 = vld [vmem:[%s3537 + $0x231] sm:$0xff]
  %v10853 = vld [vmem:[%s3537 + $0x241] sm:$0xff]
  %v10854 = vld [vmem:[%s3537 + $0x249] sm:$0xff]
  %v10855 = vld [vmem:[%s3537 + $0x259] sm:$0xff]
  %v10856 = vld [vmem:[%s3537 + $0x261] sm:$0xff]
  %v10857 = vld [vmem:[%s3537 + $0x271] sm:$0xff]
  %v10858 = vld [vmem:[%s3537 + $0x279] sm:$0xff]
  %v10859 = vld [vmem:[%s3537 + $0x289] sm:$0xff]
  %v10860 = vld [vmem:[%s3537 + $0x291] sm:$0xff]
  %v10861 = vld [vmem:[%s3537 + $0x2a1] sm:$0xff]
  %v10862 = vld [vmem:[%s3537 + $0x2a9] sm:$0xff]
  %v10863 = vld [vmem:[%s3537 + $0x2b9] sm:$0xff]
  %v10864 = vld [vmem:[%s3537 + $0x2c1] sm:$0xff]
  %v10865 = vld [vmem:[%s3537 + $0x2d1] sm:$0xff]
  %v10866 = vld [vmem:[%s3537 + $0x2d9] sm:$0xff]
  %v10867 = vld [vmem:[%s3537 + $0x2e9] sm:$0xff]
  %v10868 = vld [vmem:[%s3537 + $0x2f1] sm:$0xff]
  %v10869 = vld [vmem:[%s3537 + $0x301] sm:$0xff]
  %v10870 = vld [vmem:[%s3537 + $0x309] sm:$0xff]
  %v10871 = vld [vmem:[%s3537 + $0x319] sm:$0xff]
  %v10872 = vld [vmem:[%s3537 + $0x321] sm:$0xff]
  %v10873 = vpack.c.bf16 %v10810, %v10809
  %v10874 = vpack.c.bf16 %v10812, %v10811
  %v10875 = vpack.c.bf16 %v10814, %v10813
  %v10876 = vpack.c.bf16 %v10816, %v10815
  %v10877 = vpack.c.bf16 %v10818, %v10817
  %v10878 = vpack.c.bf16 %v10820, %v10819
  %v10879 = vpack.c.bf16 %v10822, %v10821
  %v10880 = vpack.c.bf16 %v10824, %v10823
  %v10881 = vpack.c.bf16 %v10826, %v10825
  %v10882 = vpack.c.bf16 %v10828, %v10827
  %v10883 = vpack.c.bf16 %v10830, %v10829
  %v10884 = vpack.c.bf16 %v10832, %v10831
  %v10885 = vpack.c.bf16 %v10834, %v10833
  %v10886 = vpack.c.bf16 %v10836, %v10835
  %v10887 = vpack.c.bf16 %v10838, %v10837
  %v10888 = vpack.c.bf16 %v10840, %v10839
  %v10889 = vpack.c.bf16 %v10842, %v10841
  %v10890 = vpack.c.bf16 %v10844, %v10843
  %v10891 = vpack.c.bf16 %v10846, %v10845
  %v10892 = vpack.c.bf16 %v10848, %v10847
  %v10893 = vpack.c.bf16 %v10850, %v10849
  %v10894 = vpack.c.bf16 %v10852, %v10851
  %v10895 = vpack.c.bf16 %v10854, %v10853
  %v10896 = vpack.c.bf16 %v10856, %v10855
  %v10897 = vpack.c.bf16 %v10858, %v10857
  %v10898 = vpack.c.bf16 %v10860, %v10859
  %v10899 = vpack.c.bf16 %v10862, %v10861
  %v10900 = vpack.c.bf16 %v10864, %v10863
  %v10901 = vpack.c.bf16 %v10866, %v10865
  %v10902 = vpack.c.bf16 %v10868, %v10867
  %v10903 = vpack.c.bf16 %v10870, %v10869
  %v10904 = vpack.c.bf16 %v10872, %v10871
  %v10937 = vunpack.c.l.b16 %v10873
  %v10938 = vunpack.c.h.b16 %v10873
  %v10939 = vunpack.c.l.b16 %v10874
  %v10940 = vunpack.c.h.b16 %v10874
  %v10941 = vunpack.c.l.b16 %v10875
  %v10942 = vunpack.c.h.b16 %v10875
  %v10943 = vunpack.c.l.b16 %v10876
  %v10944 = vunpack.c.h.b16 %v10876
  %v10945 = vunpack.c.l.b16 %v10877
  %v10946 = vunpack.c.h.b16 %v10877
  %v10947 = vunpack.c.l.b16 %v10878
  %v10948 = vunpack.c.h.b16 %v10878
  %v10949 = vunpack.c.l.b16 %v10879
  %v10950 = vunpack.c.h.b16 %v10879
  %v10951 = vunpack.c.l.b16 %v10880
  %v10952 = vunpack.c.h.b16 %v10880
  %v10953 = vunpack.c.l.b16 %v10881
  %v10954 = vunpack.c.h.b16 %v10881
  %v10955 = vunpack.c.l.b16 %v10882
  %v10956 = vunpack.c.h.b16 %v10882
  %v10957 = vunpack.c.l.b16 %v10883
  %v10958 = vunpack.c.h.b16 %v10883
  %v10959 = vunpack.c.l.b16 %v10884
  %v10960 = vunpack.c.h.b16 %v10884
  %v10961 = vunpack.c.l.b16 %v10885
  %v10962 = vunpack.c.h.b16 %v10885
  %v10963 = vunpack.c.l.b16 %v10886
  %v10964 = vunpack.c.h.b16 %v10886
  %v10965 = vunpack.c.l.b16 %v10887
  %v10966 = vunpack.c.h.b16 %v10887
  %v10967 = vunpack.c.l.b16 %v10888
  %v10968 = vunpack.c.h.b16 %v10888
  %v10969 = vunpack.c.l.b16 %v10889
  %v10970 = vunpack.c.h.b16 %v10889
  %v10971 = vunpack.c.l.b16 %v10890
  %v10972 = vunpack.c.h.b16 %v10890
  %v10973 = vunpack.c.l.b16 %v10891
  %v10974 = vunpack.c.h.b16 %v10891
  %v10975 = vunpack.c.l.b16 %v10892
  %v10976 = vunpack.c.h.b16 %v10892
  %v10977 = vunpack.c.l.b16 %v10893
  %v10978 = vunpack.c.h.b16 %v10893
  %v10979 = vunpack.c.l.b16 %v10894
  %v10980 = vunpack.c.h.b16 %v10894
  %v10981 = vunpack.c.l.b16 %v10895
  %v10982 = vunpack.c.h.b16 %v10895
  %v10983 = vunpack.c.l.b16 %v10896
  %v10984 = vunpack.c.h.b16 %v10896
  %v10985 = vunpack.c.l.b16 %v10897
  %v10986 = vunpack.c.h.b16 %v10897
  %v10987 = vunpack.c.l.b16 %v10898
  %v10988 = vunpack.c.h.b16 %v10898
  %v10989 = vunpack.c.l.b16 %v10899
  %v10990 = vunpack.c.h.b16 %v10899
  %v10991 = vunpack.c.l.b16 %v10900
  %v10992 = vunpack.c.h.b16 %v10900
  %v10993 = vunpack.c.l.b16 %v10901
  %v10994 = vunpack.c.h.b16 %v10901
  %v10995 = vunpack.c.l.b16 %v10902
  %v10996 = vunpack.c.h.b16 %v10902
  %v10997 = vunpack.c.l.b16 %v10903
  %v10998 = vunpack.c.h.b16 %v10903
  %v10999 = vunpack.c.l.b16 %v10904
  %v11000 = vunpack.c.h.b16 %v10904
  %v11001 = vpack.c.b16 %v10937, %v10937
  %v11002 = vpack.c.b16 %v10938, %v10938
  %v11003 = vpack.c.b16 %v10939, %v10939
  %v11004 = vpack.c.b16 %v10940, %v10940
  %v11005 = vpack.c.b16 %v10941, %v10941
  %v11006 = vpack.c.b16 %v10942, %v10942
  %v11007 = vpack.c.b16 %v10943, %v10943
  %v11008 = vpack.c.b16 %v10944, %v10944
  %v11009 = vpack.c.b16 %v10945, %v10945
  %v11010 = vpack.c.b16 %v10946, %v10946
  %v11011 = vpack.c.b16 %v10947, %v10947
  %v11012 = vpack.c.b16 %v10948, %v10948
  %v11013 = vpack.c.b16 %v10949, %v10949
  %v11014 = vpack.c.b16 %v10950, %v10950
  %v11015 = vpack.c.b16 %v10951, %v10951
  %v11016 = vpack.c.b16 %v10952, %v10952
  %v11017 = vpack.c.b16 %v10953, %v10953
  %v11018 = vpack.c.b16 %v10954, %v10954
  %v11019 = vpack.c.b16 %v10955, %v10955
  %v11020 = vpack.c.b16 %v10956, %v10956
  %v11021 = vpack.c.b16 %v10957, %v10957
  %v11022 = vpack.c.b16 %v10958, %v10958
  %v11023 = vpack.c.b16 %v10959, %v10959
  %v11024 = vpack.c.b16 %v10960, %v10960
  %v11025 = vpack.c.b16 %v10961, %v10961
  %v11026 = vpack.c.b16 %v10962, %v10962
  %v11027 = vpack.c.b16 %v10963, %v10963
  %v11028 = vpack.c.b16 %v10964, %v10964
  %v11029 = vpack.c.b16 %v10965, %v10965
  %v11030 = vpack.c.b16 %v10966, %v10966
  %v11031 = vpack.c.b16 %v10967, %v10967
  %v11032 = vpack.c.b16 %v10968, %v10968
  %v11033 = vpack.c.b16 %v10969, %v10969
  %v11034 = vpack.c.b16 %v10970, %v10970
  %v11035 = vpack.c.b16 %v10971, %v10971
  %v11036 = vpack.c.b16 %v10972, %v10972
  %v11037 = vpack.c.b16 %v10973, %v10973
  %v11038 = vpack.c.b16 %v10974, %v10974
  %v11039 = vpack.c.b16 %v10975, %v10975
  %v11040 = vpack.c.b16 %v10976, %v10976
  %v11041 = vpack.c.b16 %v10977, %v10977
  %v11042 = vpack.c.b16 %v10978, %v10978
  %v11043 = vpack.c.b16 %v10979, %v10979
  %v11044 = vpack.c.b16 %v10980, %v10980
  %v11045 = vpack.c.b16 %v10981, %v10981
  %v11046 = vpack.c.b16 %v10982, %v10982
  %v11047 = vpack.c.b16 %v10983, %v10983
  %v11048 = vpack.c.b16 %v10984, %v10984
  %v11049 = vpack.c.b16 %v10985, %v10985
  %v11050 = vpack.c.b16 %v10986, %v10986
  %v11051 = vpack.c.b16 %v10987, %v10987
  %v11052 = vpack.c.b16 %v10988, %v10988
  %v11053 = vpack.c.b16 %v10989, %v10989
  %v11054 = vpack.c.b16 %v10990, %v10990
  %v11055 = vpack.c.b16 %v10991, %v10991
  %v11056 = vpack.c.b16 %v10992, %v10992
  %v11057 = vpack.c.b16 %v10993, %v10993
  %v11058 = vpack.c.b16 %v10994, %v10994
  %v11059 = vpack.c.b16 %v10995, %v10995
  %v11060 = vpack.c.b16 %v10996, %v10996
  %v11061 = vpack.c.b16 %v10997, %v10997
  %v11062 = vpack.c.b16 %v10998, %v10998
  %v11063 = vpack.c.b16 %v10999, %v10999
  %v11064 = vpack.c.b16 %v11000, %v11000
  %11065 = vrot.lane.b32.xlu0 %v11001, 64
  %v11066 = vpop.permute.xlu0 %11065
  %11067 = vrot.lane.b32.xlu0 %v11002, 64
  %v11068 = vpop.permute.xlu0 %11067
  %11069 = vrot.lane.b32.xlu0 %v11003, 64
  %v11070 = vpop.permute.xlu0 %11069
  %11071 = vrot.lane.b32.xlu0 %v11004, 64
  %v11072 = vpop.permute.xlu0 %11071
  %11073 = vrot.lane.b32.xlu0 %v11005, 64
  %v11074 = vpop.permute.xlu0 %11073
  %11075 = vrot.lane.b32.xlu0 %v11006, 64
  %v11076 = vpop.permute.xlu0 %11075
  %11077 = vrot.lane.b32.xlu0 %v11007, 64
  %v11078 = vpop.permute.xlu0 %11077
  %11079 = vrot.lane.b32.xlu0 %v11008, 64
  %v11080 = vpop.permute.xlu0 %11079
  %11081 = vrot.lane.b32.xlu0 %v11009, 64
  %v11082 = vpop.permute.xlu0 %11081
  %11083 = vrot.lane.b32.xlu0 %v11010, 64
  %v11084 = vpop.permute.xlu0 %11083
  %11085 = vrot.lane.b32.xlu0 %v11011, 64
  %v11086 = vpop.permute.xlu0 %11085
  %11087 = vrot.lane.b32.xlu0 %v11012, 64
  %v11088 = vpop.permute.xlu0 %11087
  %11089 = vrot.lane.b32.xlu0 %v11013, 64
  %v11090 = vpop.permute.xlu0 %11089
  %11091 = vrot.lane.b32.xlu0 %v11014, 64
  %v11092 = vpop.permute.xlu0 %11091
  %11093 = vrot.lane.b32.xlu0 %v11015, 64
  %v11094 = vpop.permute.xlu0 %11093
  %11095 = vrot.lane.b32.xlu0 %v11016, 64
  %v11096 = vpop.permute.xlu0 %11095
  %11097 = vrot.lane.b32.xlu0 %v11017, 64
  %v11098 = vpop.permute.xlu0 %11097
  %11099 = vrot.lane.b32.xlu0 %v11018, 64
  %v11100 = vpop.permute.xlu0 %11099
  %11101 = vrot.lane.b32.xlu0 %v11019, 64
  %v11102 = vpop.permute.xlu0 %11101
  %11103 = vrot.lane.b32.xlu0 %v11020, 64
  %v11104 = vpop.permute.xlu0 %11103
  %11105 = vrot.lane.b32.xlu0 %v11021, 64
  %v11106 = vpop.permute.xlu0 %11105
  %11107 = vrot.lane.b32.xlu0 %v11022, 64
  %v11108 = vpop.permute.xlu0 %11107
  %11109 = vrot.lane.b32.xlu0 %v11023, 64
  %v11110 = vpop.permute.xlu0 %11109
  %11111 = vrot.lane.b32.xlu0 %v11024, 64
  %v11112 = vpop.permute.xlu0 %11111
  %11113 = vrot.lane.b32.xlu0 %v11025, 64
  %v11114 = vpop.permute.xlu0 %11113
  %11115 = vrot.lane.b32.xlu0 %v11026, 64
  %v11116 = vpop.permute.xlu0 %11115
  %11117 = vrot.lane.b32.xlu0 %v11027, 64
  %v11118 = vpop.permute.xlu0 %11117
  %11119 = vrot.lane.b32.xlu0 %v11028, 64
  %v11120 = vpop.permute.xlu0 %11119
  %11121 = vrot.lane.b32.xlu0 %v11029, 64
  %v11122 = vpop.permute.xlu0 %11121
  %11123 = vrot.lane.b32.xlu0 %v11030, 64
  %v11124 = vpop.permute.xlu0 %11123
  %11125 = vrot.lane.b32.xlu0 %v11031, 64
  %v11126 = vpop.permute.xlu0 %11125
  %11127 = vrot.lane.b32.xlu0 %v11032, 64
  %v11128 = vpop.permute.xlu0 %11127
  %11129 = vrot.lane.b32.xlu0 %v11033, 64
  %v11130 = vpop.permute.xlu0 %11129
  %11131 = vrot.lane.b32.xlu0 %v11034, 64
  %v11132 = vpop.permute.xlu0 %11131
  %11133 = vrot.lane.b32.xlu0 %v11035, 64
  %v11134 = vpop.permute.xlu0 %11133
  %11135 = vrot.lane.b32.xlu0 %v11036, 64
  %v11136 = vpop.permute.xlu0 %11135
  %11137 = vrot.lane.b32.xlu0 %v11037, 64
  %v11138 = vpop.permute.xlu0 %11137
  %11139 = vrot.lane.b32.xlu0 %v11038, 64
  %v11140 = vpop.permute.xlu0 %11139
  %11141 = vrot.lane.b32.xlu0 %v11039, 64
  %v11142 = vpop.permute.xlu0 %11141
  %11143 = vrot.lane.b32.xlu0 %v11040, 64
  %v11144 = vpop.permute.xlu0 %11143
  %11145 = vrot.lane.b32.xlu0 %v11041, 64
  %v11146 = vpop.permute.xlu0 %11145
  %11147 = vrot.lane.b32.xlu0 %v11042, 64
  %v11148 = vpop.permute.xlu0 %11147
  %11149 = vrot.lane.b32.xlu0 %v11043, 64
  %v11150 = vpop.permute.xlu0 %11149
  %11151 = vrot.lane.b32.xlu0 %v11044, 64
  %v11152 = vpop.permute.xlu0 %11151
  %11153 = vrot.lane.b32.xlu0 %v11045, 64
  %v11154 = vpop.permute.xlu0 %11153
  %11155 = vrot.lane.b32.xlu0 %v11046, 64
  %v11156 = vpop.permute.xlu0 %11155
  %11157 = vrot.lane.b32.xlu0 %v11047, 64
  %v11158 = vpop.permute.xlu0 %11157
  %11159 = vrot.lane.b32.xlu0 %v11048, 64
  %v11160 = vpop.permute.xlu0 %11159
  %11161 = vrot.lane.b32.xlu0 %v11049, 64
  %v11162 = vpop.permute.xlu0 %11161
  %11163 = vrot.lane.b32.xlu0 %v11050, 64
  %v11164 = vpop.permute.xlu0 %11163
  %11165 = vrot.lane.b32.xlu0 %v11051, 64
  %v11166 = vpop.permute.xlu0 %11165
  %11167 = vrot.lane.b32.xlu0 %v11052, 64
  %v11168 = vpop.permute.xlu0 %11167
  %11169 = vrot.lane.b32.xlu0 %v11053, 64
  %v11170 = vpop.permute.xlu0 %11169
  %11171 = vrot.lane.b32.xlu0 %v11054, 64
  %v11172 = vpop.permute.xlu0 %11171
  %11173 = vrot.lane.b32.xlu0 %v11055, 64
  %v11174 = vpop.permute.xlu0 %11173
  %11175 = vrot.lane.b32.xlu0 %v11056, 64
  %v11176 = vpop.permute.xlu0 %11175
  %11177 = vrot.lane.b32.xlu0 %v11057, 64
  %v11178 = vpop.permute.xlu0 %11177
  %11179 = vrot.lane.b32.xlu0 %v11058, 64
  %v11180 = vpop.permute.xlu0 %11179
  %11181 = vrot.lane.b32.xlu0 %v11059, 64
  %v11182 = vpop.permute.xlu0 %11181
  %11183 = vrot.lane.b32.xlu0 %v11060, 64
  %v11184 = vpop.permute.xlu0 %11183
  %11185 = vrot.lane.b32.xlu0 %v11061, 64
  %v11186 = vpop.permute.xlu0 %11185
  %11187 = vrot.lane.b32.xlu0 %v11062, 64
  %v11188 = vpop.permute.xlu0 %11187
  %11189 = vrot.lane.b32.xlu0 %v11063, 64
  %v11190 = vpop.permute.xlu0 %11189
  %11191 = vrot.lane.b32.xlu0 %v11064, 64
  %v11192 = vpop.permute.xlu0 %11191
  %11257 = vst.msk [vmem:[#allocation3 + $0xc] sm:$0xf] %vm1680, %v11066
  %11258 = vst.msk [vmem:[#allocation3 + $0x20] sm:$0xf] %vm1680, %v11068
  %11259 = vst.msk [vmem:[#allocation3 + $0x34] sm:$0xf] %vm1680, %v11070
  %11260 = vst.msk [vmem:[#allocation3 + $0x48] sm:$0xf] %vm1680, %v11072
  %11261 = vst.msk [vmem:[#allocation3 + $0x5c] sm:$0xf] %vm1680, %v11074
  %11262 = vst.msk [vmem:[#allocation3 + $0x70] sm:$0xf] %vm1680, %v11076
  %11263 = vst.msk [vmem:[#allocation3 + $0x84] sm:$0xf] %vm1680, %v11078
  %11264 = vst.msk [vmem:[#allocation3 + $0x98] sm:$0xf] %vm1680, %v11080
  %11265 = vst.msk [vmem:[#allocation3 + $0xac] sm:$0xf] %vm1680, %v11082
  %11266 = vst.msk [vmem:[#allocation3 + $0xc0] sm:$0xf] %vm1680, %v11084
  %11267 = vst.msk [vmem:[#allocation3 + $0xd4] sm:$0xf] %vm1680, %v11086
  %11268 = vst.msk [vmem:[#allocation3 + $0xe8] sm:$0xf] %vm1680, %v11088
  %11269 = vst.msk [vmem:[#allocation3 + $0xfc] sm:$0xf] %vm1680, %v11090
  %11270 = vst.msk [vmem:[#allocation3 + $0x110] sm:$0xf] %vm1680, %v11092
  %11271 = vst.msk [vmem:[#allocation3 + $0x124] sm:$0xf] %vm1680, %v11094
  %11272 = vst.msk [vmem:[#allocation3 + $0x138] sm:$0xf] %vm1680, %v11096
  %11273 = vst.msk [vmem:[#allocation3 + $0x14c] sm:$0xf] %vm1680, %v11098
  %11274 = vst.msk [vmem:[#allocation3 + $0x160] sm:$0xf] %vm1680, %v11100
  %11275 = vst.msk [vmem:[#allocation3 + $0x174] sm:$0xf] %vm1680, %v11102
  %11276 = vst.msk [vmem:[#allocation3 + $0x188] sm:$0xf] %vm1680, %v11104
  %11277 = vst.msk [vmem:[#allocation3 + $0x19c] sm:$0xf] %vm1680, %v11106
  %11278 = vst.msk [vmem:[#allocation3 + $0x1b0] sm:$0xf] %vm1680, %v11108
  %11279 = vst.msk [vmem:[#allocation3 + $0x1c4] sm:$0xf] %vm1680, %v11110
  %11280 = vst.msk [vmem:[#allocation3 + $0x1d8] sm:$0xf] %vm1680, %v11112
  %11281 = vst.msk [vmem:[#allocation3 + $0x1ec] sm:$0xf] %vm1680, %v11114
  %11282 = vst.msk [vmem:[#allocation3 + $0x200] sm:$0xf] %vm1680, %v11116
  %11283 = vst.msk [vmem:[#allocation3 + $0x214] sm:$0xf] %vm1680, %v11118
  %11284 = vst.msk [vmem:[#allocation3 + $0x228] sm:$0xf] %vm1680, %v11120
  %11285 = vst.msk [vmem:[#allocation3 + $0x23c] sm:$0xf] %vm1680, %v11122
  %11286 = vst.msk [vmem:[#allocation3 + $0x250] sm:$0xf] %vm1680, %v11124
  %11287 = vst.msk [vmem:[#allocation3 + $0x264] sm:$0xf] %vm1680, %v11126
  %11288 = vst.msk [vmem:[#allocation3 + $0x278] sm:$0xf] %vm1680, %v11128
  %11289 = vst.msk [vmem:[#allocation3 + $0x28c] sm:$0xf] %vm1680, %v11130
  %11290 = vst.msk [vmem:[#allocation3 + $0x2a0] sm:$0xf] %vm1680, %v11132
  %11291 = vst.msk [vmem:[#allocation3 + $0x2b4] sm:$0xf] %vm1680, %v11134
  %11292 = vst.msk [vmem:[#allocation3 + $0x2c8] sm:$0xf] %vm1680, %v11136
  %11293 = vst.msk [vmem:[#allocation3 + $0x2dc] sm:$0xf] %vm1680, %v11138
  %11294 = vst.msk [vmem:[#allocation3 + $0x2f0] sm:$0xf] %vm1680, %v11140
  %11295 = vst.msk [vmem:[#allocation3 + $0x304] sm:$0xf] %vm1680, %v11142
  %11296 = vst.msk [vmem:[#allocation3 + $0x318] sm:$0xf] %vm1680, %v11144
  %11297 = vst.msk [vmem:[#allocation3 + $0x32c] sm:$0xf] %vm1680, %v11146
  %11298 = vst.msk [vmem:[#allocation3 + $0x340] sm:$0xf] %vm1680, %v11148
  %11299 = vst.msk [vmem:[#allocation3 + $0x354] sm:$0xf] %vm1680, %v11150
  %11300 = vst.msk [vmem:[#allocation3 + $0x368] sm:$0xf] %vm1680, %v11152
  %11301 = vst.msk [vmem:[#allocation3 + $0x37c] sm:$0xf] %vm1680, %v11154
  %11302 = vst.msk [vmem:[#allocation3 + $0x390] sm:$0xf] %vm1680, %v11156
  %11303 = vst.msk [vmem:[#allocation3 + $0x3a4] sm:$0xf] %vm1680, %v11158
  %11304 = vst.msk [vmem:[#allocation3 + $0x3b8] sm:$0xf] %vm1680, %v11160
  %11305 = vst.msk [vmem:[#allocation3 + $0x3cc] sm:$0xf] %vm1680, %v11162
  %11306 = vst.msk [vmem:[#allocation3 + $0x3e0] sm:$0xf] %vm1680, %v11164
  %11307 = vst.msk [vmem:[#allocation3 + $0x3f4] sm:$0xf] %vm1680, %v11166
  %11308 = vst.msk [vmem:[#allocation3 + $0x408] sm:$0xf] %vm1680, %v11168
  %11309 = vst.msk [vmem:[#allocation3 + $0x41c] sm:$0xf] %vm1680, %v11170
  %11310 = vst.msk [vmem:[#allocation3 + $0x430] sm:$0xf] %vm1680, %v11172
  %11311 = vst.msk [vmem:[#allocation3 + $0x444] sm:$0xf] %vm1680, %v11174
  %11312 = vst.msk [vmem:[#allocation3 + $0x458] sm:$0xf] %vm1680, %v11176
  %11313 = vst.msk [vmem:[#allocation3 + $0x46c] sm:$0xf] %vm1680, %v11178
  %11314 = vst.msk [vmem:[#allocation3 + $0x480] sm:$0xf] %vm1680, %v11180
  %11315 = vst.msk [vmem:[#allocation3 + $0x494] sm:$0xf] %vm1680, %v11182
  %11316 = vst.msk [vmem:[#allocation3 + $0x4a8] sm:$0xf] %vm1680, %v11184
  %11317 = vst.msk [vmem:[#allocation3 + $0x4bc] sm:$0xf] %vm1680, %v11186
  %11318 = vst.msk [vmem:[#allocation3 + $0x4d0] sm:$0xf] %vm1680, %v11188
  %11319 = vst.msk [vmem:[#allocation3 + $0x4e4] sm:$0xf] %vm1680, %v11190
  %11320 = vst.msk [vmem:[#allocation3 + $0x4f8] sm:$0xf] %vm1680, %v11192
  %v11321 = vld [vmem:[%s3537 + $0x2] sm:$0xff]
  %v11322 = vld [vmem:[%s3537 + $0xa] sm:$0xff]
  %v11323 = vld [vmem:[%s3537 + $0x1a] sm:$0xff]
  %v11324 = vld [vmem:[%s3537 + $0x22] sm:$0xff]
  %v11325 = vld [vmem:[%s3537 + $0x32] sm:$0xff]
  %v11326 = vld [vmem:[%s3537 + $0x3a] sm:$0xff]
  %v11327 = vld [vmem:[%s3537 + $0x4a] sm:$0xff]
  %v11328 = vld [vmem:[%s3537 + $0x52] sm:$0xff]
  %v11329 = vld [vmem:[%s3537 + $0x62] sm:$0xff]
  %v11330 = vld [vmem:[%s3537 + $0x6a] sm:$0xff]
  %v11331 = vld [vmem:[%s3537 + $0x7a] sm:$0xff]
  %v11332 = vld [vmem:[%s3537 + $0x82] sm:$0xff]
  %v11333 = vld [vmem:[%s3537 + $0x92] sm:$0xff]
  %v11334 = vld [vmem:[%s3537 + $0x9a] sm:$0xff]
  %v11335 = vld [vmem:[%s3537 + $0xaa] sm:$0xff]
  %v11336 = vld [vmem:[%s3537 + $0xb2] sm:$0xff]
  %v11337 = vld [vmem:[%s3537 + $0xc2] sm:$0xff]
  %v11338 = vld [vmem:[%s3537 + $0xca] sm:$0xff]
  %v11339 = vld [vmem:[%s3537 + $0xda] sm:$0xff]
  %v11340 = vld [vmem:[%s3537 + $0xe2] sm:$0xff]
  %v11341 = vld [vmem:[%s3537 + $0xf2] sm:$0xff]
  %v11342 = vld [vmem:[%s3537 + $0xfa] sm:$0xff]
  %v11343 = vld [vmem:[%s3537 + $0x10a] sm:$0xff]
  %v11344 = vld [vmem:[%s3537 + $0x112] sm:$0xff]
  %v11345 = vld [vmem:[%s3537 + $0x122] sm:$0xff]
  %v11346 = vld [vmem:[%s3537 + $0x12a] sm:$0xff]
  %v11347 = vld [vmem:[%s3537 + $0x13a] sm:$0xff]
  %v11348 = vld [vmem:[%s3537 + $0x142] sm:$0xff]
  %v11349 = vld [vmem:[%s3537 + $0x152] sm:$0xff]
  %v11350 = vld [vmem:[%s3537 + $0x15a] sm:$0xff]
  %v11351 = vld [vmem:[%s3537 + $0x16a] sm:$0xff]
  %v11352 = vld [vmem:[%s3537 + $0x172] sm:$0xff]
  %v11353 = vld [vmem:[%s3537 + $0x1b2] sm:$0xff]
  %v11354 = vld [vmem:[%s3537 + $0x1ba] sm:$0xff]
  %v11355 = vld [vmem:[%s3537 + $0x1ca] sm:$0xff]
  %v11356 = vld [vmem:[%s3537 + $0x1d2] sm:$0xff]
  %v11357 = vld [vmem:[%s3537 + $0x1e2] sm:$0xff]
  %v11358 = vld [vmem:[%s3537 + $0x1ea] sm:$0xff]
  %v11359 = vld [vmem:[%s3537 + $0x1fa] sm:$0xff]
  %v11360 = vld [vmem:[%s3537 + $0x202] sm:$0xff]
  %v11361 = vld [vmem:[%s3537 + $0x212] sm:$0xff]
  %v11362 = vld [vmem:[%s3537 + $0x21a] sm:$0xff]
  %v11363 = vld [vmem:[%s3537 + $0x22a] sm:$0xff]
  %v11364 = vld [vmem:[%s3537 + $0x232] sm:$0xff]
  %v11365 = vld [vmem:[%s3537 + $0x242] sm:$0xff]
  %v11366 = vld [vmem:[%s3537 + $0x24a] sm:$0xff]
  %v11367 = vld [vmem:[%s3537 + $0x25a] sm:$0xff]
  %v11368 = vld [vmem:[%s3537 + $0x262] sm:$0xff]
  %v11369 = vld [vmem:[%s3537 + $0x272] sm:$0xff]
  %v11370 = vld [vmem:[%s3537 + $0x27a] sm:$0xff]
  %v11371 = vld [vmem:[%s3537 + $0x28a] sm:$0xff]
  %v11372 = vld [vmem:[%s3537 + $0x292] sm:$0xff]
  %v11373 = vld [vmem:[%s3537 + $0x2a2] sm:$0xff]
  %v11374 = vld [vmem:[%s3537 + $0x2aa] sm:$0xff]
  %v11375 = vld [vmem:[%s3537 + $0x2ba] sm:$0xff]
  %v11376 = vld [vmem:[%s3537 + $0x2c2] sm:$0xff]
  %v11377 = vld [vmem:[%s3537 + $0x2d2] sm:$0xff]
  %v11378 = vld [vmem:[%s3537 + $0x2da] sm:$0xff]
  %v11379 = vld [vmem:[%s3537 + $0x2ea] sm:$0xff]
  %v11380 = vld [vmem:[%s3537 + $0x2f2] sm:$0xff]
  %v11381 = vld [vmem:[%s3537 + $0x302] sm:$0xff]
  %v11382 = vld [vmem:[%s3537 + $0x30a] sm:$0xff]
  %v11383 = vld [vmem:[%s3537 + $0x31a] sm:$0xff]
  %v11384 = vld [vmem:[%s3537 + $0x322] sm:$0xff]
  %v11385 = vpack.c.bf16 %v11322, %v11321
  %v11386 = vpack.c.bf16 %v11324, %v11323
  %v11387 = vpack.c.bf16 %v11326, %v11325
  %v11388 = vpack.c.bf16 %v11328, %v11327
  %v11389 = vpack.c.bf16 %v11330, %v11329
  %v11390 = vpack.c.bf16 %v11332, %v11331
  %v11391 = vpack.c.bf16 %v11334, %v11333
  %v11392 = vpack.c.bf16 %v11336, %v11335
  %v11393 = vpack.c.bf16 %v11338, %v11337
  %v11394 = vpack.c.bf16 %v11340, %v11339
  %v11395 = vpack.c.bf16 %v11342, %v11341
  %v11396 = vpack.c.bf16 %v11344, %v11343
  %v11397 = vpack.c.bf16 %v11346, %v11345
  %v11398 = vpack.c.bf16 %v11348, %v11347
  %v11399 = vpack.c.bf16 %v11350, %v11349
  %v11400 = vpack.c.bf16 %v11352, %v11351
  %v11401 = vpack.c.bf16 %v11354, %v11353
  %v11402 = vpack.c.bf16 %v11356, %v11355
  %v11403 = vpack.c.bf16 %v11358, %v11357
  %v11404 = vpack.c.bf16 %v11360, %v11359
  %v11405 = vpack.c.bf16 %v11362, %v11361
  %v11406 = vpack.c.bf16 %v11364, %v11363
  %v11407 = vpack.c.bf16 %v11366, %v11365
  %v11408 = vpack.c.bf16 %v11368, %v11367
  %v11409 = vpack.c.bf16 %v11370, %v11369
  %v11410 = vpack.c.bf16 %v11372, %v11371
  %v11411 = vpack.c.bf16 %v11374, %v11373
  %v11412 = vpack.c.bf16 %v11376, %v11375
  %v11413 = vpack.c.bf16 %v11378, %v11377
  %v11414 = vpack.c.bf16 %v11380, %v11379
  %v11415 = vpack.c.bf16 %v11382, %v11381
  %v11416 = vpack.c.bf16 %v11384, %v11383
  %v11449 = vunpack.c.l.b16 %v11385
  %v11450 = vunpack.c.h.b16 %v11385
  %v11451 = vunpack.c.l.b16 %v11386
  %v11452 = vunpack.c.h.b16 %v11386
  %v11453 = vunpack.c.l.b16 %v11387
  %v11454 = vunpack.c.h.b16 %v11387
  %v11455 = vunpack.c.l.b16 %v11388
  %v11456 = vunpack.c.h.b16 %v11388
  %v11457 = vunpack.c.l.b16 %v11389
  %v11458 = vunpack.c.h.b16 %v11389
  %v11459 = vunpack.c.l.b16 %v11390
  %v11460 = vunpack.c.h.b16 %v11390
  %v11461 = vunpack.c.l.b16 %v11391
  %v11462 = vunpack.c.h.b16 %v11391
  %v11463 = vunpack.c.l.b16 %v11392
  %v11464 = vunpack.c.h.b16 %v11392
  %v11465 = vunpack.c.l.b16 %v11393
  %v11466 = vunpack.c.h.b16 %v11393
  %v11467 = vunpack.c.l.b16 %v11394
  %v11468 = vunpack.c.h.b16 %v11394
  %v11469 = vunpack.c.l.b16 %v11395
  %v11470 = vunpack.c.h.b16 %v11395
  %v11471 = vunpack.c.l.b16 %v11396
  %v11472 = vunpack.c.h.b16 %v11396
  %v11473 = vunpack.c.l.b16 %v11397
  %v11474 = vunpack.c.h.b16 %v11397
  %v11475 = vunpack.c.l.b16 %v11398
  %v11476 = vunpack.c.h.b16 %v11398
  %v11477 = vunpack.c.l.b16 %v11399
  %v11478 = vunpack.c.h.b16 %v11399
  %v11479 = vunpack.c.l.b16 %v11400
  %v11480 = vunpack.c.h.b16 %v11400
  %v11481 = vunpack.c.l.b16 %v11401
  %v11482 = vunpack.c.h.b16 %v11401
  %v11483 = vunpack.c.l.b16 %v11402
  %v11484 = vunpack.c.h.b16 %v11402
  %v11485 = vunpack.c.l.b16 %v11403
  %v11486 = vunpack.c.h.b16 %v11403
  %v11487 = vunpack.c.l.b16 %v11404
  %v11488 = vunpack.c.h.b16 %v11404
  %v11489 = vunpack.c.l.b16 %v11405
  %v11490 = vunpack.c.h.b16 %v11405
  %v11491 = vunpack.c.l.b16 %v11406
  %v11492 = vunpack.c.h.b16 %v11406
  %v11493 = vunpack.c.l.b16 %v11407
  %v11494 = vunpack.c.h.b16 %v11407
  %v11495 = vunpack.c.l.b16 %v11408
  %v11496 = vunpack.c.h.b16 %v11408
  %v11497 = vunpack.c.l.b16 %v11409
  %v11498 = vunpack.c.h.b16 %v11409
  %v11499 = vunpack.c.l.b16 %v11410
  %v11500 = vunpack.c.h.b16 %v11410
  %v11501 = vunpack.c.l.b16 %v11411
  %v11502 = vunpack.c.h.b16 %v11411
  %v11503 = vunpack.c.l.b16 %v11412
  %v11504 = vunpack.c.h.b16 %v11412
  %v11505 = vunpack.c.l.b16 %v11413
  %v11506 = vunpack.c.h.b16 %v11413
  %v11507 = vunpack.c.l.b16 %v11414
  %v11508 = vunpack.c.h.b16 %v11414
  %v11509 = vunpack.c.l.b16 %v11415
  %v11510 = vunpack.c.h.b16 %v11415
  %v11511 = vunpack.c.l.b16 %v11416
  %v11512 = vunpack.c.h.b16 %v11416
  %v11513 = vpack.c.b16 %v11449, %v11449
  %v11514 = vpack.c.b16 %v11450, %v11450
  %v11515 = vpack.c.b16 %v11451, %v11451
  %v11516 = vpack.c.b16 %v11452, %v11452
  %v11517 = vpack.c.b16 %v11453, %v11453
  %v11518 = vpack.c.b16 %v11454, %v11454
  %v11519 = vpack.c.b16 %v11455, %v11455
  %v11520 = vpack.c.b16 %v11456, %v11456
  %v11521 = vpack.c.b16 %v11457, %v11457
  %v11522 = vpack.c.b16 %v11458, %v11458
  %v11523 = vpack.c.b16 %v11459, %v11459
  %v11524 = vpack.c.b16 %v11460, %v11460
  %v11525 = vpack.c.b16 %v11461, %v11461
  %v11526 = vpack.c.b16 %v11462, %v11462
  %v11527 = vpack.c.b16 %v11463, %v11463
  %v11528 = vpack.c.b16 %v11464, %v11464
  %v11529 = vpack.c.b16 %v11465, %v11465
  %v11530 = vpack.c.b16 %v11466, %v11466
  %v11531 = vpack.c.b16 %v11467, %v11467
  %v11532 = vpack.c.b16 %v11468, %v11468
  %v11533 = vpack.c.b16 %v11469, %v11469
  %v11534 = vpack.c.b16 %v11470, %v11470
  %v11535 = vpack.c.b16 %v11471, %v11471
  %v11536 = vpack.c.b16 %v11472, %v11472
  %v11537 = vpack.c.b16 %v11473, %v11473
  %v11538 = vpack.c.b16 %v11474, %v11474
  %v11539 = vpack.c.b16 %v11475, %v11475
  %v11540 = vpack.c.b16 %v11476, %v11476
  %v11541 = vpack.c.b16 %v11477, %v11477
  %v11542 = vpack.c.b16 %v11478, %v11478
  %v11543 = vpack.c.b16 %v11479, %v11479
  %v11544 = vpack.c.b16 %v11480, %v11480
  %v11545 = vpack.c.b16 %v11481, %v11481
  %v11546 = vpack.c.b16 %v11482, %v11482
  %v11547 = vpack.c.b16 %v11483, %v11483
  %v11548 = vpack.c.b16 %v11484, %v11484
  %v11549 = vpack.c.b16 %v11485, %v11485
  %v11550 = vpack.c.b16 %v11486, %v11486
  %v11551 = vpack.c.b16 %v11487, %v11487
  %v11552 = vpack.c.b16 %v11488, %v11488
  %v11553 = vpack.c.b16 %v11489, %v11489
  %v11554 = vpack.c.b16 %v11490, %v11490
  %v11555 = vpack.c.b16 %v11491, %v11491
  %v11556 = vpack.c.b16 %v11492, %v11492
  %v11557 = vpack.c.b16 %v11493, %v11493
  %v11558 = vpack.c.b16 %v11494, %v11494
  %v11559 = vpack.c.b16 %v11495, %v11495
  %v11560 = vpack.c.b16 %v11496, %v11496
  %v11561 = vpack.c.b16 %v11497, %v11497
  %v11562 = vpack.c.b16 %v11498, %v11498
  %v11563 = vpack.c.b16 %v11499, %v11499
  %v11564 = vpack.c.b16 %v11500, %v11500
  %v11565 = vpack.c.b16 %v11501, %v11501
  %v11566 = vpack.c.b16 %v11502, %v11502
  %v11567 = vpack.c.b16 %v11503, %v11503
  %v11568 = vpack.c.b16 %v11504, %v11504
  %v11569 = vpack.c.b16 %v11505, %v11505
  %v11570 = vpack.c.b16 %v11506, %v11506
  %v11571 = vpack.c.b16 %v11507, %v11507
  %v11572 = vpack.c.b16 %v11508, %v11508
  %v11573 = vpack.c.b16 %v11509, %v11509
  %v11574 = vpack.c.b16 %v11510, %v11510
  %v11575 = vpack.c.b16 %v11511, %v11511
  %v11576 = vpack.c.b16 %v11512, %v11512
  %11641 = vst.msk [vmem:[#allocation3 + $0x10] sm:$0xf] %vm1167, %v11513
  %11642 = vst.msk [vmem:[#allocation3 + $0x24] sm:$0xf] %vm1167, %v11514
  %11643 = vst.msk [vmem:[#allocation3 + $0x38] sm:$0xf] %vm1167, %v11515
  %11644 = vst.msk [vmem:[#allocation3 + $0x4c] sm:$0xf] %vm1167, %v11516
  %11645 = vst.msk [vmem:[#allocation3 + $0x60] sm:$0xf] %vm1167, %v11517
  %11646 = vst.msk [vmem:[#allocation3 + $0x74] sm:$0xf] %vm1167, %v11518
  %11647 = vst.msk [vmem:[#allocation3 + $0x88] sm:$0xf] %vm1167, %v11519
  %11648 = vst.msk [vmem:[#allocation3 + $0x9c] sm:$0xf] %vm1167, %v11520
  %11649 = vst.msk [vmem:[#allocation3 + $0xb0] sm:$0xf] %vm1167, %v11521
  %11650 = vst.msk [vmem:[#allocation3 + $0xc4] sm:$0xf] %vm1167, %v11522
  %11651 = vst.msk [vmem:[#allocation3 + $0xd8] sm:$0xf] %vm1167, %v11523
  %11652 = vst.msk [vmem:[#allocation3 + $0xec] sm:$0xf] %vm1167, %v11524
  %11653 = vst.msk [vmem:[#allocation3 + $0x100] sm:$0xf] %vm1167, %v11525
  %11654 = vst.msk [vmem:[#allocation3 + $0x114] sm:$0xf] %vm1167, %v11526
  %11655 = vst.msk [vmem:[#allocation3 + $0x128] sm:$0xf] %vm1167, %v11527
  %11656 = vst.msk [vmem:[#allocation3 + $0x13c] sm:$0xf] %vm1167, %v11528
  %11657 = vst.msk [vmem:[#allocation3 + $0x150] sm:$0xf] %vm1167, %v11529
  %11658 = vst.msk [vmem:[#allocation3 + $0x164] sm:$0xf] %vm1167, %v11530
  %11659 = vst.msk [vmem:[#allocation3 + $0x178] sm:$0xf] %vm1167, %v11531
  %11660 = vst.msk [vmem:[#allocation3 + $0x18c] sm:$0xf] %vm1167, %v11532
  %11661 = vst.msk [vmem:[#allocation3 + $0x1a0] sm:$0xf] %vm1167, %v11533
  %11662 = vst.msk [vmem:[#allocation3 + $0x1b4] sm:$0xf] %vm1167, %v11534
  %11663 = vst.msk [vmem:[#allocation3 + $0x1c8] sm:$0xf] %vm1167, %v11535
  %11664 = vst.msk [vmem:[#allocation3 + $0x1dc] sm:$0xf] %vm1167, %v11536
  %11665 = vst.msk [vmem:[#allocation3 + $0x1f0] sm:$0xf] %vm1167, %v11537
  %11666 = vst.msk [vmem:[#allocation3 + $0x204] sm:$0xf] %vm1167, %v11538
  %11667 = vst.msk [vmem:[#allocation3 + $0x218] sm:$0xf] %vm1167, %v11539
  %11668 = vst.msk [vmem:[#allocation3 + $0x22c] sm:$0xf] %vm1167, %v11540
  %11669 = vst.msk [vmem:[#allocation3 + $0x240] sm:$0xf] %vm1167, %v11541
  %11670 = vst.msk [vmem:[#allocation3 + $0x254] sm:$0xf] %vm1167, %v11542
  %11671 = vst.msk [vmem:[#allocation3 + $0x268] sm:$0xf] %vm1167, %v11543
  %11672 = vst.msk [vmem:[#allocation3 + $0x27c] sm:$0xf] %vm1167, %v11544
  %11673 = vst.msk [vmem:[#allocation3 + $0x290] sm:$0xf] %vm1167, %v11545
  %11674 = vst.msk [vmem:[#allocation3 + $0x2a4] sm:$0xf] %vm1167, %v11546
  %11675 = vst.msk [vmem:[#allocation3 + $0x2b8] sm:$0xf] %vm1167, %v11547
  %11676 = vst.msk [vmem:[#allocation3 + $0x2cc] sm:$0xf] %vm1167, %v11548
  %11677 = vst.msk [vmem:[#allocation3 + $0x2e0] sm:$0xf] %vm1167, %v11549
  %11678 = vst.msk [vmem:[#allocation3 + $0x2f4] sm:$0xf] %vm1167, %v11550
  %11679 = vst.msk [vmem:[#allocation3 + $0x308] sm:$0xf] %vm1167, %v11551
  %11680 = vst.msk [vmem:[#allocation3 + $0x31c] sm:$0xf] %vm1167, %v11552
  %11681 = vst.msk [vmem:[#allocation3 + $0x330] sm:$0xf] %vm1167, %v11553
  %11682 = vst.msk [vmem:[#allocation3 + $0x344] sm:$0xf] %vm1167, %v11554
  %11683 = vst.msk [vmem:[#allocation3 + $0x358] sm:$0xf] %vm1167, %v11555
  %11684 = vst.msk [vmem:[#allocation3 + $0x36c] sm:$0xf] %vm1167, %v11556
  %11685 = vst.msk [vmem:[#allocation3 + $0x380] sm:$0xf] %vm1167, %v11557
  %11686 = vst.msk [vmem:[#allocation3 + $0x394] sm:$0xf] %vm1167, %v11558
  %11687 = vst.msk [vmem:[#allocation3 + $0x3a8] sm:$0xf] %vm1167, %v11559
  %11688 = vst.msk [vmem:[#allocation3 + $0x3bc] sm:$0xf] %vm1167, %v11560
  %11689 = vst.msk [vmem:[#allocation3 + $0x3d0] sm:$0xf] %vm1167, %v11561
  %11690 = vst.msk [vmem:[#allocation3 + $0x3e4] sm:$0xf] %vm1167, %v11562
  %11691 = vst.msk [vmem:[#allocation3 + $0x3f8] sm:$0xf] %vm1167, %v11563
  %11692 = vst.msk [vmem:[#allocation3 + $0x40c] sm:$0xf] %vm1167, %v11564
  %11693 = vst.msk [vmem:[#allocation3 + $0x420] sm:$0xf] %vm1167, %v11565
  %11694 = vst.msk [vmem:[#allocation3 + $0x434] sm:$0xf] %vm1167, %v11566
  %11695 = vst.msk [vmem:[#allocation3 + $0x448] sm:$0xf] %vm1167, %v11567
  %11696 = vst.msk [vmem:[#allocation3 + $0x45c] sm:$0xf] %vm1167, %v11568
  %11697 = vst.msk [vmem:[#allocation3 + $0x470] sm:$0xf] %vm1167, %v11569
  %11698 = vst.msk [vmem:[#allocation3 + $0x484] sm:$0xf] %vm1167, %v11570
  %11699 = vst.msk [vmem:[#allocation3 + $0x498] sm:$0xf] %vm1167, %v11571
  %11700 = vst.msk [vmem:[#allocation3 + $0x4ac] sm:$0xf] %vm1167, %v11572
  %11701 = vst.msk [vmem:[#allocation3 + $0x4c0] sm:$0xf] %vm1167, %v11573
  %11702 = vst.msk [vmem:[#allocation3 + $0x4d4] sm:$0xf] %vm1167, %v11574
  %11703 = vst.msk [vmem:[#allocation3 + $0x4e8] sm:$0xf] %vm1167, %v11575
  %11704 = vst.msk [vmem:[#allocation3 + $0x4fc] sm:$0xf] %vm1167, %v11576
  %v11705 = vld [vmem:[%s7] sm:$0xff]
  %v11706 = vld [vmem:[%s7 + $0x8] sm:$0xff]
  %v11707 = vld [vmem:[%s7 + $0x10] sm:$0xf]
  %v11708 = vld [vmem:[#allocation3] sm:$0xff]
  %v11709 = vld [vmem:[#allocation3 + $0x8] sm:$0xff]
  %v11710 = vld [vmem:[#allocation3 + $0x10] sm:$0xf]
  %v11711 = vld [vmem:[#allocation3 + $0x14] sm:$0xff]
  %v11712 = vld [vmem:[#allocation3 + $0x1c] sm:$0xff]
  %v11713 = vld [vmem:[#allocation3 + $0x24] sm:$0xf]
  %v11714 = vld [vmem:[#allocation3 + $0x28] sm:$0xff]
  %v11715 = vld [vmem:[#allocation3 + $0x30] sm:$0xff]
  %v11716 = vld [vmem:[#allocation3 + $0x38] sm:$0xf]
  %v11717 = vld [vmem:[#allocation3 + $0x3c] sm:$0xff]
  %v11718 = vld [vmem:[#allocation3 + $0x44] sm:$0xff]
  %v11719 = vld [vmem:[#allocation3 + $0x4c] sm:$0xf]
  %v11720 = vld [vmem:[#allocation3 + $0x50] sm:$0xff]
  %v11721 = vld [vmem:[#allocation3 + $0x58] sm:$0xff]
  %v11722 = vld [vmem:[#allocation3 + $0x60] sm:$0xf]
  %v11723 = vld [vmem:[#allocation3 + $0x64] sm:$0xff]
  %v11724 = vld [vmem:[#allocation3 + $0x6c] sm:$0xff]
  %v11725 = vld [vmem:[#allocation3 + $0x74] sm:$0xf]
  %v11726 = vld [vmem:[#allocation3 + $0x78] sm:$0xff]
  %v11727 = vld [vmem:[#allocation3 + $0x80] sm:$0xff]
  %v11728 = vld [vmem:[#allocation3 + $0x88] sm:$0xf]
  %v11729 = vld [vmem:[#allocation3 + $0x8c] sm:$0xff]
  %v11730 = vld [vmem:[#allocation3 + $0x94] sm:$0xff]
  %v11731 = vld [vmem:[#allocation3 + $0x9c] sm:$0xf]
  %v11732 = vld [vmem:[#allocation3 + $0xa0] sm:$0xff]
  %v11733 = vld [vmem:[#allocation3 + $0xa8] sm:$0xff]
  %v11734 = vld [vmem:[#allocation3 + $0xb0] sm:$0xf]
  %v11735 = vld [vmem:[#allocation3 + $0xb4] sm:$0xff]
  %v11736 = vld [vmem:[#allocation3 + $0xbc] sm:$0xff]
  %v11737 = vld [vmem:[#allocation3 + $0xc4] sm:$0xf]
  %v11738 = vld [vmem:[#allocation3 + $0xc8] sm:$0xff]
  %v11739 = vld [vmem:[#allocation3 + $0xd0] sm:$0xff]
  %v11740 = vld [vmem:[#allocation3 + $0xd8] sm:$0xf]
  %v11741 = vld [vmem:[#allocation3 + $0xdc] sm:$0xff]
  %v11742 = vld [vmem:[#allocation3 + $0xe4] sm:$0xff]
  %v11743 = vld [vmem:[#allocation3 + $0xec] sm:$0xf]
  %v11744 = vld [vmem:[#allocation3 + $0xf0] sm:$0xff]
  %v11745 = vld [vmem:[#allocation3 + $0xf8] sm:$0xff]
  %v11746 = vld [vmem:[#allocation3 + $0x100] sm:$0xf]
  %v11747 = vld [vmem:[#allocation3 + $0x104] sm:$0xff]
  %v11748 = vld [vmem:[#allocation3 + $0x10c] sm:$0xff]
  %v11749 = vld [vmem:[#allocation3 + $0x114] sm:$0xf]
  %v11750 = vld [vmem:[#allocation3 + $0x118] sm:$0xff]
  %v11751 = vld [vmem:[#allocation3 + $0x120] sm:$0xff]
  %v11752 = vld [vmem:[#allocation3 + $0x128] sm:$0xf]
  %v11753 = vld [vmem:[#allocation3 + $0x12c] sm:$0xff]
  %v11754 = vld [vmem:[#allocation3 + $0x134] sm:$0xff]
  %v11755 = vld [vmem:[#allocation3 + $0x13c] sm:$0xf]
  %v11756 = vld [vmem:[#allocation3 + $0x140] sm:$0xff]
  %v11757 = vld [vmem:[#allocation3 + $0x148] sm:$0xff]
  %v11758 = vld [vmem:[#allocation3 + $0x150] sm:$0xf]
  %v11759 = vld [vmem:[#allocation3 + $0x154] sm:$0xff]
  %v11760 = vld [vmem:[#allocation3 + $0x15c] sm:$0xff]
  %v11761 = vld [vmem:[#allocation3 + $0x164] sm:$0xf]
  %v11762 = vld [vmem:[#allocation3 + $0x168] sm:$0xff]
  %v11763 = vld [vmem:[#allocation3 + $0x170] sm:$0xff]
  %v11764 = vld [vmem:[#allocation3 + $0x178] sm:$0xf]
  %v11765 = vld [vmem:[#allocation3 + $0x17c] sm:$0xff]
  %v11766 = vld [vmem:[#allocation3 + $0x184] sm:$0xff]
  %v11767 = vld [vmem:[#allocation3 + $0x18c] sm:$0xf]
  %v11768 = vld [vmem:[#allocation3 + $0x190] sm:$0xff]
  %v11769 = vld [vmem:[#allocation3 + $0x198] sm:$0xff]
  %v11770 = vld [vmem:[#allocation3 + $0x1a0] sm:$0xf]
  %v11771 = vld [vmem:[#allocation3 + $0x1a4] sm:$0xff]
  %v11772 = vld [vmem:[#allocation3 + $0x1ac] sm:$0xff]
  %v11773 = vld [vmem:[#allocation3 + $0x1b4] sm:$0xf]
  %v11774 = vld [vmem:[#allocation3 + $0x1b8] sm:$0xff]
  %v11775 = vld [vmem:[#allocation3 + $0x1c0] sm:$0xff]
  %v11776 = vld [vmem:[#allocation3 + $0x1c8] sm:$0xf]
  %v11777 = vld [vmem:[#allocation3 + $0x1cc] sm:$0xff]
  %v11778 = vld [vmem:[#allocation3 + $0x1d4] sm:$0xff]
  %v11779 = vld [vmem:[#allocation3 + $0x1dc] sm:$0xf]
  %v11780 = vld [vmem:[#allocation3 + $0x1e0] sm:$0xff]
  %v11781 = vld [vmem:[#allocation3 + $0x1e8] sm:$0xff]
  %v11782 = vld [vmem:[#allocation3 + $0x1f0] sm:$0xf]
  %v11783 = vld [vmem:[#allocation3 + $0x1f4] sm:$0xff]
  %v11784 = vld [vmem:[#allocation3 + $0x1fc] sm:$0xff]
  %v11785 = vld [vmem:[#allocation3 + $0x204] sm:$0xf]
  %v11786 = vld [vmem:[#allocation3 + $0x208] sm:$0xff]
  %v11787 = vld [vmem:[#allocation3 + $0x210] sm:$0xff]
  %v11788 = vld [vmem:[#allocation3 + $0x218] sm:$0xf]
  %v11789 = vld [vmem:[#allocation3 + $0x21c] sm:$0xff]
  %v11790 = vld [vmem:[#allocation3 + $0x224] sm:$0xff]
  %v11791 = vld [vmem:[#allocation3 + $0x22c] sm:$0xf]
  %v11792 = vld [vmem:[#allocation3 + $0x230] sm:$0xff]
  %v11793 = vld [vmem:[#allocation3 + $0x238] sm:$0xff]
  %v11794 = vld [vmem:[#allocation3 + $0x240] sm:$0xf]
  %v11795 = vld [vmem:[#allocation3 + $0x244] sm:$0xff]
  %v11796 = vld [vmem:[#allocation3 + $0x24c] sm:$0xff]
  %v11797 = vld [vmem:[#allocation3 + $0x254] sm:$0xf]
  %v11798 = vld [vmem:[#allocation3 + $0x258] sm:$0xff]
  %v11799 = vld [vmem:[#allocation3 + $0x260] sm:$0xff]
  %v11800 = vld [vmem:[#allocation3 + $0x268] sm:$0xf]
  %v11801 = vld [vmem:[#allocation3 + $0x26c] sm:$0xff]
  %v11802 = vld [vmem:[#allocation3 + $0x274] sm:$0xff]
  %v11803 = vld [vmem:[#allocation3 + $0x27c] sm:$0xf]
  %v11804 = vld [vmem:[#allocation3 + $0x280] sm:$0xff]
  %v11805 = vld [vmem:[#allocation3 + $0x288] sm:$0xff]
  %v11806 = vld [vmem:[#allocation3 + $0x290] sm:$0xf]
  %v11807 = vld [vmem:[#allocation3 + $0x294] sm:$0xff]
  %v11808 = vld [vmem:[#allocation3 + $0x29c] sm:$0xff]
  %v11809 = vld [vmem:[#allocation3 + $0x2a4] sm:$0xf]
  %v11810 = vld [vmem:[#allocation3 + $0x2a8] sm:$0xff]
  %v11811 = vld [vmem:[#allocation3 + $0x2b0] sm:$0xff]
  %v11812 = vld [vmem:[#allocation3 + $0x2b8] sm:$0xf]
  %v11813 = vld [vmem:[#allocation3 + $0x2bc] sm:$0xff]
  %v11814 = vld [vmem:[#allocation3 + $0x2c4] sm:$0xff]
  %v11815 = vld [vmem:[#allocation3 + $0x2cc] sm:$0xf]
  %v11816 = vld [vmem:[#allocation3 + $0x2d0] sm:$0xff]
  %v11817 = vld [vmem:[#allocation3 + $0x2d8] sm:$0xff]
  %v11818 = vld [vmem:[#allocation3 + $0x2e0] sm:$0xf]
  %v11819 = vld [vmem:[#allocation3 + $0x2e4] sm:$0xff]
  %v11820 = vld [vmem:[#allocation3 + $0x2ec] sm:$0xff]
  %v11821 = vld [vmem:[#allocation3 + $0x2f4] sm:$0xf]
  %v11822 = vld [vmem:[#allocation3 + $0x2f8] sm:$0xff]
  %v11823 = vld [vmem:[#allocation3 + $0x300] sm:$0xff]
  %v11824 = vld [vmem:[#allocation3 + $0x308] sm:$0xf]
  %v11825 = vld [vmem:[#allocation3 + $0x30c] sm:$0xff]
  %v11826 = vld [vmem:[#allocation3 + $0x314] sm:$0xff]
  %v11827 = vld [vmem:[#allocation3 + $0x31c] sm:$0xf]
  %v11828 = vld [vmem:[#allocation3 + $0x320] sm:$0xff]
  %v11829 = vld [vmem:[#allocation3 + $0x328] sm:$0xff]
  %v11830 = vld [vmem:[#allocation3 + $0x330] sm:$0xf]
  %v11831 = vld [vmem:[#allocation3 + $0x334] sm:$0xff]
  %v11832 = vld [vmem:[#allocation3 + $0x33c] sm:$0xff]
  %v11833 = vld [vmem:[#allocation3 + $0x344] sm:$0xf]
  %v11834 = vld [vmem:[#allocation3 + $0x348] sm:$0xff]
  %v11835 = vld [vmem:[#allocation3 + $0x350] sm:$0xff]
  %v11836 = vld [vmem:[#allocation3 + $0x358] sm:$0xf]
  %v11837 = vld [vmem:[#allocation3 + $0x35c] sm:$0xff]
  %v11838 = vld [vmem:[#allocation3 + $0x364] sm:$0xff]
  %v11839 = vld [vmem:[#allocation3 + $0x36c] sm:$0xf]
  %v11840 = vld [vmem:[#allocation3 + $0x370] sm:$0xff]
  %v11841 = vld [vmem:[#allocation3 + $0x378] sm:$0xff]
  %v11842 = vld [vmem:[#allocation3 + $0x380] sm:$0xf]
  %v11843 = vld [vmem:[#allocation3 + $0x384] sm:$0xff]
  %v11844 = vld [vmem:[#allocation3 + $0x38c] sm:$0xff]
  %v11845 = vld [vmem:[#allocation3 + $0x394] sm:$0xf]
  %v11846 = vld [vmem:[#allocation3 + $0x398] sm:$0xff]
  %v11847 = vld [vmem:[#allocation3 + $0x3a0] sm:$0xff]
  %v11848 = vld [vmem:[#allocation3 + $0x3a8] sm:$0xf]
  %v11849 = vld [vmem:[#allocation3 + $0x3ac] sm:$0xff]
  %v11850 = vld [vmem:[#allocation3 + $0x3b4] sm:$0xff]
  %v11851 = vld [vmem:[#allocation3 + $0x3bc] sm:$0xf]
  %v11852 = vld [vmem:[#allocation3 + $0x3c0] sm:$0xff]
  %v11853 = vld [vmem:[#allocation3 + $0x3c8] sm:$0xff]
  %v11854 = vld [vmem:[#allocation3 + $0x3d0] sm:$0xf]
  %v11855 = vld [vmem:[#allocation3 + $0x3d4] sm:$0xff]
  %v11856 = vld [vmem:[#allocation3 + $0x3dc] sm:$0xff]
  %v11857 = vld [vmem:[#allocation3 + $0x3e4] sm:$0xf]
  %v11858 = vld [vmem:[#allocation3 + $0x3e8] sm:$0xff]
  %v11859 = vld [vmem:[#allocation3 + $0x3f0] sm:$0xff]
  %v11860 = vld [vmem:[#allocation3 + $0x3f8] sm:$0xf]
  %v11861 = vld [vmem:[#allocation3 + $0x3fc] sm:$0xff]
  %v11862 = vld [vmem:[#allocation3 + $0x404] sm:$0xff]
  %v11863 = vld [vmem:[#allocation3 + $0x40c] sm:$0xf]
  %v11864 = vld [vmem:[#allocation3 + $0x410] sm:$0xff]
  %v11865 = vld [vmem:[#allocation3 + $0x418] sm:$0xff]
  %v11866 = vld [vmem:[#allocation3 + $0x420] sm:$0xf]
  %v11867 = vld [vmem:[#allocation3 + $0x424] sm:$0xff]
  %v11868 = vld [vmem:[#allocation3 + $0x42c] sm:$0xff]
  %v11869 = vld [vmem:[#allocation3 + $0x434] sm:$0xf]
  %v11870 = vld [vmem:[#allocation3 + $0x438] sm:$0xff]
  %v11871 = vld [vmem:[#allocation3 + $0x440] sm:$0xff]
  %v11872 = vld [vmem:[#allocation3 + $0x448] sm:$0xf]
  %v11873 = vld [vmem:[#allocation3 + $0x44c] sm:$0xff]
  %v11874 = vld [vmem:[#allocation3 + $0x454] sm:$0xff]
  %v11875 = vld [vmem:[#allocation3 + $0x45c] sm:$0xf]
  %v11876 = vld [vmem:[#allocation3 + $0x460] sm:$0xff]
  %v11877 = vld [vmem:[#allocation3 + $0x468] sm:$0xff]
  %v11878 = vld [vmem:[#allocation3 + $0x470] sm:$0xf]
  %v11879 = vld [vmem:[#allocation3 + $0x474] sm:$0xff]
  %v11880 = vld [vmem:[#allocation3 + $0x47c] sm:$0xff]
  %v11881 = vld [vmem:[#allocation3 + $0x484] sm:$0xf]
  %v11882 = vld [vmem:[#allocation3 + $0x488] sm:$0xff]
  %v11883 = vld [vmem:[#allocation3 + $0x490] sm:$0xff]
  %v11884 = vld [vmem:[#allocation3 + $0x498] sm:$0xf]
  %v11885 = vld [vmem:[#allocation3 + $0x49c] sm:$0xff]
  %v11886 = vld [vmem:[#allocation3 + $0x4a4] sm:$0xff]
  %v11887 = vld [vmem:[#allocation3 + $0x4ac] sm:$0xf]
  %v11888 = vld [vmem:[#allocation3 + $0x4b0] sm:$0xff]
  %v11889 = vld [vmem:[#allocation3 + $0x4b8] sm:$0xff]
  %v11890 = vld [vmem:[#allocation3 + $0x4c0] sm:$0xf]
  %v11891 = vld [vmem:[#allocation3 + $0x4c4] sm:$0xff]
  %v11892 = vld [vmem:[#allocation3 + $0x4cc] sm:$0xff]
  %v11893 = vld [vmem:[#allocation3 + $0x4d4] sm:$0xf]
  %v11894 = vld [vmem:[#allocation3 + $0x4d8] sm:$0xff]
  %v11895 = vld [vmem:[#allocation3 + $0x4e0] sm:$0xff]
  %v11896 = vld [vmem:[#allocation3 + $0x4e8] sm:$0xf]
  %v11897 = vld [vmem:[#allocation3 + $0x4ec] sm:$0xff]
  %v11898 = vld [vmem:[#allocation3 + $0x4f4] sm:$0xff]
  %v11899 = vld [vmem:[#allocation3 + $0x4fc] sm:$0xf]
  %v11900 = vld [vmem:[%s8] sm:$0xff]
  %11902 = vset.pattern.permute.xlu0 0
  %11903 = vperm.xlu0 %11902, %v11900
  %v11904 = vpop.permute.xlu0 %11903
  %v11909 = vunpack.c.l.b16 %v11705
  %v11910 = vunpack.c.h.b16 %v11705
  %v11911 = vunpack.c.l.b16 %v11706
  %v11912 = vunpack.c.h.b16 %v11706
  %v11913 = vunpack.c.l.b16 %v11707
  %v11914 = vpack.c.b16 %v11909, %v11909
  %v11915 = vpack.c.b16 %v11910, %v11910
  %v11916 = vpack.c.b16 %v11911, %v11911
  %v11917 = vpack.c.b16 %v11912, %v11912
  %v11918 = vpack.c.b16 %v11913, %v11913
  %v12115 = vunpack.c.l.b16 %v11708
  %v12116 = vunpack.c.h.b16 %v11708
  %v12117 = vunpack.c.l.b16 %v11709
  %v12118 = vunpack.c.h.b16 %v11709
  %v12119 = vunpack.c.l.b16 %v11710
  %v12120 = vunpack.c.l.b16 %v11711
  %v12121 = vunpack.c.h.b16 %v11711
  %v12122 = vunpack.c.l.b16 %v11712
  %v12123 = vunpack.c.h.b16 %v11712
  %v12124 = vunpack.c.l.b16 %v11713
  %v12125 = vunpack.c.l.b16 %v11714
  %v12126 = vunpack.c.h.b16 %v11714
  %v12127 = vunpack.c.l.b16 %v11715
  %v12128 = vunpack.c.h.b16 %v11715
  %v12129 = vunpack.c.l.b16 %v11716
  %v12130 = vunpack.c.l.b16 %v11717
  %v12131 = vunpack.c.h.b16 %v11717
  %v12132 = vunpack.c.l.b16 %v11718
  %v12133 = vunpack.c.h.b16 %v11718
  %v12134 = vunpack.c.l.b16 %v11719
  %v12135 = vunpack.c.l.b16 %v11720
  %v12136 = vunpack.c.h.b16 %v11720
  %v12137 = vunpack.c.l.b16 %v11721
  %v12138 = vunpack.c.h.b16 %v11721
  %v12139 = vunpack.c.l.b16 %v11722
  %v12140 = vunpack.c.l.b16 %v11723
  %v12141 = vunpack.c.h.b16 %v11723
  %v12142 = vunpack.c.l.b16 %v11724
  %v12143 = vunpack.c.h.b16 %v11724
  %v12144 = vunpack.c.l.b16 %v11725
  %v12145 = vunpack.c.l.b16 %v11726
  %v12146 = vunpack.c.h.b16 %v11726
  %v12147 = vunpack.c.l.b16 %v11727
  %v12148 = vunpack.c.h.b16 %v11727
  %v12149 = vunpack.c.l.b16 %v11728
  %v12150 = vunpack.c.l.b16 %v11729
  %v12151 = vunpack.c.h.b16 %v11729
  %v12152 = vunpack.c.l.b16 %v11730
  %v12153 = vunpack.c.h.b16 %v11730
  %v12154 = vunpack.c.l.b16 %v11731
  %v12155 = vunpack.c.l.b16 %v11732
  %v12156 = vunpack.c.h.b16 %v11732
  %v12157 = vunpack.c.l.b16 %v11733
  %v12158 = vunpack.c.h.b16 %v11733
  %v12159 = vunpack.c.l.b16 %v11734
  %v12160 = vunpack.c.l.b16 %v11735
  %v12161 = vunpack.c.h.b16 %v11735
  %v12162 = vunpack.c.l.b16 %v11736
  %v12163 = vunpack.c.h.b16 %v11736
  %v12164 = vunpack.c.l.b16 %v11737
  %v12165 = vunpack.c.l.b16 %v11738
  %v12166 = vunpack.c.h.b16 %v11738
  %v12167 = vunpack.c.l.b16 %v11739
  %v12168 = vunpack.c.h.b16 %v11739
  %v12169 = vunpack.c.l.b16 %v11740
  %v12170 = vunpack.c.l.b16 %v11741
  %v12171 = vunpack.c.h.b16 %v11741
  %v12172 = vunpack.c.l.b16 %v11742
  %v12173 = vunpack.c.h.b16 %v11742
  %v12174 = vunpack.c.l.b16 %v11743
  %v12175 = vunpack.c.l.b16 %v11744
  %v12176 = vunpack.c.h.b16 %v11744
  %v12177 = vunpack.c.l.b16 %v11745
  %v12178 = vunpack.c.h.b16 %v11745
  %v12179 = vunpack.c.l.b16 %v11746
  %v12180 = vunpack.c.l.b16 %v11747
  %v12181 = vunpack.c.h.b16 %v11747
  %v12182 = vunpack.c.l.b16 %v11748
  %v12183 = vunpack.c.h.b16 %v11748
  %v12184 = vunpack.c.l.b16 %v11749
  %v12185 = vunpack.c.l.b16 %v11750
  %v12186 = vunpack.c.h.b16 %v11750
  %v12187 = vunpack.c.l.b16 %v11751
  %v12188 = vunpack.c.h.b16 %v11751
  %v12189 = vunpack.c.l.b16 %v11752
  %v12190 = vunpack.c.l.b16 %v11753
  %v12191 = vunpack.c.h.b16 %v11753
  %v12192 = vunpack.c.l.b16 %v11754
  %v12193 = vunpack.c.h.b16 %v11754
  %v12194 = vunpack.c.l.b16 %v11755
  %v12195 = vunpack.c.l.b16 %v11756
  %v12196 = vunpack.c.h.b16 %v11756
  %v12197 = vunpack.c.l.b16 %v11757
  %v12198 = vunpack.c.h.b16 %v11757
  %v12199 = vunpack.c.l.b16 %v11758
  %v12200 = vunpack.c.l.b16 %v11759
  %v12201 = vunpack.c.h.b16 %v11759
  %v12202 = vunpack.c.l.b16 %v11760
  %v12203 = vunpack.c.h.b16 %v11760
  %v12204 = vunpack.c.l.b16 %v11761
  %v12205 = vunpack.c.l.b16 %v11762
  %v12206 = vunpack.c.h.b16 %v11762
  %v12207 = vunpack.c.l.b16 %v11763
  %v12208 = vunpack.c.h.b16 %v11763
  %v12209 = vunpack.c.l.b16 %v11764
  %v12210 = vunpack.c.l.b16 %v11765
  %v12211 = vunpack.c.h.b16 %v11765
  %v12212 = vunpack.c.l.b16 %v11766
  %v12213 = vunpack.c.h.b16 %v11766
  %v12214 = vunpack.c.l.b16 %v11767
  %v12215 = vunpack.c.l.b16 %v11768
  %v12216 = vunpack.c.h.b16 %v11768
  %v12217 = vunpack.c.l.b16 %v11769
  %v12218 = vunpack.c.h.b16 %v11769
  %v12219 = vunpack.c.l.b16 %v11770
  %v12220 = vunpack.c.l.b16 %v11771
  %v12221 = vunpack.c.h.b16 %v11771
  %v12222 = vunpack.c.l.b16 %v11772
  %v12223 = vunpack.c.h.b16 %v11772
  %v12224 = vunpack.c.l.b16 %v11773
  %v12225 = vunpack.c.l.b16 %v11774
  %v12226 = vunpack.c.h.b16 %v11774
  %v12227 = vunpack.c.l.b16 %v11775
  %v12228 = vunpack.c.h.b16 %v11775
  %v12229 = vunpack.c.l.b16 %v11776
  %v12230 = vunpack.c.l.b16 %v11777
  %v12231 = vunpack.c.h.b16 %v11777
  %v12232 = vunpack.c.l.b16 %v11778
  %v12233 = vunpack.c.h.b16 %v11778
  %v12234 = vunpack.c.l.b16 %v11779
  %v12235 = vunpack.c.l.b16 %v11780
  %v12236 = vunpack.c.h.b16 %v11780
  %v12237 = vunpack.c.l.b16 %v11781
  %v12238 = vunpack.c.h.b16 %v11781
  %v12239 = vunpack.c.l.b16 %v11782
  %v12240 = vunpack.c.l.b16 %v11783
  %v12241 = vunpack.c.h.b16 %v11783
  %v12242 = vunpack.c.l.b16 %v11784
  %v12243 = vunpack.c.h.b16 %v11784
  %v12244 = vunpack.c.l.b16 %v11785
  %v12245 = vunpack.c.l.b16 %v11786
  %v12246 = vunpack.c.h.b16 %v11786
  %v12247 = vunpack.c.l.b16 %v11787
  %v12248 = vunpack.c.h.b16 %v11787
  %v12249 = vunpack.c.l.b16 %v11788
  %v12250 = vunpack.c.l.b16 %v11789
  %v12251 = vunpack.c.h.b16 %v11789
  %v12252 = vunpack.c.l.b16 %v11790
  %v12253 = vunpack.c.h.b16 %v11790
  %v12254 = vunpack.c.l.b16 %v11791
  %v12255 = vunpack.c.l.b16 %v11792
  %v12256 = vunpack.c.h.b16 %v11792
  %v12257 = vunpack.c.l.b16 %v11793
  %v12258 = vunpack.c.h.b16 %v11793
  %v12259 = vunpack.c.l.b16 %v11794
  %v12260 = vunpack.c.l.b16 %v11795
  %v12261 = vunpack.c.h.b16 %v11795
  %v12262 = vunpack.c.l.b16 %v11796
  %v12263 = vunpack.c.h.b16 %v11796
  %v12264 = vunpack.c.l.b16 %v11797
  %v12265 = vunpack.c.l.b16 %v11798
  %v12266 = vunpack.c.h.b16 %v11798
  %v12267 = vunpack.c.l.b16 %v11799
  %v12268 = vunpack.c.h.b16 %v11799
  %v12269 = vunpack.c.l.b16 %v11800
  %v12270 = vunpack.c.l.b16 %v11801
  %v12271 = vunpack.c.h.b16 %v11801
  %v12272 = vunpack.c.l.b16 %v11802
  %v12273 = vunpack.c.h.b16 %v11802
  %v12274 = vunpack.c.l.b16 %v11803
  %v12275 = vunpack.c.l.b16 %v11804
  %v12276 = vunpack.c.h.b16 %v11804
  %v12277 = vunpack.c.l.b16 %v11805
  %v12278 = vunpack.c.h.b16 %v11805
  %v12279 = vunpack.c.l.b16 %v11806
  %v12280 = vunpack.c.l.b16 %v11807
  %v12281 = vunpack.c.h.b16 %v11807
  %v12282 = vunpack.c.l.b16 %v11808
  %v12283 = vunpack.c.h.b16 %v11808
  %v12284 = vunpack.c.l.b16 %v11809
  %v12285 = vunpack.c.l.b16 %v11810
  %v12286 = vunpack.c.h.b16 %v11810
  %v12287 = vunpack.c.l.b16 %v11811
  %v12288 = vunpack.c.h.b16 %v11811
  %v12289 = vunpack.c.l.b16 %v11812
  %v12290 = vunpack.c.l.b16 %v11813
  %v12291 = vunpack.c.h.b16 %v11813
  %v12292 = vunpack.c.l.b16 %v11814
  %v12293 = vunpack.c.h.b16 %v11814
  %v12294 = vunpack.c.l.b16 %v11815
  %v12295 = vunpack.c.l.b16 %v11816
  %v12296 = vunpack.c.h.b16 %v11816
  %v12297 = vunpack.c.l.b16 %v11817
  %v12298 = vunpack.c.h.b16 %v11817
  %v12299 = vunpack.c.l.b16 %v11818
  %v12300 = vunpack.c.l.b16 %v11819
  %v12301 = vunpack.c.h.b16 %v11819
  %v12302 = vunpack.c.l.b16 %v11820
  %v12303 = vunpack.c.h.b16 %v11820
  %v12304 = vunpack.c.l.b16 %v11821
  %v12305 = vunpack.c.l.b16 %v11822
  %v12306 = vunpack.c.h.b16 %v11822
  %v12307 = vunpack.c.l.b16 %v11823
  %v12308 = vunpack.c.h.b16 %v11823
  %v12309 = vunpack.c.l.b16 %v11824
  %v12310 = vunpack.c.l.b16 %v11825
  %v12311 = vunpack.c.h.b16 %v11825
  %v12312 = vunpack.c.l.b16 %v11826
  %v12313 = vunpack.c.h.b16 %v11826
  %v12314 = vunpack.c.l.b16 %v11827
  %v12315 = vunpack.c.l.b16 %v11828
  %v12316 = vunpack.c.h.b16 %v11828
  %v12317 = vunpack.c.l.b16 %v11829
  %v12318 = vunpack.c.h.b16 %v11829
  %v12319 = vunpack.c.l.b16 %v11830
  %v12320 = vunpack.c.l.b16 %v11831
  %v12321 = vunpack.c.h.b16 %v11831
  %v12322 = vunpack.c.l.b16 %v11832
  %v12323 = vunpack.c.h.b16 %v11832
  %v12324 = vunpack.c.l.b16 %v11833
  %v12325 = vunpack.c.l.b16 %v11834
  %v12326 = vunpack.c.h.b16 %v11834
  %v12327 = vunpack.c.l.b16 %v11835
  %v12328 = vunpack.c.h.b16 %v11835
  %v12329 = vunpack.c.l.b16 %v11836
  %v12330 = vunpack.c.l.b16 %v11837
  %v12331 = vunpack.c.h.b16 %v11837
  %v12332 = vunpack.c.l.b16 %v11838
  %v12333 = vunpack.c.h.b16 %v11838
  %v12334 = vunpack.c.l.b16 %v11839
  %v12335 = vunpack.c.l.b16 %v11840
  %v12336 = vunpack.c.h.b16 %v11840
  %v12337 = vunpack.c.l.b16 %v11841
  %v12338 = vunpack.c.h.b16 %v11841
  %v12339 = vunpack.c.l.b16 %v11842
  %v12340 = vunpack.c.l.b16 %v11843
  %v12341 = vunpack.c.h.b16 %v11843
  %v12342 = vunpack.c.l.b16 %v11844
  %v12343 = vunpack.c.h.b16 %v11844
  %v12344 = vunpack.c.l.b16 %v11845
  %v12345 = vunpack.c.l.b16 %v11846
  %v12346 = vunpack.c.h.b16 %v11846
  %v12347 = vunpack.c.l.b16 %v11847
  %v12348 = vunpack.c.h.b16 %v11847
  %v12349 = vunpack.c.l.b16 %v11848
  %v12350 = vunpack.c.l.b16 %v11849
  %v12351 = vunpack.c.h.b16 %v11849
  %v12352 = vunpack.c.l.b16 %v11850
  %v12353 = vunpack.c.h.b16 %v11850
  %v12354 = vunpack.c.l.b16 %v11851
  %v12355 = vunpack.c.l.b16 %v11852
  %v12356 = vunpack.c.h.b16 %v11852
  %v12357 = vunpack.c.l.b16 %v11853
  %v12358 = vunpack.c.h.b16 %v11853
  %v12359 = vunpack.c.l.b16 %v11854
  %v12360 = vunpack.c.l.b16 %v11855
  %v12361 = vunpack.c.h.b16 %v11855
  %v12362 = vunpack.c.l.b16 %v11856
  %v12363 = vunpack.c.h.b16 %v11856
  %v12364 = vunpack.c.l.b16 %v11857
  %v12365 = vunpack.c.l.b16 %v11858
  %v12366 = vunpack.c.h.b16 %v11858
  %v12367 = vunpack.c.l.b16 %v11859
  %v12368 = vunpack.c.h.b16 %v11859
  %v12369 = vunpack.c.l.b16 %v11860
  %v12370 = vunpack.c.l.b16 %v11861
  %v12371 = vunpack.c.h.b16 %v11861
  %v12372 = vunpack.c.l.b16 %v11862
  %v12373 = vunpack.c.h.b16 %v11862
  %v12374 = vunpack.c.l.b16 %v11863
  %v12375 = vunpack.c.l.b16 %v11864
  %v12376 = vunpack.c.h.b16 %v11864
  %v12377 = vunpack.c.l.b16 %v11865
  %v12378 = vunpack.c.h.b16 %v11865
  %v12379 = vunpack.c.l.b16 %v11866
  %v12380 = vunpack.c.l.b16 %v11867
  %v12381 = vunpack.c.h.b16 %v11867
  %v12382 = vunpack.c.l.b16 %v11868
  %v12383 = vunpack.c.h.b16 %v11868
  %v12384 = vunpack.c.l.b16 %v11869
  %v12385 = vunpack.c.l.b16 %v11870
  %v12386 = vunpack.c.h.b16 %v11870
  %v12387 = vunpack.c.l.b16 %v11871
  %v12388 = vunpack.c.h.b16 %v11871
  %v12389 = vunpack.c.l.b16 %v11872
  %v12390 = vunpack.c.l.b16 %v11873
  %v12391 = vunpack.c.h.b16 %v11873
  %v12392 = vunpack.c.l.b16 %v11874
  %v12393 = vunpack.c.h.b16 %v11874
  %v12394 = vunpack.c.l.b16 %v11875
  %v12395 = vunpack.c.l.b16 %v11876
  %v12396 = vunpack.c.h.b16 %v11876
  %v12397 = vunpack.c.l.b16 %v11877
  %v12398 = vunpack.c.h.b16 %v11877
  %v12399 = vunpack.c.l.b16 %v11878
  %v12400 = vunpack.c.l.b16 %v11879
  %v12401 = vunpack.c.h.b16 %v11879
  %v12402 = vunpack.c.l.b16 %v11880
  %v12403 = vunpack.c.h.b16 %v11880
  %v12404 = vunpack.c.l.b16 %v11881
  %v12405 = vunpack.c.l.b16 %v11882
  %v12406 = vunpack.c.h.b16 %v11882
  %v12407 = vunpack.c.l.b16 %v11883
  %v12408 = vunpack.c.h.b16 %v11883
  %v12409 = vunpack.c.l.b16 %v11884
  %v12410 = vunpack.c.l.b16 %v11885
  %v12411 = vunpack.c.h.b16 %v11885
  %v12412 = vunpack.c.l.b16 %v11886
  %v12413 = vunpack.c.h.b16 %v11886
  %v12414 = vunpack.c.l.b16 %v11887
  %v12415 = vunpack.c.l.b16 %v11888
  %v12416 = vunpack.c.h.b16 %v11888
  %v12417 = vunpack.c.l.b16 %v11889
  %v12418 = vunpack.c.h.b16 %v11889
  %v12419 = vunpack.c.l.b16 %v11890
  %v12420 = vunpack.c.l.b16 %v11891
  %v12421 = vunpack.c.h.b16 %v11891
  %v12422 = vunpack.c.l.b16 %v11892
  %v12423 = vunpack.c.h.b16 %v11892
  %v12424 = vunpack.c.l.b16 %v11893
  %v12425 = vunpack.c.l.b16 %v11894
  %v12426 = vunpack.c.h.b16 %v11894
  %v12427 = vunpack.c.l.b16 %v11895
  %v12428 = vunpack.c.h.b16 %v11895
  %v12429 = vunpack.c.l.b16 %v11896
  %v12430 = vunpack.c.l.b16 %v11897
  %v12431 = vunpack.c.h.b16 %v11897
  %v12432 = vunpack.c.l.b16 %v11898
  %v12433 = vunpack.c.h.b16 %v11898
  %v12434 = vunpack.c.l.b16 %v11899
  %v12435 = vpack.c.b16 %v12120, %v12115
  %v12436 = vpack.c.b16 %v12121, %v12116
  %v12437 = vpack.c.b16 %v12122, %v12117
  %v12438 = vpack.c.b16 %v12123, %v12118
  %v12439 = vpack.c.b16 %v12124, %v12119
  %v12440 = vpack.c.b16 %v12130, %v12125
  %v12441 = vpack.c.b16 %v12131, %v12126
  %v12442 = vpack.c.b16 %v12132, %v12127
  %v12443 = vpack.c.b16 %v12133, %v12128
  %v12444 = vpack.c.b16 %v12134, %v12129
  %v12445 = vpack.c.b16 %v12140, %v12135
  %v12446 = vpack.c.b16 %v12141, %v12136
  %v12447 = vpack.c.b16 %v12142, %v12137
  %v12448 = vpack.c.b16 %v12143, %v12138
  %v12449 = vpack.c.b16 %v12144, %v12139
  %v12450 = vpack.c.b16 %v12150, %v12145
  %v12451 = vpack.c.b16 %v12151, %v12146
  %v12452 = vpack.c.b16 %v12152, %v12147
  %v12453 = vpack.c.b16 %v12153, %v12148
  %v12454 = vpack.c.b16 %v12154, %v12149
  %v12455 = vpack.c.b16 %v12160, %v12155
  %v12456 = vpack.c.b16 %v12161, %v12156
  %v12457 = vpack.c.b16 %v12162, %v12157
  %v12458 = vpack.c.b16 %v12163, %v12158
  %v12459 = vpack.c.b16 %v12164, %v12159
  %v12460 = vpack.c.b16 %v12170, %v12165
  %v12461 = vpack.c.b16 %v12171, %v12166
  %v12462 = vpack.c.b16 %v12172, %v12167
  %v12463 = vpack.c.b16 %v12173, %v12168
  %v12464 = vpack.c.b16 %v12174, %v12169
  %v12465 = vpack.c.b16 %v12180, %v12175
  %v12466 = vpack.c.b16 %v12181, %v12176
  %v12467 = vpack.c.b16 %v12182, %v12177
  %v12468 = vpack.c.b16 %v12183, %v12178
  %v12469 = vpack.c.b16 %v12184, %v12179
  %v12470 = vpack.c.b16 %v12190, %v12185
  %v12471 = vpack.c.b16 %v12191, %v12186
  %v12472 = vpack.c.b16 %v12192, %v12187
  %v12473 = vpack.c.b16 %v12193, %v12188
  %v12474 = vpack.c.b16 %v12194, %v12189
  %v12475 = vpack.c.b16 %v12200, %v12195
  %v12476 = vpack.c.b16 %v12201, %v12196
  %v12477 = vpack.c.b16 %v12202, %v12197
  %v12478 = vpack.c.b16 %v12203, %v12198
  %v12479 = vpack.c.b16 %v12204, %v12199
  %v12480 = vpack.c.b16 %v12210, %v12205
  %v12481 = vpack.c.b16 %v12211, %v12206
  %v12482 = vpack.c.b16 %v12212, %v12207
  %v12483 = vpack.c.b16 %v12213, %v12208
  %v12484 = vpack.c.b16 %v12214, %v12209
  %v12485 = vpack.c.b16 %v12220, %v12215
  %v12486 = vpack.c.b16 %v12221, %v12216
  %v12487 = vpack.c.b16 %v12222, %v12217
  %v12488 = vpack.c.b16 %v12223, %v12218
  %v12489 = vpack.c.b16 %v12224, %v12219
  %v12490 = vpack.c.b16 %v12230, %v12225
  %v12491 = vpack.c.b16 %v12231, %v12226
  %v12492 = vpack.c.b16 %v12232, %v12227
  %v12493 = vpack.c.b16 %v12233, %v12228
  %v12494 = vpack.c.b16 %v12234, %v12229
  %v12495 = vpack.c.b16 %v12240, %v12235
  %v12496 = vpack.c.b16 %v12241, %v12236
  %v12497 = vpack.c.b16 %v12242, %v12237
  %v12498 = vpack.c.b16 %v12243, %v12238
  %v12499 = vpack.c.b16 %v12244, %v12239
  %v12500 = vpack.c.b16 %v12250, %v12245
  %v12501 = vpack.c.b16 %v12251, %v12246
  %v12502 = vpack.c.b16 %v12252, %v12247
  %v12503 = vpack.c.b16 %v12253, %v12248
  %v12504 = vpack.c.b16 %v12254, %v12249
  %v12505 = vpack.c.b16 %v12260, %v12255
  %v12506 = vpack.c.b16 %v12261, %v12256
  %v12507 = vpack.c.b16 %v12262, %v12257
  %v12508 = vpack.c.b16 %v12263, %v12258
  %v12509 = vpack.c.b16 %v12264, %v12259
  %v12510 = vpack.c.b16 %v12270, %v12265
  %v12511 = vpack.c.b16 %v12271, %v12266
  %v12512 = vpack.c.b16 %v12272, %v12267
  %v12513 = vpack.c.b16 %v12273, %v12268
  %v12514 = vpack.c.b16 %v12274, %v12269
  %v12515 = vpack.c.b16 %v12280, %v12275
  %v12516 = vpack.c.b16 %v12281, %v12276
  %v12517 = vpack.c.b16 %v12282, %v12277
  %v12518 = vpack.c.b16 %v12283, %v12278
  %v12519 = vpack.c.b16 %v12284, %v12279
  %v12520 = vpack.c.b16 %v12290, %v12285
  %v12521 = vpack.c.b16 %v12291, %v12286
  %v12522 = vpack.c.b16 %v12292, %v12287
  %v12523 = vpack.c.b16 %v12293, %v12288
  %v12524 = vpack.c.b16 %v12294, %v12289
  %v12525 = vpack.c.b16 %v12300, %v12295
  %v12526 = vpack.c.b16 %v12301, %v12296
  %v12527 = vpack.c.b16 %v12302, %v12297
  %v12528 = vpack.c.b16 %v12303, %v12298
  %v12529 = vpack.c.b16 %v12304, %v12299
  %v12530 = vpack.c.b16 %v12310, %v12305
  %v12531 = vpack.c.b16 %v12311, %v12306
  %v12532 = vpack.c.b16 %v12312, %v12307
  %v12533 = vpack.c.b16 %v12313, %v12308
  %v12534 = vpack.c.b16 %v12314, %v12309
  %v12535 = vpack.c.b16 %v12320, %v12315
  %v12536 = vpack.c.b16 %v12321, %v12316
  %v12537 = vpack.c.b16 %v12322, %v12317
  %v12538 = vpack.c.b16 %v12323, %v12318
  %v12539 = vpack.c.b16 %v12324, %v12319
  %v12540 = vpack.c.b16 %v12330, %v12325
  %v12541 = vpack.c.b16 %v12331, %v12326
  %v12542 = vpack.c.b16 %v12332, %v12327
  %v12543 = vpack.c.b16 %v12333, %v12328
  %v12544 = vpack.c.b16 %v12334, %v12329
  %v12545 = vpack.c.b16 %v12340, %v12335
  %v12546 = vpack.c.b16 %v12341, %v12336
  %v12547 = vpack.c.b16 %v12342, %v12337
  %v12548 = vpack.c.b16 %v12343, %v12338
  %v12549 = vpack.c.b16 %v12344, %v12339
  %v12550 = vpack.c.b16 %v12350, %v12345
  %v12551 = vpack.c.b16 %v12351, %v12346
  %v12552 = vpack.c.b16 %v12352, %v12347
  %v12553 = vpack.c.b16 %v12353, %v12348
  %v12554 = vpack.c.b16 %v12354, %v12349
  %v12555 = vpack.c.b16 %v12360, %v12355
  %v12556 = vpack.c.b16 %v12361, %v12356
  %v12557 = vpack.c.b16 %v12362, %v12357
  %v12558 = vpack.c.b16 %v12363, %v12358
  %v12559 = vpack.c.b16 %v12364, %v12359
  %v12560 = vpack.c.b16 %v12370, %v12365
  %v12561 = vpack.c.b16 %v12371, %v12366
  %v12562 = vpack.c.b16 %v12372, %v12367
  %v12563 = vpack.c.b16 %v12373, %v12368
  %v12564 = vpack.c.b16 %v12374, %v12369
  %v12565 = vpack.c.b16 %v12380, %v12375
  %v12566 = vpack.c.b16 %v12381, %v12376
  %v12567 = vpack.c.b16 %v12382, %v12377
  %v12568 = vpack.c.b16 %v12383, %v12378
  %v12569 = vpack.c.b16 %v12384, %v12379
  %v12570 = vpack.c.b16 %v12390, %v12385
  %v12571 = vpack.c.b16 %v12391, %v12386
  %v12572 = vpack.c.b16 %v12392, %v12387
  %v12573 = vpack.c.b16 %v12393, %v12388
  %v12574 = vpack.c.b16 %v12394, %v12389
  %v12575 = vpack.c.b16 %v12400, %v12395
  %v12576 = vpack.c.b16 %v12401, %v12396
  %v12577 = vpack.c.b16 %v12402, %v12397
  %v12578 = vpack.c.b16 %v12403, %v12398
  %v12579 = vpack.c.b16 %v12404, %v12399
  %v12580 = vpack.c.b16 %v12410, %v12405
  %v12581 = vpack.c.b16 %v12411, %v12406
  %v12582 = vpack.c.b16 %v12412, %v12407
  %v12583 = vpack.c.b16 %v12413, %v12408
  %v12584 = vpack.c.b16 %v12414, %v12409
  %v12585 = vpack.c.b16 %v12420, %v12415
  %v12586 = vpack.c.b16 %v12421, %v12416
  %v12587 = vpack.c.b16 %v12422, %v12417
  %v12588 = vpack.c.b16 %v12423, %v12418
  %v12589 = vpack.c.b16 %v12424, %v12419
  %v12590 = vpack.c.b16 %v12430, %v12425
  %v12591 = vpack.c.b16 %v12431, %v12426
  %v12592 = vpack.c.b16 %v12432, %v12427
  %v12593 = vpack.c.b16 %v12433, %v12428
  %v12594 = vpack.c.b16 %v12434, %v12429
  %v12724 = vsel %vm672, %v11918, 0
  %v12727 = vsel %vm672, %v12439, 0
  %v12730 = vsel %vm672, %v12444, 0
  %v12733 = vsel %vm672, %v12449, 0
  %v12736 = vsel %vm672, %v12454, 0
  %v12739 = vsel %vm672, %v12459, 0
  %v12742 = vsel %vm672, %v12464, 0
  %v12745 = vsel %vm672, %v12469, 0
  %v12748 = vsel %vm672, %v12474, 0
  %v12751 = vsel %vm672, %v12479, 0
  %v12754 = vsel %vm672, %v12484, 0
  %v12757 = vsel %vm672, %v12489, 0
  %v12760 = vsel %vm672, %v12494, 0
  %v12763 = vsel %vm672, %v12499, 0
  %v12766 = vsel %vm672, %v12504, 0
  %v12769 = vsel %vm672, %v12509, 0
  %v12772 = vsel %vm672, %v12514, 0
  %v12775 = vsel %vm672, %v12519, 0
  %v12778 = vsel %vm672, %v12524, 0
  %v12781 = vsel %vm672, %v12529, 0
  %v12784 = vsel %vm672, %v12534, 0
  %v12787 = vsel %vm672, %v12539, 0
  %v12790 = vsel %vm672, %v12544, 0
  %v12793 = vsel %vm672, %v12549, 0
  %v12796 = vsel %vm672, %v12554, 0
  %v12799 = vsel %vm672, %v12559, 0
  %v12802 = vsel %vm672, %v12564, 0
  %v12805 = vsel %vm672, %v12569, 0
  %v12808 = vsel %vm672, %v12574, 0
  %v12811 = vsel %vm672, %v12579, 0
  %v12814 = vsel %vm672, %v12584, 0
  %v12817 = vsel %vm672, %v12589, 0
  %v12820 = vsel %vm672, %v12594, 0
  %12822 = vmatprep.subr.bf16.mxu0 %v12471
  %12823 = vmatpush1.bf16.xpose.msra.mxu0 %v12470
  %12824 = vmatprep.subr.bf16.mxu0 %v12466
  %12825 = vmatpush1.bf16.xpose.msra.mxu0 %v12465
  %12826 = vmatprep.subr.bf16.mxu0 %v12461
  %12827 = vmatpush1.bf16.xpose.msra.mxu0 %v12460
  %12828 = vmatprep.subr.bf16.mxu0 %v12456
  %12829 = vmatpush1.bf16.xpose.msra.mxu0 %v12455
  %12830 = vmatprep.subr.bf16.mxu0 %v12451
  %12831 = vmatpush1.bf16.xpose.msra.mxu0 %v12450
  %12832 = vmatprep.subr.bf16.mxu0 %v12446
  %12833 = vmatpush1.bf16.xpose.msra.mxu0 %v12445
  %12834 = vmatprep.subr.bf16.mxu0 %v12441
  %12835 = vmatpush1.bf16.xpose.msra.mxu0 %v12440
  %12836 = vmatprep.subr.bf16.mxu0 %v12436
  %12837 = vmatpush1.bf16.xpose.msra.mxu0 %v12435
  %12838 = vmatprep.subr.bf16.mxu0 %v12511
  %12839 = vmatpush2.bf16.xpose.msra.mxu0 %v12510
  %12840 = vmatprep.subr.bf16.mxu0 %v12506
  %12841 = vmatpush2.bf16.xpose.msra.mxu0 %v12505
  %12842 = vmatprep.subr.bf16.mxu0 %v12501
  %12843 = vmatpush2.bf16.xpose.msra.mxu0 %v12500
  %12844 = vmatprep.subr.bf16.mxu0 %v12496
  %12845 = vmatpush2.bf16.xpose.msra.mxu0 %v12495
  %12846 = vmatprep.subr.bf16.mxu0 %v12491
  %12847 = vmatpush2.bf16.xpose.msra.mxu0 %v12490
  %12848 = vmatprep.subr.bf16.mxu0 %v12486
  %12849 = vmatpush2.bf16.xpose.msra.mxu0 %v12485
  %12850 = vmatprep.subr.bf16.mxu0 %v12481
  %12851 = vmatpush2.bf16.xpose.msra.mxu0 %v12480
  %12852 = vmatprep.subr.bf16.mxu0 %v12476
  %12853 = vmatpush2.bf16.xpose.msra.mxu0 %v12475
  %12854 = vmatprep.mubr.bf16.mxu0 %v11915
  %12855 = vmatmul.mubr.bf16.gmra.mxu0 %v11914
  %v12856 = vpop.f32.mrf.mxu0
  %v12857 = vadd.f32 %v11904, %v12856
  %v12858 = vpop.f32.mrf.mxu0
  %v12859 = vadd.f32 %v11904, %v12858
  %v12860 = vpop.f32.mrf.mxu0
  %v12861 = vpop.f32.mrf.mxu0
  %12862 = vdwg.mxu0
  %12863 = vmatprep.subr.bf16.mxu0 %v12473
  %12864 = vmatpush1.bf16.xpose.msra.mxu0 %v12472
  %12865 = vmatprep.subr.bf16.mxu0 %v12468
  %12866 = vmatpush1.bf16.xpose.msra.mxu0 %v12467
  %12867 = vmatprep.subr.bf16.mxu0 %v12463
  %12868 = vmatpush1.bf16.xpose.msra.mxu0 %v12462
  %12869 = vmatprep.subr.bf16.mxu0 %v12458
  %12870 = vmatpush1.bf16.xpose.msra.mxu0 %v12457
  %12871 = vmatprep.subr.bf16.mxu0 %v12453
  %12872 = vmatpush1.bf16.xpose.msra.mxu0 %v12452
  %12873 = vmatprep.subr.bf16.mxu0 %v12448
  %12874 = vmatpush1.bf16.xpose.msra.mxu0 %v12447
  %12875 = vmatprep.subr.bf16.mxu0 %v12443
  %12876 = vmatpush1.bf16.xpose.msra.mxu0 %v12442
  %12877 = vmatprep.subr.bf16.mxu0 %v12438
  %12878 = vmatpush1.bf16.xpose.msra.mxu0 %v12437
  %12879 = vmatprep.subr.bf16.mxu0 %v12513
  %12880 = vmatpush2.bf16.xpose.msra.mxu0 %v12512
  %12881 = vmatprep.subr.bf16.mxu0 %v12508
  %12882 = vmatpush2.bf16.xpose.msra.mxu0 %v12507
  %12883 = vmatprep.subr.bf16.mxu0 %v12503
  %12884 = vmatpush2.bf16.xpose.msra.mxu0 %v12502
  %12885 = vmatprep.subr.bf16.mxu0 %v12498
  %12886 = vmatpush2.bf16.xpose.msra.mxu0 %v12497
  %12887 = vmatprep.subr.bf16.mxu0 %v12493
  %12888 = vmatpush2.bf16.xpose.msra.mxu0 %v12492
  %12889 = vmatprep.subr.bf16.mxu0 %v12488
  %12890 = vmatpush2.bf16.xpose.msra.mxu0 %v12487
  %12891 = vmatprep.subr.bf16.mxu0 %v12483
  %12892 = vmatpush2.bf16.xpose.msra.mxu0 %v12482
  %12893 = vmatprep.subr.bf16.mxu0 %v12478
  %12894 = vmatpush2.bf16.xpose.msra.mxu0 %v12477
  %12895 = vmatprep.mubr.bf16.mxu0 %v11917
  %12896 = vmatmul.mubr.bf16.gmra.mxu0 %v11916
  %v12897 = vpop.f32.mrf.mxu0
  %v12898 = vadd.f32 %v12857, %v12897
  %v12899 = vpop.f32.mrf.mxu0
  %v12900 = vadd.f32 %v12859, %v12899
  %v12901 = vpop.f32.mrf.mxu0
  %v12902 = vpop.f32.mrf.mxu0
  %12903 = vdwg.mxu0
  %12904 = vmatprep.subr.bf16.mxu0 0
  %12905 = vmatpush1.bf16.xpose.msra.mxu0 %v12748
  %12906 = vmatprep.subr.bf16.mxu0 0
  %12907 = vmatpush1.bf16.xpose.msra.mxu0 %v12745
  %12908 = vmatprep.subr.bf16.mxu0 0
  %12909 = vmatpush1.bf16.xpose.msra.mxu0 %v12742
  %12910 = vmatprep.subr.bf16.mxu0 0
  %12911 = vmatpush1.bf16.xpose.msra.mxu0 %v12739
  %12912 = vmatprep.subr.bf16.mxu0 0
  %12913 = vmatpush1.bf16.xpose.msra.mxu0 %v12736
  %12914 = vmatprep.subr.bf16.mxu0 0
  %12915 = vmatpush1.bf16.xpose.msra.mxu0 %v12733
  %12916 = vmatprep.subr.bf16.mxu0 0
  %12917 = vmatpush1.bf16.xpose.msra.mxu0 %v12730
  %12918 = vmatprep.subr.bf16.mxu0 0
  %12919 = vmatpush1.bf16.xpose.msra.mxu0 %v12727
  %12920 = vmatprep.subr.bf16.mxu0 0
  %12921 = vmatpush2.bf16.xpose.msra.mxu0 %v12772
  %12922 = vmatprep.subr.bf16.mxu0 0
  %12923 = vmatpush2.bf16.xpose.msra.mxu0 %v12769
  %12924 = vmatprep.subr.bf16.mxu0 0
  %12925 = vmatpush2.bf16.xpose.msra.mxu0 %v12766
  %12926 = vmatprep.subr.bf16.mxu0 0
  %12927 = vmatpush2.bf16.xpose.msra.mxu0 %v12763
  %12928 = vmatprep.subr.bf16.mxu0 0
  %12929 = vmatpush2.bf16.xpose.msra.mxu0 %v12760
  %12930 = vmatprep.subr.bf16.mxu0 0
  %12931 = vmatpush2.bf16.xpose.msra.mxu0 %v12757
  %12932 = vmatprep.subr.bf16.mxu0 0
  %12933 = vmatpush2.bf16.xpose.msra.mxu0 %v12754
  %12934 = vmatprep.subr.bf16.mxu0 0
  %12935 = vmatpush2.bf16.xpose.msra.mxu0 %v12751
  %12936 = vmatprep.mubr.bf16.mxu0 0
  %12937 = vmatmul.mubr.bf16.gmra.mxu0 %v12724
  %v12938 = vpop.f32.mrf.mxu0
  %v12939 = vadd.f32 %v12898, %v12938
  %v12940 = vpop.f32.mrf.mxu0
  %v12941 = vadd.f32 %v12900, %v12940
  %v12942 = vpop.f32.mrf.mxu0
  %v12943 = vpop.f32.mrf.mxu0
  %12944 = vdwg.mxu0
  %12945 = vmatprep.subr.bf16.mxu0 %v12551
  %12946 = vmatpush1.bf16.xpose.msra.mxu0 %v12550
  %12947 = vmatprep.subr.bf16.mxu0 %v12546
  %12948 = vmatpush1.bf16.xpose.msra.mxu0 %v12545
  %12949 = vmatprep.subr.bf16.mxu0 %v12541
  %12950 = vmatpush1.bf16.xpose.msra.mxu0 %v12540
  %12951 = vmatprep.subr.bf16.mxu0 %v12536
  %12952 = vmatpush1.bf16.xpose.msra.mxu0 %v12535
  %12953 = vmatprep.subr.bf16.mxu0 %v12531
  %12954 = vmatpush1.bf16.xpose.msra.mxu0 %v12530
  %12955 = vmatprep.subr.bf16.mxu0 %v12526
  %12956 = vmatpush1.bf16.xpose.msra.mxu0 %v12525
  %12957 = vmatprep.subr.bf16.mxu0 %v12521
  %12958 = vmatpush1.bf16.xpose.msra.mxu0 %v12520
  %12959 = vmatprep.subr.bf16.mxu0 %v12516
  %12960 = vmatpush1.bf16.xpose.msra.mxu0 %v12515
  %12961 = vmatprep.subr.bf16.mxu0 %v12591
  %12962 = vmatpush2.bf16.xpose.msra.mxu0 %v12590
  %12963 = vmatprep.subr.bf16.mxu0 %v12586
  %12964 = vmatpush2.bf16.xpose.msra.mxu0 %v12585
  %12965 = vmatprep.subr.bf16.mxu0 %v12581
  %12966 = vmatpush2.bf16.xpose.msra.mxu0 %v12580
  %12967 = vmatprep.subr.bf16.mxu0 %v12576
  %12968 = vmatpush2.bf16.xpose.msra.mxu0 %v12575
  %12969 = vmatprep.subr.bf16.mxu0 %v12571
  %12970 = vmatpush2.bf16.xpose.msra.mxu0 %v12570
  %12971 = vmatprep.subr.bf16.mxu0 %v12566
  %12972 = vmatpush2.bf16.xpose.msra.mxu0 %v12565
  %12973 = vmatprep.subr.bf16.mxu0 %v12561
  %12974 = vmatpush2.bf16.xpose.msra.mxu0 %v12560
  %12975 = vmatprep.subr.bf16.mxu0 %v12556
  %12976 = vmatpush2.bf16.xpose.msra.mxu0 %v12555
  %12977 = vmatprep.mubr.bf16.mxu0 %v11915
  %12978 = vmatmul.mubr.bf16.gmra.mxu0 %v11914
  %v12979 = vpop.f32.mrf.mxu0
  %v12980 = vadd.f32 %v11904, %v12979
  %v12981 = vpop.f32.mrf.mxu0
  %v12982 = vadd.f32 %v11904, %v12981
  %v12983 = vpop.f32.mrf.mxu0
  %v12984 = vpop.f32.mrf.mxu0
  %12985 = vdwg.mxu0
  %12986 = vmatprep.subr.bf16.mxu0 %v12553
  %12987 = vmatpush1.bf16.xpose.msra.mxu0 %v12552
  %12988 = vmatprep.subr.bf16.mxu0 %v12548
  %12989 = vmatpush1.bf16.xpose.msra.mxu0 %v12547
  %12990 = vmatprep.subr.bf16.mxu0 %v12543
  %12991 = vmatpush1.bf16.xpose.msra.mxu0 %v12542
  %12992 = vmatprep.subr.bf16.mxu0 %v12538
  %12993 = vmatpush1.bf16.xpose.msra.mxu0 %v12537
  %12994 = vmatprep.subr.bf16.mxu0 %v12533
  %12995 = vmatpush1.bf16.xpose.msra.mxu0 %v12532
  %12996 = vmatprep.subr.bf16.mxu0 %v12528
  %12997 = vmatpush1.bf16.xpose.msra.mxu0 %v12527
  %12998 = vmatprep.subr.bf16.mxu0 %v12523
  %12999 = vmatpush1.bf16.xpose.msra.mxu0 %v12522
  %13000 = vmatprep.subr.bf16.mxu0 %v12518
  %13001 = vmatpush1.bf16.xpose.msra.mxu0 %v12517
  %13002 = vmatprep.subr.bf16.mxu0 %v12593
  %13003 = vmatpush2.bf16.xpose.msra.mxu0 %v12592
  %13004 = vmatprep.subr.bf16.mxu0 %v12588
  %13005 = vmatpush2.bf16.xpose.msra.mxu0 %v12587
  %13006 = vmatprep.subr.bf16.mxu0 %v12583
  %13007 = vmatpush2.bf16.xpose.msra.mxu0 %v12582
  %13008 = vmatprep.subr.bf16.mxu0 %v12578
  %13009 = vmatpush2.bf16.xpose.msra.mxu0 %v12577
  %13010 = vmatprep.subr.bf16.mxu0 %v12573
  %13011 = vmatpush2.bf16.xpose.msra.mxu0 %v12572
  %13012 = vmatprep.subr.bf16.mxu0 %v12568
  %13013 = vmatpush2.bf16.xpose.msra.mxu0 %v12567
  %13014 = vmatprep.subr.bf16.mxu0 %v12563
  %13015 = vmatpush2.bf16.xpose.msra.mxu0 %v12562
  %13016 = vmatprep.subr.bf16.mxu0 %v12558
  %13017 = vmatpush2.bf16.xpose.msra.mxu0 %v12557
  %13018 = vmatprep.mubr.bf16.mxu0 %v11917
  %13019 = vmatmul.mubr.bf16.gmra.mxu0 %v11916
  %v13020 = vpop.f32.mrf.mxu0
  %v13021 = vadd.f32 %v12980, %v13020
  %v13022 = vpop.f32.mrf.mxu0
  %v13023 = vadd.f32 %v12982, %v13022
  %v13024 = vpop.f32.mrf.mxu0
  %v13025 = vpop.f32.mrf.mxu0
  %13026 = vdwg.mxu0
  %13027 = vmatprep.subr.bf16.mxu0 0
  %13028 = vmatpush1.bf16.xpose.msra.mxu0 %v12796
  %13029 = vmatprep.subr.bf16.mxu0 0
  %13030 = vmatpush1.bf16.xpose.msra.mxu0 %v12793
  %13031 = vmatprep.subr.bf16.mxu0 0
  %13032 = vmatpush1.bf16.xpose.msra.mxu0 %v12790
  %13033 = vmatprep.subr.bf16.mxu0 0
  %13034 = vmatpush1.bf16.xpose.msra.mxu0 %v12787
  %13035 = vmatprep.subr.bf16.mxu0 0
  %13036 = vmatpush1.bf16.xpose.msra.mxu0 %v12784
  %13037 = vmatprep.subr.bf16.mxu0 0
  %13038 = vmatpush1.bf16.xpose.msra.mxu0 %v12781
  %13039 = vmatprep.subr.bf16.mxu0 0
  %13040 = vmatpush1.bf16.xpose.msra.mxu0 %v12778
  %13041 = vmatprep.subr.bf16.mxu0 0
  %13042 = vmatpush1.bf16.xpose.msra.mxu0 %v12775
  %13043 = vmatprep.subr.bf16.mxu0 0
  %13044 = vmatpush2.bf16.xpose.msra.mxu0 %v12820
  %13045 = vmatprep.subr.bf16.mxu0 0
  %13046 = vmatpush2.bf16.xpose.msra.mxu0 %v12817
  %13047 = vmatprep.subr.bf16.mxu0 0
  %13048 = vmatpush2.bf16.xpose.msra.mxu0 %v12814
  %13049 = vmatprep.subr.bf16.mxu0 0
  %13050 = vmatpush2.bf16.xpose.msra.mxu0 %v12811
  %13051 = vmatprep.subr.bf16.mxu0 0
  %13052 = vmatpush2.bf16.xpose.msra.mxu0 %v12808
  %13053 = vmatprep.subr.bf16.mxu0 0
  %13054 = vmatpush2.bf16.xpose.msra.mxu0 %v12805
  %13055 = vmatprep.subr.bf16.mxu0 0
  %13056 = vmatpush2.bf16.xpose.msra.mxu0 %v12802
  %13057 = vmatprep.subr.bf16.mxu0 0
  %13058 = vmatpush2.bf16.xpose.msra.mxu0 %v12799
  %13059 = vmatprep.mubr.bf16.mxu0 0
  %13060 = vmatmul.mubr.bf16.gmra.mxu0 %v12724
  %v13061 = vpop.f32.mrf.mxu0
  %v13062 = vadd.f32 %v13021, %v13061
  %v13063 = vpop.f32.mrf.mxu0
  %v13064 = vadd.f32 %v13023, %v13063
  %v13065 = vpop.f32.mrf.mxu0
  %v13066 = vpop.f32.mrf.mxu0
  %13067 = vdwg.mxu0
  %13068 = vst [vmem:[%s9] sm:$0xff] %v12939
  %13069 = vst [vmem:[%s9 + $0x8] sm:$0xff] %v12941
  %13070 = vst [vmem:[%s9 + $0x10] sm:$0xff] %v13062
  %13071 = vst [vmem:[%s9 + $0x18] sm:$0xff] %v13064
  // Predicated region
  $region38: #{cnn_forward.1} parent=0 // pred_check
    _
  $region39: #{cnn_forward.1} parent=0 // pred_check_branch
    %13073 = sbr.rel (0) target = $region41
  $region40: #{cnn_forward.1} parent=0 // pred_region
    _
  $region41: #{cnn_forward.1} parent=0 // pred_fallthru
    _
  // Predicated region
  $region42: #{cnn_forward.1} parent=0 // pred_check
    _
  $region43: #{cnn_forward.1} parent=0 // pred_check_branch
    %13075 = sbr.rel (0) target = $region45
  $region44: #{cnn_forward.1} parent=0 // pred_region
    _
  $region45: #{cnn_forward.1} parent=0 // pred_fallthru
    _

</llo_original>
